<compile_context>
chip_gen: v6e
topology: v6e:2x2x1
jax: 0.10.0
libtpu: 0.0.40
codegen_flags: <defaults>
</compile_context>

<pallas_src>
import numpy as np
import jax
import jax.numpy as jnp
from jax.experimental import pallas as pl
from jax.experimental.pallas import tpu as pltpu


# ----------------------------------------------------------------------------
# Host-side constant matrices (match torch semantics exactly).
# ----------------------------------------------------------------------------

def interp_matrix_linear(L_in, L_out):
    # F.interpolate(mode='linear', align_corners=False).  Rows sum to 1.
    M = np.zeros((L_out, L_in), dtype=np.float32)
    scale = L_in / L_out
    for i in range(L_out):
        src = max((i + 0.5) * scale - 0.5, 0.0)
        x0 = min(int(np.floor(src)), L_in - 1)
        x1 = min(x0 + 1, L_in - 1)
        w1 = src - x0
        M[i, x0] += 1.0 - w1
        M[i, x1] += w1
    return M


def adaptive_avgpool_matrix(L_in, L_out):
    # nn.AdaptiveAvgPool1d
    M = np.zeros((L_out, L_in), dtype=np.float32)
    for i in range(L_out):
        s = (i * L_in) // L_out
        e = -((-(i + 1) * L_in) // L_out)
        M[i, s:e] = 1.0 / (e - s)
    return M


def _build_constants(lengths, pool_scales):
    """Pool+upsample matrices, resize matrices, and conv shift matrices."""
    P = len(lengths)
    L_top = lengths[-1]

    # PPM: upsample(L) @ adaptive_pool(scale)  -> (L_top, L_top) per scale.
    ppm_m = np.stack([
        interp_matrix_linear(s, L_top) @ adaptive_avgpool_matrix(L_top, s)
        for s in pool_scales]).astype(np.float32)

    def resize_mat(L_in, L_target):
        # recompute_scale_factor=True semantics: L_out = floor(L_in * scale).
        L_out = int(np.floor(L_in * (L_target / L_in)))
        assert L_out == L_target, (L_in, L_target, L_out)
        return interp_matrix_linear(L_in, L_out)

    up_td = [resize_mat(lengths[i], lengths[i + 1]) for i in range(P - 1)]
    up_fp = [resize_mat(lengths[i], L_top) for i in range(P - 1)]

    # Shift matrices for Conv1d(k=3, padding=1): zero row == zero padding.
    s_prev = np.eye(L_top, k=-1, dtype=np.float32)   # (s_prev @ x)[t] = x[t-1]
    s_next = np.eye(L_top, k=1, dtype=np.float32)    # (s_next @ x)[t] = x[t+1]
    return ppm_m, up_td, up_fp, s_prev, s_next


# ----------------------------------------------------------------------------
# The fused Pallas kernel (one grid step == one batch element end-to-end).
# ----------------------------------------------------------------------------

def _make_fused_kernel(period_num, num_scales, lengths, d_model, pred_len):
    P = period_num
    S = num_scales
    L_top = lengths[-1]
    del d_model, pred_len  # shapes are carried by the refs

    def kernel(*refs):
        it = iter(refs)
        x_refs = [next(it) for _ in range(P)]                # (1, L_i, C) blocks
        lat_w, lat_b = next(it), next(it)                    # (P-1,C,C), (P-1,1,C)
        ppm_w, ppm_b, ppm_m = next(it), next(it), next(it)   # (S,C,C), (S,1,C), (S,L,L)
        bot_w, bot_b = next(it), next(it)                    # ((S+1)*3,C,C), (1,C)
        fpn_w, fpn_b = next(it), next(it)                    # ((P-1)*3,C,C), (P-1,1,C)
        fbot_w, fbot_b = next(it), next(it)                  # (P*3,C,C), (1,C)
        seg_w, seg_b = next(it), next(it)                    # (C,C), (1,C)
        out_w, out_b = next(it), next(it)                    # (L_top,C,pred), (1,pred)
        up_td = [next(it) for _ in range(P - 1)]             # (L_{i+1}, L_i)
        up_fp = [next(it) for _ in range(P - 1)]             # (L_top, L_i)
        s_prev_ref, s_next_ref = next(it), next(it)          # (L_top, L_top)
        o_ref = next(it)                                     # (1, 1, pred)

        dot = lambda a, b: jnp.dot(a, b, preferred_element_type=jnp.float32)
        s_prev = s_prev_ref[...]
        s_next = s_next_ref[...]

        def conv3(parts, w_ref, base, bias, L):
            # Conv1d(k=3, padding=1) over the (implicit) channel-concat of
            # `parts`:  y[t] = sum_p x_p[t-1]@w0 + x_p[t]@w1 + x_p[t+1]@w2 + b,
            # with the shifts (and zero padding) done via the shift matrices.
            sp = s_prev[:L, :L]
            sn = s_next[:L, :L]
            acc = None
            for p, xpart in enumerate(parts):
                xm = dot(sp, xpart)             # x[t-1], zero at t=0
                xq = dot(sn, xpart)             # x[t+1], zero at t=L-1
                t = (dot(xm, w_ref[base + 3 * p + 0])
                     + dot(xpart, w_ref[base + 3 * p + 1])
                     + dot(xq, w_ref[base + 3 * p + 2]))
                acc = t if acc is None else acc + t
            return acc + bias

        xs = [r[0] for r in x_refs]             # per-level (L_i, C)

        # lateral 1x1 convs on levels 0..P-2
        laterals = [dot(xs[i], lat_w[i]) + lat_b[i] for i in range(P - 1)]

        # PPM on the top level.  pool->conv1x1->upsample commutes to
        # conv1x1 first (matmul associativity); the conv bias commutes with
        # the upsample because the interp-matrix rows sum to 1 exactly.
        xt = xs[-1]
        psp_parts = [xt]
        for s in range(S):
            z = dot(xt, ppm_w[s])
            psp_parts.append(dot(ppm_m[s], z) + ppm_b[s])
        # bottleneck k=3 conv over the (implicit) (S+1)*C-channel concat
        laterals.append(conv3(psp_parts, bot_w, 0, bot_b[...], L_top))

        # top-down path: laterals[i+1] += linear-resize(laterals[i])
        for i in range(P - 1):
            laterals[i + 1] = laterals[i + 1] + dot(up_td[i][...], laterals[i])

        # FPN k=3 convs, then resize everything to the top level's length
        fpn_outs = []
        for i in range(P - 1):
            y = conv3([laterals[i]], fpn_w, 3 * i, fpn_b[i], lengths[i])
            fpn_outs.append(dot(up_fp[i][...], y))
        fpn_outs.append(laterals[-1])

        # fpn_bottleneck over the (implicit) P*C-channel concat
        feat = conv3(fpn_outs, fbot_w, 0, fbot_b[...], L_top)

        # dropout(0.1) is identity at inference; conv_seg (1x1 conv)
        seasonal = dot(feat, seg_w[...]) + seg_b[...]

        # Flatten(start_dim=-2) + Linear(L_top*C -> pred_len), fused as a
        # sum over rows of (1,C) @ (C,pred_len) weight slices.
        acc = out_b[...]
        for l in range(L_top):
            acc = acc + dot(seasonal[l:l + 1, :], out_w[l])
        o_ref[0] = acc

    return kernel


# ----------------------------------------------------------------------------
# Wrapper: builds constants, specs and the single pallas_call.
# ----------------------------------------------------------------------------

def decode_head_patch_forward(inputs, params, pool_scales, token_num_max, pred_len):
    P = len(inputs)
    B, _, C = inputs[0].shape
    lengths = tuple(int(x.shape[1]) for x in inputs)
    L_top = lengths[-1]
    S = len(pool_scales)
    assert L_top == token_num_max, "Flatten assumes last-level length == token_num_max"

    ppm_m, up_td, up_fp, s_prev, s_next = _build_constants(lengths, pool_scales)

    operands = (list(inputs)
                + [params["lat_w"], params["lat_b"],
                   params["ppm_w"], params["ppm_b"], jnp.asarray(ppm_m),
                   params["bot_w"], params["bot_b"],
                   params["fpn_w"], params["fpn_b"],
                   params["fbot_w"], params["fbot_b"],
                   params["seg_w"], params["seg_b"],
                   params["out_w"], params["out_b"]]
                + [jnp.asarray(u) for u in up_td]
                + [jnp.asarray(u) for u in up_fp]
                + [jnp.asarray(s_prev), jnp.asarray(s_next)])

    def batch_spec(x):
        return pl.BlockSpec((1,) + tuple(x.shape[1:]),
                            lambda b, n=x.ndim: (b,) + (0,) * (n - 1))

    def const_spec(x):
        return pl.BlockSpec(tuple(x.shape), lambda b, n=x.ndim: (0,) * n)

    in_specs = ([batch_spec(x) for x in inputs]
                + [const_spec(a) for a in operands[P:]])

    kernel = _make_fused_kernel(P, S, lengths, C, pred_len)

    out = pl.pallas_call(
        kernel,
        out_shape=jax.ShapeDtypeStruct((B, 1, pred_len), jnp.float32),
        grid=(B,),
        in_specs=in_specs,
        out_specs=pl.BlockSpec((1, 1, pred_len), lambda b: (b, 0, 0)),
        compiler_params=pltpu.CompilerParams(
            dimension_semantics=("parallel",)),
    )(*operands)
    return out.reshape(B, pred_len)


# ----------------------------------------------------------------------------
# Parameters (deterministic synthetic init; conv weights stored pre-transposed
# and flattened as [part*3 + tap, Cin_slice, Cout], Linear as [L, C, pred]).
# ----------------------------------------------------------------------------

def init_params(key, d_model, token_num_max, pred_len, pool_scales, period_num):
    C = d_model
    P = period_num
    S = len(pool_scales)
    keys = iter(jax.random.split(key, 16))

    def w(shape):
        return (0.02 * jax.random.normal(next(keys), shape)).astype(jnp.float32)

    p = {}
    p["lat_w"] = w((P - 1, C, C))
    p["lat_b"] = w((P - 1, 1, C))
    p["ppm_w"] = w((S, C, C))
    p["ppm_b"] = w((S, 1, C))
    p["bot_w"] = w(((S + 1) * 3, C, C))      # bottleneck: part order [x_top, ppm_0..S-1]
    p["bot_b"] = w((1, C))
    p["fpn_w"] = w(((P - 1) * 3, C, C))
    p["fpn_b"] = w((P - 1, 1, C))
    p["fbot_w"] = w((P * 3, C, C))           # fpn_bottleneck: part order [level 0..P-1]
    p["fbot_b"] = w((1, C))
    p["seg_w"] = w((C, C))
    p["seg_b"] = w((1, C))
    p["out_w"] = w((token_num_max, C, pred_len))   # torch Linear weight.T reshaped
    p["out_b"] = w((1, pred_len))
    return p


# ----------------------------------------------------------------------------
# Pure-JAX reference (same math, no Pallas) used as a correctness check.
# ----------------------------------------------------------------------------

def _reference_forward(inputs, params, pool_scales, token_num_max, pred_len):
    P = len(inputs)
    B, _, C = inputs[0].shape
    lengths = tuple(int(x.shape[1]) for x in inputs)
    L_top = lengths[-1]
    S = len(pool_scales)
    ppm_m, up_td, up_fp, s_prev, s_next = _build_constants(lengths, pool_scales)
    ppm_m = jnp.asarray(ppm_m)
    up_td = [jnp.asarray(u) for u in up_td]
    up_fp = [jnp.asarray(u) for u in up_fp]
    s_prev = jnp.asarray(s_prev)
    s_next = jnp.asarray(s_next)

    def conv3(parts, w, base, b, L):
        sp = s_prev[:L, :L]
        sn = s_next[:L, :L]
        acc = 0.0
        for p, x in enumerate(parts):
            acc = (acc + (sp @ x) @ w[base + 3 * p]
                   + x @ w[base + 3 * p + 1]
                   + (sn @ x) @ w[base + 3 * p + 2])
        return acc + b

    outs = []
    for bi in range(B):
        xs = [x[bi] for x in inputs]
        laterals = [xs[i] @ params["lat_w"][i] + params["lat_b"][i] for i in range(P - 1)]
        xt = xs[-1]
        parts = [xt] + [ppm_m[s] @ (xt @ params["ppm_w"][s]) + params["ppm_b"][s]
                        for s in range(S)]
        laterals.append(conv3(parts, params["bot_w"], 0, params["bot_b"], L_top))
        for i in range(P - 1):
            laterals[i + 1] = laterals[i + 1] + up_td[i] @ laterals[i]
        fpn = []
        for i in range(P - 1):
            fpn.append(up_fp[i] @ conv3([laterals[i]], params["fpn_w"], 3 * i,
                                        params["fpn_b"][i], lengths[i]))
        fpn.append(laterals[-1])
        feat = conv3(fpn, params["fbot_w"], 0, params["fbot_b"], L_top)
        seasonal = feat @ params["seg_w"] + params["seg_b"]
        flat = seasonal.reshape(1, L_top * C)
        out = flat @ params["out_w"].reshape(L_top * C, pred_len) + params["out_b"]
        outs.append(out[0])
    return jnp.stack(outs)


# ----------------------------------------------------------------------------

if __name__ == "__main__":
    B = 2
    d_model = 32
    token_num_max = 16
    pred_len = 12
    pool_scales = (1, 2, 3, 6)
    period_num = 3
    token_lens = (4, 8, 16)   # per-period token counts; last == token_num_max

    key = jax.random.PRNGKey(0)
    pkey, *ikeys = jax.random.split(key, 1 + period_num)
    params = init_params(pkey, d_model, token_num_max, pred_len, pool_scales, period_num)

    inputs = [jax.random.normal(ikeys[i], (B, token_lens[i], d_model), dtype=jnp.float32)
              for i in range(period_num)]

    out = decode_head_patch_forward(inputs, params, pool_scales, token_num_max, pred_len)
    out = jax.block_until_ready(out)
    assert out.shape == (B, pred_len), out.shape
    assert bool(jnp.all(jnp.isfinite(out)))

    with jax.default_matmul_precision("float32"):
        ref = _reference_forward(inputs, params, pool_scales, token_num_max, pred_len)
    np.testing.assert_allclose(np.asarray(out), np.asarray(ref), rtol=2e-2, atol=1e-3)

    print("KERNEL_OK")
</pallas_src>

<mosaic_0001>
module attributes {stable_mosaic.version = 11 : i64} {
  func.func @kernel(%arg0: i32, %arg1: memref<1x4x32xf32, #tpu.memory_space<vmem>>, %arg2: memref<1x8x32xf32, #tpu.memory_space<vmem>>, %arg3: memref<1x16x32xf32, #tpu.memory_space<vmem>>, %arg4: memref<2x32x32xf32, #tpu.memory_space<vmem>>, %arg5: memref<2x1x32xf32, #tpu.memory_space<vmem>>, %arg6: memref<4x32x32xf32, #tpu.memory_space<vmem>>, %arg7: memref<4x1x32xf32, #tpu.memory_space<vmem>>, %arg8: memref<4x16x16xf32, #tpu.memory_space<vmem>>, %arg9: memref<15x32x32xf32, #tpu.memory_space<vmem>>, %arg10: memref<1x32xf32, #tpu.memory_space<vmem>>, %arg11: memref<6x32x32xf32, #tpu.memory_space<vmem>>, %arg12: memref<2x1x32xf32, #tpu.memory_space<vmem>>, %arg13: memref<9x32x32xf32, #tpu.memory_space<vmem>>, %arg14: memref<1x32xf32, #tpu.memory_space<vmem>>, %arg15: memref<32x32xf32, #tpu.memory_space<vmem>>, %arg16: memref<1x32xf32, #tpu.memory_space<vmem>>, %arg17: memref<16x32x12xf32, #tpu.memory_space<vmem>>, %arg18: memref<1x12xf32, #tpu.memory_space<vmem>>, %arg19: memref<8x4xf32, #tpu.memory_space<vmem>>, %arg20: memref<16x8xf32, #tpu.memory_space<vmem>>, %arg21: memref<16x4xf32, #tpu.memory_space<vmem>>, %arg22: memref<16x8xf32, #tpu.memory_space<vmem>>, %arg23: memref<16x16xf32, #tpu.memory_space<vmem>>, %arg24: memref<16x16xf32, #tpu.memory_space<vmem>>, %arg25: memref<1x1x12xf32, #tpu.memory_space<vmem>>) attributes {dimension_semantics = [#tpu.dimension_semantics<parallel>], iteration_bounds = array<i64: 2>, scalar_prefetch = 0 : i64, scratch_operands = 0 : i64, tpu.core_type = #tpu.core_type<tc>, window_params = [{transform_indices = @transform_0, window_bounds = array<i64: 1, 4, 32>}, {transform_indices = @transform_1, window_bounds = array<i64: 1, 8, 32>}, {transform_indices = @transform_2, window_bounds = array<i64: 1, 16, 32>}, {pipeline_mode = #tpu.pipeline_mode<synchronous>, transform_indices = @transform_3, window_bounds = array<i64: 2, 32, 32>}, {pipeline_mode = #tpu.pipeline_mode<synchronous>, transform_indices = @transform_4, window_bounds = array<i64: 2, 1, 32>}, {pipeline_mode = #tpu.pipeline_mode<synchronous>, transform_indices = @transform_5, window_bounds = array<i64: 4, 32, 32>}, {pipeline_mode = #tpu.pipeline_mode<synchronous>, transform_indices = @transform_6, window_bounds = array<i64: 4, 1, 32>}, {pipeline_mode = #tpu.pipeline_mode<synchronous>, transform_indices = @transform_7, window_bounds = array<i64: 4, 16, 16>}, {pipeline_mode = #tpu.pipeline_mode<synchronous>, transform_indices = @transform_8, window_bounds = array<i64: 15, 32, 32>}, {pipeline_mode = #tpu.pipeline_mode<synchronous>, transform_indices = @transform_9, window_bounds = array<i64: 1, 32>}, {pipeline_mode = #tpu.pipeline_mode<synchronous>, transform_indices = @transform_10, window_bounds = array<i64: 6, 32, 32>}, {pipeline_mode = #tpu.pipeline_mode<synchronous>, transform_indices = @transform_11, window_bounds = array<i64: 2, 1, 32>}, {pipeline_mode = #tpu.pipeline_mode<synchronous>, transform_indices = @transform_12, window_bounds = array<i64: 9, 32, 32>}, {pipeline_mode = #tpu.pipeline_mode<synchronous>, transform_indices = @transform_13, window_bounds = array<i64: 1, 32>}, {pipeline_mode = #tpu.pipeline_mode<synchronous>, transform_indices = @transform_14, window_bounds = array<i64: 32, 32>}, {pipeline_mode = #tpu.pipeline_mode<synchronous>, transform_indices = @transform_15, window_bounds = array<i64: 1, 32>}, {pipeline_mode = #tpu.pipeline_mode<synchronous>, transform_indices = @transform_16, window_bounds = array<i64: 16, 32, 12>}, {pipeline_mode = #tpu.pipeline_mode<synchronous>, transform_indices = @transform_17, window_bounds = array<i64: 1, 12>}, {pipeline_mode = #tpu.pipeline_mode<synchronous>, transform_indices = @transform_18, window_bounds = array<i64: 8, 4>}, {pipeline_mode = #tpu.pipeline_mode<synchronous>, transform_indices = @transform_19, window_bounds = array<i64: 16, 8>}, {pipeline_mode = #tpu.pipeline_mode<synchronous>, transform_indices = @transform_20, window_bounds = array<i64: 16, 4>}, {pipeline_mode = #tpu.pipeline_mode<synchronous>, transform_indices = @transform_21, window_bounds = array<i64: 16, 8>}, {pipeline_mode = #tpu.pipeline_mode<synchronous>, transform_indices = @transform_22, window_bounds = array<i64: 16, 16>}, {pipeline_mode = #tpu.pipeline_mode<synchronous>, transform_indices = @transform_23, window_bounds = array<i64: 16, 16>}, {transform_indices = @transform_24, window_bounds = array<i64: 1, 1, 12>}]} {
    %c0 = arith.constant 0 : index
    %c0_0 = arith.constant 0 : index
    %0 = vector.load %arg23[%c0, %c0_0] : memref<16x16xf32, #tpu.memory_space<vmem>>, vector<16x16xf32>
    %c0_1 = arith.constant 0 : index
    %c0_2 = arith.constant 0 : index
    %1 = vector.load %arg24[%c0_1, %c0_2] : memref<16x16xf32, #tpu.memory_space<vmem>>, vector<16x16xf32>
    %c0_3 = arith.constant 0 : index
    %c0_4 = arith.constant 0 : index
    %c0_5 = arith.constant 0 : index
    %2 = vector.load %arg1[%c0_3, %c0_4, %c0_5] : memref<1x4x32xf32, #tpu.memory_space<vmem>>, vector<1x4x32xf32>
    %3 = vector.shape_cast %2 : vector<1x4x32xf32> to vector<4x32xf32>
    %c0_6 = arith.constant 0 : index
    %c0_7 = arith.constant 0 : index
    %c0_8 = arith.constant 0 : index
    %4 = vector.load %arg2[%c0_6, %c0_7, %c0_8] : memref<1x8x32xf32, #tpu.memory_space<vmem>>, vector<1x8x32xf32>
    %5 = vector.shape_cast %4 : vector<1x8x32xf32> to vector<8x32xf32>
    %c0_9 = arith.constant 0 : index
    %c0_10 = arith.constant 0 : index
    %c0_11 = arith.constant 0 : index
    %6 = vector.load %arg3[%c0_9, %c0_10, %c0_11] : memref<1x16x32xf32, #tpu.memory_space<vmem>>, vector<1x16x32xf32>
    %7 = vector.shape_cast %6 : vector<1x16x32xf32> to vector<16x32xf32>
    %c0_12 = arith.constant 0 : index
    %c0_13 = arith.constant 0 : index
    %c0_14 = arith.constant 0 : index
    %8 = vector.load %arg4[%c0_12, %c0_13, %c0_14] : memref<2x32x32xf32, #tpu.memory_space<vmem>>, vector<1x32x32xf32>
    %9 = vector.shape_cast %8 : vector<1x32x32xf32> to vector<32x32xf32>
    %cst = arith.constant dense<0.000000e+00> : vector<4x32xf32>
    %10 = tpu.matmul %3, %9, %cst {dimension_numbers = #tpu.dot_dimension_numbers<[1], [0], [0], [1], [0, 0, 1, 1], [], []>} : vector<4x32xf32>, vector<32x32xf32>, vector<4x32xf32> -> vector<4x32xf32>
    %c0_15 = arith.constant 0 : index
    %c0_16 = arith.constant 0 : index
    %c0_17 = arith.constant 0 : index
    %11 = vector.load %arg5[%c0_15, %c0_16, %c0_17] : memref<2x1x32xf32, #tpu.memory_space<vmem>>, vector<1x1x32xf32>
    %12 = vector.shape_cast %11 : vector<1x1x32xf32> to vector<1x32xf32>
    %13 = vector.broadcast %12 : vector<1x32xf32> to vector<4x32xf32>
    %14 = arith.addf %10, %13 : vector<4x32xf32>
    %c1 = arith.constant 1 : index
    %c0_18 = arith.constant 0 : index
    %c0_19 = arith.constant 0 : index
    %15 = vector.load %arg4[%c1, %c0_18, %c0_19] : memref<2x32x32xf32, #tpu.memory_space<vmem>>, vector<1x32x32xf32>
    %16 = vector.shape_cast %15 : vector<1x32x32xf32> to vector<32x32xf32>
    %cst_20 = arith.constant dense<0.000000e+00> : vector<8x32xf32>
    %17 = tpu.matmul %5, %16, %cst_20 {dimension_numbers = #tpu.dot_dimension_numbers<[1], [0], [0], [1], [0, 0, 1, 1], [], []>} : vector<8x32xf32>, vector<32x32xf32>, vector<8x32xf32> -> vector<8x32xf32>
    %c1_21 = arith.constant 1 : index
    %c0_22 = arith.constant 0 : index
    %c0_23 = arith.constant 0 : index
    %18 = vector.load %arg5[%c1_21, %c0_22, %c0_23] : memref<2x1x32xf32, #tpu.memory_space<vmem>>, vector<1x1x32xf32>
    %19 = vector.shape_cast %18 : vector<1x1x32xf32> to vector<1x32xf32>
    %20 = vector.broadcast %19 : vector<1x32xf32> to vector<8x32xf32>
    %21 = arith.addf %17, %20 : vector<8x32xf32>
    %c0_24 = arith.constant 0 : index
    %c0_25 = arith.constant 0 : index
    %c0_26 = arith.constant 0 : index
    %22 = vector.load %arg6[%c0_24, %c0_25, %c0_26] : memref<4x32x32xf32, #tpu.memory_space<vmem>>, vector<1x32x32xf32>
    %23 = vector.shape_cast %22 : vector<1x32x32xf32> to vector<32x32xf32>
    %cst_27 = arith.constant dense<0.000000e+00> : vector<16x32xf32>
    %24 = tpu.matmul %7, %23, %cst_27 {dimension_numbers = #tpu.dot_dimension_numbers<[1], [0], [0], [1], [0, 0, 1, 1], [], []>} : vector<16x32xf32>, vector<32x32xf32>, vector<16x32xf32> -> vector<16x32xf32>
    %c0_28 = arith.constant 0 : index
    %c0_29 = arith.constant 0 : index
    %c0_30 = arith.constant 0 : index
    %25 = vector.load %arg8[%c0_28, %c0_29, %c0_30] : memref<4x16x16xf32, #tpu.memory_space<vmem>>, vector<1x16x16xf32>
    %26 = vector.shape_cast %25 : vector<1x16x16xf32> to vector<16x16xf32>
    %cst_31 = arith.constant dense<0.000000e+00> : vector<16x32xf32>
    %27 = tpu.matmul %26, %24, %cst_31 {dimension_numbers = #tpu.dot_dimension_numbers<[1], [0], [0], [1], [0, 0, 1, 1], [], []>} : vector<16x16xf32>, vector<16x32xf32>, vector<16x32xf32> -> vector<16x32xf32>
    %c0_32 = arith.constant 0 : index
    %c0_33 = arith.constant 0 : index
    %c0_34 = arith.constant 0 : index
    %28 = vector.load %arg7[%c0_32, %c0_33, %c0_34] : memref<4x1x32xf32, #tpu.memory_space<vmem>>, vector<1x1x32xf32>
    %29 = vector.shape_cast %28 : vector<1x1x32xf32> to vector<1x32xf32>
    %30 = vector.broadcast %29 : vector<1x32xf32> to vector<16x32xf32>
    %31 = arith.addf %27, %30 : vector<16x32xf32>
    %c1_35 = arith.constant 1 : index
    %c0_36 = arith.constant 0 : index
    %c0_37 = arith.constant 0 : index
    %32 = vector.load %arg6[%c1_35, %c0_36, %c0_37] : memref<4x32x32xf32, #tpu.memory_space<vmem>>, vector<1x32x32xf32>
    %33 = vector.shape_cast %32 : vector<1x32x32xf32> to vector<32x32xf32>
    %cst_38 = arith.constant dense<0.000000e+00> : vector<16x32xf32>
    %34 = tpu.matmul %7, %33, %cst_38 {dimension_numbers = #tpu.dot_dimension_numbers<[1], [0], [0], [1], [0, 0, 1, 1], [], []>} : vector<16x32xf32>, vector<32x32xf32>, vector<16x32xf32> -> vector<16x32xf32>
    %c1_39 = arith.constant 1 : index
    %c0_40 = arith.constant 0 : index
    %c0_41 = arith.constant 0 : index
    %35 = vector.load %arg8[%c1_39, %c0_40, %c0_41] : memref<4x16x16xf32, #tpu.memory_space<vmem>>, vector<1x16x16xf32>
    %36 = vector.shape_cast %35 : vector<1x16x16xf32> to vector<16x16xf32>
    %cst_42 = arith.constant dense<0.000000e+00> : vector<16x32xf32>
    %37 = tpu.matmul %36, %34, %cst_42 {dimension_numbers = #tpu.dot_dimension_numbers<[1], [0], [0], [1], [0, 0, 1, 1], [], []>} : vector<16x16xf32>, vector<16x32xf32>, vector<16x32xf32> -> vector<16x32xf32>
    %c1_43 = arith.constant 1 : index
    %c0_44 = arith.constant 0 : index
    %c0_45 = arith.constant 0 : index
    %38 = vector.load %arg7[%c1_43, %c0_44, %c0_45] : memref<4x1x32xf32, #tpu.memory_space<vmem>>, vector<1x1x32xf32>
    %39 = vector.shape_cast %38 : vector<1x1x32xf32> to vector<1x32xf32>
    %40 = vector.broadcast %39 : vector<1x32xf32> to vector<16x32xf32>
    %41 = arith.addf %37, %40 : vector<16x32xf32>
    %c2 = arith.constant 2 : index
    %c0_46 = arith.constant 0 : index
    %c0_47 = arith.constant 0 : index
    %42 = vector.load %arg6[%c2, %c0_46, %c0_47] : memref<4x32x32xf32, #tpu.memory_space<vmem>>, vector<1x32x32xf32>
    %43 = vector.shape_cast %42 : vector<1x32x32xf32> to vector<32x32xf32>
    %cst_48 = arith.constant dense<0.000000e+00> : vector<16x32xf32>
    %44 = tpu.matmul %7, %43, %cst_48 {dimension_numbers = #tpu.dot_dimension_numbers<[1], [0], [0], [1], [0, 0, 1, 1], [], []>} : vector<16x32xf32>, vector<32x32xf32>, vector<16x32xf32> -> vector<16x32xf32>
    %c2_49 = arith.constant 2 : index
    %c0_50 = arith.constant 0 : index
    %c0_51 = arith.constant 0 : index
    %45 = vector.load %arg8[%c2_49, %c0_50, %c0_51] : memref<4x16x16xf32, #tpu.memory_space<vmem>>, vector<1x16x16xf32>
    %46 = vector.shape_cast %45 : vector<1x16x16xf32> to vector<16x16xf32>
    %cst_52 = arith.constant dense<0.000000e+00> : vector<16x32xf32>
    %47 = tpu.matmul %46, %44, %cst_52 {dimension_numbers = #tpu.dot_dimension_numbers<[1], [0], [0], [1], [0, 0, 1, 1], [], []>} : vector<16x16xf32>, vector<16x32xf32>, vector<16x32xf32> -> vector<16x32xf32>
    %c2_53 = arith.constant 2 : index
    %c0_54 = arith.constant 0 : index
    %c0_55 = arith.constant 0 : index
    %48 = vector.load %arg7[%c2_53, %c0_54, %c0_55] : memref<4x1x32xf32, #tpu.memory_space<vmem>>, vector<1x1x32xf32>
    %49 = vector.shape_cast %48 : vector<1x1x32xf32> to vector<1x32xf32>
    %50 = vector.broadcast %49 : vector<1x32xf32> to vector<16x32xf32>
    %51 = arith.addf %47, %50 : vector<16x32xf32>
    %c3 = arith.constant 3 : index
    %c0_56 = arith.constant 0 : index
    %c0_57 = arith.constant 0 : index
    %52 = vector.load %arg6[%c3, %c0_56, %c0_57] : memref<4x32x32xf32, #tpu.memory_space<vmem>>, vector<1x32x32xf32>
    %53 = vector.shape_cast %52 : vector<1x32x32xf32> to vector<32x32xf32>
    %cst_58 = arith.constant dense<0.000000e+00> : vector<16x32xf32>
    %54 = tpu.matmul %7, %53, %cst_58 {dimension_numbers = #tpu.dot_dimension_numbers<[1], [0], [0], [1], [0, 0, 1, 1], [], []>} : vector<16x32xf32>, vector<32x32xf32>, vector<16x32xf32> -> vector<16x32xf32>
    %c3_59 = arith.constant 3 : index
    %c0_60 = arith.constant 0 : index
    %c0_61 = arith.constant 0 : index
    %55 = vector.load %arg8[%c3_59, %c0_60, %c0_61] : memref<4x16x16xf32, #tpu.memory_space<vmem>>, vector<1x16x16xf32>
    %56 = vector.shape_cast %55 : vector<1x16x16xf32> to vector<16x16xf32>
    %cst_62 = arith.constant dense<0.000000e+00> : vector<16x32xf32>
    %57 = tpu.matmul %56, %54, %cst_62 {dimension_numbers = #tpu.dot_dimension_numbers<[1], [0], [0], [1], [0, 0, 1, 1], [], []>} : vector<16x16xf32>, vector<16x32xf32>, vector<16x32xf32> -> vector<16x32xf32>
    %c3_63 = arith.constant 3 : index
    %c0_64 = arith.constant 0 : index
    %c0_65 = arith.constant 0 : index
    %58 = vector.load %arg7[%c3_63, %c0_64, %c0_65] : memref<4x1x32xf32, #tpu.memory_space<vmem>>, vector<1x1x32xf32>
    %59 = vector.shape_cast %58 : vector<1x1x32xf32> to vector<1x32xf32>
    %60 = vector.broadcast %59 : vector<1x32xf32> to vector<16x32xf32>
    %61 = arith.addf %57, %60 : vector<16x32xf32>
    %c0_66 = arith.constant 0 : index
    %c0_67 = arith.constant 0 : index
    %62 = vector.load %arg10[%c0_66, %c0_67] : memref<1x32xf32, #tpu.memory_space<vmem>>, vector<1x32xf32>
    %cst_68 = arith.constant dense<0.000000e+00> : vector<16x32xf32>
    %63 = tpu.matmul %0, %7, %cst_68 {dimension_numbers = #tpu.dot_dimension_numbers<[1], [0], [0], [1], [0, 0, 1, 1], [], []>} : vector<16x16xf32>, vector<16x32xf32>, vector<16x32xf32> -> vector<16x32xf32>
    %cst_69 = arith.constant dense<0.000000e+00> : vector<16x32xf32>
    %64 = tpu.matmul %1, %7, %cst_69 {dimension_numbers = #tpu.dot_dimension_numbers<[1], [0], [0], [1], [0, 0, 1, 1], [], []>} : vector<16x16xf32>, vector<16x32xf32>, vector<16x32xf32> -> vector<16x32xf32>
    %c0_70 = arith.constant 0 : index
    %c0_71 = arith.constant 0 : index
    %c0_72 = arith.constant 0 : index
    %65 = vector.load %arg9[%c0_70, %c0_71, %c0_72] : memref<15x32x32xf32, #tpu.memory_space<vmem>>, vector<1x32x32xf32>
    %66 = vector.shape_cast %65 : vector<1x32x32xf32> to vector<32x32xf32>
    %cst_73 = arith.constant dense<0.000000e+00> : vector<16x32xf32>
    %67 = tpu.matmul %63, %66, %cst_73 {dimension_numbers = #tpu.dot_dimension_numbers<[1], [0], [0], [1], [0, 0, 1, 1], [], []>} : vector<16x32xf32>, vector<32x32xf32>, vector<16x32xf32> -> vector<16x32xf32>
    %c1_74 = arith.constant 1 : index
    %c0_75 = arith.constant 0 : index
    %c0_76 = arith.constant 0 : index
    %68 = vector.load %arg9[%c1_74, %c0_75, %c0_76] : memref<15x32x32xf32, #tpu.memory_space<vmem>>, vector<1x32x32xf32>
    %69 = vector.shape_cast %68 : vector<1x32x32xf32> to vector<32x32xf32>
    %cst_77 = arith.constant dense<0.000000e+00> : vector<16x32xf32>
    %70 = tpu.matmul %7, %69, %cst_77 {dimension_numbers = #tpu.dot_dimension_numbers<[1], [0], [0], [1], [0, 0, 1, 1], [], []>} : vector<16x32xf32>, vector<32x32xf32>, vector<16x32xf32> -> vector<16x32xf32>
    %71 = arith.addf %67, %70 : vector<16x32xf32>
    %c2_78 = arith.constant 2 : index
    %c0_79 = arith.constant 0 : index
    %c0_80 = arith.constant 0 : index
    %72 = vector.load %arg9[%c2_78, %c0_79, %c0_80] : memref<15x32x32xf32, #tpu.memory_space<vmem>>, vector<1x32x32xf32>
    %73 = vector.shape_cast %72 : vector<1x32x32xf32> to vector<32x32xf32>
    %cst_81 = arith.constant dense<0.000000e+00> : vector<16x32xf32>
    %74 = tpu.matmul %64, %73, %cst_81 {dimension_numbers = #tpu.dot_dimension_numbers<[1], [0], [0], [1], [0, 0, 1, 1], [], []>} : vector<16x32xf32>, vector<32x32xf32>, vector<16x32xf32> -> vector<16x32xf32>
    %75 = arith.addf %71, %74 : vector<16x32xf32>
    %cst_82 = arith.constant dense<0.000000e+00> : vector<16x32xf32>
    %76 = tpu.matmul %0, %31, %cst_82 {dimension_numbers = #tpu.dot_dimension_numbers<[1], [0], [0], [1], [0, 0, 1, 1], [], []>} : vector<16x16xf32>, vector<16x32xf32>, vector<16x32xf32> -> vector<16x32xf32>
    %cst_83 = arith.constant dense<0.000000e+00> : vector<16x32xf32>
    %77 = tpu.matmul %1, %31, %cst_83 {dimension_numbers = #tpu.dot_dimension_numbers<[1], [0], [0], [1], [0, 0, 1, 1], [], []>} : vector<16x16xf32>, vector<16x32xf32>, vector<16x32xf32> -> vector<16x32xf32>
    %c3_84 = arith.constant 3 : index
    %c0_85 = arith.constant 0 : index
    %c0_86 = arith.constant 0 : index
    %78 = vector.load %arg9[%c3_84, %c0_85, %c0_86] : memref<15x32x32xf32, #tpu.memory_space<vmem>>, vector<1x32x32xf32>
    %79 = vector.shape_cast %78 : vector<1x32x32xf32> to vector<32x32xf32>
    %cst_87 = arith.constant dense<0.000000e+00> : vector<16x32xf32>
    %80 = tpu.matmul %76, %79, %cst_87 {dimension_numbers = #tpu.dot_dimension_numbers<[1], [0], [0], [1], [0, 0, 1, 1], [], []>} : vector<16x32xf32>, vector<32x32xf32>, vector<16x32xf32> -> vector<16x32xf32>
    %c4 = arith.constant 4 : index
    %c0_88 = arith.constant 0 : index
    %c0_89 = arith.constant 0 : index
    %81 = vector.load %arg9[%c4, %c0_88, %c0_89] : memref<15x32x32xf32, #tpu.memory_space<vmem>>, vector<1x32x32xf32>
    %82 = vector.shape_cast %81 : vector<1x32x32xf32> to vector<32x32xf32>
    %cst_90 = arith.constant dense<0.000000e+00> : vector<16x32xf32>
    %83 = tpu.matmul %31, %82, %cst_90 {dimension_numbers = #tpu.dot_dimension_numbers<[1], [0], [0], [1], [0, 0, 1, 1], [], []>} : vector<16x32xf32>, vector<32x32xf32>, vector<16x32xf32> -> vector<16x32xf32>
    %84 = arith.addf %80, %83 : vector<16x32xf32>
    %c5 = arith.constant 5 : index
    %c0_91 = arith.constant 0 : index
    %c0_92 = arith.constant 0 : index
    %85 = vector.load %arg9[%c5, %c0_91, %c0_92] : memref<15x32x32xf32, #tpu.memory_space<vmem>>, vector<1x32x32xf32>
    %86 = vector.shape_cast %85 : vector<1x32x32xf32> to vector<32x32xf32>
    %cst_93 = arith.constant dense<0.000000e+00> : vector<16x32xf32>
    %87 = tpu.matmul %77, %86, %cst_93 {dimension_numbers = #tpu.dot_dimension_numbers<[1], [0], [0], [1], [0, 0, 1, 1], [], []>} : vector<16x32xf32>, vector<32x32xf32>, vector<16x32xf32> -> vector<16x32xf32>
    %88 = arith.addf %84, %87 : vector<16x32xf32>
    %89 = arith.addf %75, %88 : vector<16x32xf32>
    %cst_94 = arith.constant dense<0.000000e+00> : vector<16x32xf32>
    %90 = tpu.matmul %0, %41, %cst_94 {dimension_numbers = #tpu.dot_dimension_numbers<[1], [0], [0], [1], [0, 0, 1, 1], [], []>} : vector<16x16xf32>, vector<16x32xf32>, vector<16x32xf32> -> vector<16x32xf32>
    %cst_95 = arith.constant dense<0.000000e+00> : vector<16x32xf32>
    %91 = tpu.matmul %1, %41, %cst_95 {dimension_numbers = #tpu.dot_dimension_numbers<[1], [0], [0], [1], [0, 0, 1, 1], [], []>} : vector<16x16xf32>, vector<16x32xf32>, vector<16x32xf32> -> vector<16x32xf32>
    %c6 = arith.constant 6 : index
    %c0_96 = arith.constant 0 : index
    %c0_97 = arith.constant 0 : index
    %92 = vector.load %arg9[%c6, %c0_96, %c0_97] : memref<15x32x32xf32, #tpu.memory_space<vmem>>, vector<1x32x32xf32>
    %93 = vector.shape_cast %92 : vector<1x32x32xf32> to vector<32x32xf32>
    %cst_98 = arith.constant dense<0.000000e+00> : vector<16x32xf32>
    %94 = tpu.matmul %90, %93, %cst_98 {dimension_numbers = #tpu.dot_dimension_numbers<[1], [0], [0], [1], [0, 0, 1, 1], [], []>} : vector<16x32xf32>, vector<32x32xf32>, vector<16x32xf32> -> vector<16x32xf32>
    %c7 = arith.constant 7 : index
    %c0_99 = arith.constant 0 : index
    %c0_100 = arith.constant 0 : index
    %95 = vector.load %arg9[%c7, %c0_99, %c0_100] : memref<15x32x32xf32, #tpu.memory_space<vmem>>, vector<1x32x32xf32>
    %96 = vector.shape_cast %95 : vector<1x32x32xf32> to vector<32x32xf32>
    %cst_101 = arith.constant dense<0.000000e+00> : vector<16x32xf32>
    %97 = tpu.matmul %41, %96, %cst_101 {dimension_numbers = #tpu.dot_dimension_numbers<[1], [0], [0], [1], [0, 0, 1, 1], [], []>} : vector<16x32xf32>, vector<32x32xf32>, vector<16x32xf32> -> vector<16x32xf32>
    %98 = arith.addf %94, %97 : vector<16x32xf32>
    %c8 = arith.constant 8 : index
    %c0_102 = arith.constant 0 : index
    %c0_103 = arith.constant 0 : index
    %99 = vector.load %arg9[%c8, %c0_102, %c0_103] : memref<15x32x32xf32, #tpu.memory_space<vmem>>, vector<1x32x32xf32>
    %100 = vector.shape_cast %99 : vector<1x32x32xf32> to vector<32x32xf32>
    %cst_104 = arith.constant dense<0.000000e+00> : vector<16x32xf32>
    %101 = tpu.matmul %91, %100, %cst_104 {dimension_numbers = #tpu.dot_dimension_numbers<[1], [0], [0], [1], [0, 0, 1, 1], [], []>} : vector<16x32xf32>, vector<32x32xf32>, vector<16x32xf32> -> vector<16x32xf32>
    %102 = arith.addf %98, %101 : vector<16x32xf32>
    %103 = arith.addf %89, %102 : vector<16x32xf32>
    %cst_105 = arith.constant dense<0.000000e+00> : vector<16x32xf32>
    %104 = tpu.matmul %0, %51, %cst_105 {dimension_numbers = #tpu.dot_dimension_numbers<[1], [0], [0], [1], [0, 0, 1, 1], [], []>} : vector<16x16xf32>, vector<16x32xf32>, vector<16x32xf32> -> vector<16x32xf32>
    %cst_106 = arith.constant dense<0.000000e+00> : vector<16x32xf32>
    %105 = tpu.matmul %1, %51, %cst_106 {dimension_numbers = #tpu.dot_dimension_numbers<[1], [0], [0], [1], [0, 0, 1, 1], [], []>} : vector<16x16xf32>, vector<16x32xf32>, vector<16x32xf32> -> vector<16x32xf32>
    %c9 = arith.constant 9 : index
    %c0_107 = arith.constant 0 : index
    %c0_108 = arith.constant 0 : index
    %106 = vector.load %arg9[%c9, %c0_107, %c0_108] : memref<15x32x32xf32, #tpu.memory_space<vmem>>, vector<1x32x32xf32>
    %107 = vector.shape_cast %106 : vector<1x32x32xf32> to vector<32x32xf32>
    %cst_109 = arith.constant dense<0.000000e+00> : vector<16x32xf32>
    %108 = tpu.matmul %104, %107, %cst_109 {dimension_numbers = #tpu.dot_dimension_numbers<[1], [0], [0], [1], [0, 0, 1, 1], [], []>} : vector<16x32xf32>, vector<32x32xf32>, vector<16x32xf32> -> vector<16x32xf32>
    %c10 = arith.constant 10 : index
    %c0_110 = arith.constant 0 : index
    %c0_111 = arith.constant 0 : index
    %109 = vector.load %arg9[%c10, %c0_110, %c0_111] : memref<15x32x32xf32, #tpu.memory_space<vmem>>, vector<1x32x32xf32>
    %110 = vector.shape_cast %109 : vector<1x32x32xf32> to vector<32x32xf32>
    %cst_112 = arith.constant dense<0.000000e+00> : vector<16x32xf32>
    %111 = tpu.matmul %51, %110, %cst_112 {dimension_numbers = #tpu.dot_dimension_numbers<[1], [0], [0], [1], [0, 0, 1, 1], [], []>} : vector<16x32xf32>, vector<32x32xf32>, vector<16x32xf32> -> vector<16x32xf32>
    %112 = arith.addf %108, %111 : vector<16x32xf32>
    %c11 = arith.constant 11 : index
    %c0_113 = arith.constant 0 : index
    %c0_114 = arith.constant 0 : index
    %113 = vector.load %arg9[%c11, %c0_113, %c0_114] : memref<15x32x32xf32, #tpu.memory_space<vmem>>, vector<1x32x32xf32>
    %114 = vector.shape_cast %113 : vector<1x32x32xf32> to vector<32x32xf32>
    %cst_115 = arith.constant dense<0.000000e+00> : vector<16x32xf32>
    %115 = tpu.matmul %105, %114, %cst_115 {dimension_numbers = #tpu.dot_dimension_numbers<[1], [0], [0], [1], [0, 0, 1, 1], [], []>} : vector<16x32xf32>, vector<32x32xf32>, vector<16x32xf32> -> vector<16x32xf32>
    %116 = arith.addf %112, %115 : vector<16x32xf32>
    %117 = arith.addf %103, %116 : vector<16x32xf32>
    %cst_116 = arith.constant dense<0.000000e+00> : vector<16x32xf32>
    %118 = tpu.matmul %0, %61, %cst_116 {dimension_numbers = #tpu.dot_dimension_numbers<[1], [0], [0], [1], [0, 0, 1, 1], [], []>} : vector<16x16xf32>, vector<16x32xf32>, vector<16x32xf32> -> vector<16x32xf32>
    %cst_117 = arith.constant dense<0.000000e+00> : vector<16x32xf32>
    %119 = tpu.matmul %1, %61, %cst_117 {dimension_numbers = #tpu.dot_dimension_numbers<[1], [0], [0], [1], [0, 0, 1, 1], [], []>} : vector<16x16xf32>, vector<16x32xf32>, vector<16x32xf32> -> vector<16x32xf32>
    %c12 = arith.constant 12 : index
    %c0_118 = arith.constant 0 : index
    %c0_119 = arith.constant 0 : index
    %120 = vector.load %arg9[%c12, %c0_118, %c0_119] : memref<15x32x32xf32, #tpu.memory_space<vmem>>, vector<1x32x32xf32>
    %121 = vector.shape_cast %120 : vector<1x32x32xf32> to vector<32x32xf32>
    %cst_120 = arith.constant dense<0.000000e+00> : vector<16x32xf32>
    %122 = tpu.matmul %118, %121, %cst_120 {dimension_numbers = #tpu.dot_dimension_numbers<[1], [0], [0], [1], [0, 0, 1, 1], [], []>} : vector<16x32xf32>, vector<32x32xf32>, vector<16x32xf32> -> vector<16x32xf32>
    %c13 = arith.constant 13 : index
    %c0_121 = arith.constant 0 : index
    %c0_122 = arith.constant 0 : index
    %123 = vector.load %arg9[%c13, %c0_121, %c0_122] : memref<15x32x32xf32, #tpu.memory_space<vmem>>, vector<1x32x32xf32>
    %124 = vector.shape_cast %123 : vector<1x32x32xf32> to vector<32x32xf32>
    %cst_123 = arith.constant dense<0.000000e+00> : vector<16x32xf32>
    %125 = tpu.matmul %61, %124, %cst_123 {dimension_numbers = #tpu.dot_dimension_numbers<[1], [0], [0], [1], [0, 0, 1, 1], [], []>} : vector<16x32xf32>, vector<32x32xf32>, vector<16x32xf32> -> vector<16x32xf32>
    %126 = arith.addf %122, %125 : vector<16x32xf32>
    %c14 = arith.constant 14 : index
    %c0_124 = arith.constant 0 : index
    %c0_125 = arith.constant 0 : index
    %127 = vector.load %arg9[%c14, %c0_124, %c0_125] : memref<15x32x32xf32, #tpu.memory_space<vmem>>, vector<1x32x32xf32>
    %128 = vector.shape_cast %127 : vector<1x32x32xf32> to vector<32x32xf32>
    %cst_126 = arith.constant dense<0.000000e+00> : vector<16x32xf32>
    %129 = tpu.matmul %119, %128, %cst_126 {dimension_numbers = #tpu.dot_dimension_numbers<[1], [0], [0], [1], [0, 0, 1, 1], [], []>} : vector<16x32xf32>, vector<32x32xf32>, vector<16x32xf32> -> vector<16x32xf32>
    %130 = arith.addf %126, %129 : vector<16x32xf32>
    %131 = arith.addf %117, %130 : vector<16x32xf32>
    %132 = vector.broadcast %62 : vector<1x32xf32> to vector<16x32xf32>
    %133 = arith.addf %131, %132 : vector<16x32xf32>
    %c0_127 = arith.constant 0 : index
    %c0_128 = arith.constant 0 : index
    %134 = vector.load %arg19[%c0_127, %c0_128] : memref<8x4xf32, #tpu.memory_space<vmem>>, vector<8x4xf32>
    %cst_129 = arith.constant dense<0.000000e+00> : vector<8x32xf32>
    %135 = tpu.matmul %134, %14, %cst_129 {dimension_numbers = #tpu.dot_dimension_numbers<[1], [0], [0], [1], [0, 0, 1, 1], [], []>} : vector<8x4xf32>, vector<4x32xf32>, vector<8x32xf32> -> vector<8x32xf32>
    %136 = arith.addf %21, %135 : vector<8x32xf32>
    %c0_130 = arith.constant 0 : index
    %c0_131 = arith.constant 0 : index
    %137 = vector.load %arg20[%c0_130, %c0_131] : memref<16x8xf32, #tpu.memory_space<vmem>>, vector<16x8xf32>
    %cst_132 = arith.constant dense<0.000000e+00> : vector<16x32xf32>
    %138 = tpu.matmul %137, %136, %cst_132 {dimension_numbers = #tpu.dot_dimension_numbers<[1], [0], [0], [1], [0, 0, 1, 1], [], []>} : vector<16x8xf32>, vector<8x32xf32>, vector<16x32xf32> -> vector<16x32xf32>
    %139 = arith.addf %133, %138 : vector<16x32xf32>
    %c0_133 = arith.constant 0 : index
    %c0_134 = arith.constant 0 : index
    %c0_135 = arith.constant 0 : index
    %140 = vector.load %arg12[%c0_133, %c0_134, %c0_135] : memref<2x1x32xf32, #tpu.memory_space<vmem>>, vector<1x1x32xf32>
    %141 = vector.shape_cast %140 : vector<1x1x32xf32> to vector<1x32xf32>
    %142 = vector.extract_strided_slice %0 {offsets = [0, 0], sizes = [4, 4], strides = [1, 1]} : vector<16x16xf32> to vector<4x4xf32>
    %143 = vector.extract_strided_slice %1 {offsets = [0, 0], sizes = [4, 4], strides = [1, 1]} : vector<16x16xf32> to vector<4x4xf32>
    %cst_136 = arith.constant dense<0.000000e+00> : vector<4x32xf32>
    %144 = tpu.matmul %142, %14, %cst_136 {dimension_numbers = #tpu.dot_dimension_numbers<[1], [0], [0], [1], [0, 0, 1, 1], [], []>} : vector<4x4xf32>, vector<4x32xf32>, vector<4x32xf32> -> vector<4x32xf32>
    %cst_137 = arith.constant dense<0.000000e+00> : vector<4x32xf32>
    %145 = tpu.matmul %143, %14, %cst_137 {dimension_numbers = #tpu.dot_dimension_numbers<[1], [0], [0], [1], [0, 0, 1, 1], [], []>} : vector<4x4xf32>, vector<4x32xf32>, vector<4x32xf32> -> vector<4x32xf32>
    %c0_138 = arith.constant 0 : index
    %c0_139 = arith.constant 0 : index
    %c0_140 = arith.constant 0 : index
    %146 = vector.load %arg11[%c0_138, %c0_139, %c0_140] : memref<6x32x32xf32, #tpu.memory_space<vmem>>, vector<1x32x32xf32>
    %147 = vector.shape_cast %146 : vector<1x32x32xf32> to vector<32x32xf32>
    %cst_141 = arith.constant dense<0.000000e+00> : vector<4x32xf32>
    %148 = tpu.matmul %144, %147, %cst_141 {dimension_numbers = #tpu.dot_dimension_numbers<[1], [0], [0], [1], [0, 0, 1, 1], [], []>} : vector<4x32xf32>, vector<32x32xf32>, vector<4x32xf32> -> vector<4x32xf32>
    %c1_142 = arith.constant 1 : index
    %c0_143 = arith.constant 0 : index
    %c0_144 = arith.constant 0 : index
    %149 = vector.load %arg11[%c1_142, %c0_143, %c0_144] : memref<6x32x32xf32, #tpu.memory_space<vmem>>, vector<1x32x32xf32>
    %150 = vector.shape_cast %149 : vector<1x32x32xf32> to vector<32x32xf32>
    %cst_145 = arith.constant dense<0.000000e+00> : vector<4x32xf32>
    %151 = tpu.matmul %14, %150, %cst_145 {dimension_numbers = #tpu.dot_dimension_numbers<[1], [0], [0], [1], [0, 0, 1, 1], [], []>} : vector<4x32xf32>, vector<32x32xf32>, vector<4x32xf32> -> vector<4x32xf32>
    %152 = arith.addf %148, %151 : vector<4x32xf32>
    %c2_146 = arith.constant 2 : index
    %c0_147 = arith.constant 0 : index
    %c0_148 = arith.constant 0 : index
    %153 = vector.load %arg11[%c2_146, %c0_147, %c0_148] : memref<6x32x32xf32, #tpu.memory_space<vmem>>, vector<1x32x32xf32>
    %154 = vector.shape_cast %153 : vector<1x32x32xf32> to vector<32x32xf32>
    %cst_149 = arith.constant dense<0.000000e+00> : vector<4x32xf32>
    %155 = tpu.matmul %145, %154, %cst_149 {dimension_numbers = #tpu.dot_dimension_numbers<[1], [0], [0], [1], [0, 0, 1, 1], [], []>} : vector<4x32xf32>, vector<32x32xf32>, vector<4x32xf32> -> vector<4x32xf32>
    %156 = arith.addf %152, %155 : vector<4x32xf32>
    %157 = vector.broadcast %141 : vector<1x32xf32> to vector<4x32xf32>
    %158 = arith.addf %156, %157 : vector<4x32xf32>
    %c0_150 = arith.constant 0 : index
    %c0_151 = arith.constant 0 : index
    %159 = vector.load %arg21[%c0_150, %c0_151] : memref<16x4xf32, #tpu.memory_space<vmem>>, vector<16x4xf32>
    %cst_152 = arith.constant dense<0.000000e+00> : vector<16x32xf32>
    %160 = tpu.matmul %159, %158, %cst_152 {dimension_numbers = #tpu.dot_dimension_numbers<[1], [0], [0], [1], [0, 0, 1, 1], [], []>} : vector<16x4xf32>, vector<4x32xf32>, vector<16x32xf32> -> vector<16x32xf32>
    %c1_153 = arith.constant 1 : index
    %c0_154 = arith.constant 0 : index
    %c0_155 = arith.constant 0 : index
    %161 = vector.load %arg12[%c1_153, %c0_154, %c0_155] : memref<2x1x32xf32, #tpu.memory_space<vmem>>, vector<1x1x32xf32>
    %162 = vector.shape_cast %161 : vector<1x1x32xf32> to vector<1x32xf32>
    %163 = vector.extract_strided_slice %0 {offsets = [0, 0], sizes = [8, 8], strides = [1, 1]} : vector<16x16xf32> to vector<8x8xf32>
    %164 = vector.extract_strided_slice %1 {offsets = [0, 0], sizes = [8, 8], strides = [1, 1]} : vector<16x16xf32> to vector<8x8xf32>
    %cst_156 = arith.constant dense<0.000000e+00> : vector<8x32xf32>
    %165 = tpu.matmul %163, %136, %cst_156 {dimension_numbers = #tpu.dot_dimension_numbers<[1], [0], [0], [1], [0, 0, 1, 1], [], []>} : vector<8x8xf32>, vector<8x32xf32>, vector<8x32xf32> -> vector<8x32xf32>
    %cst_157 = arith.constant dense<0.000000e+00> : vector<8x32xf32>
    %166 = tpu.matmul %164, %136, %cst_157 {dimension_numbers = #tpu.dot_dimension_numbers<[1], [0], [0], [1], [0, 0, 1, 1], [], []>} : vector<8x8xf32>, vector<8x32xf32>, vector<8x32xf32> -> vector<8x32xf32>
    %c3_158 = arith.constant 3 : index
    %c0_159 = arith.constant 0 : index
    %c0_160 = arith.constant 0 : index
    %167 = vector.load %arg11[%c3_158, %c0_159, %c0_160] : memref<6x32x32xf32, #tpu.memory_space<vmem>>, vector<1x32x32xf32>
    %168 = vector.shape_cast %167 : vector<1x32x32xf32> to vector<32x32xf32>
    %cst_161 = arith.constant dense<0.000000e+00> : vector<8x32xf32>
    %169 = tpu.matmul %165, %168, %cst_161 {dimension_numbers = #tpu.dot_dimension_numbers<[1], [0], [0], [1], [0, 0, 1, 1], [], []>} : vector<8x32xf32>, vector<32x32xf32>, vector<8x32xf32> -> vector<8x32xf32>
    %c4_162 = arith.constant 4 : index
    %c0_163 = arith.constant 0 : index
    %c0_164 = arith.constant 0 : index
    %170 = vector.load %arg11[%c4_162, %c0_163, %c0_164] : memref<6x32x32xf32, #tpu.memory_space<vmem>>, vector<1x32x32xf32>
    %171 = vector.shape_cast %170 : vector<1x32x32xf32> to vector<32x32xf32>
    %cst_165 = arith.constant dense<0.000000e+00> : vector<8x32xf32>
    %172 = tpu.matmul %136, %171, %cst_165 {dimension_numbers = #tpu.dot_dimension_numbers<[1], [0], [0], [1], [0, 0, 1, 1], [], []>} : vector<8x32xf32>, vector<32x32xf32>, vector<8x32xf32> -> vector<8x32xf32>
    %173 = arith.addf %169, %172 : vector<8x32xf32>
    %c5_166 = arith.constant 5 : index
    %c0_167 = arith.constant 0 : index
    %c0_168 = arith.constant 0 : index
    %174 = vector.load %arg11[%c5_166, %c0_167, %c0_168] : memref<6x32x32xf32, #tpu.memory_space<vmem>>, vector<1x32x32xf32>
    %175 = vector.shape_cast %174 : vector<1x32x32xf32> to vector<32x32xf32>
    %cst_169 = arith.constant dense<0.000000e+00> : vector<8x32xf32>
    %176 = tpu.matmul %166, %175, %cst_169 {dimension_numbers = #tpu.dot_dimension_numbers<[1], [0], [0], [1], [0, 0, 1, 1], [], []>} : vector<8x32xf32>, vector<32x32xf32>, vector<8x32xf32> -> vector<8x32xf32>
    %177 = arith.addf %173, %176 : vector<8x32xf32>
    %178 = vector.broadcast %162 : vector<1x32xf32> to vector<8x32xf32>
    %179 = arith.addf %177, %178 : vector<8x32xf32>
    %c0_170 = arith.constant 0 : index
    %c0_171 = arith.constant 0 : index
    %180 = vector.load %arg22[%c0_170, %c0_171] : memref<16x8xf32, #tpu.memory_space<vmem>>, vector<16x8xf32>
    %cst_172 = arith.constant dense<0.000000e+00> : vector<16x32xf32>
    %181 = tpu.matmul %180, %179, %cst_172 {dimension_numbers = #tpu.dot_dimension_numbers<[1], [0], [0], [1], [0, 0, 1, 1], [], []>} : vector<16x8xf32>, vector<8x32xf32>, vector<16x32xf32> -> vector<16x32xf32>
    %c0_173 = arith.constant 0 : index
    %c0_174 = arith.constant 0 : index
    %182 = vector.load %arg14[%c0_173, %c0_174] : memref<1x32xf32, #tpu.memory_space<vmem>>, vector<1x32xf32>
    %cst_175 = arith.constant dense<0.000000e+00> : vector<16x32xf32>
    %183 = tpu.matmul %0, %160, %cst_175 {dimension_numbers = #tpu.dot_dimension_numbers<[1], [0], [0], [1], [0, 0, 1, 1], [], []>} : vector<16x16xf32>, vector<16x32xf32>, vector<16x32xf32> -> vector<16x32xf32>
    %cst_176 = arith.constant dense<0.000000e+00> : vector<16x32xf32>
    %184 = tpu.matmul %1, %160, %cst_176 {dimension_numbers = #tpu.dot_dimension_numbers<[1], [0], [0], [1], [0, 0, 1, 1], [], []>} : vector<16x16xf32>, vector<16x32xf32>, vector<16x32xf32> -> vector<16x32xf32>
    %c0_177 = arith.constant 0 : index
    %c0_178 = arith.constant 0 : index
    %c0_179 = arith.constant 0 : index
    %185 = vector.load %arg13[%c0_177, %c0_178, %c0_179] : memref<9x32x32xf32, #tpu.memory_space<vmem>>, vector<1x32x32xf32>
    %186 = vector.shape_cast %185 : vector<1x32x32xf32> to vector<32x32xf32>
    %cst_180 = arith.constant dense<0.000000e+00> : vector<16x32xf32>
    %187 = tpu.matmul %183, %186, %cst_180 {dimension_numbers = #tpu.dot_dimension_numbers<[1], [0], [0], [1], [0, 0, 1, 1], [], []>} : vector<16x32xf32>, vector<32x32xf32>, vector<16x32xf32> -> vector<16x32xf32>
    %c1_181 = arith.constant 1 : index
    %c0_182 = arith.constant 0 : index
    %c0_183 = arith.constant 0 : index
    %188 = vector.load %arg13[%c1_181, %c0_182, %c0_183] : memref<9x32x32xf32, #tpu.memory_space<vmem>>, vector<1x32x32xf32>
    %189 = vector.shape_cast %188 : vector<1x32x32xf32> to vector<32x32xf32>
    %cst_184 = arith.constant dense<0.000000e+00> : vector<16x32xf32>
    %190 = tpu.matmul %160, %189, %cst_184 {dimension_numbers = #tpu.dot_dimension_numbers<[1], [0], [0], [1], [0, 0, 1, 1], [], []>} : vector<16x32xf32>, vector<32x32xf32>, vector<16x32xf32> -> vector<16x32xf32>
    %191 = arith.addf %187, %190 : vector<16x32xf32>
    %c2_185 = arith.constant 2 : index
    %c0_186 = arith.constant 0 : index
    %c0_187 = arith.constant 0 : index
    %192 = vector.load %arg13[%c2_185, %c0_186, %c0_187] : memref<9x32x32xf32, #tpu.memory_space<vmem>>, vector<1x32x32xf32>
    %193 = vector.shape_cast %192 : vector<1x32x32xf32> to vector<32x32xf32>
    %cst_188 = arith.constant dense<0.000000e+00> : vector<16x32xf32>
    %194 = tpu.matmul %184, %193, %cst_188 {dimension_numbers = #tpu.dot_dimension_numbers<[1], [0], [0], [1], [0, 0, 1, 1], [], []>} : vector<16x32xf32>, vector<32x32xf32>, vector<16x32xf32> -> vector<16x32xf32>
    %195 = arith.addf %191, %194 : vector<16x32xf32>
    %cst_189 = arith.constant dense<0.000000e+00> : vector<16x32xf32>
    %196 = tpu.matmul %0, %181, %cst_189 {dimension_numbers = #tpu.dot_dimension_numbers<[1], [0], [0], [1], [0, 0, 1, 1], [], []>} : vector<16x16xf32>, vector<16x32xf32>, vector<16x32xf32> -> vector<16x32xf32>
    %cst_190 = arith.constant dense<0.000000e+00> : vector<16x32xf32>
    %197 = tpu.matmul %1, %181, %cst_190 {dimension_numbers = #tpu.dot_dimension_numbers<[1], [0], [0], [1], [0, 0, 1, 1], [], []>} : vector<16x16xf32>, vector<16x32xf32>, vector<16x32xf32> -> vector<16x32xf32>
    %c3_191 = arith.constant 3 : index
    %c0_192 = arith.constant 0 : index
    %c0_193 = arith.constant 0 : index
    %198 = vector.load %arg13[%c3_191, %c0_192, %c0_193] : memref<9x32x32xf32, #tpu.memory_space<vmem>>, vector<1x32x32xf32>
    %199 = vector.shape_cast %198 : vector<1x32x32xf32> to vector<32x32xf32>
    %cst_194 = arith.constant dense<0.000000e+00> : vector<16x32xf32>
    %200 = tpu.matmul %196, %199, %cst_194 {dimension_numbers = #tpu.dot_dimension_numbers<[1], [0], [0], [1], [0, 0, 1, 1], [], []>} : vector<16x32xf32>, vector<32x32xf32>, vector<16x32xf32> -> vector<16x32xf32>
    %c4_195 = arith.constant 4 : index
    %c0_196 = arith.constant 0 : index
    %c0_197 = arith.constant 0 : index
    %201 = vector.load %arg13[%c4_195, %c0_196, %c0_197] : memref<9x32x32xf32, #tpu.memory_space<vmem>>, vector<1x32x32xf32>
    %202 = vector.shape_cast %201 : vector<1x32x32xf32> to vector<32x32xf32>
    %cst_198 = arith.constant dense<0.000000e+00> : vector<16x32xf32>
    %203 = tpu.matmul %181, %202, %cst_198 {dimension_numbers = #tpu.dot_dimension_numbers<[1], [0], [0], [1], [0, 0, 1, 1], [], []>} : vector<16x32xf32>, vector<32x32xf32>, vector<16x32xf32> -> vector<16x32xf32>
    %204 = arith.addf %200, %203 : vector<16x32xf32>
    %c5_199 = arith.constant 5 : index
    %c0_200 = arith.constant 0 : index
    %c0_201 = arith.constant 0 : index
    %205 = vector.load %arg13[%c5_199, %c0_200, %c0_201] : memref<9x32x32xf32, #tpu.memory_space<vmem>>, vector<1x32x32xf32>
    %206 = vector.shape_cast %205 : vector<1x32x32xf32> to vector<32x32xf32>
    %cst_202 = arith.constant dense<0.000000e+00> : vector<16x32xf32>
    %207 = tpu.matmul %197, %206, %cst_202 {dimension_numbers = #tpu.dot_dimension_numbers<[1], [0], [0], [1], [0, 0, 1, 1], [], []>} : vector<16x32xf32>, vector<32x32xf32>, vector<16x32xf32> -> vector<16x32xf32>
    %208 = arith.addf %204, %207 : vector<16x32xf32>
    %209 = arith.addf %195, %208 : vector<16x32xf32>
    %cst_203 = arith.constant dense<0.000000e+00> : vector<16x32xf32>
    %210 = tpu.matmul %0, %139, %cst_203 {dimension_numbers = #tpu.dot_dimension_numbers<[1], [0], [0], [1], [0, 0, 1, 1], [], []>} : vector<16x16xf32>, vector<16x32xf32>, vector<16x32xf32> -> vector<16x32xf32>
    %cst_204 = arith.constant dense<0.000000e+00> : vector<16x32xf32>
    %211 = tpu.matmul %1, %139, %cst_204 {dimension_numbers = #tpu.dot_dimension_numbers<[1], [0], [0], [1], [0, 0, 1, 1], [], []>} : vector<16x16xf32>, vector<16x32xf32>, vector<16x32xf32> -> vector<16x32xf32>
    %c6_205 = arith.constant 6 : index
    %c0_206 = arith.constant 0 : index
    %c0_207 = arith.constant 0 : index
    %212 = vector.load %arg13[%c6_205, %c0_206, %c0_207] : memref<9x32x32xf32, #tpu.memory_space<vmem>>, vector<1x32x32xf32>
    %213 = vector.shape_cast %212 : vector<1x32x32xf32> to vector<32x32xf32>
    %cst_208 = arith.constant dense<0.000000e+00> : vector<16x32xf32>
    %214 = tpu.matmul %210, %213, %cst_208 {dimension_numbers = #tpu.dot_dimension_numbers<[1], [0], [0], [1], [0, 0, 1, 1], [], []>} : vector<16x32xf32>, vector<32x32xf32>, vector<16x32xf32> -> vector<16x32xf32>
    %c7_209 = arith.constant 7 : index
    %c0_210 = arith.constant 0 : index
    %c0_211 = arith.constant 0 : index
    %215 = vector.load %arg13[%c7_209, %c0_210, %c0_211] : memref<9x32x32xf32, #tpu.memory_space<vmem>>, vector<1x32x32xf32>
    %216 = vector.shape_cast %215 : vector<1x32x32xf32> to vector<32x32xf32>
    %cst_212 = arith.constant dense<0.000000e+00> : vector<16x32xf32>
    %217 = tpu.matmul %139, %216, %cst_212 {dimension_numbers = #tpu.dot_dimension_numbers<[1], [0], [0], [1], [0, 0, 1, 1], [], []>} : vector<16x32xf32>, vector<32x32xf32>, vector<16x32xf32> -> vector<16x32xf32>
    %218 = arith.addf %214, %217 : vector<16x32xf32>
    %c8_213 = arith.constant 8 : index
    %c0_214 = arith.constant 0 : index
    %c0_215 = arith.constant 0 : index
    %219 = vector.load %arg13[%c8_213, %c0_214, %c0_215] : memref<9x32x32xf32, #tpu.memory_space<vmem>>, vector<1x32x32xf32>
    %220 = vector.shape_cast %219 : vector<1x32x32xf32> to vector<32x32xf32>
    %cst_216 = arith.constant dense<0.000000e+00> : vector<16x32xf32>
    %221 = tpu.matmul %211, %220, %cst_216 {dimension_numbers = #tpu.dot_dimension_numbers<[1], [0], [0], [1], [0, 0, 1, 1], [], []>} : vector<16x32xf32>, vector<32x32xf32>, vector<16x32xf32> -> vector<16x32xf32>
    %222 = arith.addf %218, %221 : vector<16x32xf32>
    %223 = arith.addf %209, %222 : vector<16x32xf32>
    %224 = vector.broadcast %182 : vector<1x32xf32> to vector<16x32xf32>
    %225 = arith.addf %223, %224 : vector<16x32xf32>
    %c0_217 = arith.constant 0 : index
    %c0_218 = arith.constant 0 : index
    %226 = vector.load %arg15[%c0_217, %c0_218] : memref<32x32xf32, #tpu.memory_space<vmem>>, vector<32x32xf32>
    %cst_219 = arith.constant dense<0.000000e+00> : vector<16x32xf32>
    %227 = tpu.matmul %225, %226, %cst_219 {dimension_numbers = #tpu.dot_dimension_numbers<[1], [0], [0], [1], [0, 0, 1, 1], [], []>} : vector<16x32xf32>, vector<32x32xf32>, vector<16x32xf32> -> vector<16x32xf32>
    %c0_220 = arith.constant 0 : index
    %c0_221 = arith.constant 0 : index
    %228 = vector.load %arg16[%c0_220, %c0_221] : memref<1x32xf32, #tpu.memory_space<vmem>>, vector<1x32xf32>
    %229 = vector.broadcast %228 : vector<1x32xf32> to vector<16x32xf32>
    %230 = arith.addf %227, %229 : vector<16x32xf32>
    %c0_222 = arith.constant 0 : index
    %c0_223 = arith.constant 0 : index
    %231 = vector.load %arg18[%c0_222, %c0_223] : memref<1x12xf32, #tpu.memory_space<vmem>>, vector<1x12xf32>
    %232 = vector.extract_strided_slice %230 {offsets = [0, 0], sizes = [1, 32], strides = [1, 1]} : vector<16x32xf32> to vector<1x32xf32>
    %c0_224 = arith.constant 0 : index
    %c0_225 = arith.constant 0 : index
    %c0_226 = arith.constant 0 : index
    %233 = vector.load %arg17[%c0_224, %c0_225, %c0_226] : memref<16x32x12xf32, #tpu.memory_space<vmem>>, vector<1x32x12xf32>
    %234 = vector.shape_cast %233 : vector<1x32x12xf32> to vector<32x12xf32>
    %cst_227 = arith.constant dense<0.000000e+00> : vector<1x12xf32>
    %235 = tpu.matmul %232, %234, %cst_227 {dimension_numbers = #tpu.dot_dimension_numbers<[1], [0], [0], [1], [0, 0, 1, 1], [], []>} : vector<1x32xf32>, vector<32x12xf32>, vector<1x12xf32> -> vector<1x12xf32>
    %236 = arith.addf %231, %235 : vector<1x12xf32>
    %237 = vector.extract_strided_slice %230 {offsets = [1, 0], sizes = [1, 32], strides = [1, 1]} : vector<16x32xf32> to vector<1x32xf32>
    %c1_228 = arith.constant 1 : index
    %c0_229 = arith.constant 0 : index
    %c0_230 = arith.constant 0 : index
    %238 = vector.load %arg17[%c1_228, %c0_229, %c0_230] : memref<16x32x12xf32, #tpu.memory_space<vmem>>, vector<1x32x12xf32>
    %239 = vector.shape_cast %238 : vector<1x32x12xf32> to vector<32x12xf32>
    %cst_231 = arith.constant dense<0.000000e+00> : vector<1x12xf32>
    %240 = tpu.matmul %237, %239, %cst_231 {dimension_numbers = #tpu.dot_dimension_numbers<[1], [0], [0], [1], [0, 0, 1, 1], [], []>} : vector<1x32xf32>, vector<32x12xf32>, vector<1x12xf32> -> vector<1x12xf32>
    %241 = arith.addf %236, %240 : vector<1x12xf32>
    %242 = vector.extract_strided_slice %230 {offsets = [2, 0], sizes = [1, 32], strides = [1, 1]} : vector<16x32xf32> to vector<1x32xf32>
    %c2_232 = arith.constant 2 : index
    %c0_233 = arith.constant 0 : index
    %c0_234 = arith.constant 0 : index
    %243 = vector.load %arg17[%c2_232, %c0_233, %c0_234] : memref<16x32x12xf32, #tpu.memory_space<vmem>>, vector<1x32x12xf32>
    %244 = vector.shape_cast %243 : vector<1x32x12xf32> to vector<32x12xf32>
    %cst_235 = arith.constant dense<0.000000e+00> : vector<1x12xf32>
    %245 = tpu.matmul %242, %244, %cst_235 {dimension_numbers = #tpu.dot_dimension_numbers<[1], [0], [0], [1], [0, 0, 1, 1], [], []>} : vector<1x32xf32>, vector<32x12xf32>, vector<1x12xf32> -> vector<1x12xf32>
    %246 = arith.addf %241, %245 : vector<1x12xf32>
    %247 = vector.extract_strided_slice %230 {offsets = [3, 0], sizes = [1, 32], strides = [1, 1]} : vector<16x32xf32> to vector<1x32xf32>
    %c3_236 = arith.constant 3 : index
    %c0_237 = arith.constant 0 : index
    %c0_238 = arith.constant 0 : index
    %248 = vector.load %arg17[%c3_236, %c0_237, %c0_238] : memref<16x32x12xf32, #tpu.memory_space<vmem>>, vector<1x32x12xf32>
    %249 = vector.shape_cast %248 : vector<1x32x12xf32> to vector<32x12xf32>
    %cst_239 = arith.constant dense<0.000000e+00> : vector<1x12xf32>
    %250 = tpu.matmul %247, %249, %cst_239 {dimension_numbers = #tpu.dot_dimension_numbers<[1], [0], [0], [1], [0, 0, 1, 1], [], []>} : vector<1x32xf32>, vector<32x12xf32>, vector<1x12xf32> -> vector<1x12xf32>
    %251 = arith.addf %246, %250 : vector<1x12xf32>
    %252 = vector.extract_strided_slice %230 {offsets = [4, 0], sizes = [1, 32], strides = [1, 1]} : vector<16x32xf32> to vector<1x32xf32>
    %c4_240 = arith.constant 4 : index
    %c0_241 = arith.constant 0 : index
    %c0_242 = arith.constant 0 : index
    %253 = vector.load %arg17[%c4_240, %c0_241, %c0_242] : memref<16x32x12xf32, #tpu.memory_space<vmem>>, vector<1x32x12xf32>
    %254 = vector.shape_cast %253 : vector<1x32x12xf32> to vector<32x12xf32>
    %cst_243 = arith.constant dense<0.000000e+00> : vector<1x12xf32>
    %255 = tpu.matmul %252, %254, %cst_243 {dimension_numbers = #tpu.dot_dimension_numbers<[1], [0], [0], [1], [0, 0, 1, 1], [], []>} : vector<1x32xf32>, vector<32x12xf32>, vector<1x12xf32> -> vector<1x12xf32>
    %256 = arith.addf %251, %255 : vector<1x12xf32>
    %257 = vector.extract_strided_slice %230 {offsets = [5, 0], sizes = [1, 32], strides = [1, 1]} : vector<16x32xf32> to vector<1x32xf32>
    %c5_244 = arith.constant 5 : index
    %c0_245 = arith.constant 0 : index
    %c0_246 = arith.constant 0 : index
    %258 = vector.load %arg17[%c5_244, %c0_245, %c0_246] : memref<16x32x12xf32, #tpu.memory_space<vmem>>, vector<1x32x12xf32>
    %259 = vector.shape_cast %258 : vector<1x32x12xf32> to vector<32x12xf32>
    %cst_247 = arith.constant dense<0.000000e+00> : vector<1x12xf32>
    %260 = tpu.matmul %257, %259, %cst_247 {dimension_numbers = #tpu.dot_dimension_numbers<[1], [0], [0], [1], [0, 0, 1, 1], [], []>} : vector<1x32xf32>, vector<32x12xf32>, vector<1x12xf32> -> vector<1x12xf32>
    %261 = arith.addf %256, %260 : vector<1x12xf32>
    %262 = vector.extract_strided_slice %230 {offsets = [6, 0], sizes = [1, 32], strides = [1, 1]} : vector<16x32xf32> to vector<1x32xf32>
    %c6_248 = arith.constant 6 : index
    %c0_249 = arith.constant 0 : index
    %c0_250 = arith.constant 0 : index
    %263 = vector.load %arg17[%c6_248, %c0_249, %c0_250] : memref<16x32x12xf32, #tpu.memory_space<vmem>>, vector<1x32x12xf32>
    %264 = vector.shape_cast %263 : vector<1x32x12xf32> to vector<32x12xf32>
    %cst_251 = arith.constant dense<0.000000e+00> : vector<1x12xf32>
    %265 = tpu.matmul %262, %264, %cst_251 {dimension_numbers = #tpu.dot_dimension_numbers<[1], [0], [0], [1], [0, 0, 1, 1], [], []>} : vector<1x32xf32>, vector<32x12xf32>, vector<1x12xf32> -> vector<1x12xf32>
    %266 = arith.addf %261, %265 : vector<1x12xf32>
    %267 = vector.extract_strided_slice %230 {offsets = [7, 0], sizes = [1, 32], strides = [1, 1]} : vector<16x32xf32> to vector<1x32xf32>
    %c7_252 = arith.constant 7 : index
    %c0_253 = arith.constant 0 : index
    %c0_254 = arith.constant 0 : index
    %268 = vector.load %arg17[%c7_252, %c0_253, %c0_254] : memref<16x32x12xf32, #tpu.memory_space<vmem>>, vector<1x32x12xf32>
    %269 = vector.shape_cast %268 : vector<1x32x12xf32> to vector<32x12xf32>
    %cst_255 = arith.constant dense<0.000000e+00> : vector<1x12xf32>
    %270 = tpu.matmul %267, %269, %cst_255 {dimension_numbers = #tpu.dot_dimension_numbers<[1], [0], [0], [1], [0, 0, 1, 1], [], []>} : vector<1x32xf32>, vector<32x12xf32>, vector<1x12xf32> -> vector<1x12xf32>
    %271 = arith.addf %266, %270 : vector<1x12xf32>
    %272 = vector.extract_strided_slice %230 {offsets = [8, 0], sizes = [1, 32], strides = [1, 1]} : vector<16x32xf32> to vector<1x32xf32>
    %c8_256 = arith.constant 8 : index
    %c0_257 = arith.constant 0 : index
    %c0_258 = arith.constant 0 : index
    %273 = vector.load %arg17[%c8_256, %c0_257, %c0_258] : memref<16x32x12xf32, #tpu.memory_space<vmem>>, vector<1x32x12xf32>
    %274 = vector.shape_cast %273 : vector<1x32x12xf32> to vector<32x12xf32>
    %cst_259 = arith.constant dense<0.000000e+00> : vector<1x12xf32>
    %275 = tpu.matmul %272, %274, %cst_259 {dimension_numbers = #tpu.dot_dimension_numbers<[1], [0], [0], [1], [0, 0, 1, 1], [], []>} : vector<1x32xf32>, vector<32x12xf32>, vector<1x12xf32> -> vector<1x12xf32>
    %276 = arith.addf %271, %275 : vector<1x12xf32>
    %277 = vector.extract_strided_slice %230 {offsets = [9, 0], sizes = [1, 32], strides = [1, 1]} : vector<16x32xf32> to vector<1x32xf32>
    %c9_260 = arith.constant 9 : index
    %c0_261 = arith.constant 0 : index
    %c0_262 = arith.constant 0 : index
    %278 = vector.load %arg17[%c9_260, %c0_261, %c0_262] : memref<16x32x12xf32, #tpu.memory_space<vmem>>, vector<1x32x12xf32>
    %279 = vector.shape_cast %278 : vector<1x32x12xf32> to vector<32x12xf32>
    %cst_263 = arith.constant dense<0.000000e+00> : vector<1x12xf32>
    %280 = tpu.matmul %277, %279, %cst_263 {dimension_numbers = #tpu.dot_dimension_numbers<[1], [0], [0], [1], [0, 0, 1, 1], [], []>} : vector<1x32xf32>, vector<32x12xf32>, vector<1x12xf32> -> vector<1x12xf32>
    %281 = arith.addf %276, %280 : vector<1x12xf32>
    %282 = vector.extract_strided_slice %230 {offsets = [10, 0], sizes = [1, 32], strides = [1, 1]} : vector<16x32xf32> to vector<1x32xf32>
    %c10_264 = arith.constant 10 : index
    %c0_265 = arith.constant 0 : index
    %c0_266 = arith.constant 0 : index
    %283 = vector.load %arg17[%c10_264, %c0_265, %c0_266] : memref<16x32x12xf32, #tpu.memory_space<vmem>>, vector<1x32x12xf32>
    %284 = vector.shape_cast %283 : vector<1x32x12xf32> to vector<32x12xf32>
    %cst_267 = arith.constant dense<0.000000e+00> : vector<1x12xf32>
    %285 = tpu.matmul %282, %284, %cst_267 {dimension_numbers = #tpu.dot_dimension_numbers<[1], [0], [0], [1], [0, 0, 1, 1], [], []>} : vector<1x32xf32>, vector<32x12xf32>, vector<1x12xf32> -> vector<1x12xf32>
    %286 = arith.addf %281, %285 : vector<1x12xf32>
    %287 = vector.extract_strided_slice %230 {offsets = [11, 0], sizes = [1, 32], strides = [1, 1]} : vector<16x32xf32> to vector<1x32xf32>
    %c11_268 = arith.constant 11 : index
    %c0_269 = arith.constant 0 : index
    %c0_270 = arith.constant 0 : index
    %288 = vector.load %arg17[%c11_268, %c0_269, %c0_270] : memref<16x32x12xf32, #tpu.memory_space<vmem>>, vector<1x32x12xf32>
    %289 = vector.shape_cast %288 : vector<1x32x12xf32> to vector<32x12xf32>
    %cst_271 = arith.constant dense<0.000000e+00> : vector<1x12xf32>
    %290 = tpu.matmul %287, %289, %cst_271 {dimension_numbers = #tpu.dot_dimension_numbers<[1], [0], [0], [1], [0, 0, 1, 1], [], []>} : vector<1x32xf32>, vector<32x12xf32>, vector<1x12xf32> -> vector<1x12xf32>
    %291 = arith.addf %286, %290 : vector<1x12xf32>
    %292 = vector.extract_strided_slice %230 {offsets = [12, 0], sizes = [1, 32], strides = [1, 1]} : vector<16x32xf32> to vector<1x32xf32>
    %c12_272 = arith.constant 12 : index
    %c0_273 = arith.constant 0 : index
    %c0_274 = arith.constant 0 : index
    %293 = vector.load %arg17[%c12_272, %c0_273, %c0_274] : memref<16x32x12xf32, #tpu.memory_space<vmem>>, vector<1x32x12xf32>
    %294 = vector.shape_cast %293 : vector<1x32x12xf32> to vector<32x12xf32>
    %cst_275 = arith.constant dense<0.000000e+00> : vector<1x12xf32>
    %295 = tpu.matmul %292, %294, %cst_275 {dimension_numbers = #tpu.dot_dimension_numbers<[1], [0], [0], [1], [0, 0, 1, 1], [], []>} : vector<1x32xf32>, vector<32x12xf32>, vector<1x12xf32> -> vector<1x12xf32>
    %296 = arith.addf %291, %295 : vector<1x12xf32>
    %297 = vector.extract_strided_slice %230 {offsets = [13, 0], sizes = [1, 32], strides = [1, 1]} : vector<16x32xf32> to vector<1x32xf32>
    %c13_276 = arith.constant 13 : index
    %c0_277 = arith.constant 0 : index
    %c0_278 = arith.constant 0 : index
    %298 = vector.load %arg17[%c13_276, %c0_277, %c0_278] : memref<16x32x12xf32, #tpu.memory_space<vmem>>, vector<1x32x12xf32>
    %299 = vector.shape_cast %298 : vector<1x32x12xf32> to vector<32x12xf32>
    %cst_279 = arith.constant dense<0.000000e+00> : vector<1x12xf32>
    %300 = tpu.matmul %297, %299, %cst_279 {dimension_numbers = #tpu.dot_dimension_numbers<[1], [0], [0], [1], [0, 0, 1, 1], [], []>} : vector<1x32xf32>, vector<32x12xf32>, vector<1x12xf32> -> vector<1x12xf32>
    %301 = arith.addf %296, %300 : vector<1x12xf32>
    %302 = vector.extract_strided_slice %230 {offsets = [14, 0], sizes = [1, 32], strides = [1, 1]} : vector<16x32xf32> to vector<1x32xf32>
    %c14_280 = arith.constant 14 : index
    %c0_281 = arith.constant 0 : index
    %c0_282 = arith.constant 0 : index
    %303 = vector.load %arg17[%c14_280, %c0_281, %c0_282] : memref<16x32x12xf32, #tpu.memory_space<vmem>>, vector<1x32x12xf32>
    %304 = vector.shape_cast %303 : vector<1x32x12xf32> to vector<32x12xf32>
    %cst_283 = arith.constant dense<0.000000e+00> : vector<1x12xf32>
    %305 = tpu.matmul %302, %304, %cst_283 {dimension_numbers = #tpu.dot_dimension_numbers<[1], [0], [0], [1], [0, 0, 1, 1], [], []>} : vector<1x32xf32>, vector<32x12xf32>, vector<1x12xf32> -> vector<1x12xf32>
    %306 = arith.addf %301, %305 : vector<1x12xf32>
    %307 = vector.extract_strided_slice %230 {offsets = [15, 0], sizes = [1, 32], strides = [1, 1]} : vector<16x32xf32> to vector<1x32xf32>
    %c15 = arith.constant 15 : index
    %c0_284 = arith.constant 0 : index
    %c0_285 = arith.constant 0 : index
    %308 = vector.load %arg17[%c15, %c0_284, %c0_285] : memref<16x32x12xf32, #tpu.memory_space<vmem>>, vector<1x32x12xf32>
    %309 = vector.shape_cast %308 : vector<1x32x12xf32> to vector<32x12xf32>
    %cst_286 = arith.constant dense<0.000000e+00> : vector<1x12xf32>
    %310 = tpu.matmul %307, %309, %cst_286 {dimension_numbers = #tpu.dot_dimension_numbers<[1], [0], [0], [1], [0, 0, 1, 1], [], []>} : vector<1x32xf32>, vector<32x12xf32>, vector<1x12xf32> -> vector<1x12xf32>
    %311 = arith.addf %306, %310 : vector<1x12xf32>
    %c0_287 = arith.constant 0 : index
    %c0_288 = arith.constant 0 : index
    %c0_289 = arith.constant 0 : index
    %312 = vector.load %arg25[%c0_287, %c0_288, %c0_289] : memref<1x1x12xf32, #tpu.memory_space<vmem>>, vector<1x1x12xf32>
    %313 = vector.shape_cast %312 : vector<1x1x12xf32> to vector<1x12xf32>
    %314 = vector.shape_cast %311 : vector<1x12xf32> to vector<1x1x12xf32>
    tpu.vector_store %arg25[%c0_287, %c0_288, %c0_289], %314 {strides = array<i32>} : memref<1x1x12xf32, #tpu.memory_space<vmem>>, vector<1x1x12xf32>,
    return
  }
  func.func @transform_0(%arg0: i32) -> (i32, i32, i32) {
    %c0_i32 = arith.constant 0 : i32
    %c0_i32_0 = arith.constant 0 : i32
    %c0_i32_1 = arith.constant 0 : i32
    return %arg0, %c0_i32, %c0_i32_0 : i32, i32, i32
  }
  func.func @transform_1(%arg0: i32) -> (i32, i32, i32) {
    %c0_i32 = arith.constant 0 : i32
    %c0_i32_0 = arith.constant 0 : i32
    %c0_i32_1 = arith.constant 0 : i32
    return %arg0, %c0_i32, %c0_i32_0 : i32, i32, i32
  }
  func.func @transform_2(%arg0: i32) -> (i32, i32, i32) {
    %c0_i32 = arith.constant 0 : i32
    %c0_i32_0 = arith.constant 0 : i32
    %c0_i32_1 = arith.constant 0 : i32
    return %arg0, %c0_i32, %c0_i32_0 : i32, i32, i32
  }
  func.func @transform_3(%arg0: i32) -> (i32, i32, i32) {
    %c0_i32 = arith.constant 0 : i32
    %c0_i32_0 = arith.constant 0 : i32
    %c0_i32_1 = arith.constant 0 : i32
    %c0_i32_2 = arith.constant 0 : i32
    return %c0_i32, %c0_i32_0, %c0_i32_1 : i32, i32, i32
  }
  func.func @transform_4(%arg0: i32) -> (i32, i32, i32) {
    %c0_i32 = arith.constant 0 : i32
    %c0_i32_0 = arith.constant 0 : i32
    %c0_i32_1 = arith.constant 0 : i32
    %c0_i32_2 = arith.constant 0 : i32
    return %c0_i32, %c0_i32_0, %c0_i32_1 : i32, i32, i32
  }
  func.func @transform_5(%arg0: i32) -> (i32, i32, i32) {
    %c0_i32 = arith.constant 0 : i32
    %c0_i32_0 = arith.constant 0 : i32
    %c0_i32_1 = arith.constant 0 : i32
    %c0_i32_2 = arith.constant 0 : i32
    return %c0_i32, %c0_i32_0, %c0_i32_1 : i32, i32, i32
  }
  func.func @transform_6(%arg0: i32) -> (i32, i32, i32) {
    %c0_i32 = arith.constant 0 : i32
    %c0_i32_0 = arith.constant 0 : i32
    %c0_i32_1 = arith.constant 0 : i32
    %c0_i32_2 = arith.constant 0 : i32
    return %c0_i32, %c0_i32_0, %c0_i32_1 : i32, i32, i32
  }
  func.func @transform_7(%arg0: i32) -> (i32, i32, i32) {
    %c0_i32 = arith.constant 0 : i32
    %c0_i32_0 = arith.constant 0 : i32
    %c0_i32_1 = arith.constant 0 : i32
    %c0_i32_2 = arith.constant 0 : i32
    return %c0_i32, %c0_i32_0, %c0_i32_1 : i32, i32, i32
  }
  func.func @transform_8(%arg0: i32) -> (i32, i32, i32) {
    %c0_i32 = arith.constant 0 : i32
    %c0_i32_0 = arith.constant 0 : i32
    %c0_i32_1 = arith.constant 0 : i32
    %c0_i32_2 = arith.constant 0 : i32
    return %c0_i32, %c0_i32_0, %c0_i32_1 : i32, i32, i32
  }
  func.func @transform_9(%arg0: i32) -> (i32, i32) {
    %c0_i32 = arith.constant 0 : i32
    %c0_i32_0 = arith.constant 0 : i32
    %c0_i32_1 = arith.constant 0 : i32
    return %c0_i32, %c0_i32_0 : i32, i32
  }
  func.func @transform_10(%arg0: i32) -> (i32, i32, i32) {
    %c0_i32 = arith.constant 0 : i32
    %c0_i32_0 = arith.constant 0 : i32
    %c0_i32_1 = arith.constant 0 : i32
    %c0_i32_2 = arith.constant 0 : i32
    return %c0_i32, %c0_i32_0, %c0_i32_1 : i32, i32, i32
  }
  func.func @transform_11(%arg0: i32) -> (i32, i32, i32) {
    %c0_i32 = arith.constant 0 : i32
    %c0_i32_0 = arith.constant 0 : i32
    %c0_i32_1 = arith.constant 0 : i32
    %c0_i32_2 = arith.constant 0 : i32
    return %c0_i32, %c0_i32_0, %c0_i32_1 : i32, i32, i32
  }
  func.func @transform_12(%arg0: i32) -> (i32, i32, i32) {
    %c0_i32 = arith.constant 0 : i32
    %c0_i32_0 = arith.constant 0 : i32
    %c0_i32_1 = arith.constant 0 : i32
    %c0_i32_2 = arith.constant 0 : i32
    return %c0_i32, %c0_i32_0, %c0_i32_1 : i32, i32, i32
  }
  func.func @transform_13(%arg0: i32) -> (i32, i32) {
    %c0_i32 = arith.constant 0 : i32
    %c0_i32_0 = arith.constant 0 : i32
    %c0_i32_1 = arith.constant 0 : i32
    return %c0_i32, %c0_i32_0 : i32, i32
  }
  func.func @transform_14(%arg0: i32) -> (i32, i32) {
    %c0_i32 = arith.constant 0 : i32
    %c0_i32_0 = arith.constant 0 : i32
    %c0_i32_1 = arith.constant 0 : i32
    return %c0_i32, %c0_i32_0 : i32, i32
  }
  func.func @transform_15(%arg0: i32) -> (i32, i32) {
    %c0_i32 = arith.constant 0 : i32
    %c0_i32_0 = arith.constant 0 : i32
    %c0_i32_1 = arith.constant 0 : i32
    return %c0_i32, %c0_i32_0 : i32, i32
  }
  func.func @transform_16(%arg0: i32) -> (i32, i32, i32) {
    %c0_i32 = arith.constant 0 : i32
    %c0_i32_0 = arith.constant 0 : i32
    %c0_i32_1 = arith.constant 0 : i32
    %c0_i32_2 = arith.constant 0 : i32
    return %c0_i32, %c0_i32_0, %c0_i32_1 : i32, i32, i32
  }
  func.func @transform_17(%arg0: i32) -> (i32, i32) {
    %c0_i32 = arith.constant 0 : i32
    %c0_i32_0 = arith.constant 0 : i32
    %c0_i32_1 = arith.constant 0 : i32
    return %c0_i32, %c0_i32_0 : i32, i32
  }
  func.func @transform_18(%arg0: i32) -> (i32, i32) {
    %c0_i32 = arith.constant 0 : i32
    %c0_i32_0 = arith.constant 0 : i32
    %c0_i32_1 = arith.constant 0 : i32
    return %c0_i32, %c0_i32_0 : i32, i32
  }
  func.func @transform_19(%arg0: i32) -> (i32, i32) {
    %c0_i32 = arith.constant 0 : i32
    %c0_i32_0 = arith.constant 0 : i32
    %c0_i32_1 = arith.constant 0 : i32
    return %c0_i32, %c0_i32_0 : i32, i32
  }
  func.func @transform_20(%arg0: i32) -> (i32, i32) {
    %c0_i32 = arith.constant 0 : i32
    %c0_i32_0 = arith.constant 0 : i32
    %c0_i32_1 = arith.constant 0 : i32
    return %c0_i32, %c0_i32_0 : i32, i32
  }
  func.func @transform_21(%arg0: i32) -> (i32, i32) {
    %c0_i32 = arith.constant 0 : i32
    %c0_i32_0 = arith.constant 0 : i32
    %c0_i32_1 = arith.constant 0 : i32
    return %c0_i32, %c0_i32_0 : i32, i32
  }
  func.func @transform_22(%arg0: i32) -> (i32, i32) {
    %c0_i32 = arith.constant 0 : i32
    %c0_i32_0 = arith.constant 0 : i32
    %c0_i32_1 = arith.constant 0 : i32
    return %c0_i32, %c0_i32_0 : i32, i32
  }
  func.func @transform_23(%arg0: i32) -> (i32, i32) {
    %c0_i32 = arith.constant 0 : i32
    %c0_i32_0 = arith.constant 0 : i32
    %c0_i32_1 = arith.constant 0 : i32
    return %c0_i32, %c0_i32_0 : i32, i32
  }
  func.func @transform_24(%arg0: i32) -> (i32, i32, i32) {
    %c0_i32 = arith.constant 0 : i32
    %c0_i32_0 = arith.constant 0 : i32
    %c0_i32_1 = arith.constant 0 : i32
    return %arg0, %c0_i32, %c0_i32_0 : i32, i32, i32
  }
}

</mosaic_0001>

<llo_original>
// kernel: tpu_custom_call.1
$region0: #{tpu_custom_call.1}
  #allocation0 [shape = 'u32[]', space=smem, size = 0x4, offset = 0x4, fixed_abs, tag = 'smem constant byte address 0x4 - core index']
  #allocation1 [shape = 'u32[144,128]{1,0:T(1,128)}', space=vmem, size = 0x12000, scoped, tag = 'internal scratch']
  %s0 = inlined_call_operand.hbm [shape: f32[2,4,32], index: 0, kind: input, shape index: {}]
  %s1 = inlined_call_operand.hbm [shape: f32[2,8,32], index: 1, kind: input, shape index: {}]
  %s2 = inlined_call_operand.hbm [shape: f32[2,16,32], index: 2, kind: input, shape index: {}]
  %s3 = inlined_call_operand.hbm [shape: f32[2,32,32], index: 3, kind: input, shape index: {}]
  %s4 = inlined_call_operand.hbm [shape: f32[2,1,32], index: 4, kind: input, shape index: {}]
  %s5 = inlined_call_operand.hbm [shape: f32[4,32,32], index: 5, kind: input, shape index: {}]
  %s6 = inlined_call_operand.hbm [shape: f32[4,1,32], index: 6, kind: input, shape index: {}]
  %s7 = inlined_call_operand.hbm [shape: f32[4,16,16], index: 7, kind: input, shape index: {}]
  %s8 = inlined_call_operand.vmem [shape: f32[15,32,32], index: 8, kind: input, shape index: {}]
  %s9 = inlined_call_operand.hbm [shape: f32[1,32], index: 9, kind: input, shape index: {}]
  %s10 = inlined_call_operand.hbm [shape: f32[6,32,32], index: 10, kind: input, shape index: {}]
  %s11 = inlined_call_operand.hbm [shape: f32[2,1,32], index: 11, kind: input, shape index: {}]
  %s12 = inlined_call_operand.vmem [shape: f32[9,32,32], index: 12, kind: input, shape index: {}]
  %s13 = inlined_call_operand.hbm [shape: f32[1,32], index: 13, kind: input, shape index: {}]
  %s14 = inlined_call_operand.vmem [shape: f32[32,32], index: 14, kind: input, shape index: {}]
  %s15 = inlined_call_operand.hbm [shape: f32[1,32], index: 15, kind: input, shape index: {}]
  %s16 = inlined_call_operand.vmem [shape: f32[16,32,12], index: 16, kind: input, shape index: {}]
  %s17 = inlined_call_operand.hbm [shape: f32[1,12], index: 17, kind: input, shape index: {}]
  %s18 = inlined_call_operand.vmem [shape: f32[8,4], index: 18, kind: input, shape index: {}]
  %s19 = inlined_call_operand.vmem [shape: f32[16,8], index: 19, kind: input, shape index: {}]
  %s20 = inlined_call_operand.vmem [shape: f32[16,4], index: 20, kind: input, shape index: {}]
  %s21 = inlined_call_operand.vmem [shape: f32[16,8], index: 21, kind: input, shape index: {}]
  %s22 = inlined_call_operand.vmem [shape: f32[16,16], index: 22, kind: input, shape index: {}]
  %s23 = inlined_call_operand.hbm [shape: f32[16,16], index: 23, kind: input, shape index: {}]
  %s24 = inlined_call_operand.hbm [shape: f32[2,1,12], index: 24, kind: output, shape index: {}]
  %s25 = sld [smem:[#allocation0]]
  $region189: #{tpu_custom_call.1} parent=0
    _
  %s27 = ssub.s32 1, %s25
  %s28 = scalar_select 0, %s27, %s25
  $region1: #{tpu_custom_call.1} parent=0
    #allocation2 [shape = 'u8[4096]{0}', space=vmem, size = 0x1000, scoped, tag = 'input window, operand 0']
    #allocation3 [shape = 's32[2]{0}', space=sflag, size = 0x8, scoped, tag = 'scoped memory for tpu_custom_call.1']
    #allocation4 [shape = 's32[2]{0}', space=sflag, size = 0x8, scoped, tag = 'scoped memory for tpu_custom_call.1']
    #allocation5 [shape = 'u8[8192]{0}', space=vmem, size = 0x2000, scoped, tag = 'input window, operand 1']
    #allocation6 [shape = 's32[2]{0}', space=sflag, size = 0x8, scoped, tag = 'scoped memory for tpu_custom_call.1']
    #allocation7 [shape = 'u8[16384]{0}', space=vmem, size = 0x4000, scoped, tag = 'input window, operand 2']
    #allocation8 [shape = 'u8[32768]{0}', space=vmem, size = 0x8000, scoped, tag = 'input window, operand 3, single buffered']
    #allocation9 [shape = 's32[1]{0}', space=sflag, size = 0x4, scoped, tag = 'scoped memory for tpu_custom_call.1']
    #allocation10 [shape = 'u8[1024]{0}', space=vmem, size = 0x400, scoped, tag = 'input window, operand 4, single buffered']
    #allocation11 [shape = 'u8[65536]{0}', space=vmem, size = 0x10000, scoped, tag = 'input window, operand 5, single buffered']
    #allocation12 [shape = 's32[1]{0}', space=sflag, size = 0x4, scoped, tag = 'scoped memory for tpu_custom_call.1']
    #allocation13 [shape = 'u8[2048]{0}', space=vmem, size = 0x800, scoped, tag = 'input window, operand 6, single buffered']
    #allocation14 [shape = 'u8[32768]{0}', space=vmem, size = 0x8000, scoped, tag = 'input window, operand 7, single buffered']
    #allocation15 [shape = 's32[1]{0}', space=sflag, size = 0x4, scoped, tag = 'scoped memory for tpu_custom_call.1']
    #allocation16 [shape = 'u8[512]{0}', space=vmem, size = 0x400, scoped, tag = 'input window, operand 9, single buffered']
    #allocation17 [shape = 'u8[98304]{0}', space=vmem, size = 0x18000, scoped, tag = 'input window, operand 10, single buffered']
    #allocation18 [shape = 's32[1]{0}', space=sflag, size = 0x4, scoped, tag = 'scoped memory for tpu_custom_call.1']
    #allocation19 [shape = 'u8[1024]{0}', space=vmem, size = 0x400, scoped, tag = 'input window, operand 11, single buffered']
    #allocation20 [shape = 'u8[512]{0}', space=vmem, size = 0x400, scoped, tag = 'input window, operand 13, single buffered']
    #allocation21 [shape = 's32[1]{0}', space=sflag, size = 0x4, scoped, tag = 'scoped memory for tpu_custom_call.1']
    #allocation22 [shape = 'u8[512]{0}', space=vmem, size = 0x400, scoped, tag = 'input window, operand 15, single buffered']
    #allocation23 [shape = 'u8[512]{0}', space=vmem, size = 0x400, scoped, tag = 'input window, operand 17, single buffered']
    #allocation24 [shape = 's32[1]{0}', space=sflag, size = 0x4, scoped, tag = 'scoped memory for tpu_custom_call.1']
    #allocation25 [shape = 'u8[8192]{0}', space=vmem, size = 0x2000, scoped, tag = 'input window, operand 23, single buffered']
    #allocation26 [shape = 'u8[1024]{0}', space=vmem, size = 0x400, scoped, tag = 'output window, operand 0']
    %29 = vsyncpa [#allocation3], 0
    %s30 = scalar_lea.sflag [#allocation3], 1
    %31 = vsyncpa %s30, 0
    %32 = vsyncpa [#allocation6], 0
    %s33 = scalar_lea.sflag [#allocation6], 1
    %34 = vsyncpa %s33, 0
    %35 = vsyncpa [#allocation9], 0
    %36 = vsyncpa [#allocation12], 0
    %37 = vsyncpa [#allocation15], 0
    %38 = vsyncpa [#allocation18], 0
    %39 = vsyncpa [#allocation21], 0
    %40 = vsyncpa [#allocation24], 0
    %41 = vsyncpa [#allocation4], 0
    %s42 = scalar_lea.sflag [#allocation4], 1
    %43 = vsyncpa %s42, 0
    loop: start=0, step=1, limit=4
    $region2: #{tpu_custom_call.1} parent=1 // loop_pre_header
      _
    $region3: #{tpu_custom_call.1} parent=1 // loop_header
      %s45 = sphi 0, %s49
      %p46 = scmp.ge.s32.totalorder %s45, 4
      %s55 = sphi 0, %s57
      %s58 = sphi 0, %s55
      %s59 = sphi 0, %s58
      %s75 = sphi 0, %s59
      %s81 = sphi 0, %s83
      %s84 = sphi 0, %s81
      %s85 = sphi 0, %s84
      %s101 = sphi 0, %s85
      %s107 = sphi 0, %s109
      %s110 = sphi 0, %s107
      %s111 = sphi 0, %s110
      %s127 = sphi 0, %s111
      %s131 = sphi 0, %s131
      %s133 = sphi 0, %s131
      %s134 = sphi 0, %s133
      %s148 = sphi 0, %s134
      %s152 = sphi 0, %s152
      %s154 = sphi 0, %s152
      %s155 = sphi 0, %s154
      %s169 = sphi 0, %s155
      %s173 = sphi 0, %s173
      %s175 = sphi 0, %s173
      %s176 = sphi 0, %s175
      %s190 = sphi 0, %s176
      %s194 = sphi 0, %s194
      %s196 = sphi 0, %s194
      %s197 = sphi 0, %s196
      %s211 = sphi 0, %s197
      %s215 = sphi 0, %s215
      %s217 = sphi 0, %s215
      %s218 = sphi 0, %s217
      %s232 = sphi 0, %s218
      %s236 = sphi 0, %s236
      %s238 = sphi 0, %s236
      %s239 = sphi 0, %s238
      %s253 = sphi 0, %s239
      %s257 = sphi 0, %s257
      %s259 = sphi 0, %s257
      %s260 = sphi 0, %s259
      %s274 = sphi 0, %s260
      %s278 = sphi 0, %s278
      %s280 = sphi 0, %s278
      %s281 = sphi 0, %s280
      %s295 = sphi 0, %s281
      %s299 = sphi 0, %s299
      %s301 = sphi 0, %s299
      %s302 = sphi 0, %s301
      %s316 = sphi 0, %s302
      %s320 = sphi 0, %s320
      %s322 = sphi 0, %s320
      %s323 = sphi 0, %s322
      %s337 = sphi 0, %s323
      %s341 = sphi 0, %s341
      %s343 = sphi 0, %s341
      %s344 = sphi 0, %s343
      %s358 = sphi 0, %s344
      %s362 = sphi 0, %s362
      %s364 = sphi 0, %s362
      %s365 = sphi 0, %s364
      %s379 = sphi 0, %s365
      %s383 = sphi 0, %s383
      %s385 = sphi 0, %s383
      %s386 = sphi 0, %s385
      %s400 = sphi 0, %s386
      %s404 = sphi 0, %s404
      %s406 = sphi 0, %s404
      %s407 = sphi 0, %s406
      %s421 = sphi 0, %s407
      %s425 = sphi 0, %s425
      %s427 = sphi 0, %s425
      %s428 = sphi 0, %s427
      %s442 = sphi 0, %s428
      %s446 = sphi 0, %s446
      %s448 = sphi 0, %s446
      %s449 = sphi 0, %s448
      %s463 = sphi 0, %s449
      %s467 = sphi 0, %s467
      %s469 = sphi 0, %s467
      %s470 = sphi 0, %s469
      %s484 = sphi 0, %s470
      %s488 = sphi 0, %s488
      %s490 = sphi 0, %s488
      %s491 = sphi 0, %s490
      %s505 = sphi 0, %s491
      %s509 = sphi 0, %s509
      %s511 = sphi 0, %s509
      %s512 = sphi 0, %s511
      %s526 = sphi 0, %s512
      %s530 = sphi 0, %s530
      %s532 = sphi 0, %s530
      %s533 = sphi 0, %s532
      %s547 = sphi 0, %s533
      %s551 = sphi 0, %s551
      %s553 = sphi 0, %s551
      %s554 = sphi 0, %s553
      %s568 = sphi 0, %s554
      %s574 = sphi 0, %s576
      %s577 = sphi 0, %s574
      %s578 = sphi 0, %s577
      %s594 = sphi 0, %s578
    $region4: #{tpu_custom_call.1} parent=1 // loop_header_branch
      %48 = sbr.rel (%p46) target = $region8
    $region5: #{tpu_custom_call.1} parent=1 // loop_body
      %s50 = ssub.s32 %s45, 1
      %s51 = ssub.s32 %s45, 2
      %s52 = sadd.s32 %s45, 1
      %s53 = ssub.s32 %s45, %s52
      %p54 = scmp.eq.s32.totalorder %s53, 0
      %s56 = sadd.s32 %s55, 1
      %s57 = scalar_select %p54, %s55, %s56
      %p60 = pneg %p54
      %p61 = scmp.eq.s32.totalorder %s45, 1
      %p62 = por %p60, %p61
      %p63 = scmp.ne.s32.totalorder %s55, %s58
      %p64 = scmp.eq.s32.totalorder %s45, 0
      %p65 = por %p63, %p64
      %p66 = scmp.ne.s32.totalorder %s55, %s58
      %p67 = scmp.eq.s32.totalorder %s50, 1
      %p68 = por %p66, %p67
      %p69 = scmp.ne.s32.totalorder %s58, %s59
      %p70 = scmp.eq.s32.totalorder %s50, 0
      %p71 = por %p69, %p70
      %p72 = scmp.ne.s32.totalorder %s58, %s59
      %p73 = scmp.eq.s32.totalorder %s51, 1
      %p74 = por %p72, %p73
      %p76 = scmp.ne.s32.totalorder %s59, %s75
      %p77 = scmp.eq.s32.totalorder %s51, 0
      %p78 = por %p76, %p77
      %s79 = ssub.s32 %s45, %s52
      %p80 = scmp.eq.s32.totalorder %s79, 0
      %s82 = sadd.s32 %s81, 1
      %s83 = scalar_select %p80, %s81, %s82
      %p86 = pneg %p80
      %p87 = scmp.eq.s32.totalorder %s45, 1
      %p88 = por %p86, %p87
      %p89 = scmp.ne.s32.totalorder %s81, %s84
      %p90 = scmp.eq.s32.totalorder %s45, 0
      %p91 = por %p89, %p90
      %p92 = scmp.ne.s32.totalorder %s81, %s84
      %p93 = scmp.eq.s32.totalorder %s50, 1
      %p94 = por %p92, %p93
      %p95 = scmp.ne.s32.totalorder %s84, %s85
      %p96 = scmp.eq.s32.totalorder %s50, 0
      %p97 = por %p95, %p96
      %p98 = scmp.ne.s32.totalorder %s84, %s85
      %p99 = scmp.eq.s32.totalorder %s51, 1
      %p100 = por %p98, %p99
      %p102 = scmp.ne.s32.totalorder %s85, %s101
      %p103 = scmp.eq.s32.totalorder %s51, 0
      %p104 = por %p102, %p103
      %s105 = ssub.s32 %s45, %s52
      %p106 = scmp.eq.s32.totalorder %s105, 0
      %s108 = sadd.s32 %s107, 1
      %s109 = scalar_select %p106, %s107, %s108
      %p112 = pneg %p106
      %p113 = scmp.eq.s32.totalorder %s45, 1
      %p114 = por %p112, %p113
      %p115 = scmp.ne.s32.totalorder %s107, %s110
      %p116 = scmp.eq.s32.totalorder %s45, 0
      %p117 = por %p115, %p116
      %p118 = scmp.ne.s32.totalorder %s107, %s110
      %p119 = scmp.eq.s32.totalorder %s50, 1
      %p120 = por %p118, %p119
      %p121 = scmp.ne.s32.totalorder %s110, %s111
      %p122 = scmp.eq.s32.totalorder %s50, 0
      %p123 = por %p121, %p122
      %p124 = scmp.ne.s32.totalorder %s110, %s111
      %p125 = scmp.eq.s32.totalorder %s51, 1
      %p126 = por %p124, %p125
      %p128 = scmp.ne.s32.totalorder %s111, %s127
      %p129 = scmp.eq.s32.totalorder %s51, 0
      %p130 = por %p128, %p129
      %s132 = sadd.s32 %s131, 1
      %p135 = scmp.eq.s32.totalorder %s45, 1
      %p136 = scmp.ne.s32.totalorder %s131, %s133
      %p137 = scmp.eq.s32.totalorder %s45, 0
      %p138 = por %p136, %p137
      %p139 = scmp.ne.s32.totalorder %s131, %s133
      %p140 = scmp.eq.s32.totalorder %s50, 1
      %p141 = por %p139, %p140
      %p142 = scmp.ne.s32.totalorder %s133, %s134
      %p143 = scmp.eq.s32.totalorder %s50, 0
      %p144 = por %p142, %p143
      %p145 = scmp.ne.s32.totalorder %s133, %s134
      %p146 = scmp.eq.s32.totalorder %s51, 1
      %p147 = por %p145, %p146
      %p149 = scmp.ne.s32.totalorder %s134, %s148
      %p150 = scmp.eq.s32.totalorder %s51, 0
      %p151 = por %p149, %p150
      %s153 = sadd.s32 %s152, 1
      %p156 = scmp.eq.s32.totalorder %s45, 1
      %p157 = scmp.ne.s32.totalorder %s152, %s154
      %p158 = scmp.eq.s32.totalorder %s45, 0
      %p159 = por %p157, %p158
      %p160 = scmp.ne.s32.totalorder %s152, %s154
      %p161 = scmp.eq.s32.totalorder %s50, 1
      %p162 = por %p160, %p161
      %p163 = scmp.ne.s32.totalorder %s154, %s155
      %p164 = scmp.eq.s32.totalorder %s50, 0
      %p165 = por %p163, %p164
      %p166 = scmp.ne.s32.totalorder %s154, %s155
      %p167 = scmp.eq.s32.totalorder %s51, 1
      %p168 = por %p166, %p167
      %p170 = scmp.ne.s32.totalorder %s155, %s169
      %p171 = scmp.eq.s32.totalorder %s51, 0
      %p172 = por %p170, %p171
      %s174 = sadd.s32 %s173, 1
      %p177 = scmp.eq.s32.totalorder %s45, 1
      %p178 = scmp.ne.s32.totalorder %s173, %s175
      %p179 = scmp.eq.s32.totalorder %s45, 0
      %p180 = por %p178, %p179
      %p181 = scmp.ne.s32.totalorder %s173, %s175
      %p182 = scmp.eq.s32.totalorder %s50, 1
      %p183 = por %p181, %p182
      %p184 = scmp.ne.s32.totalorder %s175, %s176
      %p185 = scmp.eq.s32.totalorder %s50, 0
      %p186 = por %p184, %p185
      %p187 = scmp.ne.s32.totalorder %s175, %s176
      %p188 = scmp.eq.s32.totalorder %s51, 1
      %p189 = por %p187, %p188
      %p191 = scmp.ne.s32.totalorder %s176, %s190
      %p192 = scmp.eq.s32.totalorder %s51, 0
      %p193 = por %p191, %p192
      %s195 = sadd.s32 %s194, 1
      %p198 = scmp.eq.s32.totalorder %s45, 1
      %p199 = scmp.ne.s32.totalorder %s194, %s196
      %p200 = scmp.eq.s32.totalorder %s45, 0
      %p201 = por %p199, %p200
      %p202 = scmp.ne.s32.totalorder %s194, %s196
      %p203 = scmp.eq.s32.totalorder %s50, 1
      %p204 = por %p202, %p203
      %p205 = scmp.ne.s32.totalorder %s196, %s197
      %p206 = scmp.eq.s32.totalorder %s50, 0
      %p207 = por %p205, %p206
      %p208 = scmp.ne.s32.totalorder %s196, %s197
      %p209 = scmp.eq.s32.totalorder %s51, 1
      %p210 = por %p208, %p209
      %p212 = scmp.ne.s32.totalorder %s197, %s211
      %p213 = scmp.eq.s32.totalorder %s51, 0
      %p214 = por %p212, %p213
      %s216 = sadd.s32 %s215, 1
      %p219 = scmp.eq.s32.totalorder %s45, 1
      %p220 = scmp.ne.s32.totalorder %s215, %s217
      %p221 = scmp.eq.s32.totalorder %s45, 0
      %p222 = por %p220, %p221
      %p223 = scmp.ne.s32.totalorder %s215, %s217
      %p224 = scmp.eq.s32.totalorder %s50, 1
      %p225 = por %p223, %p224
      %p226 = scmp.ne.s32.totalorder %s217, %s218
      %p227 = scmp.eq.s32.totalorder %s50, 0
      %p228 = por %p226, %p227
      %p229 = scmp.ne.s32.totalorder %s217, %s218
      %p230 = scmp.eq.s32.totalorder %s51, 1
      %p231 = por %p229, %p230
      %p233 = scmp.ne.s32.totalorder %s218, %s232
      %p234 = scmp.eq.s32.totalorder %s51, 0
      %p235 = por %p233, %p234
      %s237 = sadd.s32 %s236, 1
      %p240 = scmp.eq.s32.totalorder %s45, 1
      %p241 = scmp.ne.s32.totalorder %s236, %s238
      %p242 = scmp.eq.s32.totalorder %s45, 0
      %p243 = por %p241, %p242
      %p244 = scmp.ne.s32.totalorder %s236, %s238
      %p245 = scmp.eq.s32.totalorder %s50, 1
      %p246 = por %p244, %p245
      %p247 = scmp.ne.s32.totalorder %s238, %s239
      %p248 = scmp.eq.s32.totalorder %s50, 0
      %p249 = por %p247, %p248
      %p250 = scmp.ne.s32.totalorder %s238, %s239
      %p251 = scmp.eq.s32.totalorder %s51, 1
      %p252 = por %p250, %p251
      %p254 = scmp.ne.s32.totalorder %s239, %s253
      %p255 = scmp.eq.s32.totalorder %s51, 0
      %p256 = por %p254, %p255
      %s258 = sadd.s32 %s257, 1
      %p261 = scmp.eq.s32.totalorder %s45, 1
      %p262 = scmp.ne.s32.totalorder %s257, %s259
      %p263 = scmp.eq.s32.totalorder %s45, 0
      %p264 = por %p262, %p263
      %p265 = scmp.ne.s32.totalorder %s257, %s259
      %p266 = scmp.eq.s32.totalorder %s50, 1
      %p267 = por %p265, %p266
      %p268 = scmp.ne.s32.totalorder %s259, %s260
      %p269 = scmp.eq.s32.totalorder %s50, 0
      %p270 = por %p268, %p269
      %p271 = scmp.ne.s32.totalorder %s259, %s260
      %p272 = scmp.eq.s32.totalorder %s51, 1
      %p273 = por %p271, %p272
      %p275 = scmp.ne.s32.totalorder %s260, %s274
      %p276 = scmp.eq.s32.totalorder %s51, 0
      %p277 = por %p275, %p276
      %s279 = sadd.s32 %s278, 1
      %p282 = scmp.eq.s32.totalorder %s45, 1
      %p283 = scmp.ne.s32.totalorder %s278, %s280
      %p284 = scmp.eq.s32.totalorder %s45, 0
      %p285 = por %p283, %p284
      %p286 = scmp.ne.s32.totalorder %s278, %s280
      %p287 = scmp.eq.s32.totalorder %s50, 1
      %p288 = por %p286, %p287
      %p289 = scmp.ne.s32.totalorder %s280, %s281
      %p290 = scmp.eq.s32.totalorder %s50, 0
      %p291 = por %p289, %p290
      %p292 = scmp.ne.s32.totalorder %s280, %s281
      %p293 = scmp.eq.s32.totalorder %s51, 1
      %p294 = por %p292, %p293
      %p296 = scmp.ne.s32.totalorder %s281, %s295
      %p297 = scmp.eq.s32.totalorder %s51, 0
      %p298 = por %p296, %p297
      %s300 = sadd.s32 %s299, 1
      %p303 = scmp.eq.s32.totalorder %s45, 1
      %p304 = scmp.ne.s32.totalorder %s299, %s301
      %p305 = scmp.eq.s32.totalorder %s45, 0
      %p306 = por %p304, %p305
      %p307 = scmp.ne.s32.totalorder %s299, %s301
      %p308 = scmp.eq.s32.totalorder %s50, 1
      %p309 = por %p307, %p308
      %p310 = scmp.ne.s32.totalorder %s301, %s302
      %p311 = scmp.eq.s32.totalorder %s50, 0
      %p312 = por %p310, %p311
      %p313 = scmp.ne.s32.totalorder %s301, %s302
      %p314 = scmp.eq.s32.totalorder %s51, 1
      %p315 = por %p313, %p314
      %p317 = scmp.ne.s32.totalorder %s302, %s316
      %p318 = scmp.eq.s32.totalorder %s51, 0
      %p319 = por %p317, %p318
      %s321 = sadd.s32 %s320, 1
      %p324 = scmp.eq.s32.totalorder %s45, 1
      %p325 = scmp.ne.s32.totalorder %s320, %s322
      %p326 = scmp.eq.s32.totalorder %s45, 0
      %p327 = por %p325, %p326
      %p328 = scmp.ne.s32.totalorder %s320, %s322
      %p329 = scmp.eq.s32.totalorder %s50, 1
      %p330 = por %p328, %p329
      %p331 = scmp.ne.s32.totalorder %s322, %s323
      %p332 = scmp.eq.s32.totalorder %s50, 0
      %p333 = por %p331, %p332
      %p334 = scmp.ne.s32.totalorder %s322, %s323
      %p335 = scmp.eq.s32.totalorder %s51, 1
      %p336 = por %p334, %p335
      %p338 = scmp.ne.s32.totalorder %s323, %s337
      %p339 = scmp.eq.s32.totalorder %s51, 0
      %p340 = por %p338, %p339
      %s342 = sadd.s32 %s341, 1
      %p345 = scmp.eq.s32.totalorder %s45, 1
      %p346 = scmp.ne.s32.totalorder %s341, %s343
      %p347 = scmp.eq.s32.totalorder %s45, 0
      %p348 = por %p346, %p347
      %p349 = scmp.ne.s32.totalorder %s341, %s343
      %p350 = scmp.eq.s32.totalorder %s50, 1
      %p351 = por %p349, %p350
      %p352 = scmp.ne.s32.totalorder %s343, %s344
      %p353 = scmp.eq.s32.totalorder %s50, 0
      %p354 = por %p352, %p353
      %p355 = scmp.ne.s32.totalorder %s343, %s344
      %p356 = scmp.eq.s32.totalorder %s51, 1
      %p357 = por %p355, %p356
      %p359 = scmp.ne.s32.totalorder %s344, %s358
      %p360 = scmp.eq.s32.totalorder %s51, 0
      %p361 = por %p359, %p360
      %s363 = sadd.s32 %s362, 1
      %p366 = scmp.eq.s32.totalorder %s45, 1
      %p367 = scmp.ne.s32.totalorder %s362, %s364
      %p368 = scmp.eq.s32.totalorder %s45, 0
      %p369 = por %p367, %p368
      %p370 = scmp.ne.s32.totalorder %s362, %s364
      %p371 = scmp.eq.s32.totalorder %s50, 1
      %p372 = por %p370, %p371
      %p373 = scmp.ne.s32.totalorder %s364, %s365
      %p374 = scmp.eq.s32.totalorder %s50, 0
      %p375 = por %p373, %p374
      %p376 = scmp.ne.s32.totalorder %s364, %s365
      %p377 = scmp.eq.s32.totalorder %s51, 1
      %p378 = por %p376, %p377
      %p380 = scmp.ne.s32.totalorder %s365, %s379
      %p381 = scmp.eq.s32.totalorder %s51, 0
      %p382 = por %p380, %p381
      %s384 = sadd.s32 %s383, 1
      %p387 = scmp.eq.s32.totalorder %s45, 1
      %p388 = scmp.ne.s32.totalorder %s383, %s385
      %p389 = scmp.eq.s32.totalorder %s45, 0
      %p390 = por %p388, %p389
      %p391 = scmp.ne.s32.totalorder %s383, %s385
      %p392 = scmp.eq.s32.totalorder %s50, 1
      %p393 = por %p391, %p392
      %p394 = scmp.ne.s32.totalorder %s385, %s386
      %p395 = scmp.eq.s32.totalorder %s50, 0
      %p396 = por %p394, %p395
      %p397 = scmp.ne.s32.totalorder %s385, %s386
      %p398 = scmp.eq.s32.totalorder %s51, 1
      %p399 = por %p397, %p398
      %p401 = scmp.ne.s32.totalorder %s386, %s400
      %p402 = scmp.eq.s32.totalorder %s51, 0
      %p403 = por %p401, %p402
      %s405 = sadd.s32 %s404, 1
      %p408 = scmp.eq.s32.totalorder %s45, 1
      %p409 = scmp.ne.s32.totalorder %s404, %s406
      %p410 = scmp.eq.s32.totalorder %s45, 0
      %p411 = por %p409, %p410
      %p412 = scmp.ne.s32.totalorder %s404, %s406
      %p413 = scmp.eq.s32.totalorder %s50, 1
      %p414 = por %p412, %p413
      %p415 = scmp.ne.s32.totalorder %s406, %s407
      %p416 = scmp.eq.s32.totalorder %s50, 0
      %p417 = por %p415, %p416
      %p418 = scmp.ne.s32.totalorder %s406, %s407
      %p419 = scmp.eq.s32.totalorder %s51, 1
      %p420 = por %p418, %p419
      %p422 = scmp.ne.s32.totalorder %s407, %s421
      %p423 = scmp.eq.s32.totalorder %s51, 0
      %p424 = por %p422, %p423
      %s426 = sadd.s32 %s425, 1
      %p429 = scmp.eq.s32.totalorder %s45, 1
      %p430 = scmp.ne.s32.totalorder %s425, %s427
      %p431 = scmp.eq.s32.totalorder %s45, 0
      %p432 = por %p430, %p431
      %p433 = scmp.ne.s32.totalorder %s425, %s427
      %p434 = scmp.eq.s32.totalorder %s50, 1
      %p435 = por %p433, %p434
      %p436 = scmp.ne.s32.totalorder %s427, %s428
      %p437 = scmp.eq.s32.totalorder %s50, 0
      %p438 = por %p436, %p437
      %p439 = scmp.ne.s32.totalorder %s427, %s428
      %p440 = scmp.eq.s32.totalorder %s51, 1
      %p441 = por %p439, %p440
      %p443 = scmp.ne.s32.totalorder %s428, %s442
      %p444 = scmp.eq.s32.totalorder %s51, 0
      %p445 = por %p443, %p444
      %s447 = sadd.s32 %s446, 1
      %p450 = scmp.eq.s32.totalorder %s45, 1
      %p451 = scmp.ne.s32.totalorder %s446, %s448
      %p452 = scmp.eq.s32.totalorder %s45, 0
      %p453 = por %p451, %p452
      %p454 = scmp.ne.s32.totalorder %s446, %s448
      %p455 = scmp.eq.s32.totalorder %s50, 1
      %p456 = por %p454, %p455
      %p457 = scmp.ne.s32.totalorder %s448, %s449
      %p458 = scmp.eq.s32.totalorder %s50, 0
      %p459 = por %p457, %p458
      %p460 = scmp.ne.s32.totalorder %s448, %s449
      %p461 = scmp.eq.s32.totalorder %s51, 1
      %p462 = por %p460, %p461
      %p464 = scmp.ne.s32.totalorder %s449, %s463
      %p465 = scmp.eq.s32.totalorder %s51, 0
      %p466 = por %p464, %p465
      %s468 = sadd.s32 %s467, 1
      %p471 = scmp.eq.s32.totalorder %s45, 1
      %p472 = scmp.ne.s32.totalorder %s467, %s469
      %p473 = scmp.eq.s32.totalorder %s45, 0
      %p474 = por %p472, %p473
      %p475 = scmp.ne.s32.totalorder %s467, %s469
      %p476 = scmp.eq.s32.totalorder %s50, 1
      %p477 = por %p475, %p476
      %p478 = scmp.ne.s32.totalorder %s469, %s470
      %p479 = scmp.eq.s32.totalorder %s50, 0
      %p480 = por %p478, %p479
      %p481 = scmp.ne.s32.totalorder %s469, %s470
      %p482 = scmp.eq.s32.totalorder %s51, 1
      %p483 = por %p481, %p482
      %p485 = scmp.ne.s32.totalorder %s470, %s484
      %p486 = scmp.eq.s32.totalorder %s51, 0
      %p487 = por %p485, %p486
      %s489 = sadd.s32 %s488, 1
      %p492 = scmp.eq.s32.totalorder %s45, 1
      %p493 = scmp.ne.s32.totalorder %s488, %s490
      %p494 = scmp.eq.s32.totalorder %s45, 0
      %p495 = por %p493, %p494
      %p496 = scmp.ne.s32.totalorder %s488, %s490
      %p497 = scmp.eq.s32.totalorder %s50, 1
      %p498 = por %p496, %p497
      %p499 = scmp.ne.s32.totalorder %s490, %s491
      %p500 = scmp.eq.s32.totalorder %s50, 0
      %p501 = por %p499, %p500
      %p502 = scmp.ne.s32.totalorder %s490, %s491
      %p503 = scmp.eq.s32.totalorder %s51, 1
      %p504 = por %p502, %p503
      %p506 = scmp.ne.s32.totalorder %s491, %s505
      %p507 = scmp.eq.s32.totalorder %s51, 0
      %p508 = por %p506, %p507
      %s510 = sadd.s32 %s509, 1
      %p513 = scmp.eq.s32.totalorder %s45, 1
      %p514 = scmp.ne.s32.totalorder %s509, %s511
      %p515 = scmp.eq.s32.totalorder %s45, 0
      %p516 = por %p514, %p515
      %p517 = scmp.ne.s32.totalorder %s509, %s511
      %p518 = scmp.eq.s32.totalorder %s50, 1
      %p519 = por %p517, %p518
      %p520 = scmp.ne.s32.totalorder %s511, %s512
      %p521 = scmp.eq.s32.totalorder %s50, 0
      %p522 = por %p520, %p521
      %p523 = scmp.ne.s32.totalorder %s511, %s512
      %p524 = scmp.eq.s32.totalorder %s51, 1
      %p525 = por %p523, %p524
      %p527 = scmp.ne.s32.totalorder %s512, %s526
      %p528 = scmp.eq.s32.totalorder %s51, 0
      %p529 = por %p527, %p528
      %s531 = sadd.s32 %s530, 1
      %p534 = scmp.eq.s32.totalorder %s45, 1
      %p535 = scmp.ne.s32.totalorder %s530, %s532
      %p536 = scmp.eq.s32.totalorder %s45, 0
      %p537 = por %p535, %p536
      %p538 = scmp.ne.s32.totalorder %s530, %s532
      %p539 = scmp.eq.s32.totalorder %s50, 1
      %p540 = por %p538, %p539
      %p541 = scmp.ne.s32.totalorder %s532, %s533
      %p542 = scmp.eq.s32.totalorder %s50, 0
      %p543 = por %p541, %p542
      %p544 = scmp.ne.s32.totalorder %s532, %s533
      %p545 = scmp.eq.s32.totalorder %s51, 1
      %p546 = por %p544, %p545
      %p548 = scmp.ne.s32.totalorder %s533, %s547
      %p549 = scmp.eq.s32.totalorder %s51, 0
      %p550 = por %p548, %p549
      %s552 = sadd.s32 %s551, 1
      %p555 = scmp.eq.s32.totalorder %s45, 1
      %p556 = scmp.ne.s32.totalorder %s551, %s553
      %p557 = scmp.eq.s32.totalorder %s45, 0
      %p558 = por %p556, %p557
      %p559 = scmp.ne.s32.totalorder %s551, %s553
      %p560 = scmp.eq.s32.totalorder %s50, 1
      %p561 = por %p559, %p560
      %p562 = scmp.ne.s32.totalorder %s553, %s554
      %p563 = scmp.eq.s32.totalorder %s50, 0
      %p564 = por %p562, %p563
      %p565 = scmp.ne.s32.totalorder %s553, %s554
      %p566 = scmp.eq.s32.totalorder %s51, 1
      %p567 = por %p565, %p566
      %p569 = scmp.ne.s32.totalorder %s554, %s568
      %p570 = scmp.eq.s32.totalorder %s51, 0
      %p571 = por %p569, %p570
      %s572 = ssub.s32 %s45, %s52
      %p573 = scmp.eq.s32.totalorder %s572, 0
      %s575 = sadd.s32 %s574, 1
      %s576 = scalar_select %p573, %s574, %s575
      %p579 = pneg %p573
      %p580 = scmp.eq.s32.totalorder %s45, 1
      %p581 = por %p579, %p580
      %p582 = scmp.ne.s32.totalorder %s574, %s577
      %p583 = scmp.eq.s32.totalorder %s45, 0
      %p584 = por %p582, %p583
      %p585 = scmp.ne.s32.totalorder %s574, %s577
      %p586 = scmp.eq.s32.totalorder %s50, 1
      %p587 = por %p585, %p586
      %p588 = scmp.ne.s32.totalorder %s577, %s578
      %p589 = scmp.eq.s32.totalorder %s50, 0
      %p590 = por %p588, %p589
      %p591 = scmp.ne.s32.totalorder %s577, %s578
      %p592 = scmp.eq.s32.totalorder %s51, 1
      %p593 = por %p591, %p592
      %p595 = scmp.ne.s32.totalorder %s578, %s594
      %p596 = scmp.eq.s32.totalorder %s51, 0
      %p597 = por %p595, %p596
      %p598 = scmp.le.s32.totalorder 1, %s45
      %p599 = scmp.lt.s32.totalorder %s45, 3
      %p600 = pnand %p598, %p599
      %p601 = pneg %p600
      // Predicated region
      $region9: #{tpu_custom_call.1} parent=5 // pred_check
        _
      $region10: #{tpu_custom_call.1} parent=5 // pred_check_branch
        %603 = sbr.rel (%p600) target = $region12
      $region11: #{tpu_custom_call.1} parent=5 // pred_region
        %s604 = ssub.s32 %s45, 1
        // Predicated region
        $region13: #{tpu_custom_call.1} parent=11 // pred_check
          %p605 = pneg %p144
        $region14: #{tpu_custom_call.1} parent=11 // pred_check_branch
          %607 = sbr.rel (%p605) target = $region16
        $region15: #{tpu_custom_call.1} parent=11 // pred_region
          %s609 = ssub.s32 1024, 1024
          %610 = vsyncadd [#allocation9], %s609
          %s611 = sshll.u32 [#allocation8], 4
          %s612 = int_to_ptr.vmem [resolvable:$true] %s611
          %617 = dma.hbm_to_vmem [thread:$0]  %s3, 1024, %s612, [#allocation9], 128, 128, 8
        $region16: #{tpu_custom_call.1} parent=11 // pred_fallthru
          _
        // Predicated region
        $region17: #{tpu_custom_call.1} parent=11 // pred_check
          %p618 = pneg %p165
        $region18: #{tpu_custom_call.1} parent=11 // pred_check_branch
          %620 = sbr.rel (%p618) target = $region20
        $region19: #{tpu_custom_call.1} parent=11 // pred_region
          %s622 = ssub.s32 32, 32
          %623 = vsyncadd [#allocation9], %s622
          %s624 = sshll.u32 [#allocation10], 4
          %s625 = int_to_ptr.vmem [resolvable:$true] %s624
          %630 = dma.hbm_to_vmem [thread:$0]  %s4, 32, %s625, [#allocation9], 16, 16, 1
        $region20: #{tpu_custom_call.1} parent=11 // pred_fallthru
          _
        // Predicated region
        $region21: #{tpu_custom_call.1} parent=11 // pred_check
          %p631 = pneg %p186
        $region22: #{tpu_custom_call.1} parent=11 // pred_check_branch
          %633 = sbr.rel (%p631) target = $region24
        $region23: #{tpu_custom_call.1} parent=11 // pred_region
          %s635 = ssub.s32 2048, 2048
          %636 = vsyncadd [#allocation12], %s635
          %s637 = sshll.u32 [#allocation11], 4
          %s638 = int_to_ptr.vmem [resolvable:$true] %s637
          %643 = dma.hbm_to_vmem [thread:$0]  %s5, 2048, %s638, [#allocation12], 128, 128, 8
        $region24: #{tpu_custom_call.1} parent=11 // pred_fallthru
          _
        // Predicated region
        $region25: #{tpu_custom_call.1} parent=11 // pred_check
          %p644 = pneg %p207
        $region26: #{tpu_custom_call.1} parent=11 // pred_check_branch
          %646 = sbr.rel (%p644) target = $region28
        $region27: #{tpu_custom_call.1} parent=11 // pred_region
          %s648 = ssub.s32 64, 64
          %649 = vsyncadd [#allocation12], %s648
          %s650 = sshll.u32 [#allocation13], 4
          %s651 = int_to_ptr.vmem [resolvable:$true] %s650
          %656 = dma.hbm_to_vmem [thread:$0]  %s6, 64, %s651, [#allocation12], 16, 16, 1
        $region28: #{tpu_custom_call.1} parent=11 // pred_fallthru
          _
        // Predicated region
        $region29: #{tpu_custom_call.1} parent=11 // pred_check
          %p657 = pneg %p228
        $region30: #{tpu_custom_call.1} parent=11 // pred_check_branch
          %659 = sbr.rel (%p657) target = $region32
        $region31: #{tpu_custom_call.1} parent=11 // pred_region
          %s661 = ssub.s32 1024, 1024
          %662 = vsyncadd [#allocation15], %s661
          %s663 = sshll.u32 [#allocation14], 4
          %s664 = int_to_ptr.vmem [resolvable:$true] %s663
          %669 = dma.hbm_to_vmem [thread:$0]  %s7, 1024, %s664, [#allocation15], 128, 128, 8
        $region32: #{tpu_custom_call.1} parent=11 // pred_fallthru
          _
        // Predicated region
        $region33: #{tpu_custom_call.1} parent=11 // pred_check
          %p670 = pneg %p249
        $region34: #{tpu_custom_call.1} parent=11 // pred_check_branch
          %672 = sbr.rel (%p670) target = $region36
        $region35: #{tpu_custom_call.1} parent=11 // pred_region
          _
        $region36: #{tpu_custom_call.1} parent=11 // pred_fallthru
          _
        // Predicated region
        $region37: #{tpu_custom_call.1} parent=11 // pred_check
          %p673 = pneg %p270
        $region38: #{tpu_custom_call.1} parent=11 // pred_check_branch
          %675 = sbr.rel (%p673) target = $region40
        $region39: #{tpu_custom_call.1} parent=11 // pred_region
          %s677 = ssub.s32 16, 16
          %678 = vsyncadd [#allocation15], %s677
          %s680 = sshll.u32 [#allocation16], 4
          %s681 = int_to_ptr.vmem [resolvable:$true] %s680
          %683 = dma.hbm_to_vmem [thread:$0]  %s9, 16, %s681, [#allocation15]
        $region40: #{tpu_custom_call.1} parent=11 // pred_fallthru
          _
        // Predicated region
        $region41: #{tpu_custom_call.1} parent=11 // pred_check
          %p684 = pneg %p291
        $region42: #{tpu_custom_call.1} parent=11 // pred_check_branch
          %686 = sbr.rel (%p684) target = $region44
        $region43: #{tpu_custom_call.1} parent=11 // pred_region
          %s688 = ssub.s32 3072, 3072
          %689 = vsyncadd [#allocation18], %s688
          %s690 = sshll.u32 [#allocation17], 4
          %s691 = int_to_ptr.vmem [resolvable:$true] %s690
          %696 = dma.hbm_to_vmem [thread:$0]  %s10, 3072, %s691, [#allocation18], 128, 128, 8
        $region44: #{tpu_custom_call.1} parent=11 // pred_fallthru
          _
        // Predicated region
        $region45: #{tpu_custom_call.1} parent=11 // pred_check
          %p697 = pneg %p312
        $region46: #{tpu_custom_call.1} parent=11 // pred_check_branch
          %699 = sbr.rel (%p697) target = $region48
        $region47: #{tpu_custom_call.1} parent=11 // pred_region
          %s701 = ssub.s32 32, 32
          %702 = vsyncadd [#allocation18], %s701
          %s703 = sshll.u32 [#allocation19], 4
          %s704 = int_to_ptr.vmem [resolvable:$true] %s703
          %709 = dma.hbm_to_vmem [thread:$0]  %s11, 32, %s704, [#allocation18], 16, 16, 1
        $region48: #{tpu_custom_call.1} parent=11 // pred_fallthru
          _
        // Predicated region
        $region49: #{tpu_custom_call.1} parent=11 // pred_check
          %p710 = pneg %p333
        $region50: #{tpu_custom_call.1} parent=11 // pred_check_branch
          %712 = sbr.rel (%p710) target = $region52
        $region51: #{tpu_custom_call.1} parent=11 // pred_region
          _
        $region52: #{tpu_custom_call.1} parent=11 // pred_fallthru
          _
        // Predicated region
        $region53: #{tpu_custom_call.1} parent=11 // pred_check
          %p713 = pneg %p354
        $region54: #{tpu_custom_call.1} parent=11 // pred_check_branch
          %715 = sbr.rel (%p713) target = $region56
        $region55: #{tpu_custom_call.1} parent=11 // pred_region
          %s717 = ssub.s32 16, 16
          %718 = vsyncadd [#allocation21], %s717
          %s720 = sshll.u32 [#allocation20], 4
          %s721 = int_to_ptr.vmem [resolvable:$true] %s720
          %723 = dma.hbm_to_vmem [thread:$0]  %s13, 16, %s721, [#allocation21]
        $region56: #{tpu_custom_call.1} parent=11 // pred_fallthru
          _
        // Predicated region
        $region57: #{tpu_custom_call.1} parent=11 // pred_check
          %p724 = pneg %p375
        $region58: #{tpu_custom_call.1} parent=11 // pred_check_branch
          %726 = sbr.rel (%p724) target = $region60
        $region59: #{tpu_custom_call.1} parent=11 // pred_region
          _
        $region60: #{tpu_custom_call.1} parent=11 // pred_fallthru
          _
        // Predicated region
        $region61: #{tpu_custom_call.1} parent=11 // pred_check
          %p727 = pneg %p396
        $region62: #{tpu_custom_call.1} parent=11 // pred_check_branch
          %729 = sbr.rel (%p727) target = $region64
        $region63: #{tpu_custom_call.1} parent=11 // pred_region
          %s731 = ssub.s32 16, 16
          %732 = vsyncadd [#allocation21], %s731
          %s734 = sshll.u32 [#allocation22], 4
          %s735 = int_to_ptr.vmem [resolvable:$true] %s734
          %737 = dma.hbm_to_vmem [thread:$0]  %s15, 16, %s735, [#allocation21]
        $region64: #{tpu_custom_call.1} parent=11 // pred_fallthru
          _
        // Predicated region
        $region65: #{tpu_custom_call.1} parent=11 // pred_check
          %p738 = pneg %p417
        $region66: #{tpu_custom_call.1} parent=11 // pred_check_branch
          %740 = sbr.rel (%p738) target = $region68
        $region67: #{tpu_custom_call.1} parent=11 // pred_region
          _
        $region68: #{tpu_custom_call.1} parent=11 // pred_fallthru
          _
        // Predicated region
        $region69: #{tpu_custom_call.1} parent=11 // pred_check
          %p741 = pneg %p438
        $region70: #{tpu_custom_call.1} parent=11 // pred_check_branch
          %743 = sbr.rel (%p741) target = $region72
        $region71: #{tpu_custom_call.1} parent=11 // pred_region
          %s745 = ssub.s32 16, 16
          %746 = vsyncadd [#allocation24], %s745
          %s748 = sshll.u32 [#allocation23], 4
          %s749 = int_to_ptr.vmem [resolvable:$true] %s748
          %751 = dma.hbm_to_vmem [thread:$0]  %s17, 16, %s749, [#allocation24]
        $region72: #{tpu_custom_call.1} parent=11 // pred_fallthru
          _
        // Predicated region
        $region73: #{tpu_custom_call.1} parent=11 // pred_check
          %p752 = pneg %p459
        $region74: #{tpu_custom_call.1} parent=11 // pred_check_branch
          %754 = sbr.rel (%p752) target = $region76
        $region75: #{tpu_custom_call.1} parent=11 // pred_region
          _
        $region76: #{tpu_custom_call.1} parent=11 // pred_fallthru
          _
        // Predicated region
        $region77: #{tpu_custom_call.1} parent=11 // pred_check
          %p755 = pneg %p480
        $region78: #{tpu_custom_call.1} parent=11 // pred_check_branch
          %757 = sbr.rel (%p755) target = $region80
        $region79: #{tpu_custom_call.1} parent=11 // pred_region
          _
        $region80: #{tpu_custom_call.1} parent=11 // pred_fallthru
          _
        // Predicated region
        $region81: #{tpu_custom_call.1} parent=11 // pred_check
          %p758 = pneg %p501
        $region82: #{tpu_custom_call.1} parent=11 // pred_check_branch
          %760 = sbr.rel (%p758) target = $region84
        $region83: #{tpu_custom_call.1} parent=11 // pred_region
          _
        $region84: #{tpu_custom_call.1} parent=11 // pred_fallthru
          _
        // Predicated region
        $region85: #{tpu_custom_call.1} parent=11 // pred_check
          %p761 = pneg %p522
        $region86: #{tpu_custom_call.1} parent=11 // pred_check_branch
          %763 = sbr.rel (%p761) target = $region88
        $region87: #{tpu_custom_call.1} parent=11 // pred_region
          _
        $region88: #{tpu_custom_call.1} parent=11 // pred_fallthru
          _
        // Predicated region
        $region89: #{tpu_custom_call.1} parent=11 // pred_check
          %p764 = pneg %p543
        $region90: #{tpu_custom_call.1} parent=11 // pred_check_branch
          %766 = sbr.rel (%p764) target = $region92
        $region91: #{tpu_custom_call.1} parent=11 // pred_region
          _
        $region92: #{tpu_custom_call.1} parent=11 // pred_fallthru
          _
        // Predicated region
        $region93: #{tpu_custom_call.1} parent=11 // pred_check
          %p767 = pneg %p564
        $region94: #{tpu_custom_call.1} parent=11 // pred_check_branch
          %769 = sbr.rel (%p767) target = $region96
        $region95: #{tpu_custom_call.1} parent=11 // pred_region
          %s771 = ssub.s32 256, 256
          %772 = vsyncadd [#allocation24], %s771
          %s773 = sshll.u32 [#allocation25], 4
          %s774 = int_to_ptr.vmem [resolvable:$true] %s773
          %779 = dma.hbm_to_vmem [thread:$0]  %s23, 256, %s774, [#allocation24], 128, 128, 8
        $region96: #{tpu_custom_call.1} parent=11 // pred_fallthru
          _
      $region12: #{tpu_custom_call.1} parent=5 // pred_fallthru
        _
      %p780 = scmp.lt.s32.totalorder %s45, 2
      // Predicated region
      $region97: #{tpu_custom_call.1} parent=5 // pred_check
        %p781 = pneg %p780
      $region98: #{tpu_custom_call.1} parent=5 // pred_check_branch
        %783 = sbr.rel (%p781) target = $region100
      $region99: #{tpu_custom_call.1} parent=5 // pred_region
        // Predicated region
        $region101: #{tpu_custom_call.1} parent=99 // pred_check
          %p784 = pneg %p65
        $region102: #{tpu_custom_call.1} parent=99 // pred_check_branch
          %786 = sbr.rel (%p784) target = $region104
        $region103: #{tpu_custom_call.1} parent=99 // pred_region
          %s787 = sand.u32 %s55, 1
          %s788 = scalar_lea.sflag [#allocation3], %s787
          %s789 = sand.u32 %s55, 1
          %s790 = smul.addr %s789, 4
          %s791 = scalar_lea.vmem [#allocation2], %s790
          %s793 = ssub.s32 64, 64
          %794 = vsyncadd %s788, %s793
          %s795 = smul.addr %s45, 64
          %s796 = scalar_lea.hbm %s0, %s795
          %s798 = sshll.u32 %s791, 4
          %s799 = int_to_ptr.vmem [resolvable:$true] %s798
          %801 = dma.hbm_to_vmem [thread:$0]  %s796, 64, %s799, %s788
        $region104: #{tpu_custom_call.1} parent=99 // pred_fallthru
          _
        // Predicated region
        $region105: #{tpu_custom_call.1} parent=99 // pred_check
          %p802 = pneg %p91
        $region106: #{tpu_custom_call.1} parent=99 // pred_check_branch
          %804 = sbr.rel (%p802) target = $region108
        $region107: #{tpu_custom_call.1} parent=99 // pred_region
          %s805 = sand.u32 %s45, 1
          %s806 = scalar_lea.sflag [#allocation6], %s805
          %s807 = sand.u32 %s81, 1
          %s808 = smul.addr %s807, 8
          %s809 = scalar_lea.vmem [#allocation5], %s808
          %s811 = ssub.s32 128, 128
          %812 = vsyncadd %s806, %s811
          %s813 = smul.addr %s45, 128
          %s814 = scalar_lea.hbm %s1, %s813
          %s816 = sshll.u32 %s809, 4
          %s817 = int_to_ptr.vmem [resolvable:$true] %s816
          %819 = dma.hbm_to_vmem [thread:$0]  %s814, 128, %s817, %s806
        $region108: #{tpu_custom_call.1} parent=99 // pred_fallthru
          _
        // Predicated region
        $region109: #{tpu_custom_call.1} parent=99 // pred_check
          %p820 = pneg %p117
        $region110: #{tpu_custom_call.1} parent=99 // pred_check_branch
          %822 = sbr.rel (%p820) target = $region112
        $region111: #{tpu_custom_call.1} parent=99 // pred_region
          %s823 = sand.u32 %s45, 1
          %s824 = scalar_lea.sflag [#allocation6], %s823
          %s825 = sand.u32 %s107, 1
          %s826 = smul.addr %s825, 16
          %s827 = scalar_lea.vmem [#allocation7], %s826
          %s829 = ssub.s32 256, 256
          %830 = vsyncadd %s824, %s829
          %s831 = smul.addr %s45, 2
          %s832 = smul.addr %s831, 128
          %s833 = scalar_lea.hbm %s2, %s832
          %s834 = sshll.u32 %s827, 4
          %s835 = int_to_ptr.vmem [resolvable:$true] %s834
          %840 = dma.hbm_to_vmem [thread:$0]  %s833, 256, %s835, %s824, 128, 128, 8
        $region112: #{tpu_custom_call.1} parent=99 // pred_fallthru
          _
      $region100: #{tpu_custom_call.1} parent=5 // pred_fallthru
        _
      %p841 = scmp.le.s32.totalorder 1, %s45
      %p842 = scmp.lt.s32.totalorder %s45, 3
      %p843 = pnand %p841, %p842
      %p844 = pneg %p843
      // Predicated region
      $region113: #{tpu_custom_call.1} parent=5 // pred_check
        _
      $region114: #{tpu_custom_call.1} parent=5 // pred_check_branch
        %846 = sbr.rel (%p843) target = $region116
      $region115: #{tpu_custom_call.1} parent=5 // pred_region
        %s847 = ssub.s32 %s45, 1
        %s848 = sand.u32 %s58, 1
        %s849 = scalar_lea.sflag [#allocation3], %s848
        %s850 = sand.u32 %s58, 1
        %s851 = smul.addr %s850, 4
        %s852 = scalar_lea.vmem [#allocation2], %s851
        // Predicated region
        $region117: #{tpu_custom_call.1} parent=115 // pred_check
          %p853 = pneg %p71
        $region118: #{tpu_custom_call.1} parent=115 // pred_check_branch
          %855 = sbr.rel (%p853) target = $region120
        $region119: #{tpu_custom_call.1} parent=115 // pred_region
          %856 = dma.done %s849, 64
        $region120: #{tpu_custom_call.1} parent=115 // pred_fallthru
          _
        %s857 = sand.u32 %s50, 1
        %s858 = scalar_lea.sflag [#allocation6], %s857
        %s859 = sand.u32 %s84, 1
        %s860 = smul.addr %s859, 8
        %s861 = scalar_lea.vmem [#allocation5], %s860
        // Predicated region
        $region121: #{tpu_custom_call.1} parent=115 // pred_check
          %p862 = pneg %p97
        $region122: #{tpu_custom_call.1} parent=115 // pred_check_branch
          %864 = sbr.rel (%p862) target = $region124
        $region123: #{tpu_custom_call.1} parent=115 // pred_region
          %865 = dma.done %s858, 128
        $region124: #{tpu_custom_call.1} parent=115 // pred_fallthru
          _
        %s866 = sand.u32 %s50, 1
        %s867 = scalar_lea.sflag [#allocation6], %s866
        %s868 = sand.u32 %s110, 1
        %s869 = smul.addr %s868, 16
        %s870 = scalar_lea.vmem [#allocation7], %s869
        // Predicated region
        $region125: #{tpu_custom_call.1} parent=115 // pred_check
          %p871 = pneg %p123
        $region126: #{tpu_custom_call.1} parent=115 // pred_check_branch
          %873 = sbr.rel (%p871) target = $region128
        $region127: #{tpu_custom_call.1} parent=115 // pred_region
          %874 = dma.done %s867, 256
        $region128: #{tpu_custom_call.1} parent=115 // pred_fallthru
          _
        // Predicated region
        $region129: #{tpu_custom_call.1} parent=115 // pred_check
          %p875 = pneg %p144
        $region130: #{tpu_custom_call.1} parent=115 // pred_check_branch
          %877 = sbr.rel (%p875) target = $region132
        $region131: #{tpu_custom_call.1} parent=115 // pred_region
          %878 = dma.done [#allocation9], 1024
        $region132: #{tpu_custom_call.1} parent=115 // pred_fallthru
          _
        // Predicated region
        $region133: #{tpu_custom_call.1} parent=115 // pred_check
          %p879 = pneg %p165
        $region134: #{tpu_custom_call.1} parent=115 // pred_check_branch
          %881 = sbr.rel (%p879) target = $region136
        $region135: #{tpu_custom_call.1} parent=115 // pred_region
          %882 = dma.done [#allocation9], 32
        $region136: #{tpu_custom_call.1} parent=115 // pred_fallthru
          _
        // Predicated region
        $region137: #{tpu_custom_call.1} parent=115 // pred_check
          %p883 = pneg %p186
        $region138: #{tpu_custom_call.1} parent=115 // pred_check_branch
          %885 = sbr.rel (%p883) target = $region140
        $region139: #{tpu_custom_call.1} parent=115 // pred_region
          %886 = dma.done [#allocation12], 2048
        $region140: #{tpu_custom_call.1} parent=115 // pred_fallthru
          _
        // Predicated region
        $region141: #{tpu_custom_call.1} parent=115 // pred_check
          %p887 = pneg %p207
        $region142: #{tpu_custom_call.1} parent=115 // pred_check_branch
          %889 = sbr.rel (%p887) target = $region144
        $region143: #{tpu_custom_call.1} parent=115 // pred_region
          %890 = dma.done [#allocation12], 64
        $region144: #{tpu_custom_call.1} parent=115 // pred_fallthru
          _
        // Predicated region
        $region145: #{tpu_custom_call.1} parent=115 // pred_check
          %p891 = pneg %p228
        $region146: #{tpu_custom_call.1} parent=115 // pred_check_branch
          %893 = sbr.rel (%p891) target = $region148
        $region147: #{tpu_custom_call.1} parent=115 // pred_region
          %894 = dma.done [#allocation15], 1024
        $region148: #{tpu_custom_call.1} parent=115 // pred_fallthru
          _
        // Predicated region
        $region149: #{tpu_custom_call.1} parent=115 // pred_check
          %p895 = pneg %p270
        $region150: #{tpu_custom_call.1} parent=115 // pred_check_branch
          %897 = sbr.rel (%p895) target = $region152
        $region151: #{tpu_custom_call.1} parent=115 // pred_region
          %898 = dma.done [#allocation15], 16
        $region152: #{tpu_custom_call.1} parent=115 // pred_fallthru
          _
        // Predicated region
        $region153: #{tpu_custom_call.1} parent=115 // pred_check
          %p899 = pneg %p291
        $region154: #{tpu_custom_call.1} parent=115 // pred_check_branch
          %901 = sbr.rel (%p899) target = $region156
        $region155: #{tpu_custom_call.1} parent=115 // pred_region
          %902 = dma.done [#allocation18], 3072
        $region156: #{tpu_custom_call.1} parent=115 // pred_fallthru
          _
        // Predicated region
        $region157: #{tpu_custom_call.1} parent=115 // pred_check
          %p903 = pneg %p312
        $region158: #{tpu_custom_call.1} parent=115 // pred_check_branch
          %905 = sbr.rel (%p903) target = $region160
        $region159: #{tpu_custom_call.1} parent=115 // pred_region
          %906 = dma.done [#allocation18], 32
        $region160: #{tpu_custom_call.1} parent=115 // pred_fallthru
          _
        // Predicated region
        $region161: #{tpu_custom_call.1} parent=115 // pred_check
          %p907 = pneg %p354
        $region162: #{tpu_custom_call.1} parent=115 // pred_check_branch
          %909 = sbr.rel (%p907) target = $region164
        $region163: #{tpu_custom_call.1} parent=115 // pred_region
          %910 = dma.done [#allocation21], 16
        $region164: #{tpu_custom_call.1} parent=115 // pred_fallthru
          _
        // Predicated region
        $region165: #{tpu_custom_call.1} parent=115 // pred_check
          %p911 = pneg %p396
        $region166: #{tpu_custom_call.1} parent=115 // pred_check_branch
          %913 = sbr.rel (%p911) target = $region168
        $region167: #{tpu_custom_call.1} parent=115 // pred_region
          %914 = dma.done [#allocation21], 16
        $region168: #{tpu_custom_call.1} parent=115 // pred_fallthru
          _
        // Predicated region
        $region169: #{tpu_custom_call.1} parent=115 // pred_check
          %p915 = pneg %p438
        $region170: #{tpu_custom_call.1} parent=115 // pred_check_branch
          %917 = sbr.rel (%p915) target = $region172
        $region171: #{tpu_custom_call.1} parent=115 // pred_region
          %918 = dma.done [#allocation24], 16
        $region172: #{tpu_custom_call.1} parent=115 // pred_fallthru
          _
        // Predicated region
        $region173: #{tpu_custom_call.1} parent=115 // pred_check
          %p919 = pneg %p564
        $region174: #{tpu_custom_call.1} parent=115 // pred_check_branch
          %921 = sbr.rel (%p919) target = $region176
        $region175: #{tpu_custom_call.1} parent=115 // pred_region
          %922 = dma.done [#allocation24], 256
        $region176: #{tpu_custom_call.1} parent=115 // pred_fallthru
          _
        %s923 = sand.u32 %s58, 1
        %s924 = scalar_lea.sflag [#allocation3], %s923
        %s925 = sand.u32 %s58, 1
        %s926 = smul.addr %s925, 4
        %s927 = scalar_lea.vmem [#allocation2], %s926
        %p928 = pneg %p71
        %p929 = pneg %p68
        %s930 = sand.u32 %s50, 1
        %s931 = scalar_lea.sflag [#allocation6], %s930
        %s932 = sand.u32 %s84, 1
        %s933 = smul.addr %s932, 8
        %s934 = scalar_lea.vmem [#allocation5], %s933
        %p935 = pneg %p97
        %p936 = pneg %p94
        %s937 = sand.u32 %s50, 1
        %s938 = scalar_lea.sflag [#allocation6], %s937
        %s939 = sand.u32 %s110, 1
        %s940 = smul.addr %s939, 16
        %s941 = scalar_lea.vmem [#allocation7], %s940
        %p942 = pneg %p123
        %p943 = pneg %p120
        %p944 = pneg %p144
        %p945 = pneg %p141
        %p946 = pneg %p165
        %p947 = pneg %p162
        %p948 = pneg %p186
        %p949 = pneg %p183
        %p950 = pneg %p207
        %p951 = pneg %p204
        %p952 = pneg %p228
        %p953 = pneg %p225
        %p954 = pneg %p249
        %p955 = pneg %p246
        %p956 = pneg %p270
        %p957 = pneg %p267
        %p958 = pneg %p291
        %p959 = pneg %p288
        %p960 = pneg %p312
        %p961 = pneg %p309
        %p962 = pneg %p333
        %p963 = pneg %p330
        %p964 = pneg %p354
        %p965 = pneg %p351
        %p966 = pneg %p375
        %p967 = pneg %p372
        %p968 = pneg %p396
        %p969 = pneg %p393
        %p970 = pneg %p417
        %p971 = pneg %p414
        %p972 = pneg %p438
        %p973 = pneg %p435
        %p974 = pneg %p459
        %p975 = pneg %p456
        %p976 = pneg %p480
        %p977 = pneg %p477
        %p978 = pneg %p501
        %p979 = pneg %p498
        %p980 = pneg %p522
        %p981 = pneg %p519
        %p982 = pneg %p543
        %p983 = pneg %p540
        %p984 = pneg %p564
        %p985 = pneg %p561
        %p986 = pneg %p590
        %p987 = pneg %p587
        %s988 = sand.u32 %s577, 1
        %s989 = scalar_lea.sflag [#allocation4], %s988
        %s990 = sand.u32 %s577, 1
        %s991 = scalar_lea.vmem [#allocation26], %s990
        %v992 = vld [vmem:[%s22] sm:$0xff]
        %v993 = vld [vmem:[%s22 + $0x8] sm:$0xff]
        %v994 = vld [vmem:[#allocation25] sm:$0xff]
        %v995 = vld [vmem:[#allocation25 + $0x8] sm:$0xff]
        %v996 = vld [vmem:[%s852] sm:$0xf]
        %v997 = vld [vmem:[%s861] sm:$0xff]
        %v998 = vld [vmem:[%s870] sm:$0xff]
        %v999 = vld [vmem:[%s870 + $0x8] sm:$0xff]
        %v1000 = vld [vmem:[#allocation8] sm:$0xff]
        %v1001 = vld [vmem:[#allocation8 + $0x8] sm:$0xff]
        %v1002 = vld [vmem:[#allocation8 + $0x10] sm:$0xff]
        %v1003 = vld [vmem:[#allocation8 + $0x18] sm:$0xff]
        %v1004 = vld [vmem:[#allocation10] sm:$0x1]
        %v1006 = vlaneseq
        %v1007 = vshrl.u32 %v1006, 7
        %v1008 = vsub.s32 0, %v1007
        %v1009 = vrot.slane %v1004, %v1008
        %vm1011 = vcmask 261120
        %v1013 = vsel %vm1011, %v996, 0
        %1015 = vmatprep.subr.mxu0 0.0
        %1016 = vmatpush1.msra.mxu0 0.0
        %1017 = vmatprep.subr.mxu0 0.0
        %1018 = vmatpush1.msra.mxu0 0.0
        %1019 = vmatprep.subr.mxu0 0.0
        %1020 = vmatpush1.msra.mxu0 0.0
        %1021 = vmatprep.subr.mxu0 0.0
        %1022 = vmatpush1.msra.mxu0 0.0
        %1023 = vmatprep.subr.mxu0 0.0
        %1024 = vmatpush1.msra.mxu0 0.0
        %1025 = vmatprep.subr.mxu0 0.0
        %1026 = vmatpush1.msra.mxu0 0.0
        %1027 = vmatprep.subr.mxu0 0.0
        %1028 = vmatpush1.msra.mxu0 0.0
        %1029 = vmatprep.subr.mxu0 0.0
        %1030 = vmatpush1.msra.mxu0 0.0
        %1031 = vmatprep.subr.mxu0 0.0
        %1032 = vmatpush1.msra.mxu0 0.0
        %1033 = vmatprep.subr.mxu0 0.0
        %1034 = vmatpush1.msra.mxu0 0.0
        %1035 = vmatprep.subr.mxu0 0.0
        %1036 = vmatpush1.msra.mxu0 0.0
        %1037 = vmatprep.subr.mxu0 0.0
        %1038 = vmatpush1.msra.mxu0 0.0
        %1039 = vmatprep.subr.mxu0 0.0
        %1040 = vmatpush1.msra.mxu0 %v1003
        %1041 = vmatprep.subr.mxu0 0.0
        %1042 = vmatpush1.msra.mxu0 %v1002
        %1043 = vmatprep.subr.mxu0 0.0
        %1044 = vmatpush1.msra.mxu0 %v1001
        %1045 = vmatprep.subr.mxu0 0.0
        %1046 = vmatpush1.msra.mxu0 %v1000
        %1047 = vmatprep.subr.mxu0 0.0
        %1048 = vmatpush2.msra.mxu0 0.0
        %1049 = vmatprep.subr.mxu0 0.0
        %1050 = vmatpush2.msra.mxu0 0.0
        %1051 = vmatprep.subr.mxu0 0.0
        %1052 = vmatpush2.msra.mxu0 0.0
        %1053 = vmatprep.subr.mxu0 0.0
        %1054 = vmatpush2.msra.mxu0 0.0
        %1055 = vmatprep.subr.mxu0 0.0
        %1056 = vmatpush2.msra.mxu0 0.0
        %1057 = vmatprep.subr.mxu0 0.0
        %1058 = vmatpush2.msra.mxu0 0.0
        %1059 = vmatprep.subr.mxu0 0.0
        %1060 = vmatpush2.msra.mxu0 0.0
        %1061 = vmatprep.subr.mxu0 0.0
        %1062 = vmatpush2.msra.mxu0 0.0
        %1063 = vmatprep.subr.mxu0 0.0
        %1064 = vmatpush2.msra.mxu0 0.0
        %1065 = vmatprep.subr.mxu0 0.0
        %1066 = vmatpush2.msra.mxu0 0.0
        %1067 = vmatprep.subr.mxu0 0.0
        %1068 = vmatpush2.msra.mxu0 0.0
        %1069 = vmatprep.subr.mxu0 0.0
        %1070 = vmatpush2.msra.mxu0 0.0
        %1071 = vmatprep.subr.mxu0 0.0
        %1072 = vmatpush2.msra.mxu0 0.0
        %1073 = vmatprep.subr.mxu0 0.0
        %1074 = vmatpush2.msra.mxu0 0.0
        %1075 = vmatprep.subr.mxu0 0.0
        %1076 = vmatpush2.msra.mxu0 0.0
        %1077 = vmatprep.subr.mxu0 0.0
        %1078 = vmatpush2.msra.mxu0 0.0
        %1079 = vmatprep.mubr.f32.mxu0 0.0
        %1080 = vmatmul.mubr.f32.gmra.mxu0 %v1013
        %v1081 = vpop.f32.mrf.mxu0
        %v1082 = vadd.f32 %v1009, %v1081
        %v1083 = vpop.f32.mrf.mxu0
        %1084 = vdwg.mxu0
        %s1085 = scalar_lea.vmem [#allocation8], 32
        %v1086 = vld [vmem:[%s1085] sm:$0xff]
        %v1087 = vld [vmem:[%s1085 + $0x8] sm:$0xff]
        %v1088 = vld [vmem:[%s1085 + $0x10] sm:$0xff]
        %v1089 = vld [vmem:[%s1085 + $0x18] sm:$0xff]
        %s1090 = scalar_lea.vmem [#allocation10], 1
        %v1091 = vld [vmem:[%s1090] sm:$0x1]
        %v1093 = vlaneseq
        %v1094 = vshrl.u32 %v1093, 7
        %v1095 = vsub.s32 0, %v1094
        %v1096 = vrot.slane %v1091, %v1095
        %v1099 = vsel %vm1011, %v997, 0
        %1101 = vmatprep.subr.mxu0 0.0
        %1102 = vmatpush1.msra.mxu0 0.0
        %1103 = vmatprep.subr.mxu0 0.0
        %1104 = vmatpush1.msra.mxu0 0.0
        %1105 = vmatprep.subr.mxu0 0.0
        %1106 = vmatpush1.msra.mxu0 0.0
        %1107 = vmatprep.subr.mxu0 0.0
        %1108 = vmatpush1.msra.mxu0 0.0
        %1109 = vmatprep.subr.mxu0 0.0
        %1110 = vmatpush1.msra.mxu0 0.0
        %1111 = vmatprep.subr.mxu0 0.0
        %1112 = vmatpush1.msra.mxu0 0.0
        %1113 = vmatprep.subr.mxu0 0.0
        %1114 = vmatpush1.msra.mxu0 0.0
        %1115 = vmatprep.subr.mxu0 0.0
        %1116 = vmatpush1.msra.mxu0 0.0
        %1117 = vmatprep.subr.mxu0 0.0
        %1118 = vmatpush1.msra.mxu0 0.0
        %1119 = vmatprep.subr.mxu0 0.0
        %1120 = vmatpush1.msra.mxu0 0.0
        %1121 = vmatprep.subr.mxu0 0.0
        %1122 = vmatpush1.msra.mxu0 0.0
        %1123 = vmatprep.subr.mxu0 0.0
        %1124 = vmatpush1.msra.mxu0 0.0
        %1125 = vmatprep.subr.mxu0 0.0
        %1126 = vmatpush1.msra.mxu0 %v1089
        %1127 = vmatprep.subr.mxu0 0.0
        %1128 = vmatpush1.msra.mxu0 %v1088
        %1129 = vmatprep.subr.mxu0 0.0
        %1130 = vmatpush1.msra.mxu0 %v1087
        %1131 = vmatprep.subr.mxu0 0.0
        %1132 = vmatpush1.msra.mxu0 %v1086
        %1133 = vmatprep.subr.mxu0 0.0
        %1134 = vmatpush2.msra.mxu0 0.0
        %1135 = vmatprep.subr.mxu0 0.0
        %1136 = vmatpush2.msra.mxu0 0.0
        %1137 = vmatprep.subr.mxu0 0.0
        %1138 = vmatpush2.msra.mxu0 0.0
        %1139 = vmatprep.subr.mxu0 0.0
        %1140 = vmatpush2.msra.mxu0 0.0
        %1141 = vmatprep.subr.mxu0 0.0
        %1142 = vmatpush2.msra.mxu0 0.0
        %1143 = vmatprep.subr.mxu0 0.0
        %1144 = vmatpush2.msra.mxu0 0.0
        %1145 = vmatprep.subr.mxu0 0.0
        %1146 = vmatpush2.msra.mxu0 0.0
        %1147 = vmatprep.subr.mxu0 0.0
        %1148 = vmatpush2.msra.mxu0 0.0
        %1149 = vmatprep.subr.mxu0 0.0
        %1150 = vmatpush2.msra.mxu0 0.0
        %1151 = vmatprep.subr.mxu0 0.0
        %1152 = vmatpush2.msra.mxu0 0.0
        %1153 = vmatprep.subr.mxu0 0.0
        %1154 = vmatpush2.msra.mxu0 0.0
        %1155 = vmatprep.subr.mxu0 0.0
        %1156 = vmatpush2.msra.mxu0 0.0
        %1157 = vmatprep.subr.mxu0 0.0
        %1158 = vmatpush2.msra.mxu0 0.0
        %1159 = vmatprep.subr.mxu0 0.0
        %1160 = vmatpush2.msra.mxu0 0.0
        %1161 = vmatprep.subr.mxu0 0.0
        %1162 = vmatpush2.msra.mxu0 0.0
        %1163 = vmatprep.subr.mxu0 0.0
        %1164 = vmatpush2.msra.mxu0 0.0
        %1165 = vmatprep.mubr.f32.mxu0 0.0
        %1166 = vmatmul.mubr.f32.gmra.mxu0 %v1099
        %v1167 = vpop.f32.mrf.mxu0
        %v1168 = vadd.f32 %v1096, %v1167
        %v1169 = vpop.f32.mrf.mxu0
        %1170 = vdwg.mxu0
        %v1171 = vld [vmem:[#allocation11] sm:$0xff]
        %v1172 = vld [vmem:[#allocation11 + $0x8] sm:$0xff]
        %v1173 = vld [vmem:[#allocation11 + $0x10] sm:$0xff]
        %v1174 = vld [vmem:[#allocation11 + $0x18] sm:$0xff]
        %v1176 = vsel %vm1011, %v998, 0
        %v1179 = vsel %vm1011, %v999, 0
        %1181 = vmatprep.subr.mxu0 0.0
        %1182 = vmatpush1.msra.mxu0 0.0
        %1183 = vmatprep.subr.mxu0 0.0
        %1184 = vmatpush1.msra.mxu0 0.0
        %1185 = vmatprep.subr.mxu0 0.0
        %1186 = vmatpush1.msra.mxu0 0.0
        %1187 = vmatprep.subr.mxu0 0.0
        %1188 = vmatpush1.msra.mxu0 0.0
        %1189 = vmatprep.subr.mxu0 0.0
        %1190 = vmatpush1.msra.mxu0 0.0
        %1191 = vmatprep.subr.mxu0 0.0
        %1192 = vmatpush1.msra.mxu0 0.0
        %1193 = vmatprep.subr.mxu0 0.0
        %1194 = vmatpush1.msra.mxu0 0.0
        %1195 = vmatprep.subr.mxu0 0.0
        %1196 = vmatpush1.msra.mxu0 0.0
        %1197 = vmatprep.subr.mxu0 0.0
        %1198 = vmatpush1.msra.mxu0 0.0
        %1199 = vmatprep.subr.mxu0 0.0
        %1200 = vmatpush1.msra.mxu0 0.0
        %1201 = vmatprep.subr.mxu0 0.0
        %1202 = vmatpush1.msra.mxu0 0.0
        %1203 = vmatprep.subr.mxu0 0.0
        %1204 = vmatpush1.msra.mxu0 0.0
        %1205 = vmatprep.subr.mxu0 0.0
        %1206 = vmatpush1.msra.mxu0 %v1174
        %1207 = vmatprep.subr.mxu0 0.0
        %1208 = vmatpush1.msra.mxu0 %v1173
        %1209 = vmatprep.subr.mxu0 0.0
        %1210 = vmatpush1.msra.mxu0 %v1172
        %1211 = vmatprep.subr.mxu0 0.0
        %1212 = vmatpush1.msra.mxu0 %v1171
        %1213 = vmatprep.subr.mxu0 0.0
        %1214 = vmatpush2.msra.mxu0 0.0
        %1215 = vmatprep.subr.mxu0 0.0
        %1216 = vmatpush2.msra.mxu0 0.0
        %1217 = vmatprep.subr.mxu0 0.0
        %1218 = vmatpush2.msra.mxu0 0.0
        %1219 = vmatprep.subr.mxu0 0.0
        %1220 = vmatpush2.msra.mxu0 0.0
        %1221 = vmatprep.subr.mxu0 0.0
        %1222 = vmatpush2.msra.mxu0 0.0
        %1223 = vmatprep.subr.mxu0 0.0
        %1224 = vmatpush2.msra.mxu0 0.0
        %1225 = vmatprep.subr.mxu0 0.0
        %1226 = vmatpush2.msra.mxu0 0.0
        %1227 = vmatprep.subr.mxu0 0.0
        %1228 = vmatpush2.msra.mxu0 0.0
        %1229 = vmatprep.subr.mxu0 0.0
        %1230 = vmatpush2.msra.mxu0 0.0
        %1231 = vmatprep.subr.mxu0 0.0
        %1232 = vmatpush2.msra.mxu0 0.0
        %1233 = vmatprep.subr.mxu0 0.0
        %1234 = vmatpush2.msra.mxu0 0.0
        %1235 = vmatprep.subr.mxu0 0.0
        %1236 = vmatpush2.msra.mxu0 0.0
        %1237 = vmatprep.subr.mxu0 0.0
        %1238 = vmatpush2.msra.mxu0 0.0
        %1239 = vmatprep.subr.mxu0 0.0
        %1240 = vmatpush2.msra.mxu0 0.0
        %1241 = vmatprep.subr.mxu0 0.0
        %1242 = vmatpush2.msra.mxu0 0.0
        %1243 = vmatprep.subr.mxu0 0.0
        %1244 = vmatpush2.msra.mxu0 0.0
        %1245 = vmatprep.mubr.f32.mxu0 0.0
        %1246 = vmatmul.mubr.f32.gmra.mxu0 %v1176
        %v1247 = vpop.f32.mrf.mxu0
        %v1248 = vadd.f32 0.0, %v1247
        %v1249 = vpop.f32.mrf.mxu0
        %1250 = vmatprep.mubr.f32.mxu0 0.0
        %1251 = vmatmul.mubr.f32.gmra.mxu0 %v1179
        %v1252 = vpop.f32.mrf.mxu0
        %v1253 = vadd.f32 0.0, %v1252
        %v1254 = vpop.f32.mrf.mxu0
        %1255 = vdwg.mxu0
        %v1256 = vld [vmem:[#allocation14] sm:$0xff]
        %v1257 = vld [vmem:[#allocation14 + $0x8] sm:$0xff]
        %v1258 = vld [vmem:[#allocation13] sm:$0x1]
        %v1260 = vlaneseq
        %v1261 = vshrl.u32 %v1260, 7
        %v1262 = vsub.s32 0, %v1261
        %v1263 = vrot.slane %v1258, %v1262
        %vm1265 = vcmask 130048
        %v1267 = vsel %vm1265, %v1256, 0
        %v1270 = vsel %vm1265, %v1257, 0
        %1272 = vmatprep.subr.mxu0 0.0
        %1273 = vmatpush1.msra.mxu0 0.0
        %1274 = vmatprep.subr.mxu0 0.0
        %1275 = vmatpush1.msra.mxu0 0.0
        %1276 = vmatprep.subr.mxu0 0.0
        %1277 = vmatpush1.msra.mxu0 0.0
        %1278 = vmatprep.subr.mxu0 0.0
        %1279 = vmatpush1.msra.mxu0 0.0
        %1280 = vmatprep.subr.mxu0 0.0
        %1281 = vmatpush1.msra.mxu0 0.0
        %1282 = vmatprep.subr.mxu0 0.0
        %1283 = vmatpush1.msra.mxu0 0.0
        %1284 = vmatprep.subr.mxu0 0.0
        %1285 = vmatpush1.msra.mxu0 0.0
        %1286 = vmatprep.subr.mxu0 0.0
        %1287 = vmatpush1.msra.mxu0 0.0
        %1288 = vmatprep.subr.mxu0 0.0
        %1289 = vmatpush1.msra.mxu0 0.0
        %1290 = vmatprep.subr.mxu0 0.0
        %1291 = vmatpush1.msra.mxu0 0.0
        %1292 = vmatprep.subr.mxu0 0.0
        %1293 = vmatpush1.msra.mxu0 0.0
        %1294 = vmatprep.subr.mxu0 0.0
        %1295 = vmatpush1.msra.mxu0 0.0
        %1296 = vmatprep.subr.mxu0 0.0
        %1297 = vmatpush1.msra.mxu0 0.0
        %1298 = vmatprep.subr.mxu0 0.0
        %1299 = vmatpush1.msra.mxu0 0.0
        %1300 = vmatprep.subr.mxu0 0.0
        %1301 = vmatpush1.msra.mxu0 %v1253
        %1302 = vmatprep.subr.mxu0 0.0
        %1303 = vmatpush1.msra.mxu0 %v1248
        %1304 = vmatprep.subr.mxu0 0.0
        %1305 = vmatpush2.msra.mxu0 0.0
        %1306 = vmatprep.subr.mxu0 0.0
        %1307 = vmatpush2.msra.mxu0 0.0
        %1308 = vmatprep.subr.mxu0 0.0
        %1309 = vmatpush2.msra.mxu0 0.0
        %1310 = vmatprep.subr.mxu0 0.0
        %1311 = vmatpush2.msra.mxu0 0.0
        %1312 = vmatprep.subr.mxu0 0.0
        %1313 = vmatpush2.msra.mxu0 0.0
        %1314 = vmatprep.subr.mxu0 0.0
        %1315 = vmatpush2.msra.mxu0 0.0
        %1316 = vmatprep.subr.mxu0 0.0
        %1317 = vmatpush2.msra.mxu0 0.0
        %1318 = vmatprep.subr.mxu0 0.0
        %1319 = vmatpush2.msra.mxu0 0.0
        %1320 = vmatprep.subr.mxu0 0.0
        %1321 = vmatpush2.msra.mxu0 0.0
        %1322 = vmatprep.subr.mxu0 0.0
        %1323 = vmatpush2.msra.mxu0 0.0
        %1324 = vmatprep.subr.mxu0 0.0
        %1325 = vmatpush2.msra.mxu0 0.0
        %1326 = vmatprep.subr.mxu0 0.0
        %1327 = vmatpush2.msra.mxu0 0.0
        %1328 = vmatprep.subr.mxu0 0.0
        %1329 = vmatpush2.msra.mxu0 0.0
        %1330 = vmatprep.subr.mxu0 0.0
        %1331 = vmatpush2.msra.mxu0 0.0
        %1332 = vmatprep.subr.mxu0 0.0
        %1333 = vmatpush2.msra.mxu0 0.0
        %1334 = vmatprep.subr.mxu0 0.0
        %1335 = vmatpush2.msra.mxu0 0.0
        %1336 = vmatprep.mubr.f32.mxu0 0.0
        %1337 = vmatmul.mubr.f32.gmra.mxu0 %v1267
        %v1338 = vpop.f32.mrf.mxu0
        %v1339 = vadd.f32 %v1263, %v1338
        %v1340 = vpop.f32.mrf.mxu0
        %1341 = vmatprep.mubr.f32.mxu0 0.0
        %1342 = vmatmul.mubr.f32.gmra.mxu0 %v1270
        %v1343 = vpop.f32.mrf.mxu0
        %v1344 = vadd.f32 %v1263, %v1343
        %v1345 = vpop.f32.mrf.mxu0
        %1346 = vdwg.mxu0
        %s1347 = scalar_lea.vmem [#allocation11], 32
        %v1348 = vld [vmem:[%s1347] sm:$0xff]
        %v1349 = vld [vmem:[%s1347 + $0x8] sm:$0xff]
        %v1350 = vld [vmem:[%s1347 + $0x10] sm:$0xff]
        %v1351 = vld [vmem:[%s1347 + $0x18] sm:$0xff]
        %1352 = vmatprep.subr.mxu0 0.0
        %1353 = vmatpush1.msra.mxu0 0.0
        %1354 = vmatprep.subr.mxu0 0.0
        %1355 = vmatpush1.msra.mxu0 0.0
        %1356 = vmatprep.subr.mxu0 0.0
        %1357 = vmatpush1.msra.mxu0 0.0
        %1358 = vmatprep.subr.mxu0 0.0
        %1359 = vmatpush1.msra.mxu0 0.0
        %1360 = vmatprep.subr.mxu0 0.0
        %1361 = vmatpush1.msra.mxu0 0.0
        %1362 = vmatprep.subr.mxu0 0.0
        %1363 = vmatpush1.msra.mxu0 0.0
        %1364 = vmatprep.subr.mxu0 0.0
        %1365 = vmatpush1.msra.mxu0 0.0
        %1366 = vmatprep.subr.mxu0 0.0
        %1367 = vmatpush1.msra.mxu0 0.0
        %1368 = vmatprep.subr.mxu0 0.0
        %1369 = vmatpush1.msra.mxu0 0.0
        %1370 = vmatprep.subr.mxu0 0.0
        %1371 = vmatpush1.msra.mxu0 0.0
        %1372 = vmatprep.subr.mxu0 0.0
        %1373 = vmatpush1.msra.mxu0 0.0
        %1374 = vmatprep.subr.mxu0 0.0
        %1375 = vmatpush1.msra.mxu0 0.0
        %1376 = vmatprep.subr.mxu0 0.0
        %1377 = vmatpush1.msra.mxu0 %v1351
        %1378 = vmatprep.subr.mxu0 0.0
        %1379 = vmatpush1.msra.mxu0 %v1350
        %1380 = vmatprep.subr.mxu0 0.0
        %1381 = vmatpush1.msra.mxu0 %v1349
        %1382 = vmatprep.subr.mxu0 0.0
        %1383 = vmatpush1.msra.mxu0 %v1348
        %1384 = vmatprep.subr.mxu0 0.0
        %1385 = vmatpush2.msra.mxu0 0.0
        %1386 = vmatprep.subr.mxu0 0.0
        %1387 = vmatpush2.msra.mxu0 0.0
        %1388 = vmatprep.subr.mxu0 0.0
        %1389 = vmatpush2.msra.mxu0 0.0
        %1390 = vmatprep.subr.mxu0 0.0
        %1391 = vmatpush2.msra.mxu0 0.0
        %1392 = vmatprep.subr.mxu0 0.0
        %1393 = vmatpush2.msra.mxu0 0.0
        %1394 = vmatprep.subr.mxu0 0.0
        %1395 = vmatpush2.msra.mxu0 0.0
        %1396 = vmatprep.subr.mxu0 0.0
        %1397 = vmatpush2.msra.mxu0 0.0
        %1398 = vmatprep.subr.mxu0 0.0
        %1399 = vmatpush2.msra.mxu0 0.0
        %1400 = vmatprep.subr.mxu0 0.0
        %1401 = vmatpush2.msra.mxu0 0.0
        %1402 = vmatprep.subr.mxu0 0.0
        %1403 = vmatpush2.msra.mxu0 0.0
        %1404 = vmatprep.subr.mxu0 0.0
        %1405 = vmatpush2.msra.mxu0 0.0
        %1406 = vmatprep.subr.mxu0 0.0
        %1407 = vmatpush2.msra.mxu0 0.0
        %1408 = vmatprep.subr.mxu0 0.0
        %1409 = vmatpush2.msra.mxu0 0.0
        %1410 = vmatprep.subr.mxu0 0.0
        %1411 = vmatpush2.msra.mxu0 0.0
        %1412 = vmatprep.subr.mxu0 0.0
        %1413 = vmatpush2.msra.mxu0 0.0
        %1414 = vmatprep.subr.mxu0 0.0
        %1415 = vmatpush2.msra.mxu0 0.0
        %1416 = vmatprep.mubr.f32.mxu0 0.0
        %1417 = vmatmul.mubr.f32.gmra.mxu0 %v1176
        %v1418 = vpop.f32.mrf.mxu0
        %v1419 = vadd.f32 0.0, %v1418
        %v1420 = vpop.f32.mrf.mxu0
        %1421 = vmatprep.mubr.f32.mxu0 0.0
        %1422 = vmatmul.mubr.f32.gmra.mxu0 %v1179
        %v1423 = vpop.f32.mrf.mxu0
        %v1424 = vadd.f32 0.0, %v1423
        %v1425 = vpop.f32.mrf.mxu0
        %1426 = vdwg.mxu0
        %s1427 = scalar_lea.vmem [#allocation14], 16
        %v1428 = vld [vmem:[%s1427] sm:$0xff]
        %v1429 = vld [vmem:[%s1427 + $0x8] sm:$0xff]
        %s1430 = scalar_lea.vmem [#allocation13], 1
        %v1431 = vld [vmem:[%s1430] sm:$0x1]
        %v1433 = vlaneseq
        %v1434 = vshrl.u32 %v1433, 7
        %v1435 = vsub.s32 0, %v1434
        %v1436 = vrot.slane %v1431, %v1435
        %v1439 = vsel %vm1265, %v1428, 0
        %v1442 = vsel %vm1265, %v1429, 0
        %1444 = vmatprep.subr.mxu0 0.0
        %1445 = vmatpush1.msra.mxu0 0.0
        %1446 = vmatprep.subr.mxu0 0.0
        %1447 = vmatpush1.msra.mxu0 0.0
        %1448 = vmatprep.subr.mxu0 0.0
        %1449 = vmatpush1.msra.mxu0 0.0
        %1450 = vmatprep.subr.mxu0 0.0
        %1451 = vmatpush1.msra.mxu0 0.0
        %1452 = vmatprep.subr.mxu0 0.0
        %1453 = vmatpush1.msra.mxu0 0.0
        %1454 = vmatprep.subr.mxu0 0.0
        %1455 = vmatpush1.msra.mxu0 0.0
        %1456 = vmatprep.subr.mxu0 0.0
        %1457 = vmatpush1.msra.mxu0 0.0
        %1458 = vmatprep.subr.mxu0 0.0
        %1459 = vmatpush1.msra.mxu0 0.0
        %1460 = vmatprep.subr.mxu0 0.0
        %1461 = vmatpush1.msra.mxu0 0.0
        %1462 = vmatprep.subr.mxu0 0.0
        %1463 = vmatpush1.msra.mxu0 0.0
        %1464 = vmatprep.subr.mxu0 0.0
        %1465 = vmatpush1.msra.mxu0 0.0
        %1466 = vmatprep.subr.mxu0 0.0
        %1467 = vmatpush1.msra.mxu0 0.0
        %1468 = vmatprep.subr.mxu0 0.0
        %1469 = vmatpush1.msra.mxu0 0.0
        %1470 = vmatprep.subr.mxu0 0.0
        %1471 = vmatpush1.msra.mxu0 0.0
        %1472 = vmatprep.subr.mxu0 0.0
        %1473 = vmatpush1.msra.mxu0 %v1424
        %1474 = vmatprep.subr.mxu0 0.0
        %1475 = vmatpush1.msra.mxu0 %v1419
        %1476 = vmatprep.subr.mxu0 0.0
        %1477 = vmatpush2.msra.mxu0 0.0
        %1478 = vmatprep.subr.mxu0 0.0
        %1479 = vmatpush2.msra.mxu0 0.0
        %1480 = vmatprep.subr.mxu0 0.0
        %1481 = vmatpush2.msra.mxu0 0.0
        %1482 = vmatprep.subr.mxu0 0.0
        %1483 = vmatpush2.msra.mxu0 0.0
        %1484 = vmatprep.subr.mxu0 0.0
        %1485 = vmatpush2.msra.mxu0 0.0
        %1486 = vmatprep.subr.mxu0 0.0
        %1487 = vmatpush2.msra.mxu0 0.0
        %1488 = vmatprep.subr.mxu0 0.0
        %1489 = vmatpush2.msra.mxu0 0.0
        %1490 = vmatprep.subr.mxu0 0.0
        %1491 = vmatpush2.msra.mxu0 0.0
        %1492 = vmatprep.subr.mxu0 0.0
        %1493 = vmatpush2.msra.mxu0 0.0
        %1494 = vmatprep.subr.mxu0 0.0
        %1495 = vmatpush2.msra.mxu0 0.0
        %1496 = vmatprep.subr.mxu0 0.0
        %1497 = vmatpush2.msra.mxu0 0.0
        %1498 = vmatprep.subr.mxu0 0.0
        %1499 = vmatpush2.msra.mxu0 0.0
        %1500 = vmatprep.subr.mxu0 0.0
        %1501 = vmatpush2.msra.mxu0 0.0
        %1502 = vmatprep.subr.mxu0 0.0
        %1503 = vmatpush2.msra.mxu0 0.0
        %1504 = vmatprep.subr.mxu0 0.0
        %1505 = vmatpush2.msra.mxu0 0.0
        %1506 = vmatprep.subr.mxu0 0.0
        %1507 = vmatpush2.msra.mxu0 0.0
        %1508 = vmatprep.mubr.f32.mxu0 0.0
        %1509 = vmatmul.mubr.f32.gmra.mxu0 %v1439
        %v1510 = vpop.f32.mrf.mxu0
        %v1511 = vadd.f32 %v1436, %v1510
        %v1512 = vpop.f32.mrf.mxu0
        %1513 = vmatprep.mubr.f32.mxu0 0.0
        %1514 = vmatmul.mubr.f32.gmra.mxu0 %v1442
        %v1515 = vpop.f32.mrf.mxu0
        %v1516 = vadd.f32 %v1436, %v1515
        %v1517 = vpop.f32.mrf.mxu0
        %1518 = vdwg.mxu0
        %s1519 = scalar_lea.vmem [#allocation11], 64
        %v1520 = vld [vmem:[%s1519] sm:$0xff]
        %v1521 = vld [vmem:[%s1519 + $0x8] sm:$0xff]
        %v1522 = vld [vmem:[%s1519 + $0x10] sm:$0xff]
        %v1523 = vld [vmem:[%s1519 + $0x18] sm:$0xff]
        %1524 = vmatprep.subr.mxu0 0.0
        %1525 = vmatpush1.msra.mxu0 0.0
        %1526 = vmatprep.subr.mxu0 0.0
        %1527 = vmatpush1.msra.mxu0 0.0
        %1528 = vmatprep.subr.mxu0 0.0
        %1529 = vmatpush1.msra.mxu0 0.0
        %1530 = vmatprep.subr.mxu0 0.0
        %1531 = vmatpush1.msra.mxu0 0.0
        %1532 = vmatprep.subr.mxu0 0.0
        %1533 = vmatpush1.msra.mxu0 0.0
        %1534 = vmatprep.subr.mxu0 0.0
        %1535 = vmatpush1.msra.mxu0 0.0
        %1536 = vmatprep.subr.mxu0 0.0
        %1537 = vmatpush1.msra.mxu0 0.0
        %1538 = vmatprep.subr.mxu0 0.0
        %1539 = vmatpush1.msra.mxu0 0.0
        %1540 = vmatprep.subr.mxu0 0.0
        %1541 = vmatpush1.msra.mxu0 0.0
        %1542 = vmatprep.subr.mxu0 0.0
        %1543 = vmatpush1.msra.mxu0 0.0
        %1544 = vmatprep.subr.mxu0 0.0
        %1545 = vmatpush1.msra.mxu0 0.0
        %1546 = vmatprep.subr.mxu0 0.0
        %1547 = vmatpush1.msra.mxu0 0.0
        %1548 = vmatprep.subr.mxu0 0.0
        %1549 = vmatpush1.msra.mxu0 %v1523
        %1550 = vmatprep.subr.mxu0 0.0
        %1551 = vmatpush1.msra.mxu0 %v1522
        %1552 = vmatprep.subr.mxu0 0.0
        %1553 = vmatpush1.msra.mxu0 %v1521
        %1554 = vmatprep.subr.mxu0 0.0
        %1555 = vmatpush1.msra.mxu0 %v1520
        %1556 = vmatprep.subr.mxu0 0.0
        %1557 = vmatpush2.msra.mxu0 0.0
        %1558 = vmatprep.subr.mxu0 0.0
        %1559 = vmatpush2.msra.mxu0 0.0
        %1560 = vmatprep.subr.mxu0 0.0
        %1561 = vmatpush2.msra.mxu0 0.0
        %1562 = vmatprep.subr.mxu0 0.0
        %1563 = vmatpush2.msra.mxu0 0.0
        %1564 = vmatprep.subr.mxu0 0.0
        %1565 = vmatpush2.msra.mxu0 0.0
        %1566 = vmatprep.subr.mxu0 0.0
        %1567 = vmatpush2.msra.mxu0 0.0
        %1568 = vmatprep.subr.mxu0 0.0
        %1569 = vmatpush2.msra.mxu0 0.0
        %1570 = vmatprep.subr.mxu0 0.0
        %1571 = vmatpush2.msra.mxu0 0.0
        %1572 = vmatprep.subr.mxu0 0.0
        %1573 = vmatpush2.msra.mxu0 0.0
        %1574 = vmatprep.subr.mxu0 0.0
        %1575 = vmatpush2.msra.mxu0 0.0
        %1576 = vmatprep.subr.mxu0 0.0
        %1577 = vmatpush2.msra.mxu0 0.0
        %1578 = vmatprep.subr.mxu0 0.0
        %1579 = vmatpush2.msra.mxu0 0.0
        %1580 = vmatprep.subr.mxu0 0.0
        %1581 = vmatpush2.msra.mxu0 0.0
        %1582 = vmatprep.subr.mxu0 0.0
        %1583 = vmatpush2.msra.mxu0 0.0
        %1584 = vmatprep.subr.mxu0 0.0
        %1585 = vmatpush2.msra.mxu0 0.0
        %1586 = vmatprep.subr.mxu0 0.0
        %1587 = vmatpush2.msra.mxu0 0.0
        %1588 = vmatprep.mubr.f32.mxu0 0.0
        %1589 = vmatmul.mubr.f32.gmra.mxu0 %v1176
        %v1590 = vpop.f32.mrf.mxu0
        %v1591 = vadd.f32 0.0, %v1590
        %v1592 = vpop.f32.mrf.mxu0
        %1593 = vmatprep.mubr.f32.mxu0 0.0
        %1594 = vmatmul.mubr.f32.gmra.mxu0 %v1179
        %v1595 = vpop.f32.mrf.mxu0
        %v1596 = vadd.f32 0.0, %v1595
        %v1597 = vpop.f32.mrf.mxu0
        %1598 = vdwg.mxu0
        %s1599 = scalar_lea.vmem [#allocation14], 32
        %v1600 = vld [vmem:[%s1599] sm:$0xff]
        %v1601 = vld [vmem:[%s1599 + $0x8] sm:$0xff]
        %s1602 = scalar_lea.vmem [#allocation13], 2
        %v1603 = vld [vmem:[%s1602] sm:$0x1]
        %v1605 = vlaneseq
        %v1606 = vshrl.u32 %v1605, 7
        %v1607 = vsub.s32 0, %v1606
        %v1608 = vrot.slane %v1603, %v1607
        %v1611 = vsel %vm1265, %v1600, 0
        %v1614 = vsel %vm1265, %v1601, 0
        %1616 = vmatprep.subr.mxu0 0.0
        %1617 = vmatpush1.msra.mxu0 0.0
        %1618 = vmatprep.subr.mxu0 0.0
        %1619 = vmatpush1.msra.mxu0 0.0
        %1620 = vmatprep.subr.mxu0 0.0
        %1621 = vmatpush1.msra.mxu0 0.0
        %1622 = vmatprep.subr.mxu0 0.0
        %1623 = vmatpush1.msra.mxu0 0.0
        %1624 = vmatprep.subr.mxu0 0.0
        %1625 = vmatpush1.msra.mxu0 0.0
        %1626 = vmatprep.subr.mxu0 0.0
        %1627 = vmatpush1.msra.mxu0 0.0
        %1628 = vmatprep.subr.mxu0 0.0
        %1629 = vmatpush1.msra.mxu0 0.0
        %1630 = vmatprep.subr.mxu0 0.0
        %1631 = vmatpush1.msra.mxu0 0.0
        %1632 = vmatprep.subr.mxu0 0.0
        %1633 = vmatpush1.msra.mxu0 0.0
        %1634 = vmatprep.subr.mxu0 0.0
        %1635 = vmatpush1.msra.mxu0 0.0
        %1636 = vmatprep.subr.mxu0 0.0
        %1637 = vmatpush1.msra.mxu0 0.0
        %1638 = vmatprep.subr.mxu0 0.0
        %1639 = vmatpush1.msra.mxu0 0.0
        %1640 = vmatprep.subr.mxu0 0.0
        %1641 = vmatpush1.msra.mxu0 0.0
        %1642 = vmatprep.subr.mxu0 0.0
        %1643 = vmatpush1.msra.mxu0 0.0
        %1644 = vmatprep.subr.mxu0 0.0
        %1645 = vmatpush1.msra.mxu0 %v1596
        %1646 = vmatprep.subr.mxu0 0.0
        %1647 = vmatpush1.msra.mxu0 %v1591
        %1648 = vmatprep.subr.mxu0 0.0
        %1649 = vmatpush2.msra.mxu0 0.0
        %1650 = vmatprep.subr.mxu0 0.0
        %1651 = vmatpush2.msra.mxu0 0.0
        %1652 = vmatprep.subr.mxu0 0.0
        %1653 = vmatpush2.msra.mxu0 0.0
        %1654 = vmatprep.subr.mxu0 0.0
        %1655 = vmatpush2.msra.mxu0 0.0
        %1656 = vmatprep.subr.mxu0 0.0
        %1657 = vmatpush2.msra.mxu0 0.0
        %1658 = vmatprep.subr.mxu0 0.0
        %1659 = vmatpush2.msra.mxu0 0.0
        %1660 = vmatprep.subr.mxu0 0.0
        %1661 = vmatpush2.msra.mxu0 0.0
        %1662 = vmatprep.subr.mxu0 0.0
        %1663 = vmatpush2.msra.mxu0 0.0
        %1664 = vmatprep.subr.mxu0 0.0
        %1665 = vmatpush2.msra.mxu0 0.0
        %1666 = vmatprep.subr.mxu0 0.0
        %1667 = vmatpush2.msra.mxu0 0.0
        %1668 = vmatprep.subr.mxu0 0.0
        %1669 = vmatpush2.msra.mxu0 0.0
        %1670 = vmatprep.subr.mxu0 0.0
        %1671 = vmatpush2.msra.mxu0 0.0
        %1672 = vmatprep.subr.mxu0 0.0
        %1673 = vmatpush2.msra.mxu0 0.0
        %1674 = vmatprep.subr.mxu0 0.0
        %1675 = vmatpush2.msra.mxu0 0.0
        %1676 = vmatprep.subr.mxu0 0.0
        %1677 = vmatpush2.msra.mxu0 0.0
        %1678 = vmatprep.subr.mxu0 0.0
        %1679 = vmatpush2.msra.mxu0 0.0
        %1680 = vmatprep.mubr.f32.mxu0 0.0
        %1681 = vmatmul.mubr.f32.gmra.mxu0 %v1611
        %v1682 = vpop.f32.mrf.mxu0
        %v1683 = vadd.f32 %v1608, %v1682
        %v1684 = vpop.f32.mrf.mxu0
        %1685 = vmatprep.mubr.f32.mxu0 0.0
        %1686 = vmatmul.mubr.f32.gmra.mxu0 %v1614
        %v1687 = vpop.f32.mrf.mxu0
        %v1688 = vadd.f32 %v1608, %v1687
        %v1689 = vpop.f32.mrf.mxu0
        %1690 = vdwg.mxu0
        %s1691 = scalar_lea.vmem [#allocation11], 96
        %v1692 = vld [vmem:[%s1691] sm:$0xff]
        %v1693 = vld [vmem:[%s1691 + $0x8] sm:$0xff]
        %v1694 = vld [vmem:[%s1691 + $0x10] sm:$0xff]
        %v1695 = vld [vmem:[%s1691 + $0x18] sm:$0xff]
        %1696 = vmatprep.subr.mxu0 0.0
        %1697 = vmatpush1.msra.mxu0 0.0
        %1698 = vmatprep.subr.mxu0 0.0
        %1699 = vmatpush1.msra.mxu0 0.0
        %1700 = vmatprep.subr.mxu0 0.0
        %1701 = vmatpush1.msra.mxu0 0.0
        %1702 = vmatprep.subr.mxu0 0.0
        %1703 = vmatpush1.msra.mxu0 0.0
        %1704 = vmatprep.subr.mxu0 0.0
        %1705 = vmatpush1.msra.mxu0 0.0
        %1706 = vmatprep.subr.mxu0 0.0
        %1707 = vmatpush1.msra.mxu0 0.0
        %1708 = vmatprep.subr.mxu0 0.0
        %1709 = vmatpush1.msra.mxu0 0.0
        %1710 = vmatprep.subr.mxu0 0.0
        %1711 = vmatpush1.msra.mxu0 0.0
        %1712 = vmatprep.subr.mxu0 0.0
        %1713 = vmatpush1.msra.mxu0 0.0
        %1714 = vmatprep.subr.mxu0 0.0
        %1715 = vmatpush1.msra.mxu0 0.0
        %1716 = vmatprep.subr.mxu0 0.0
        %1717 = vmatpush1.msra.mxu0 0.0
        %1718 = vmatprep.subr.mxu0 0.0
        %1719 = vmatpush1.msra.mxu0 0.0
        %1720 = vmatprep.subr.mxu0 0.0
        %1721 = vmatpush1.msra.mxu0 %v1695
        %1722 = vmatprep.subr.mxu0 0.0
        %1723 = vmatpush1.msra.mxu0 %v1694
        %1724 = vmatprep.subr.mxu0 0.0
        %1725 = vmatpush1.msra.mxu0 %v1693
        %1726 = vmatprep.subr.mxu0 0.0
        %1727 = vmatpush1.msra.mxu0 %v1692
        %1728 = vmatprep.subr.mxu0 0.0
        %1729 = vmatpush2.msra.mxu0 0.0
        %1730 = vmatprep.subr.mxu0 0.0
        %1731 = vmatpush2.msra.mxu0 0.0
        %1732 = vmatprep.subr.mxu0 0.0
        %1733 = vmatpush2.msra.mxu0 0.0
        %1734 = vmatprep.subr.mxu0 0.0
        %1735 = vmatpush2.msra.mxu0 0.0
        %1736 = vmatprep.subr.mxu0 0.0
        %1737 = vmatpush2.msra.mxu0 0.0
        %1738 = vmatprep.subr.mxu0 0.0
        %1739 = vmatpush2.msra.mxu0 0.0
        %1740 = vmatprep.subr.mxu0 0.0
        %1741 = vmatpush2.msra.mxu0 0.0
        %1742 = vmatprep.subr.mxu0 0.0
        %1743 = vmatpush2.msra.mxu0 0.0
        %1744 = vmatprep.subr.mxu0 0.0
        %1745 = vmatpush2.msra.mxu0 0.0
        %1746 = vmatprep.subr.mxu0 0.0
        %1747 = vmatpush2.msra.mxu0 0.0
        %1748 = vmatprep.subr.mxu0 0.0
        %1749 = vmatpush2.msra.mxu0 0.0
        %1750 = vmatprep.subr.mxu0 0.0
        %1751 = vmatpush2.msra.mxu0 0.0
        %1752 = vmatprep.subr.mxu0 0.0
        %1753 = vmatpush2.msra.mxu0 0.0
        %1754 = vmatprep.subr.mxu0 0.0
        %1755 = vmatpush2.msra.mxu0 0.0
        %1756 = vmatprep.subr.mxu0 0.0
        %1757 = vmatpush2.msra.mxu0 0.0
        %1758 = vmatprep.subr.mxu0 0.0
        %1759 = vmatpush2.msra.mxu0 0.0
        %1760 = vmatprep.mubr.f32.mxu0 0.0
        %1761 = vmatmul.mubr.f32.gmra.mxu0 %v1176
        %v1762 = vpop.f32.mrf.mxu0
        %v1763 = vadd.f32 0.0, %v1762
        %v1764 = vpop.f32.mrf.mxu0
        %1765 = vmatprep.mubr.f32.mxu0 0.0
        %1766 = vmatmul.mubr.f32.gmra.mxu0 %v1179
        %v1767 = vpop.f32.mrf.mxu0
        %v1768 = vadd.f32 0.0, %v1767
        %v1769 = vpop.f32.mrf.mxu0
        %1770 = vdwg.mxu0
        %s1771 = scalar_lea.vmem [#allocation14], 48
        %v1772 = vld [vmem:[%s1771] sm:$0xff]
        %v1773 = vld [vmem:[%s1771 + $0x8] sm:$0xff]
        %s1774 = scalar_lea.vmem [#allocation13], 3
        %v1775 = vld [vmem:[%s1774] sm:$0x1]
        %v1777 = vlaneseq
        %v1778 = vshrl.u32 %v1777, 7
        %v1779 = vsub.s32 0, %v1778
        %v1780 = vrot.slane %v1775, %v1779
        %v1783 = vsel %vm1265, %v1772, 0
        %v1786 = vsel %vm1265, %v1773, 0
        %1788 = vmatprep.subr.mxu0 0.0
        %1789 = vmatpush1.msra.mxu0 0.0
        %1790 = vmatprep.subr.mxu0 0.0
        %1791 = vmatpush1.msra.mxu0 0.0
        %1792 = vmatprep.subr.mxu0 0.0
        %1793 = vmatpush1.msra.mxu0 0.0
        %1794 = vmatprep.subr.mxu0 0.0
        %1795 = vmatpush1.msra.mxu0 0.0
        %1796 = vmatprep.subr.mxu0 0.0
        %1797 = vmatpush1.msra.mxu0 0.0
        %1798 = vmatprep.subr.mxu0 0.0
        %1799 = vmatpush1.msra.mxu0 0.0
        %1800 = vmatprep.subr.mxu0 0.0
        %1801 = vmatpush1.msra.mxu0 0.0
        %1802 = vmatprep.subr.mxu0 0.0
        %1803 = vmatpush1.msra.mxu0 0.0
        %1804 = vmatprep.subr.mxu0 0.0
        %1805 = vmatpush1.msra.mxu0 0.0
        %1806 = vmatprep.subr.mxu0 0.0
        %1807 = vmatpush1.msra.mxu0 0.0
        %1808 = vmatprep.subr.mxu0 0.0
        %1809 = vmatpush1.msra.mxu0 0.0
        %1810 = vmatprep.subr.mxu0 0.0
        %1811 = vmatpush1.msra.mxu0 0.0
        %1812 = vmatprep.subr.mxu0 0.0
        %1813 = vmatpush1.msra.mxu0 0.0
        %1814 = vmatprep.subr.mxu0 0.0
        %1815 = vmatpush1.msra.mxu0 0.0
        %1816 = vmatprep.subr.mxu0 0.0
        %1817 = vmatpush1.msra.mxu0 %v1768
        %1818 = vmatprep.subr.mxu0 0.0
        %1819 = vmatpush1.msra.mxu0 %v1763
        %1820 = vmatprep.subr.mxu0 0.0
        %1821 = vmatpush2.msra.mxu0 0.0
        %1822 = vmatprep.subr.mxu0 0.0
        %1823 = vmatpush2.msra.mxu0 0.0
        %1824 = vmatprep.subr.mxu0 0.0
        %1825 = vmatpush2.msra.mxu0 0.0
        %1826 = vmatprep.subr.mxu0 0.0
        %1827 = vmatpush2.msra.mxu0 0.0
        %1828 = vmatprep.subr.mxu0 0.0
        %1829 = vmatpush2.msra.mxu0 0.0
        %1830 = vmatprep.subr.mxu0 0.0
        %1831 = vmatpush2.msra.mxu0 0.0
        %1832 = vmatprep.subr.mxu0 0.0
        %1833 = vmatpush2.msra.mxu0 0.0
        %1834 = vmatprep.subr.mxu0 0.0
        %1835 = vmatpush2.msra.mxu0 0.0
        %1836 = vmatprep.subr.mxu0 0.0
        %1837 = vmatpush2.msra.mxu0 0.0
        %1838 = vmatprep.subr.mxu0 0.0
        %1839 = vmatpush2.msra.mxu0 0.0
        %1840 = vmatprep.subr.mxu0 0.0
        %1841 = vmatpush2.msra.mxu0 0.0
        %1842 = vmatprep.subr.mxu0 0.0
        %1843 = vmatpush2.msra.mxu0 0.0
        %1844 = vmatprep.subr.mxu0 0.0
        %1845 = vmatpush2.msra.mxu0 0.0
        %1846 = vmatprep.subr.mxu0 0.0
        %1847 = vmatpush2.msra.mxu0 0.0
        %1848 = vmatprep.subr.mxu0 0.0
        %1849 = vmatpush2.msra.mxu0 0.0
        %1850 = vmatprep.subr.mxu0 0.0
        %1851 = vmatpush2.msra.mxu0 0.0
        %1852 = vmatprep.mubr.f32.mxu0 0.0
        %1853 = vmatmul.mubr.f32.gmra.mxu0 %v1783
        %v1854 = vpop.f32.mrf.mxu0
        %v1855 = vadd.f32 %v1780, %v1854
        %v1856 = vpop.f32.mrf.mxu0
        %1857 = vmatprep.mubr.f32.mxu0 0.0
        %1858 = vmatmul.mubr.f32.gmra.mxu0 %v1786
        %v1859 = vpop.f32.mrf.mxu0
        %v1860 = vadd.f32 %v1780, %v1859
        %v1861 = vpop.f32.mrf.mxu0
        %1862 = vdwg.mxu0
        %v1863 = vld [vmem:[#allocation16] sm:$0x1]
        %v1865 = vsel %vm1265, %v992, 0
        %v1868 = vsel %vm1265, %v993, 0
        %1870 = vmatprep.subr.mxu0 0.0
        %1871 = vmatpush1.msra.mxu0 0.0
        %1872 = vmatprep.subr.mxu0 0.0
        %1873 = vmatpush1.msra.mxu0 0.0
        %1874 = vmatprep.subr.mxu0 0.0
        %1875 = vmatpush1.msra.mxu0 0.0
        %1876 = vmatprep.subr.mxu0 0.0
        %1877 = vmatpush1.msra.mxu0 0.0
        %1878 = vmatprep.subr.mxu0 0.0
        %1879 = vmatpush1.msra.mxu0 0.0
        %1880 = vmatprep.subr.mxu0 0.0
        %1881 = vmatpush1.msra.mxu0 0.0
        %1882 = vmatprep.subr.mxu0 0.0
        %1883 = vmatpush1.msra.mxu0 0.0
        %1884 = vmatprep.subr.mxu0 0.0
        %1885 = vmatpush1.msra.mxu0 0.0
        %1886 = vmatprep.subr.mxu0 0.0
        %1887 = vmatpush1.msra.mxu0 0.0
        %1888 = vmatprep.subr.mxu0 0.0
        %1889 = vmatpush1.msra.mxu0 0.0
        %1890 = vmatprep.subr.mxu0 0.0
        %1891 = vmatpush1.msra.mxu0 0.0
        %1892 = vmatprep.subr.mxu0 0.0
        %1893 = vmatpush1.msra.mxu0 0.0
        %1894 = vmatprep.subr.mxu0 0.0
        %1895 = vmatpush1.msra.mxu0 0.0
        %1896 = vmatprep.subr.mxu0 0.0
        %1897 = vmatpush1.msra.mxu0 0.0
        %1898 = vmatprep.subr.mxu0 0.0
        %1899 = vmatpush1.msra.mxu0 %v999
        %1900 = vmatprep.subr.mxu0 0.0
        %1901 = vmatpush1.msra.mxu0 %v998
        %1902 = vmatprep.subr.mxu0 0.0
        %1903 = vmatpush2.msra.mxu0 0.0
        %1904 = vmatprep.subr.mxu0 0.0
        %1905 = vmatpush2.msra.mxu0 0.0
        %1906 = vmatprep.subr.mxu0 0.0
        %1907 = vmatpush2.msra.mxu0 0.0
        %1908 = vmatprep.subr.mxu0 0.0
        %1909 = vmatpush2.msra.mxu0 0.0
        %1910 = vmatprep.subr.mxu0 0.0
        %1911 = vmatpush2.msra.mxu0 0.0
        %1912 = vmatprep.subr.mxu0 0.0
        %1913 = vmatpush2.msra.mxu0 0.0
        %1914 = vmatprep.subr.mxu0 0.0
        %1915 = vmatpush2.msra.mxu0 0.0
        %1916 = vmatprep.subr.mxu0 0.0
        %1917 = vmatpush2.msra.mxu0 0.0
        %1918 = vmatprep.subr.mxu0 0.0
        %1919 = vmatpush2.msra.mxu0 0.0
        %1920 = vmatprep.subr.mxu0 0.0
        %1921 = vmatpush2.msra.mxu0 0.0
        %1922 = vmatprep.subr.mxu0 0.0
        %1923 = vmatpush2.msra.mxu0 0.0
        %1924 = vmatprep.subr.mxu0 0.0
        %1925 = vmatpush2.msra.mxu0 0.0
        %1926 = vmatprep.subr.mxu0 0.0
        %1927 = vmatpush2.msra.mxu0 0.0
        %1928 = vmatprep.subr.mxu0 0.0
        %1929 = vmatpush2.msra.mxu0 0.0
        %1930 = vmatprep.subr.mxu0 0.0
        %1931 = vmatpush2.msra.mxu0 0.0
        %1932 = vmatprep.subr.mxu0 0.0
        %1933 = vmatpush2.msra.mxu0 0.0
        %1934 = vmatprep.mubr.f32.mxu0 0.0
        %1935 = vmatmul.mubr.f32.gmra.mxu0 %v1865
        %v1936 = vpop.f32.mrf.mxu0
        %v1937 = vadd.f32 0.0, %v1936
        %v1938 = vpop.f32.mrf.mxu0
        %1939 = vmatprep.mubr.f32.mxu0 0.0
        %1940 = vmatmul.mubr.f32.gmra.mxu0 %v1868
        %v1941 = vpop.f32.mrf.mxu0
        %v1942 = vadd.f32 0.0, %v1941
        %v1943 = vpop.f32.mrf.mxu0
        %1944 = vdwg.mxu0
        %v1946 = vsel %vm1265, %v994, 0
        %v1949 = vsel %vm1265, %v995, 0
        %1951 = vmatprep.subr.mxu0 0.0
        %1952 = vmatpush1.msra.mxu0 0.0
        %1953 = vmatprep.subr.mxu0 0.0
        %1954 = vmatpush1.msra.mxu0 0.0
        %1955 = vmatprep.subr.mxu0 0.0
        %1956 = vmatpush1.msra.mxu0 0.0
        %1957 = vmatprep.subr.mxu0 0.0
        %1958 = vmatpush1.msra.mxu0 0.0
        %1959 = vmatprep.subr.mxu0 0.0
        %1960 = vmatpush1.msra.mxu0 0.0
        %1961 = vmatprep.subr.mxu0 0.0
        %1962 = vmatpush1.msra.mxu0 0.0
        %1963 = vmatprep.subr.mxu0 0.0
        %1964 = vmatpush1.msra.mxu0 0.0
        %1965 = vmatprep.subr.mxu0 0.0
        %1966 = vmatpush1.msra.mxu0 0.0
        %1967 = vmatprep.subr.mxu0 0.0
        %1968 = vmatpush1.msra.mxu0 0.0
        %1969 = vmatprep.subr.mxu0 0.0
        %1970 = vmatpush1.msra.mxu0 0.0
        %1971 = vmatprep.subr.mxu0 0.0
        %1972 = vmatpush1.msra.mxu0 0.0
        %1973 = vmatprep.subr.mxu0 0.0
        %1974 = vmatpush1.msra.mxu0 0.0
        %1975 = vmatprep.subr.mxu0 0.0
        %1976 = vmatpush1.msra.mxu0 0.0
        %1977 = vmatprep.subr.mxu0 0.0
        %1978 = vmatpush1.msra.mxu0 0.0
        %1979 = vmatprep.subr.mxu0 0.0
        %1980 = vmatpush1.msra.mxu0 %v999
        %1981 = vmatprep.subr.mxu0 0.0
        %1982 = vmatpush1.msra.mxu0 %v998
        %1983 = vmatprep.subr.mxu0 0.0
        %1984 = vmatpush2.msra.mxu0 0.0
        %1985 = vmatprep.subr.mxu0 0.0
        %1986 = vmatpush2.msra.mxu0 0.0
        %1987 = vmatprep.subr.mxu0 0.0
        %1988 = vmatpush2.msra.mxu0 0.0
        %1989 = vmatprep.subr.mxu0 0.0
        %1990 = vmatpush2.msra.mxu0 0.0
        %1991 = vmatprep.subr.mxu0 0.0
        %1992 = vmatpush2.msra.mxu0 0.0
        %1993 = vmatprep.subr.mxu0 0.0
        %1994 = vmatpush2.msra.mxu0 0.0
        %1995 = vmatprep.subr.mxu0 0.0
        %1996 = vmatpush2.msra.mxu0 0.0
        %1997 = vmatprep.subr.mxu0 0.0
        %1998 = vmatpush2.msra.mxu0 0.0
        %1999 = vmatprep.subr.mxu0 0.0
        %2000 = vmatpush2.msra.mxu0 0.0
        %2001 = vmatprep.subr.mxu0 0.0
        %2002 = vmatpush2.msra.mxu0 0.0
        %2003 = vmatprep.subr.mxu0 0.0
        %2004 = vmatpush2.msra.mxu0 0.0
        %2005 = vmatprep.subr.mxu0 0.0
        %2006 = vmatpush2.msra.mxu0 0.0
        %2007 = vmatprep.subr.mxu0 0.0
        %2008 = vmatpush2.msra.mxu0 0.0
        %2009 = vmatprep.subr.mxu0 0.0
        %2010 = vmatpush2.msra.mxu0 0.0
        %2011 = vmatprep.subr.mxu0 0.0
        %2012 = vmatpush2.msra.mxu0 0.0
        %2013 = vmatprep.subr.mxu0 0.0
        %2014 = vmatpush2.msra.mxu0 0.0
        %2015 = vmatprep.mubr.f32.mxu0 0.0
        %2016 = vmatmul.mubr.f32.gmra.mxu0 %v1946
        %v2017 = vpop.f32.mrf.mxu0
        %v2018 = vadd.f32 0.0, %v2017
        %v2019 = vpop.f32.mrf.mxu0
        %2020 = vmatprep.mubr.f32.mxu0 0.0
        %2021 = vmatmul.mubr.f32.gmra.mxu0 %v1949
        %v2022 = vpop.f32.mrf.mxu0
        %v2023 = vadd.f32 0.0, %v2022
        %v2024 = vpop.f32.mrf.mxu0
        %2025 = vdwg.mxu0
        %v2026 = vld [vmem:[%s8] sm:$0xff]
        %v2027 = vld [vmem:[%s8 + $0x8] sm:$0xff]
        %v2028 = vld [vmem:[%s8 + $0x10] sm:$0xff]
        %v2029 = vld [vmem:[%s8 + $0x18] sm:$0xff]
        %s2030 = scalar_lea.vmem %s8, 32
        %v2031 = vld [vmem:[%s2030] sm:$0xff]
        %v2032 = vld [vmem:[%s2030 + $0x8] sm:$0xff]
        %v2033 = vld [vmem:[%s2030 + $0x10] sm:$0xff]
        %v2034 = vld [vmem:[%s2030 + $0x18] sm:$0xff]
        %2035 = vmatprep.subr.mxu0 0.0
        %2036 = vmatpush1.msra.mxu0 0.0
        %2037 = vmatprep.subr.mxu0 0.0
        %2038 = vmatpush1.msra.mxu0 0.0
        %2039 = vmatprep.subr.mxu0 0.0
        %2040 = vmatpush1.msra.mxu0 0.0
        %2041 = vmatprep.subr.mxu0 0.0
        %2042 = vmatpush1.msra.mxu0 0.0
        %2043 = vmatprep.subr.mxu0 0.0
        %2044 = vmatpush1.msra.mxu0 0.0
        %2045 = vmatprep.subr.mxu0 0.0
        %2046 = vmatpush1.msra.mxu0 0.0
        %2047 = vmatprep.subr.mxu0 0.0
        %2048 = vmatpush1.msra.mxu0 0.0
        %2049 = vmatprep.subr.mxu0 0.0
        %2050 = vmatpush1.msra.mxu0 0.0
        %2051 = vmatprep.subr.mxu0 0.0
        %2052 = vmatpush1.msra.mxu0 0.0
        %2053 = vmatprep.subr.mxu0 0.0
        %2054 = vmatpush1.msra.mxu0 0.0
        %2055 = vmatprep.subr.mxu0 0.0
        %2056 = vmatpush1.msra.mxu0 0.0
        %2057 = vmatprep.subr.mxu0 0.0
        %2058 = vmatpush1.msra.mxu0 0.0
        %2059 = vmatprep.subr.mxu0 0.0
        %2060 = vmatpush1.msra.mxu0 %v2034
        %2061 = vmatprep.subr.mxu0 0.0
        %2062 = vmatpush1.msra.mxu0 %v2033
        %2063 = vmatprep.subr.mxu0 0.0
        %2064 = vmatpush1.msra.mxu0 %v2032
        %2065 = vmatprep.subr.mxu0 0.0
        %2066 = vmatpush1.msra.mxu0 %v2031
        %2067 = vmatprep.subr.mxu0 0.0
        %2068 = vmatpush2.msra.mxu0 0.0
        %2069 = vmatprep.subr.mxu0 0.0
        %2070 = vmatpush2.msra.mxu0 0.0
        %2071 = vmatprep.subr.mxu0 0.0
        %2072 = vmatpush2.msra.mxu0 0.0
        %2073 = vmatprep.subr.mxu0 0.0
        %2074 = vmatpush2.msra.mxu0 0.0
        %2075 = vmatprep.subr.mxu0 0.0
        %2076 = vmatpush2.msra.mxu0 0.0
        %2077 = vmatprep.subr.mxu0 0.0
        %2078 = vmatpush2.msra.mxu0 0.0
        %2079 = vmatprep.subr.mxu0 0.0
        %2080 = vmatpush2.msra.mxu0 0.0
        %2081 = vmatprep.subr.mxu0 0.0
        %2082 = vmatpush2.msra.mxu0 0.0
        %2083 = vmatprep.subr.mxu0 0.0
        %2084 = vmatpush2.msra.mxu0 0.0
        %2085 = vmatprep.subr.mxu0 0.0
        %2086 = vmatpush2.msra.mxu0 0.0
        %2087 = vmatprep.subr.mxu0 0.0
        %2088 = vmatpush2.msra.mxu0 0.0
        %2089 = vmatprep.subr.mxu0 0.0
        %2090 = vmatpush2.msra.mxu0 0.0
        %2091 = vmatprep.subr.mxu0 0.0
        %2092 = vmatpush2.msra.mxu0 0.0
        %2093 = vmatprep.subr.mxu0 0.0
        %2094 = vmatpush2.msra.mxu0 0.0
        %2095 = vmatprep.subr.mxu0 0.0
        %2096 = vmatpush2.msra.mxu0 0.0
        %2097 = vmatprep.subr.mxu0 0.0
        %2098 = vmatpush2.msra.mxu0 0.0
        %2099 = vmatprep.mubr.f32.mxu0 0.0
        %2100 = vmatmul.mubr.f32.gmra.mxu0 %v1176
        %v2101 = vpop.f32.mrf.mxu0
        %v2102 = vadd.f32 0.0, %v2101
        %v2103 = vpop.f32.mrf.mxu0
        %2104 = vmatprep.mubr.f32.mxu0 0.0
        %2105 = vmatmul.mubr.f32.gmra.mxu0 %v1179
        %v2106 = vpop.f32.mrf.mxu0
        %v2107 = vadd.f32 0.0, %v2106
        %v2108 = vpop.f32.mrf.mxu0
        %2109 = vdwg.mxu0
        %v2111 = vsel %vm1011, %v1937, 0
        %v2114 = vsel %vm1011, %v1942, 0
        %2116 = vmatprep.subr.mxu0 0.0
        %2117 = vmatpush1.msra.mxu0 0.0
        %2118 = vmatprep.subr.mxu0 0.0
        %2119 = vmatpush1.msra.mxu0 0.0
        %2120 = vmatprep.subr.mxu0 0.0
        %2121 = vmatpush1.msra.mxu0 0.0
        %2122 = vmatprep.subr.mxu0 0.0
        %2123 = vmatpush1.msra.mxu0 0.0
        %2124 = vmatprep.subr.mxu0 0.0
        %2125 = vmatpush1.msra.mxu0 0.0
        %2126 = vmatprep.subr.mxu0 0.0
        %2127 = vmatpush1.msra.mxu0 0.0
        %2128 = vmatprep.subr.mxu0 0.0
        %2129 = vmatpush1.msra.mxu0 0.0
        %2130 = vmatprep.subr.mxu0 0.0
        %2131 = vmatpush1.msra.mxu0 0.0
        %2132 = vmatprep.subr.mxu0 0.0
        %2133 = vmatpush1.msra.mxu0 0.0
        %2134 = vmatprep.subr.mxu0 0.0
        %2135 = vmatpush1.msra.mxu0 0.0
        %2136 = vmatprep.subr.mxu0 0.0
        %2137 = vmatpush1.msra.mxu0 0.0
        %2138 = vmatprep.subr.mxu0 0.0
        %2139 = vmatpush1.msra.mxu0 0.0
        %2140 = vmatprep.subr.mxu0 0.0
        %2141 = vmatpush1.msra.mxu0 %v2029
        %2142 = vmatprep.subr.mxu0 0.0
        %2143 = vmatpush1.msra.mxu0 %v2028
        %2144 = vmatprep.subr.mxu0 0.0
        %2145 = vmatpush1.msra.mxu0 %v2027
        %2146 = vmatprep.subr.mxu0 0.0
        %2147 = vmatpush1.msra.mxu0 %v2026
        %2148 = vmatprep.subr.mxu0 0.0
        %2149 = vmatpush2.msra.mxu0 0.0
        %2150 = vmatprep.subr.mxu0 0.0
        %2151 = vmatpush2.msra.mxu0 0.0
        %2152 = vmatprep.subr.mxu0 0.0
        %2153 = vmatpush2.msra.mxu0 0.0
        %2154 = vmatprep.subr.mxu0 0.0
        %2155 = vmatpush2.msra.mxu0 0.0
        %2156 = vmatprep.subr.mxu0 0.0
        %2157 = vmatpush2.msra.mxu0 0.0
        %2158 = vmatprep.subr.mxu0 0.0
        %2159 = vmatpush2.msra.mxu0 0.0
        %2160 = vmatprep.subr.mxu0 0.0
        %2161 = vmatpush2.msra.mxu0 0.0
        %2162 = vmatprep.subr.mxu0 0.0
        %2163 = vmatpush2.msra.mxu0 0.0
        %2164 = vmatprep.subr.mxu0 0.0
        %2165 = vmatpush2.msra.mxu0 0.0
        %2166 = vmatprep.subr.mxu0 0.0
        %2167 = vmatpush2.msra.mxu0 0.0
        %2168 = vmatprep.subr.mxu0 0.0
        %2169 = vmatpush2.msra.mxu0 0.0
        %2170 = vmatprep.subr.mxu0 0.0
        %2171 = vmatpush2.msra.mxu0 0.0
        %2172 = vmatprep.subr.mxu0 0.0
        %2173 = vmatpush2.msra.mxu0 0.0
        %2174 = vmatprep.subr.mxu0 0.0
        %2175 = vmatpush2.msra.mxu0 0.0
        %2176 = vmatprep.subr.mxu0 0.0
        %2177 = vmatpush2.msra.mxu0 0.0
        %2178 = vmatprep.subr.mxu0 0.0
        %2179 = vmatpush2.msra.mxu0 0.0
        %2180 = vmatprep.mubr.f32.mxu0 0.0
        %2181 = vmatmul.mubr.f32.gmra.mxu0 %v2111
        %v2182 = vpop.f32.mrf.mxu0
        %v2183 = vadd.f32 %v2102, %v2182
        %v2184 = vpop.f32.mrf.mxu0
        %2185 = vmatprep.mubr.f32.mxu0 0.0
        %2186 = vmatmul.mubr.f32.gmra.mxu0 %v2114
        %v2187 = vpop.f32.mrf.mxu0
        %v2188 = vadd.f32 %v2107, %v2187
        %v2189 = vpop.f32.mrf.mxu0
        %2190 = vdwg.mxu0
        %s2191 = scalar_lea.vmem %s8, 64
        %v2192 = vld [vmem:[%s2191] sm:$0xff]
        %v2193 = vld [vmem:[%s2191 + $0x8] sm:$0xff]
        %v2194 = vld [vmem:[%s2191 + $0x10] sm:$0xff]
        %v2195 = vld [vmem:[%s2191 + $0x18] sm:$0xff]
        %v2197 = vsel %vm1011, %v2018, 0
        %v2200 = vsel %vm1011, %v2023, 0
        %2202 = vmatprep.subr.mxu0 0.0
        %2203 = vmatpush1.msra.mxu0 0.0
        %2204 = vmatprep.subr.mxu0 0.0
        %2205 = vmatpush1.msra.mxu0 0.0
        %2206 = vmatprep.subr.mxu0 0.0
        %2207 = vmatpush1.msra.mxu0 0.0
        %2208 = vmatprep.subr.mxu0 0.0
        %2209 = vmatpush1.msra.mxu0 0.0
        %2210 = vmatprep.subr.mxu0 0.0
        %2211 = vmatpush1.msra.mxu0 0.0
        %2212 = vmatprep.subr.mxu0 0.0
        %2213 = vmatpush1.msra.mxu0 0.0
        %2214 = vmatprep.subr.mxu0 0.0
        %2215 = vmatpush1.msra.mxu0 0.0
        %2216 = vmatprep.subr.mxu0 0.0
        %2217 = vmatpush1.msra.mxu0 0.0
        %2218 = vmatprep.subr.mxu0 0.0
        %2219 = vmatpush1.msra.mxu0 0.0
        %2220 = vmatprep.subr.mxu0 0.0
        %2221 = vmatpush1.msra.mxu0 0.0
        %2222 = vmatprep.subr.mxu0 0.0
        %2223 = vmatpush1.msra.mxu0 0.0
        %2224 = vmatprep.subr.mxu0 0.0
        %2225 = vmatpush1.msra.mxu0 0.0
        %2226 = vmatprep.subr.mxu0 0.0
        %2227 = vmatpush1.msra.mxu0 %v2195
        %2228 = vmatprep.subr.mxu0 0.0
        %2229 = vmatpush1.msra.mxu0 %v2194
        %2230 = vmatprep.subr.mxu0 0.0
        %2231 = vmatpush1.msra.mxu0 %v2193
        %2232 = vmatprep.subr.mxu0 0.0
        %2233 = vmatpush1.msra.mxu0 %v2192
        %2234 = vmatprep.subr.mxu0 0.0
        %2235 = vmatpush2.msra.mxu0 0.0
        %2236 = vmatprep.subr.mxu0 0.0
        %2237 = vmatpush2.msra.mxu0 0.0
        %2238 = vmatprep.subr.mxu0 0.0
        %2239 = vmatpush2.msra.mxu0 0.0
        %2240 = vmatprep.subr.mxu0 0.0
        %2241 = vmatpush2.msra.mxu0 0.0
        %2242 = vmatprep.subr.mxu0 0.0
        %2243 = vmatpush2.msra.mxu0 0.0
        %2244 = vmatprep.subr.mxu0 0.0
        %2245 = vmatpush2.msra.mxu0 0.0
        %2246 = vmatprep.subr.mxu0 0.0
        %2247 = vmatpush2.msra.mxu0 0.0
        %2248 = vmatprep.subr.mxu0 0.0
        %2249 = vmatpush2.msra.mxu0 0.0
        %2250 = vmatprep.subr.mxu0 0.0
        %2251 = vmatpush2.msra.mxu0 0.0
        %2252 = vmatprep.subr.mxu0 0.0
        %2253 = vmatpush2.msra.mxu0 0.0
        %2254 = vmatprep.subr.mxu0 0.0
        %2255 = vmatpush2.msra.mxu0 0.0
        %2256 = vmatprep.subr.mxu0 0.0
        %2257 = vmatpush2.msra.mxu0 0.0
        %2258 = vmatprep.subr.mxu0 0.0
        %2259 = vmatpush2.msra.mxu0 0.0
        %2260 = vmatprep.subr.mxu0 0.0
        %2261 = vmatpush2.msra.mxu0 0.0
        %2262 = vmatprep.subr.mxu0 0.0
        %2263 = vmatpush2.msra.mxu0 0.0
        %2264 = vmatprep.subr.mxu0 0.0
        %2265 = vmatpush2.msra.mxu0 0.0
        %2266 = vmatprep.mubr.f32.mxu0 0.0
        %2267 = vmatmul.mubr.f32.gmra.mxu0 %v2197
        %v2268 = vpop.f32.mrf.mxu0
        %v2269 = vadd.f32 0.0, %v2268
        %v2270 = vpop.f32.mrf.mxu0
        %2271 = vmatprep.mubr.f32.mxu0 0.0
        %2272 = vmatmul.mubr.f32.gmra.mxu0 %v2200
        %v2273 = vpop.f32.mrf.mxu0
        %v2274 = vadd.f32 0.0, %v2273
        %v2275 = vpop.f32.mrf.mxu0
        %2276 = vdwg.mxu0
        %v2277 = vadd.f32 %v2183, %v2269
        %v2278 = vadd.f32 %v2188, %v2274
        %2279 = vmatprep.subr.mxu0 0.0
        %2280 = vmatpush1.msra.mxu0 0.0
        %2281 = vmatprep.subr.mxu0 0.0
        %2282 = vmatpush1.msra.mxu0 0.0
        %2283 = vmatprep.subr.mxu0 0.0
        %2284 = vmatpush1.msra.mxu0 0.0
        %2285 = vmatprep.subr.mxu0 0.0
        %2286 = vmatpush1.msra.mxu0 0.0
        %2287 = vmatprep.subr.mxu0 0.0
        %2288 = vmatpush1.msra.mxu0 0.0
        %2289 = vmatprep.subr.mxu0 0.0
        %2290 = vmatpush1.msra.mxu0 0.0
        %2291 = vmatprep.subr.mxu0 0.0
        %2292 = vmatpush1.msra.mxu0 0.0
        %2293 = vmatprep.subr.mxu0 0.0
        %2294 = vmatpush1.msra.mxu0 0.0
        %2295 = vmatprep.subr.mxu0 0.0
        %2296 = vmatpush1.msra.mxu0 0.0
        %2297 = vmatprep.subr.mxu0 0.0
        %2298 = vmatpush1.msra.mxu0 0.0
        %2299 = vmatprep.subr.mxu0 0.0
        %2300 = vmatpush1.msra.mxu0 0.0
        %2301 = vmatprep.subr.mxu0 0.0
        %2302 = vmatpush1.msra.mxu0 0.0
        %2303 = vmatprep.subr.mxu0 0.0
        %2304 = vmatpush1.msra.mxu0 0.0
        %2305 = vmatprep.subr.mxu0 0.0
        %2306 = vmatpush1.msra.mxu0 0.0
        %2307 = vmatprep.subr.mxu0 0.0
        %2308 = vmatpush1.msra.mxu0 %v1344
        %2309 = vmatprep.subr.mxu0 0.0
        %2310 = vmatpush1.msra.mxu0 %v1339
        %2311 = vmatprep.subr.mxu0 0.0
        %2312 = vmatpush2.msra.mxu0 0.0
        %2313 = vmatprep.subr.mxu0 0.0
        %2314 = vmatpush2.msra.mxu0 0.0
        %2315 = vmatprep.subr.mxu0 0.0
        %2316 = vmatpush2.msra.mxu0 0.0
        %2317 = vmatprep.subr.mxu0 0.0
        %2318 = vmatpush2.msra.mxu0 0.0
        %2319 = vmatprep.subr.mxu0 0.0
        %2320 = vmatpush2.msra.mxu0 0.0
        %2321 = vmatprep.subr.mxu0 0.0
        %2322 = vmatpush2.msra.mxu0 0.0
        %2323 = vmatprep.subr.mxu0 0.0
        %2324 = vmatpush2.msra.mxu0 0.0
        %2325 = vmatprep.subr.mxu0 0.0
        %2326 = vmatpush2.msra.mxu0 0.0
        %2327 = vmatprep.subr.mxu0 0.0
        %2328 = vmatpush2.msra.mxu0 0.0
        %2329 = vmatprep.subr.mxu0 0.0
        %2330 = vmatpush2.msra.mxu0 0.0
        %2331 = vmatprep.subr.mxu0 0.0
        %2332 = vmatpush2.msra.mxu0 0.0
        %2333 = vmatprep.subr.mxu0 0.0
        %2334 = vmatpush2.msra.mxu0 0.0
        %2335 = vmatprep.subr.mxu0 0.0
        %2336 = vmatpush2.msra.mxu0 0.0
        %2337 = vmatprep.subr.mxu0 0.0
        %2338 = vmatpush2.msra.mxu0 0.0
        %2339 = vmatprep.subr.mxu0 0.0
        %2340 = vmatpush2.msra.mxu0 0.0
        %2341 = vmatprep.subr.mxu0 0.0
        %2342 = vmatpush2.msra.mxu0 0.0
        %2343 = vmatprep.mubr.f32.mxu0 0.0
        %2344 = vmatmul.mubr.f32.gmra.mxu0 %v1865
        %v2345 = vpop.f32.mrf.mxu0
        %v2346 = vadd.f32 0.0, %v2345
        %v2347 = vpop.f32.mrf.mxu0
        %2348 = vmatprep.mubr.f32.mxu0 0.0
        %2349 = vmatmul.mubr.f32.gmra.mxu0 %v1868
        %v2350 = vpop.f32.mrf.mxu0
        %v2351 = vadd.f32 0.0, %v2350
        %v2352 = vpop.f32.mrf.mxu0
        %2353 = vdwg.mxu0
        %2354 = vmatprep.subr.mxu0 0.0
        %2355 = vmatpush1.msra.mxu0 0.0
        %2356 = vmatprep.subr.mxu0 0.0
        %2357 = vmatpush1.msra.mxu0 0.0
        %2358 = vmatprep.subr.mxu0 0.0
        %2359 = vmatpush1.msra.mxu0 0.0
        %2360 = vmatprep.subr.mxu0 0.0
        %2361 = vmatpush1.msra.mxu0 0.0
        %2362 = vmatprep.subr.mxu0 0.0
        %2363 = vmatpush1.msra.mxu0 0.0
        %2364 = vmatprep.subr.mxu0 0.0
        %2365 = vmatpush1.msra.mxu0 0.0
        %2366 = vmatprep.subr.mxu0 0.0
        %2367 = vmatpush1.msra.mxu0 0.0
        %2368 = vmatprep.subr.mxu0 0.0
        %2369 = vmatpush1.msra.mxu0 0.0
        %2370 = vmatprep.subr.mxu0 0.0
        %2371 = vmatpush1.msra.mxu0 0.0
        %2372 = vmatprep.subr.mxu0 0.0
        %2373 = vmatpush1.msra.mxu0 0.0
        %2374 = vmatprep.subr.mxu0 0.0
        %2375 = vmatpush1.msra.mxu0 0.0
        %2376 = vmatprep.subr.mxu0 0.0
        %2377 = vmatpush1.msra.mxu0 0.0
        %2378 = vmatprep.subr.mxu0 0.0
        %2379 = vmatpush1.msra.mxu0 0.0
        %2380 = vmatprep.subr.mxu0 0.0
        %2381 = vmatpush1.msra.mxu0 0.0
        %2382 = vmatprep.subr.mxu0 0.0
        %2383 = vmatpush1.msra.mxu0 %v1344
        %2384 = vmatprep.subr.mxu0 0.0
        %2385 = vmatpush1.msra.mxu0 %v1339
        %2386 = vmatprep.subr.mxu0 0.0
        %2387 = vmatpush2.msra.mxu0 0.0
        %2388 = vmatprep.subr.mxu0 0.0
        %2389 = vmatpush2.msra.mxu0 0.0
        %2390 = vmatprep.subr.mxu0 0.0
        %2391 = vmatpush2.msra.mxu0 0.0
        %2392 = vmatprep.subr.mxu0 0.0
        %2393 = vmatpush2.msra.mxu0 0.0
        %2394 = vmatprep.subr.mxu0 0.0
        %2395 = vmatpush2.msra.mxu0 0.0
        %2396 = vmatprep.subr.mxu0 0.0
        %2397 = vmatpush2.msra.mxu0 0.0
        %2398 = vmatprep.subr.mxu0 0.0
        %2399 = vmatpush2.msra.mxu0 0.0
        %2400 = vmatprep.subr.mxu0 0.0
        %2401 = vmatpush2.msra.mxu0 0.0
        %2402 = vmatprep.subr.mxu0 0.0
        %2403 = vmatpush2.msra.mxu0 0.0
        %2404 = vmatprep.subr.mxu0 0.0
        %2405 = vmatpush2.msra.mxu0 0.0
        %2406 = vmatprep.subr.mxu0 0.0
        %2407 = vmatpush2.msra.mxu0 0.0
        %2408 = vmatprep.subr.mxu0 0.0
        %2409 = vmatpush2.msra.mxu0 0.0
        %2410 = vmatprep.subr.mxu0 0.0
        %2411 = vmatpush2.msra.mxu0 0.0
        %2412 = vmatprep.subr.mxu0 0.0
        %2413 = vmatpush2.msra.mxu0 0.0
        %2414 = vmatprep.subr.mxu0 0.0
        %2415 = vmatpush2.msra.mxu0 0.0
        %2416 = vmatprep.subr.mxu0 0.0
        %2417 = vmatpush2.msra.mxu0 0.0
        %2418 = vmatprep.mubr.f32.mxu0 0.0
        %2419 = vmatmul.mubr.f32.gmra.mxu0 %v1946
        %v2420 = vpop.f32.mrf.mxu0
        %v2421 = vadd.f32 0.0, %v2420
        %v2422 = vpop.f32.mrf.mxu0
        %2423 = vmatprep.mubr.f32.mxu0 0.0
        %2424 = vmatmul.mubr.f32.gmra.mxu0 %v1949
        %v2425 = vpop.f32.mrf.mxu0
        %v2426 = vadd.f32 0.0, %v2425
        %v2427 = vpop.f32.mrf.mxu0
        %2428 = vdwg.mxu0
        %s2429 = scalar_lea.vmem %s8, 96
        %v2430 = vld [vmem:[%s2429] sm:$0xff]
        %v2431 = vld [vmem:[%s2429 + $0x8] sm:$0xff]
        %v2432 = vld [vmem:[%s2429 + $0x10] sm:$0xff]
        %v2433 = vld [vmem:[%s2429 + $0x18] sm:$0xff]
        %s2434 = scalar_lea.vmem %s8, 128
        %v2435 = vld [vmem:[%s2434] sm:$0xff]
        %v2436 = vld [vmem:[%s2434 + $0x8] sm:$0xff]
        %v2437 = vld [vmem:[%s2434 + $0x10] sm:$0xff]
        %v2438 = vld [vmem:[%s2434 + $0x18] sm:$0xff]
        %v2440 = vsel %vm1011, %v1339, 0
        %v2443 = vsel %vm1011, %v1344, 0
        %2445 = vmatprep.subr.mxu0 0.0
        %2446 = vmatpush1.msra.mxu0 0.0
        %2447 = vmatprep.subr.mxu0 0.0
        %2448 = vmatpush1.msra.mxu0 0.0
        %2449 = vmatprep.subr.mxu0 0.0
        %2450 = vmatpush1.msra.mxu0 0.0
        %2451 = vmatprep.subr.mxu0 0.0
        %2452 = vmatpush1.msra.mxu0 0.0
        %2453 = vmatprep.subr.mxu0 0.0
        %2454 = vmatpush1.msra.mxu0 0.0
        %2455 = vmatprep.subr.mxu0 0.0
        %2456 = vmatpush1.msra.mxu0 0.0
        %2457 = vmatprep.subr.mxu0 0.0
        %2458 = vmatpush1.msra.mxu0 0.0
        %2459 = vmatprep.subr.mxu0 0.0
        %2460 = vmatpush1.msra.mxu0 0.0
        %2461 = vmatprep.subr.mxu0 0.0
        %2462 = vmatpush1.msra.mxu0 0.0
        %2463 = vmatprep.subr.mxu0 0.0
        %2464 = vmatpush1.msra.mxu0 0.0
        %2465 = vmatprep.subr.mxu0 0.0
        %2466 = vmatpush1.msra.mxu0 0.0
        %2467 = vmatprep.subr.mxu0 0.0
        %2468 = vmatpush1.msra.mxu0 0.0
        %2469 = vmatprep.subr.mxu0 0.0
        %2470 = vmatpush1.msra.mxu0 %v2438
        %2471 = vmatprep.subr.mxu0 0.0
        %2472 = vmatpush1.msra.mxu0 %v2437
        %2473 = vmatprep.subr.mxu0 0.0
        %2474 = vmatpush1.msra.mxu0 %v2436
        %2475 = vmatprep.subr.mxu0 0.0
        %2476 = vmatpush1.msra.mxu0 %v2435
        %2477 = vmatprep.subr.mxu0 0.0
        %2478 = vmatpush2.msra.mxu0 0.0
        %2479 = vmatprep.subr.mxu0 0.0
        %2480 = vmatpush2.msra.mxu0 0.0
        %2481 = vmatprep.subr.mxu0 0.0
        %2482 = vmatpush2.msra.mxu0 0.0
        %2483 = vmatprep.subr.mxu0 0.0
        %2484 = vmatpush2.msra.mxu0 0.0
        %2485 = vmatprep.subr.mxu0 0.0
        %2486 = vmatpush2.msra.mxu0 0.0
        %2487 = vmatprep.subr.mxu0 0.0
        %2488 = vmatpush2.msra.mxu0 0.0
        %2489 = vmatprep.subr.mxu0 0.0
        %2490 = vmatpush2.msra.mxu0 0.0
        %2491 = vmatprep.subr.mxu0 0.0
        %2492 = vmatpush2.msra.mxu0 0.0
        %2493 = vmatprep.subr.mxu0 0.0
        %2494 = vmatpush2.msra.mxu0 0.0
        %2495 = vmatprep.subr.mxu0 0.0
        %2496 = vmatpush2.msra.mxu0 0.0
        %2497 = vmatprep.subr.mxu0 0.0
        %2498 = vmatpush2.msra.mxu0 0.0
        %2499 = vmatprep.subr.mxu0 0.0
        %2500 = vmatpush2.msra.mxu0 0.0
        %2501 = vmatprep.subr.mxu0 0.0
        %2502 = vmatpush2.msra.mxu0 0.0
        %2503 = vmatprep.subr.mxu0 0.0
        %2504 = vmatpush2.msra.mxu0 0.0
        %2505 = vmatprep.subr.mxu0 0.0
        %2506 = vmatpush2.msra.mxu0 0.0
        %2507 = vmatprep.subr.mxu0 0.0
        %2508 = vmatpush2.msra.mxu0 0.0
        %2509 = vmatprep.mubr.f32.mxu0 0.0
        %2510 = vmatmul.mubr.f32.gmra.mxu0 %v2440
        %v2511 = vpop.f32.mrf.mxu0
        %v2512 = vadd.f32 0.0, %v2511
        %v2513 = vpop.f32.mrf.mxu0
        %2514 = vmatprep.mubr.f32.mxu0 0.0
        %2515 = vmatmul.mubr.f32.gmra.mxu0 %v2443
        %v2516 = vpop.f32.mrf.mxu0
        %v2517 = vadd.f32 0.0, %v2516
        %v2518 = vpop.f32.mrf.mxu0
        %2519 = vdwg.mxu0
        %v2521 = vsel %vm1011, %v2346, 0
        %v2524 = vsel %vm1011, %v2351, 0
        %2526 = vmatprep.subr.mxu0 0.0
        %2527 = vmatpush1.msra.mxu0 0.0
        %2528 = vmatprep.subr.mxu0 0.0
        %2529 = vmatpush1.msra.mxu0 0.0
        %2530 = vmatprep.subr.mxu0 0.0
        %2531 = vmatpush1.msra.mxu0 0.0
        %2532 = vmatprep.subr.mxu0 0.0
        %2533 = vmatpush1.msra.mxu0 0.0
        %2534 = vmatprep.subr.mxu0 0.0
        %2535 = vmatpush1.msra.mxu0 0.0
        %2536 = vmatprep.subr.mxu0 0.0
        %2537 = vmatpush1.msra.mxu0 0.0
        %2538 = vmatprep.subr.mxu0 0.0
        %2539 = vmatpush1.msra.mxu0 0.0
        %2540 = vmatprep.subr.mxu0 0.0
        %2541 = vmatpush1.msra.mxu0 0.0
        %2542 = vmatprep.subr.mxu0 0.0
        %2543 = vmatpush1.msra.mxu0 0.0
        %2544 = vmatprep.subr.mxu0 0.0
        %2545 = vmatpush1.msra.mxu0 0.0
        %2546 = vmatprep.subr.mxu0 0.0
        %2547 = vmatpush1.msra.mxu0 0.0
        %2548 = vmatprep.subr.mxu0 0.0
        %2549 = vmatpush1.msra.mxu0 0.0
        %2550 = vmatprep.subr.mxu0 0.0
        %2551 = vmatpush1.msra.mxu0 %v2433
        %2552 = vmatprep.subr.mxu0 0.0
        %2553 = vmatpush1.msra.mxu0 %v2432
        %2554 = vmatprep.subr.mxu0 0.0
        %2555 = vmatpush1.msra.mxu0 %v2431
        %2556 = vmatprep.subr.mxu0 0.0
        %2557 = vmatpush1.msra.mxu0 %v2430
        %2558 = vmatprep.subr.mxu0 0.0
        %2559 = vmatpush2.msra.mxu0 0.0
        %2560 = vmatprep.subr.mxu0 0.0
        %2561 = vmatpush2.msra.mxu0 0.0
        %2562 = vmatprep.subr.mxu0 0.0
        %2563 = vmatpush2.msra.mxu0 0.0
        %2564 = vmatprep.subr.mxu0 0.0
        %2565 = vmatpush2.msra.mxu0 0.0
        %2566 = vmatprep.subr.mxu0 0.0
        %2567 = vmatpush2.msra.mxu0 0.0
        %2568 = vmatprep.subr.mxu0 0.0
        %2569 = vmatpush2.msra.mxu0 0.0
        %2570 = vmatprep.subr.mxu0 0.0
        %2571 = vmatpush2.msra.mxu0 0.0
        %2572 = vmatprep.subr.mxu0 0.0
        %2573 = vmatpush2.msra.mxu0 0.0
        %2574 = vmatprep.subr.mxu0 0.0
        %2575 = vmatpush2.msra.mxu0 0.0
        %2576 = vmatprep.subr.mxu0 0.0
        %2577 = vmatpush2.msra.mxu0 0.0
        %2578 = vmatprep.subr.mxu0 0.0
        %2579 = vmatpush2.msra.mxu0 0.0
        %2580 = vmatprep.subr.mxu0 0.0
        %2581 = vmatpush2.msra.mxu0 0.0
        %2582 = vmatprep.subr.mxu0 0.0
        %2583 = vmatpush2.msra.mxu0 0.0
        %2584 = vmatprep.subr.mxu0 0.0
        %2585 = vmatpush2.msra.mxu0 0.0
        %2586 = vmatprep.subr.mxu0 0.0
        %2587 = vmatpush2.msra.mxu0 0.0
        %2588 = vmatprep.subr.mxu0 0.0
        %2589 = vmatpush2.msra.mxu0 0.0
        %2590 = vmatprep.mubr.f32.mxu0 0.0
        %2591 = vmatmul.mubr.f32.gmra.mxu0 %v2521
        %v2592 = vpop.f32.mrf.mxu0
        %v2593 = vadd.f32 %v2512, %v2592
        %v2594 = vpop.f32.mrf.mxu0
        %2595 = vmatprep.mubr.f32.mxu0 0.0
        %2596 = vmatmul.mubr.f32.gmra.mxu0 %v2524
        %v2597 = vpop.f32.mrf.mxu0
        %v2598 = vadd.f32 %v2517, %v2597
        %v2599 = vpop.f32.mrf.mxu0
        %2600 = vdwg.mxu0
        %s2601 = scalar_lea.vmem %s8, 160
        %v2602 = vld [vmem:[%s2601] sm:$0xff]
        %v2603 = vld [vmem:[%s2601 + $0x8] sm:$0xff]
        %v2604 = vld [vmem:[%s2601 + $0x10] sm:$0xff]
        %v2605 = vld [vmem:[%s2601 + $0x18] sm:$0xff]
        %v2607 = vsel %vm1011, %v2421, 0
        %v2610 = vsel %vm1011, %v2426, 0
        %2612 = vmatprep.subr.mxu0 0.0
        %2613 = vmatpush1.msra.mxu0 0.0
        %2614 = vmatprep.subr.mxu0 0.0
        %2615 = vmatpush1.msra.mxu0 0.0
        %2616 = vmatprep.subr.mxu0 0.0
        %2617 = vmatpush1.msra.mxu0 0.0
        %2618 = vmatprep.subr.mxu0 0.0
        %2619 = vmatpush1.msra.mxu0 0.0
        %2620 = vmatprep.subr.mxu0 0.0
        %2621 = vmatpush1.msra.mxu0 0.0
        %2622 = vmatprep.subr.mxu0 0.0
        %2623 = vmatpush1.msra.mxu0 0.0
        %2624 = vmatprep.subr.mxu0 0.0
        %2625 = vmatpush1.msra.mxu0 0.0
        %2626 = vmatprep.subr.mxu0 0.0
        %2627 = vmatpush1.msra.mxu0 0.0
        %2628 = vmatprep.subr.mxu0 0.0
        %2629 = vmatpush1.msra.mxu0 0.0
        %2630 = vmatprep.subr.mxu0 0.0
        %2631 = vmatpush1.msra.mxu0 0.0
        %2632 = vmatprep.subr.mxu0 0.0
        %2633 = vmatpush1.msra.mxu0 0.0
        %2634 = vmatprep.subr.mxu0 0.0
        %2635 = vmatpush1.msra.mxu0 0.0
        %2636 = vmatprep.subr.mxu0 0.0
        %2637 = vmatpush1.msra.mxu0 %v2605
        %2638 = vmatprep.subr.mxu0 0.0
        %2639 = vmatpush1.msra.mxu0 %v2604
        %2640 = vmatprep.subr.mxu0 0.0
        %2641 = vmatpush1.msra.mxu0 %v2603
        %2642 = vmatprep.subr.mxu0 0.0
        %2643 = vmatpush1.msra.mxu0 %v2602
        %2644 = vmatprep.subr.mxu0 0.0
        %2645 = vmatpush2.msra.mxu0 0.0
        %2646 = vmatprep.subr.mxu0 0.0
        %2647 = vmatpush2.msra.mxu0 0.0
        %2648 = vmatprep.subr.mxu0 0.0
        %2649 = vmatpush2.msra.mxu0 0.0
        %2650 = vmatprep.subr.mxu0 0.0
        %2651 = vmatpush2.msra.mxu0 0.0
        %2652 = vmatprep.subr.mxu0 0.0
        %2653 = vmatpush2.msra.mxu0 0.0
        %2654 = vmatprep.subr.mxu0 0.0
        %2655 = vmatpush2.msra.mxu0 0.0
        %2656 = vmatprep.subr.mxu0 0.0
        %2657 = vmatpush2.msra.mxu0 0.0
        %2658 = vmatprep.subr.mxu0 0.0
        %2659 = vmatpush2.msra.mxu0 0.0
        %2660 = vmatprep.subr.mxu0 0.0
        %2661 = vmatpush2.msra.mxu0 0.0
        %2662 = vmatprep.subr.mxu0 0.0
        %2663 = vmatpush2.msra.mxu0 0.0
        %2664 = vmatprep.subr.mxu0 0.0
        %2665 = vmatpush2.msra.mxu0 0.0
        %2666 = vmatprep.subr.mxu0 0.0
        %2667 = vmatpush2.msra.mxu0 0.0
        %2668 = vmatprep.subr.mxu0 0.0
        %2669 = vmatpush2.msra.mxu0 0.0
        %2670 = vmatprep.subr.mxu0 0.0
        %2671 = vmatpush2.msra.mxu0 0.0
        %2672 = vmatprep.subr.mxu0 0.0
        %2673 = vmatpush2.msra.mxu0 0.0
        %2674 = vmatprep.subr.mxu0 0.0
        %2675 = vmatpush2.msra.mxu0 0.0
        %2676 = vmatprep.mubr.f32.mxu0 0.0
        %2677 = vmatmul.mubr.f32.gmra.mxu0 %v2607
        %v2678 = vpop.f32.mrf.mxu0
        %v2679 = vadd.f32 0.0, %v2678
        %v2680 = vpop.f32.mrf.mxu0
        %2681 = vmatprep.mubr.f32.mxu0 0.0
        %2682 = vmatmul.mubr.f32.gmra.mxu0 %v2610
        %v2683 = vpop.f32.mrf.mxu0
        %v2684 = vadd.f32 0.0, %v2683
        %v2685 = vpop.f32.mrf.mxu0
        %2686 = vdwg.mxu0
        %v2687 = vadd.f32 %v2593, %v2679
        %v2688 = vadd.f32 %v2598, %v2684
        %v2689 = vadd.f32 %v2277, %v2687
        %v2690 = vadd.f32 %v2278, %v2688
        %2691 = vmatprep.subr.mxu0 0.0
        %2692 = vmatpush1.msra.mxu0 0.0
        %2693 = vmatprep.subr.mxu0 0.0
        %2694 = vmatpush1.msra.mxu0 0.0
        %2695 = vmatprep.subr.mxu0 0.0
        %2696 = vmatpush1.msra.mxu0 0.0
        %2697 = vmatprep.subr.mxu0 0.0
        %2698 = vmatpush1.msra.mxu0 0.0
        %2699 = vmatprep.subr.mxu0 0.0
        %2700 = vmatpush1.msra.mxu0 0.0
        %2701 = vmatprep.subr.mxu0 0.0
        %2702 = vmatpush1.msra.mxu0 0.0
        %2703 = vmatprep.subr.mxu0 0.0
        %2704 = vmatpush1.msra.mxu0 0.0
        %2705 = vmatprep.subr.mxu0 0.0
        %2706 = vmatpush1.msra.mxu0 0.0
        %2707 = vmatprep.subr.mxu0 0.0
        %2708 = vmatpush1.msra.mxu0 0.0
        %2709 = vmatprep.subr.mxu0 0.0
        %2710 = vmatpush1.msra.mxu0 0.0
        %2711 = vmatprep.subr.mxu0 0.0
        %2712 = vmatpush1.msra.mxu0 0.0
        %2713 = vmatprep.subr.mxu0 0.0
        %2714 = vmatpush1.msra.mxu0 0.0
        %2715 = vmatprep.subr.mxu0 0.0
        %2716 = vmatpush1.msra.mxu0 0.0
        %2717 = vmatprep.subr.mxu0 0.0
        %2718 = vmatpush1.msra.mxu0 0.0
        %2719 = vmatprep.subr.mxu0 0.0
        %2720 = vmatpush1.msra.mxu0 %v1516
        %2721 = vmatprep.subr.mxu0 0.0
        %2722 = vmatpush1.msra.mxu0 %v1511
        %2723 = vmatprep.subr.mxu0 0.0
        %2724 = vmatpush2.msra.mxu0 0.0
        %2725 = vmatprep.subr.mxu0 0.0
        %2726 = vmatpush2.msra.mxu0 0.0
        %2727 = vmatprep.subr.mxu0 0.0
        %2728 = vmatpush2.msra.mxu0 0.0
        %2729 = vmatprep.subr.mxu0 0.0
        %2730 = vmatpush2.msra.mxu0 0.0
        %2731 = vmatprep.subr.mxu0 0.0
        %2732 = vmatpush2.msra.mxu0 0.0
        %2733 = vmatprep.subr.mxu0 0.0
        %2734 = vmatpush2.msra.mxu0 0.0
        %2735 = vmatprep.subr.mxu0 0.0
        %2736 = vmatpush2.msra.mxu0 0.0
        %2737 = vmatprep.subr.mxu0 0.0
        %2738 = vmatpush2.msra.mxu0 0.0
        %2739 = vmatprep.subr.mxu0 0.0
        %2740 = vmatpush2.msra.mxu0 0.0
        %2741 = vmatprep.subr.mxu0 0.0
        %2742 = vmatpush2.msra.mxu0 0.0
        %2743 = vmatprep.subr.mxu0 0.0
        %2744 = vmatpush2.msra.mxu0 0.0
        %2745 = vmatprep.subr.mxu0 0.0
        %2746 = vmatpush2.msra.mxu0 0.0
        %2747 = vmatprep.subr.mxu0 0.0
        %2748 = vmatpush2.msra.mxu0 0.0
        %2749 = vmatprep.subr.mxu0 0.0
        %2750 = vmatpush2.msra.mxu0 0.0
        %2751 = vmatprep.subr.mxu0 0.0
        %2752 = vmatpush2.msra.mxu0 0.0
        %2753 = vmatprep.subr.mxu0 0.0
        %2754 = vmatpush2.msra.mxu0 0.0
        %2755 = vmatprep.mubr.f32.mxu0 0.0
        %2756 = vmatmul.mubr.f32.gmra.mxu0 %v1865
        %v2757 = vpop.f32.mrf.mxu0
        %v2758 = vadd.f32 0.0, %v2757
        %v2759 = vpop.f32.mrf.mxu0
        %2760 = vmatprep.mubr.f32.mxu0 0.0
        %2761 = vmatmul.mubr.f32.gmra.mxu0 %v1868
        %v2762 = vpop.f32.mrf.mxu0
        %v2763 = vadd.f32 0.0, %v2762
        %v2764 = vpop.f32.mrf.mxu0
        %2765 = vdwg.mxu0
        %2766 = vmatprep.subr.mxu0 0.0
        %2767 = vmatpush1.msra.mxu0 0.0
        %2768 = vmatprep.subr.mxu0 0.0
        %2769 = vmatpush1.msra.mxu0 0.0
        %2770 = vmatprep.subr.mxu0 0.0
        %2771 = vmatpush1.msra.mxu0 0.0
        %2772 = vmatprep.subr.mxu0 0.0
        %2773 = vmatpush1.msra.mxu0 0.0
        %2774 = vmatprep.subr.mxu0 0.0
        %2775 = vmatpush1.msra.mxu0 0.0
        %2776 = vmatprep.subr.mxu0 0.0
        %2777 = vmatpush1.msra.mxu0 0.0
        %2778 = vmatprep.subr.mxu0 0.0
        %2779 = vmatpush1.msra.mxu0 0.0
        %2780 = vmatprep.subr.mxu0 0.0
        %2781 = vmatpush1.msra.mxu0 0.0
        %2782 = vmatprep.subr.mxu0 0.0
        %2783 = vmatpush1.msra.mxu0 0.0
        %2784 = vmatprep.subr.mxu0 0.0
        %2785 = vmatpush1.msra.mxu0 0.0
        %2786 = vmatprep.subr.mxu0 0.0
        %2787 = vmatpush1.msra.mxu0 0.0
        %2788 = vmatprep.subr.mxu0 0.0
        %2789 = vmatpush1.msra.mxu0 0.0
        %2790 = vmatprep.subr.mxu0 0.0
        %2791 = vmatpush1.msra.mxu0 0.0
        %2792 = vmatprep.subr.mxu0 0.0
        %2793 = vmatpush1.msra.mxu0 0.0
        %2794 = vmatprep.subr.mxu0 0.0
        %2795 = vmatpush1.msra.mxu0 %v1516
        %2796 = vmatprep.subr.mxu0 0.0
        %2797 = vmatpush1.msra.mxu0 %v1511
        %2798 = vmatprep.subr.mxu0 0.0
        %2799 = vmatpush2.msra.mxu0 0.0
        %2800 = vmatprep.subr.mxu0 0.0
        %2801 = vmatpush2.msra.mxu0 0.0
        %2802 = vmatprep.subr.mxu0 0.0
        %2803 = vmatpush2.msra.mxu0 0.0
        %2804 = vmatprep.subr.mxu0 0.0
        %2805 = vmatpush2.msra.mxu0 0.0
        %2806 = vmatprep.subr.mxu0 0.0
        %2807 = vmatpush2.msra.mxu0 0.0
        %2808 = vmatprep.subr.mxu0 0.0
        %2809 = vmatpush2.msra.mxu0 0.0
        %2810 = vmatprep.subr.mxu0 0.0
        %2811 = vmatpush2.msra.mxu0 0.0
        %2812 = vmatprep.subr.mxu0 0.0
        %2813 = vmatpush2.msra.mxu0 0.0
        %2814 = vmatprep.subr.mxu0 0.0
        %2815 = vmatpush2.msra.mxu0 0.0
        %2816 = vmatprep.subr.mxu0 0.0
        %2817 = vmatpush2.msra.mxu0 0.0
        %2818 = vmatprep.subr.mxu0 0.0
        %2819 = vmatpush2.msra.mxu0 0.0
        %2820 = vmatprep.subr.mxu0 0.0
        %2821 = vmatpush2.msra.mxu0 0.0
        %2822 = vmatprep.subr.mxu0 0.0
        %2823 = vmatpush2.msra.mxu0 0.0
        %2824 = vmatprep.subr.mxu0 0.0
        %2825 = vmatpush2.msra.mxu0 0.0
        %2826 = vmatprep.subr.mxu0 0.0
        %2827 = vmatpush2.msra.mxu0 0.0
        %2828 = vmatprep.subr.mxu0 0.0
        %2829 = vmatpush2.msra.mxu0 0.0
        %2830 = vmatprep.mubr.f32.mxu0 0.0
        %2831 = vmatmul.mubr.f32.gmra.mxu0 %v1946
        %v2832 = vpop.f32.mrf.mxu0
        %v2833 = vadd.f32 0.0, %v2832
        %v2834 = vpop.f32.mrf.mxu0
        %2835 = vmatprep.mubr.f32.mxu0 0.0
        %2836 = vmatmul.mubr.f32.gmra.mxu0 %v1949
        %v2837 = vpop.f32.mrf.mxu0
        %v2838 = vadd.f32 0.0, %v2837
        %v2839 = vpop.f32.mrf.mxu0
        %2840 = vdwg.mxu0
        %s2841 = scalar_lea.vmem %s8, 192
        %v2842 = vld [vmem:[%s2841] sm:$0xff]
        %v2843 = vld [vmem:[%s2841 + $0x8] sm:$0xff]
        %v2844 = vld [vmem:[%s2841 + $0x10] sm:$0xff]
        %v2845 = vld [vmem:[%s2841 + $0x18] sm:$0xff]
        %s2846 = scalar_lea.vmem %s8, 224
        %v2847 = vld [vmem:[%s2846] sm:$0xff]
        %v2848 = vld [vmem:[%s2846 + $0x8] sm:$0xff]
        %v2849 = vld [vmem:[%s2846 + $0x10] sm:$0xff]
        %v2850 = vld [vmem:[%s2846 + $0x18] sm:$0xff]
        %v2852 = vsel %vm1011, %v1511, 0
        %v2855 = vsel %vm1011, %v1516, 0
        %2857 = vmatprep.subr.mxu0 0.0
        %2858 = vmatpush1.msra.mxu0 0.0
        %2859 = vmatprep.subr.mxu0 0.0
        %2860 = vmatpush1.msra.mxu0 0.0
        %2861 = vmatprep.subr.mxu0 0.0
        %2862 = vmatpush1.msra.mxu0 0.0
        %2863 = vmatprep.subr.mxu0 0.0
        %2864 = vmatpush1.msra.mxu0 0.0
        %2865 = vmatprep.subr.mxu0 0.0
        %2866 = vmatpush1.msra.mxu0 0.0
        %2867 = vmatprep.subr.mxu0 0.0
        %2868 = vmatpush1.msra.mxu0 0.0
        %2869 = vmatprep.subr.mxu0 0.0
        %2870 = vmatpush1.msra.mxu0 0.0
        %2871 = vmatprep.subr.mxu0 0.0
        %2872 = vmatpush1.msra.mxu0 0.0
        %2873 = vmatprep.subr.mxu0 0.0
        %2874 = vmatpush1.msra.mxu0 0.0
        %2875 = vmatprep.subr.mxu0 0.0
        %2876 = vmatpush1.msra.mxu0 0.0
        %2877 = vmatprep.subr.mxu0 0.0
        %2878 = vmatpush1.msra.mxu0 0.0
        %2879 = vmatprep.subr.mxu0 0.0
        %2880 = vmatpush1.msra.mxu0 0.0
        %2881 = vmatprep.subr.mxu0 0.0
        %2882 = vmatpush1.msra.mxu0 %v2850
        %2883 = vmatprep.subr.mxu0 0.0
        %2884 = vmatpush1.msra.mxu0 %v2849
        %2885 = vmatprep.subr.mxu0 0.0
        %2886 = vmatpush1.msra.mxu0 %v2848
        %2887 = vmatprep.subr.mxu0 0.0
        %2888 = vmatpush1.msra.mxu0 %v2847
        %2889 = vmatprep.subr.mxu0 0.0
        %2890 = vmatpush2.msra.mxu0 0.0
        %2891 = vmatprep.subr.mxu0 0.0
        %2892 = vmatpush2.msra.mxu0 0.0
        %2893 = vmatprep.subr.mxu0 0.0
        %2894 = vmatpush2.msra.mxu0 0.0
        %2895 = vmatprep.subr.mxu0 0.0
        %2896 = vmatpush2.msra.mxu0 0.0
        %2897 = vmatprep.subr.mxu0 0.0
        %2898 = vmatpush2.msra.mxu0 0.0
        %2899 = vmatprep.subr.mxu0 0.0
        %2900 = vmatpush2.msra.mxu0 0.0
        %2901 = vmatprep.subr.mxu0 0.0
        %2902 = vmatpush2.msra.mxu0 0.0
        %2903 = vmatprep.subr.mxu0 0.0
        %2904 = vmatpush2.msra.mxu0 0.0
        %2905 = vmatprep.subr.mxu0 0.0
        %2906 = vmatpush2.msra.mxu0 0.0
        %2907 = vmatprep.subr.mxu0 0.0
        %2908 = vmatpush2.msra.mxu0 0.0
        %2909 = vmatprep.subr.mxu0 0.0
        %2910 = vmatpush2.msra.mxu0 0.0
        %2911 = vmatprep.subr.mxu0 0.0
        %2912 = vmatpush2.msra.mxu0 0.0
        %2913 = vmatprep.subr.mxu0 0.0
        %2914 = vmatpush2.msra.mxu0 0.0
        %2915 = vmatprep.subr.mxu0 0.0
        %2916 = vmatpush2.msra.mxu0 0.0
        %2917 = vmatprep.subr.mxu0 0.0
        %2918 = vmatpush2.msra.mxu0 0.0
        %2919 = vmatprep.subr.mxu0 0.0
        %2920 = vmatpush2.msra.mxu0 0.0
        %2921 = vmatprep.mubr.f32.mxu0 0.0
        %2922 = vmatmul.mubr.f32.gmra.mxu0 %v2852
        %v2923 = vpop.f32.mrf.mxu0
        %v2924 = vadd.f32 0.0, %v2923
        %v2925 = vpop.f32.mrf.mxu0
        %2926 = vmatprep.mubr.f32.mxu0 0.0
        %2927 = vmatmul.mubr.f32.gmra.mxu0 %v2855
        %v2928 = vpop.f32.mrf.mxu0
        %v2929 = vadd.f32 0.0, %v2928
        %v2930 = vpop.f32.mrf.mxu0
        %2931 = vdwg.mxu0
        %v2933 = vsel %vm1011, %v2758, 0
        %v2936 = vsel %vm1011, %v2763, 0
        %2938 = vmatprep.subr.mxu0 0.0
        %2939 = vmatpush1.msra.mxu0 0.0
        %2940 = vmatprep.subr.mxu0 0.0
        %2941 = vmatpush1.msra.mxu0 0.0
        %2942 = vmatprep.subr.mxu0 0.0
        %2943 = vmatpush1.msra.mxu0 0.0
        %2944 = vmatprep.subr.mxu0 0.0
        %2945 = vmatpush1.msra.mxu0 0.0
        %2946 = vmatprep.subr.mxu0 0.0
        %2947 = vmatpush1.msra.mxu0 0.0
        %2948 = vmatprep.subr.mxu0 0.0
        %2949 = vmatpush1.msra.mxu0 0.0
        %2950 = vmatprep.subr.mxu0 0.0
        %2951 = vmatpush1.msra.mxu0 0.0
        %2952 = vmatprep.subr.mxu0 0.0
        %2953 = vmatpush1.msra.mxu0 0.0
        %2954 = vmatprep.subr.mxu0 0.0
        %2955 = vmatpush1.msra.mxu0 0.0
        %2956 = vmatprep.subr.mxu0 0.0
        %2957 = vmatpush1.msra.mxu0 0.0
        %2958 = vmatprep.subr.mxu0 0.0
        %2959 = vmatpush1.msra.mxu0 0.0
        %2960 = vmatprep.subr.mxu0 0.0
        %2961 = vmatpush1.msra.mxu0 0.0
        %2962 = vmatprep.subr.mxu0 0.0
        %2963 = vmatpush1.msra.mxu0 %v2845
        %2964 = vmatprep.subr.mxu0 0.0
        %2965 = vmatpush1.msra.mxu0 %v2844
        %2966 = vmatprep.subr.mxu0 0.0
        %2967 = vmatpush1.msra.mxu0 %v2843
        %2968 = vmatprep.subr.mxu0 0.0
        %2969 = vmatpush1.msra.mxu0 %v2842
        %2970 = vmatprep.subr.mxu0 0.0
        %2971 = vmatpush2.msra.mxu0 0.0
        %2972 = vmatprep.subr.mxu0 0.0
        %2973 = vmatpush2.msra.mxu0 0.0
        %2974 = vmatprep.subr.mxu0 0.0
        %2975 = vmatpush2.msra.mxu0 0.0
        %2976 = vmatprep.subr.mxu0 0.0
        %2977 = vmatpush2.msra.mxu0 0.0
        %2978 = vmatprep.subr.mxu0 0.0
        %2979 = vmatpush2.msra.mxu0 0.0
        %2980 = vmatprep.subr.mxu0 0.0
        %2981 = vmatpush2.msra.mxu0 0.0
        %2982 = vmatprep.subr.mxu0 0.0
        %2983 = vmatpush2.msra.mxu0 0.0
        %2984 = vmatprep.subr.mxu0 0.0
        %2985 = vmatpush2.msra.mxu0 0.0
        %2986 = vmatprep.subr.mxu0 0.0
        %2987 = vmatpush2.msra.mxu0 0.0
        %2988 = vmatprep.subr.mxu0 0.0
        %2989 = vmatpush2.msra.mxu0 0.0
        %2990 = vmatprep.subr.mxu0 0.0
        %2991 = vmatpush2.msra.mxu0 0.0
        %2992 = vmatprep.subr.mxu0 0.0
        %2993 = vmatpush2.msra.mxu0 0.0
        %2994 = vmatprep.subr.mxu0 0.0
        %2995 = vmatpush2.msra.mxu0 0.0
        %2996 = vmatprep.subr.mxu0 0.0
        %2997 = vmatpush2.msra.mxu0 0.0
        %2998 = vmatprep.subr.mxu0 0.0
        %2999 = vmatpush2.msra.mxu0 0.0
        %3000 = vmatprep.subr.mxu0 0.0
        %3001 = vmatpush2.msra.mxu0 0.0
        %3002 = vmatprep.mubr.f32.mxu0 0.0
        %3003 = vmatmul.mubr.f32.gmra.mxu0 %v2933
        %v3004 = vpop.f32.mrf.mxu0
        %v3005 = vadd.f32 %v2924, %v3004
        %v3006 = vpop.f32.mrf.mxu0
        %3007 = vmatprep.mubr.f32.mxu0 0.0
        %3008 = vmatmul.mubr.f32.gmra.mxu0 %v2936
        %v3009 = vpop.f32.mrf.mxu0
        %v3010 = vadd.f32 %v2929, %v3009
        %v3011 = vpop.f32.mrf.mxu0
        %3012 = vdwg.mxu0
        %s3013 = scalar_lea.vmem %s8, 256
        %v3014 = vld [vmem:[%s3013] sm:$0xff]
        %v3015 = vld [vmem:[%s3013 + $0x8] sm:$0xff]
        %v3016 = vld [vmem:[%s3013 + $0x10] sm:$0xff]
        %v3017 = vld [vmem:[%s3013 + $0x18] sm:$0xff]
        %v3019 = vsel %vm1011, %v2833, 0
        %v3022 = vsel %vm1011, %v2838, 0
        %3024 = vmatprep.subr.mxu0 0.0
        %3025 = vmatpush1.msra.mxu0 0.0
        %3026 = vmatprep.subr.mxu0 0.0
        %3027 = vmatpush1.msra.mxu0 0.0
        %3028 = vmatprep.subr.mxu0 0.0
        %3029 = vmatpush1.msra.mxu0 0.0
        %3030 = vmatprep.subr.mxu0 0.0
        %3031 = vmatpush1.msra.mxu0 0.0
        %3032 = vmatprep.subr.mxu0 0.0
        %3033 = vmatpush1.msra.mxu0 0.0
        %3034 = vmatprep.subr.mxu0 0.0
        %3035 = vmatpush1.msra.mxu0 0.0
        %3036 = vmatprep.subr.mxu0 0.0
        %3037 = vmatpush1.msra.mxu0 0.0
        %3038 = vmatprep.subr.mxu0 0.0
        %3039 = vmatpush1.msra.mxu0 0.0
        %3040 = vmatprep.subr.mxu0 0.0
        %3041 = vmatpush1.msra.mxu0 0.0
        %3042 = vmatprep.subr.mxu0 0.0
        %3043 = vmatpush1.msra.mxu0 0.0
        %3044 = vmatprep.subr.mxu0 0.0
        %3045 = vmatpush1.msra.mxu0 0.0
        %3046 = vmatprep.subr.mxu0 0.0
        %3047 = vmatpush1.msra.mxu0 0.0
        %3048 = vmatprep.subr.mxu0 0.0
        %3049 = vmatpush1.msra.mxu0 %v3017
        %3050 = vmatprep.subr.mxu0 0.0
        %3051 = vmatpush1.msra.mxu0 %v3016
        %3052 = vmatprep.subr.mxu0 0.0
        %3053 = vmatpush1.msra.mxu0 %v3015
        %3054 = vmatprep.subr.mxu0 0.0
        %3055 = vmatpush1.msra.mxu0 %v3014
        %3056 = vmatprep.subr.mxu0 0.0
        %3057 = vmatpush2.msra.mxu0 0.0
        %3058 = vmatprep.subr.mxu0 0.0
        %3059 = vmatpush2.msra.mxu0 0.0
        %3060 = vmatprep.subr.mxu0 0.0
        %3061 = vmatpush2.msra.mxu0 0.0
        %3062 = vmatprep.subr.mxu0 0.0
        %3063 = vmatpush2.msra.mxu0 0.0
        %3064 = vmatprep.subr.mxu0 0.0
        %3065 = vmatpush2.msra.mxu0 0.0
        %3066 = vmatprep.subr.mxu0 0.0
        %3067 = vmatpush2.msra.mxu0 0.0
        %3068 = vmatprep.subr.mxu0 0.0
        %3069 = vmatpush2.msra.mxu0 0.0
        %3070 = vmatprep.subr.mxu0 0.0
        %3071 = vmatpush2.msra.mxu0 0.0
        %3072 = vmatprep.subr.mxu0 0.0
        %3073 = vmatpush2.msra.mxu0 0.0
        %3074 = vmatprep.subr.mxu0 0.0
        %3075 = vmatpush2.msra.mxu0 0.0
        %3076 = vmatprep.subr.mxu0 0.0
        %3077 = vmatpush2.msra.mxu0 0.0
        %3078 = vmatprep.subr.mxu0 0.0
        %3079 = vmatpush2.msra.mxu0 0.0
        %3080 = vmatprep.subr.mxu0 0.0
        %3081 = vmatpush2.msra.mxu0 0.0
        %3082 = vmatprep.subr.mxu0 0.0
        %3083 = vmatpush2.msra.mxu0 0.0
        %3084 = vmatprep.subr.mxu0 0.0
        %3085 = vmatpush2.msra.mxu0 0.0
        %3086 = vmatprep.subr.mxu0 0.0
        %3087 = vmatpush2.msra.mxu0 0.0
        %3088 = vmatprep.mubr.f32.mxu0 0.0
        %3089 = vmatmul.mubr.f32.gmra.mxu0 %v3019
        %v3090 = vpop.f32.mrf.mxu0
        %v3091 = vadd.f32 0.0, %v3090
        %v3092 = vpop.f32.mrf.mxu0
        %3093 = vmatprep.mubr.f32.mxu0 0.0
        %3094 = vmatmul.mubr.f32.gmra.mxu0 %v3022
        %v3095 = vpop.f32.mrf.mxu0
        %v3096 = vadd.f32 0.0, %v3095
        %v3097 = vpop.f32.mrf.mxu0
        %3098 = vdwg.mxu0
        %v3099 = vadd.f32 %v3005, %v3091
        %v3100 = vadd.f32 %v3010, %v3096
        %v3101 = vadd.f32 %v2689, %v3099
        %v3102 = vadd.f32 %v2690, %v3100
        %3103 = vmatprep.subr.mxu0 0.0
        %3104 = vmatpush1.msra.mxu0 0.0
        %3105 = vmatprep.subr.mxu0 0.0
        %3106 = vmatpush1.msra.mxu0 0.0
        %3107 = vmatprep.subr.mxu0 0.0
        %3108 = vmatpush1.msra.mxu0 0.0
        %3109 = vmatprep.subr.mxu0 0.0
        %3110 = vmatpush1.msra.mxu0 0.0
        %3111 = vmatprep.subr.mxu0 0.0
        %3112 = vmatpush1.msra.mxu0 0.0
        %3113 = vmatprep.subr.mxu0 0.0
        %3114 = vmatpush1.msra.mxu0 0.0
        %3115 = vmatprep.subr.mxu0 0.0
        %3116 = vmatpush1.msra.mxu0 0.0
        %3117 = vmatprep.subr.mxu0 0.0
        %3118 = vmatpush1.msra.mxu0 0.0
        %3119 = vmatprep.subr.mxu0 0.0
        %3120 = vmatpush1.msra.mxu0 0.0
        %3121 = vmatprep.subr.mxu0 0.0
        %3122 = vmatpush1.msra.mxu0 0.0
        %3123 = vmatprep.subr.mxu0 0.0
        %3124 = vmatpush1.msra.mxu0 0.0
        %3125 = vmatprep.subr.mxu0 0.0
        %3126 = vmatpush1.msra.mxu0 0.0
        %3127 = vmatprep.subr.mxu0 0.0
        %3128 = vmatpush1.msra.mxu0 0.0
        %3129 = vmatprep.subr.mxu0 0.0
        %3130 = vmatpush1.msra.mxu0 0.0
        %3131 = vmatprep.subr.mxu0 0.0
        %3132 = vmatpush1.msra.mxu0 %v1688
        %3133 = vmatprep.subr.mxu0 0.0
        %3134 = vmatpush1.msra.mxu0 %v1683
        %3135 = vmatprep.subr.mxu0 0.0
        %3136 = vmatpush2.msra.mxu0 0.0
        %3137 = vmatprep.subr.mxu0 0.0
        %3138 = vmatpush2.msra.mxu0 0.0
        %3139 = vmatprep.subr.mxu0 0.0
        %3140 = vmatpush2.msra.mxu0 0.0
        %3141 = vmatprep.subr.mxu0 0.0
        %3142 = vmatpush2.msra.mxu0 0.0
        %3143 = vmatprep.subr.mxu0 0.0
        %3144 = vmatpush2.msra.mxu0 0.0
        %3145 = vmatprep.subr.mxu0 0.0
        %3146 = vmatpush2.msra.mxu0 0.0
        %3147 = vmatprep.subr.mxu0 0.0
        %3148 = vmatpush2.msra.mxu0 0.0
        %3149 = vmatprep.subr.mxu0 0.0
        %3150 = vmatpush2.msra.mxu0 0.0
        %3151 = vmatprep.subr.mxu0 0.0
        %3152 = vmatpush2.msra.mxu0 0.0
        %3153 = vmatprep.subr.mxu0 0.0
        %3154 = vmatpush2.msra.mxu0 0.0
        %3155 = vmatprep.subr.mxu0 0.0
        %3156 = vmatpush2.msra.mxu0 0.0
        %3157 = vmatprep.subr.mxu0 0.0
        %3158 = vmatpush2.msra.mxu0 0.0
        %3159 = vmatprep.subr.mxu0 0.0
        %3160 = vmatpush2.msra.mxu0 0.0
        %3161 = vmatprep.subr.mxu0 0.0
        %3162 = vmatpush2.msra.mxu0 0.0
        %3163 = vmatprep.subr.mxu0 0.0
        %3164 = vmatpush2.msra.mxu0 0.0
        %3165 = vmatprep.subr.mxu0 0.0
        %3166 = vmatpush2.msra.mxu0 0.0
        %3167 = vmatprep.mubr.f32.mxu0 0.0
        %3168 = vmatmul.mubr.f32.gmra.mxu0 %v1865
        %v3169 = vpop.f32.mrf.mxu0
        %v3170 = vadd.f32 0.0, %v3169
        %v3171 = vpop.f32.mrf.mxu0
        %3172 = vmatprep.mubr.f32.mxu0 0.0
        %3173 = vmatmul.mubr.f32.gmra.mxu0 %v1868
        %v3174 = vpop.f32.mrf.mxu0
        %v3175 = vadd.f32 0.0, %v3174
        %v3176 = vpop.f32.mrf.mxu0
        %3177 = vdwg.mxu0
        %3178 = vmatprep.subr.mxu0 0.0
        %3179 = vmatpush1.msra.mxu0 0.0
        %3180 = vmatprep.subr.mxu0 0.0
        %3181 = vmatpush1.msra.mxu0 0.0
        %3182 = vmatprep.subr.mxu0 0.0
        %3183 = vmatpush1.msra.mxu0 0.0
        %3184 = vmatprep.subr.mxu0 0.0
        %3185 = vmatpush1.msra.mxu0 0.0
        %3186 = vmatprep.subr.mxu0 0.0
        %3187 = vmatpush1.msra.mxu0 0.0
        %3188 = vmatprep.subr.mxu0 0.0
        %3189 = vmatpush1.msra.mxu0 0.0
        %3190 = vmatprep.subr.mxu0 0.0
        %3191 = vmatpush1.msra.mxu0 0.0
        %3192 = vmatprep.subr.mxu0 0.0
        %3193 = vmatpush1.msra.mxu0 0.0
        %3194 = vmatprep.subr.mxu0 0.0
        %3195 = vmatpush1.msra.mxu0 0.0
        %3196 = vmatprep.subr.mxu0 0.0
        %3197 = vmatpush1.msra.mxu0 0.0
        %3198 = vmatprep.subr.mxu0 0.0
        %3199 = vmatpush1.msra.mxu0 0.0
        %3200 = vmatprep.subr.mxu0 0.0
        %3201 = vmatpush1.msra.mxu0 0.0
        %3202 = vmatprep.subr.mxu0 0.0
        %3203 = vmatpush1.msra.mxu0 0.0
        %3204 = vmatprep.subr.mxu0 0.0
        %3205 = vmatpush1.msra.mxu0 0.0
        %3206 = vmatprep.subr.mxu0 0.0
        %3207 = vmatpush1.msra.mxu0 %v1688
        %3208 = vmatprep.subr.mxu0 0.0
        %3209 = vmatpush1.msra.mxu0 %v1683
        %3210 = vmatprep.subr.mxu0 0.0
        %3211 = vmatpush2.msra.mxu0 0.0
        %3212 = vmatprep.subr.mxu0 0.0
        %3213 = vmatpush2.msra.mxu0 0.0
        %3214 = vmatprep.subr.mxu0 0.0
        %3215 = vmatpush2.msra.mxu0 0.0
        %3216 = vmatprep.subr.mxu0 0.0
        %3217 = vmatpush2.msra.mxu0 0.0
        %3218 = vmatprep.subr.mxu0 0.0
        %3219 = vmatpush2.msra.mxu0 0.0
        %3220 = vmatprep.subr.mxu0 0.0
        %3221 = vmatpush2.msra.mxu0 0.0
        %3222 = vmatprep.subr.mxu0 0.0
        %3223 = vmatpush2.msra.mxu0 0.0
        %3224 = vmatprep.subr.mxu0 0.0
        %3225 = vmatpush2.msra.mxu0 0.0
        %3226 = vmatprep.subr.mxu0 0.0
        %3227 = vmatpush2.msra.mxu0 0.0
        %3228 = vmatprep.subr.mxu0 0.0
        %3229 = vmatpush2.msra.mxu0 0.0
        %3230 = vmatprep.subr.mxu0 0.0
        %3231 = vmatpush2.msra.mxu0 0.0
        %3232 = vmatprep.subr.mxu0 0.0
        %3233 = vmatpush2.msra.mxu0 0.0
        %3234 = vmatprep.subr.mxu0 0.0
        %3235 = vmatpush2.msra.mxu0 0.0
        %3236 = vmatprep.subr.mxu0 0.0
        %3237 = vmatpush2.msra.mxu0 0.0
        %3238 = vmatprep.subr.mxu0 0.0
        %3239 = vmatpush2.msra.mxu0 0.0
        %3240 = vmatprep.subr.mxu0 0.0
        %3241 = vmatpush2.msra.mxu0 0.0
        %3242 = vmatprep.mubr.f32.mxu0 0.0
        %3243 = vmatmul.mubr.f32.gmra.mxu0 %v1946
        %v3244 = vpop.f32.mrf.mxu0
        %v3245 = vadd.f32 0.0, %v3244
        %v3246 = vpop.f32.mrf.mxu0
        %3247 = vmatprep.mubr.f32.mxu0 0.0
        %3248 = vmatmul.mubr.f32.gmra.mxu0 %v1949
        %v3249 = vpop.f32.mrf.mxu0
        %v3250 = vadd.f32 0.0, %v3249
        %v3251 = vpop.f32.mrf.mxu0
        %3252 = vdwg.mxu0
        %s3253 = scalar_lea.vmem %s8, 288
        %v3254 = vld [vmem:[%s3253] sm:$0xff]
        %v3255 = vld [vmem:[%s3253 + $0x8] sm:$0xff]
        %v3256 = vld [vmem:[%s3253 + $0x10] sm:$0xff]
        %v3257 = vld [vmem:[%s3253 + $0x18] sm:$0xff]
        %s3258 = scalar_lea.vmem %s8, 320
        %v3259 = vld [vmem:[%s3258] sm:$0xff]
        %v3260 = vld [vmem:[%s3258 + $0x8] sm:$0xff]
        %v3261 = vld [vmem:[%s3258 + $0x10] sm:$0xff]
        %v3262 = vld [vmem:[%s3258 + $0x18] sm:$0xff]
        %v3264 = vsel %vm1011, %v1683, 0
        %v3267 = vsel %vm1011, %v1688, 0
        %3269 = vmatprep.subr.mxu0 0.0
        %3270 = vmatpush1.msra.mxu0 0.0
        %3271 = vmatprep.subr.mxu0 0.0
        %3272 = vmatpush1.msra.mxu0 0.0
        %3273 = vmatprep.subr.mxu0 0.0
        %3274 = vmatpush1.msra.mxu0 0.0
        %3275 = vmatprep.subr.mxu0 0.0
        %3276 = vmatpush1.msra.mxu0 0.0
        %3277 = vmatprep.subr.mxu0 0.0
        %3278 = vmatpush1.msra.mxu0 0.0
        %3279 = vmatprep.subr.mxu0 0.0
        %3280 = vmatpush1.msra.mxu0 0.0
        %3281 = vmatprep.subr.mxu0 0.0
        %3282 = vmatpush1.msra.mxu0 0.0
        %3283 = vmatprep.subr.mxu0 0.0
        %3284 = vmatpush1.msra.mxu0 0.0
        %3285 = vmatprep.subr.mxu0 0.0
        %3286 = vmatpush1.msra.mxu0 0.0
        %3287 = vmatprep.subr.mxu0 0.0
        %3288 = vmatpush1.msra.mxu0 0.0
        %3289 = vmatprep.subr.mxu0 0.0
        %3290 = vmatpush1.msra.mxu0 0.0
        %3291 = vmatprep.subr.mxu0 0.0
        %3292 = vmatpush1.msra.mxu0 0.0
        %3293 = vmatprep.subr.mxu0 0.0
        %3294 = vmatpush1.msra.mxu0 %v3262
        %3295 = vmatprep.subr.mxu0 0.0
        %3296 = vmatpush1.msra.mxu0 %v3261
        %3297 = vmatprep.subr.mxu0 0.0
        %3298 = vmatpush1.msra.mxu0 %v3260
        %3299 = vmatprep.subr.mxu0 0.0
        %3300 = vmatpush1.msra.mxu0 %v3259
        %3301 = vmatprep.subr.mxu0 0.0
        %3302 = vmatpush2.msra.mxu0 0.0
        %3303 = vmatprep.subr.mxu0 0.0
        %3304 = vmatpush2.msra.mxu0 0.0
        %3305 = vmatprep.subr.mxu0 0.0
        %3306 = vmatpush2.msra.mxu0 0.0
        %3307 = vmatprep.subr.mxu0 0.0
        %3308 = vmatpush2.msra.mxu0 0.0
        %3309 = vmatprep.subr.mxu0 0.0
        %3310 = vmatpush2.msra.mxu0 0.0
        %3311 = vmatprep.subr.mxu0 0.0
        %3312 = vmatpush2.msra.mxu0 0.0
        %3313 = vmatprep.subr.mxu0 0.0
        %3314 = vmatpush2.msra.mxu0 0.0
        %3315 = vmatprep.subr.mxu0 0.0
        %3316 = vmatpush2.msra.mxu0 0.0
        %3317 = vmatprep.subr.mxu0 0.0
        %3318 = vmatpush2.msra.mxu0 0.0
        %3319 = vmatprep.subr.mxu0 0.0
        %3320 = vmatpush2.msra.mxu0 0.0
        %3321 = vmatprep.subr.mxu0 0.0
        %3322 = vmatpush2.msra.mxu0 0.0
        %3323 = vmatprep.subr.mxu0 0.0
        %3324 = vmatpush2.msra.mxu0 0.0
        %3325 = vmatprep.subr.mxu0 0.0
        %3326 = vmatpush2.msra.mxu0 0.0
        %3327 = vmatprep.subr.mxu0 0.0
        %3328 = vmatpush2.msra.mxu0 0.0
        %3329 = vmatprep.subr.mxu0 0.0
        %3330 = vmatpush2.msra.mxu0 0.0
        %3331 = vmatprep.subr.mxu0 0.0
        %3332 = vmatpush2.msra.mxu0 0.0
        %3333 = vmatprep.mubr.f32.mxu0 0.0
        %3334 = vmatmul.mubr.f32.gmra.mxu0 %v3264
        %v3335 = vpop.f32.mrf.mxu0
        %v3336 = vadd.f32 0.0, %v3335
        %v3337 = vpop.f32.mrf.mxu0
        %3338 = vmatprep.mubr.f32.mxu0 0.0
        %3339 = vmatmul.mubr.f32.gmra.mxu0 %v3267
        %v3340 = vpop.f32.mrf.mxu0
        %v3341 = vadd.f32 0.0, %v3340
        %v3342 = vpop.f32.mrf.mxu0
        %3343 = vdwg.mxu0
        %v3345 = vsel %vm1011, %v3170, 0
        %v3348 = vsel %vm1011, %v3175, 0
        %3350 = vmatprep.subr.mxu0 0.0
        %3351 = vmatpush1.msra.mxu0 0.0
        %3352 = vmatprep.subr.mxu0 0.0
        %3353 = vmatpush1.msra.mxu0 0.0
        %3354 = vmatprep.subr.mxu0 0.0
        %3355 = vmatpush1.msra.mxu0 0.0
        %3356 = vmatprep.subr.mxu0 0.0
        %3357 = vmatpush1.msra.mxu0 0.0
        %3358 = vmatprep.subr.mxu0 0.0
        %3359 = vmatpush1.msra.mxu0 0.0
        %3360 = vmatprep.subr.mxu0 0.0
        %3361 = vmatpush1.msra.mxu0 0.0
        %3362 = vmatprep.subr.mxu0 0.0
        %3363 = vmatpush1.msra.mxu0 0.0
        %3364 = vmatprep.subr.mxu0 0.0
        %3365 = vmatpush1.msra.mxu0 0.0
        %3366 = vmatprep.subr.mxu0 0.0
        %3367 = vmatpush1.msra.mxu0 0.0
        %3368 = vmatprep.subr.mxu0 0.0
        %3369 = vmatpush1.msra.mxu0 0.0
        %3370 = vmatprep.subr.mxu0 0.0
        %3371 = vmatpush1.msra.mxu0 0.0
        %3372 = vmatprep.subr.mxu0 0.0
        %3373 = vmatpush1.msra.mxu0 0.0
        %3374 = vmatprep.subr.mxu0 0.0
        %3375 = vmatpush1.msra.mxu0 %v3257
        %3376 = vmatprep.subr.mxu0 0.0
        %3377 = vmatpush1.msra.mxu0 %v3256
        %3378 = vmatprep.subr.mxu0 0.0
        %3379 = vmatpush1.msra.mxu0 %v3255
        %3380 = vmatprep.subr.mxu0 0.0
        %3381 = vmatpush1.msra.mxu0 %v3254
        %3382 = vmatprep.subr.mxu0 0.0
        %3383 = vmatpush2.msra.mxu0 0.0
        %3384 = vmatprep.subr.mxu0 0.0
        %3385 = vmatpush2.msra.mxu0 0.0
        %3386 = vmatprep.subr.mxu0 0.0
        %3387 = vmatpush2.msra.mxu0 0.0
        %3388 = vmatprep.subr.mxu0 0.0
        %3389 = vmatpush2.msra.mxu0 0.0
        %3390 = vmatprep.subr.mxu0 0.0
        %3391 = vmatpush2.msra.mxu0 0.0
        %3392 = vmatprep.subr.mxu0 0.0
        %3393 = vmatpush2.msra.mxu0 0.0
        %3394 = vmatprep.subr.mxu0 0.0
        %3395 = vmatpush2.msra.mxu0 0.0
        %3396 = vmatprep.subr.mxu0 0.0
        %3397 = vmatpush2.msra.mxu0 0.0
        %3398 = vmatprep.subr.mxu0 0.0
        %3399 = vmatpush2.msra.mxu0 0.0
        %3400 = vmatprep.subr.mxu0 0.0
        %3401 = vmatpush2.msra.mxu0 0.0
        %3402 = vmatprep.subr.mxu0 0.0
        %3403 = vmatpush2.msra.mxu0 0.0
        %3404 = vmatprep.subr.mxu0 0.0
        %3405 = vmatpush2.msra.mxu0 0.0
        %3406 = vmatprep.subr.mxu0 0.0
        %3407 = vmatpush2.msra.mxu0 0.0
        %3408 = vmatprep.subr.mxu0 0.0
        %3409 = vmatpush2.msra.mxu0 0.0
        %3410 = vmatprep.subr.mxu0 0.0
        %3411 = vmatpush2.msra.mxu0 0.0
        %3412 = vmatprep.subr.mxu0 0.0
        %3413 = vmatpush2.msra.mxu0 0.0
        %3414 = vmatprep.mubr.f32.mxu0 0.0
        %3415 = vmatmul.mubr.f32.gmra.mxu0 %v3345
        %v3416 = vpop.f32.mrf.mxu0
        %v3417 = vadd.f32 %v3336, %v3416
        %v3418 = vpop.f32.mrf.mxu0
        %3419 = vmatprep.mubr.f32.mxu0 0.0
        %3420 = vmatmul.mubr.f32.gmra.mxu0 %v3348
        %v3421 = vpop.f32.mrf.mxu0
        %v3422 = vadd.f32 %v3341, %v3421
        %v3423 = vpop.f32.mrf.mxu0
        %3424 = vdwg.mxu0
        %s3425 = scalar_lea.vmem %s8, 352
        %v3426 = vld [vmem:[%s3425] sm:$0xff]
        %v3427 = vld [vmem:[%s3425 + $0x8] sm:$0xff]
        %v3428 = vld [vmem:[%s3425 + $0x10] sm:$0xff]
        %v3429 = vld [vmem:[%s3425 + $0x18] sm:$0xff]
        %v3431 = vsel %vm1011, %v3245, 0
        %v3434 = vsel %vm1011, %v3250, 0
        %3436 = vmatprep.subr.mxu0 0.0
        %3437 = vmatpush1.msra.mxu0 0.0
        %3438 = vmatprep.subr.mxu0 0.0
        %3439 = vmatpush1.msra.mxu0 0.0
        %3440 = vmatprep.subr.mxu0 0.0
        %3441 = vmatpush1.msra.mxu0 0.0
        %3442 = vmatprep.subr.mxu0 0.0
        %3443 = vmatpush1.msra.mxu0 0.0
        %3444 = vmatprep.subr.mxu0 0.0
        %3445 = vmatpush1.msra.mxu0 0.0
        %3446 = vmatprep.subr.mxu0 0.0
        %3447 = vmatpush1.msra.mxu0 0.0
        %3448 = vmatprep.subr.mxu0 0.0
        %3449 = vmatpush1.msra.mxu0 0.0
        %3450 = vmatprep.subr.mxu0 0.0
        %3451 = vmatpush1.msra.mxu0 0.0
        %3452 = vmatprep.subr.mxu0 0.0
        %3453 = vmatpush1.msra.mxu0 0.0
        %3454 = vmatprep.subr.mxu0 0.0
        %3455 = vmatpush1.msra.mxu0 0.0
        %3456 = vmatprep.subr.mxu0 0.0
        %3457 = vmatpush1.msra.mxu0 0.0
        %3458 = vmatprep.subr.mxu0 0.0
        %3459 = vmatpush1.msra.mxu0 0.0
        %3460 = vmatprep.subr.mxu0 0.0
        %3461 = vmatpush1.msra.mxu0 %v3429
        %3462 = vmatprep.subr.mxu0 0.0
        %3463 = vmatpush1.msra.mxu0 %v3428
        %3464 = vmatprep.subr.mxu0 0.0
        %3465 = vmatpush1.msra.mxu0 %v3427
        %3466 = vmatprep.subr.mxu0 0.0
        %3467 = vmatpush1.msra.mxu0 %v3426
        %3468 = vmatprep.subr.mxu0 0.0
        %3469 = vmatpush2.msra.mxu0 0.0
        %3470 = vmatprep.subr.mxu0 0.0
        %3471 = vmatpush2.msra.mxu0 0.0
        %3472 = vmatprep.subr.mxu0 0.0
        %3473 = vmatpush2.msra.mxu0 0.0
        %3474 = vmatprep.subr.mxu0 0.0
        %3475 = vmatpush2.msra.mxu0 0.0
        %3476 = vmatprep.subr.mxu0 0.0
        %3477 = vmatpush2.msra.mxu0 0.0
        %3478 = vmatprep.subr.mxu0 0.0
        %3479 = vmatpush2.msra.mxu0 0.0
        %3480 = vmatprep.subr.mxu0 0.0
        %3481 = vmatpush2.msra.mxu0 0.0
        %3482 = vmatprep.subr.mxu0 0.0
        %3483 = vmatpush2.msra.mxu0 0.0
        %3484 = vmatprep.subr.mxu0 0.0
        %3485 = vmatpush2.msra.mxu0 0.0
        %3486 = vmatprep.subr.mxu0 0.0
        %3487 = vmatpush2.msra.mxu0 0.0
        %3488 = vmatprep.subr.mxu0 0.0
        %3489 = vmatpush2.msra.mxu0 0.0
        %3490 = vmatprep.subr.mxu0 0.0
        %3491 = vmatpush2.msra.mxu0 0.0
        %3492 = vmatprep.subr.mxu0 0.0
        %3493 = vmatpush2.msra.mxu0 0.0
        %3494 = vmatprep.subr.mxu0 0.0
        %3495 = vmatpush2.msra.mxu0 0.0
        %3496 = vmatprep.subr.mxu0 0.0
        %3497 = vmatpush2.msra.mxu0 0.0
        %3498 = vmatprep.subr.mxu0 0.0
        %3499 = vmatpush2.msra.mxu0 0.0
        %3500 = vmatprep.mubr.f32.mxu0 0.0
        %3501 = vmatmul.mubr.f32.gmra.mxu0 %v3431
        %v3502 = vpop.f32.mrf.mxu0
        %v3503 = vadd.f32 0.0, %v3502
        %v3504 = vpop.f32.mrf.mxu0
        %3505 = vmatprep.mubr.f32.mxu0 0.0
        %3506 = vmatmul.mubr.f32.gmra.mxu0 %v3434
        %v3507 = vpop.f32.mrf.mxu0
        %v3508 = vadd.f32 0.0, %v3507
        %v3509 = vpop.f32.mrf.mxu0
        %3510 = vdwg.mxu0
        %v3511 = vadd.f32 %v3417, %v3503
        %v3512 = vadd.f32 %v3422, %v3508
        %v3513 = vadd.f32 %v3101, %v3511
        %v3514 = vadd.f32 %v3102, %v3512
        %3515 = vmatprep.subr.mxu0 0.0
        %3516 = vmatpush1.msra.mxu0 0.0
        %3517 = vmatprep.subr.mxu0 0.0
        %3518 = vmatpush1.msra.mxu0 0.0
        %3519 = vmatprep.subr.mxu0 0.0
        %3520 = vmatpush1.msra.mxu0 0.0
        %3521 = vmatprep.subr.mxu0 0.0
        %3522 = vmatpush1.msra.mxu0 0.0
        %3523 = vmatprep.subr.mxu0 0.0
        %3524 = vmatpush1.msra.mxu0 0.0
        %3525 = vmatprep.subr.mxu0 0.0
        %3526 = vmatpush1.msra.mxu0 0.0
        %3527 = vmatprep.subr.mxu0 0.0
        %3528 = vmatpush1.msra.mxu0 0.0
        %3529 = vmatprep.subr.mxu0 0.0
        %3530 = vmatpush1.msra.mxu0 0.0
        %3531 = vmatprep.subr.mxu0 0.0
        %3532 = vmatpush1.msra.mxu0 0.0
        %3533 = vmatprep.subr.mxu0 0.0
        %3534 = vmatpush1.msra.mxu0 0.0
        %3535 = vmatprep.subr.mxu0 0.0
        %3536 = vmatpush1.msra.mxu0 0.0
        %3537 = vmatprep.subr.mxu0 0.0
        %3538 = vmatpush1.msra.mxu0 0.0
        %3539 = vmatprep.subr.mxu0 0.0
        %3540 = vmatpush1.msra.mxu0 0.0
        %3541 = vmatprep.subr.mxu0 0.0
        %3542 = vmatpush1.msra.mxu0 0.0
        %3543 = vmatprep.subr.mxu0 0.0
        %3544 = vmatpush1.msra.mxu0 %v1860
        %3545 = vmatprep.subr.mxu0 0.0
        %3546 = vmatpush1.msra.mxu0 %v1855
        %3547 = vmatprep.subr.mxu0 0.0
        %3548 = vmatpush2.msra.mxu0 0.0
        %3549 = vmatprep.subr.mxu0 0.0
        %3550 = vmatpush2.msra.mxu0 0.0
        %3551 = vmatprep.subr.mxu0 0.0
        %3552 = vmatpush2.msra.mxu0 0.0
        %3553 = vmatprep.subr.mxu0 0.0
        %3554 = vmatpush2.msra.mxu0 0.0
        %3555 = vmatprep.subr.mxu0 0.0
        %3556 = vmatpush2.msra.mxu0 0.0
        %3557 = vmatprep.subr.mxu0 0.0
        %3558 = vmatpush2.msra.mxu0 0.0
        %3559 = vmatprep.subr.mxu0 0.0
        %3560 = vmatpush2.msra.mxu0 0.0
        %3561 = vmatprep.subr.mxu0 0.0
        %3562 = vmatpush2.msra.mxu0 0.0
        %3563 = vmatprep.subr.mxu0 0.0
        %3564 = vmatpush2.msra.mxu0 0.0
        %3565 = vmatprep.subr.mxu0 0.0
        %3566 = vmatpush2.msra.mxu0 0.0
        %3567 = vmatprep.subr.mxu0 0.0
        %3568 = vmatpush2.msra.mxu0 0.0
        %3569 = vmatprep.subr.mxu0 0.0
        %3570 = vmatpush2.msra.mxu0 0.0
        %3571 = vmatprep.subr.mxu0 0.0
        %3572 = vmatpush2.msra.mxu0 0.0
        %3573 = vmatprep.subr.mxu0 0.0
        %3574 = vmatpush2.msra.mxu0 0.0
        %3575 = vmatprep.subr.mxu0 0.0
        %3576 = vmatpush2.msra.mxu0 0.0
        %3577 = vmatprep.subr.mxu0 0.0
        %3578 = vmatpush2.msra.mxu0 0.0
        %3579 = vmatprep.mubr.f32.mxu0 0.0
        %3580 = vmatmul.mubr.f32.gmra.mxu0 %v1865
        %v3581 = vpop.f32.mrf.mxu0
        %v3582 = vadd.f32 0.0, %v3581
        %v3583 = vpop.f32.mrf.mxu0
        %3584 = vmatprep.mubr.f32.mxu0 0.0
        %3585 = vmatmul.mubr.f32.gmra.mxu0 %v1868
        %v3586 = vpop.f32.mrf.mxu0
        %v3587 = vadd.f32 0.0, %v3586
        %v3588 = vpop.f32.mrf.mxu0
        %3589 = vdwg.mxu0
        %3590 = vmatprep.subr.mxu0 0.0
        %3591 = vmatpush1.msra.mxu0 0.0
        %3592 = vmatprep.subr.mxu0 0.0
        %3593 = vmatpush1.msra.mxu0 0.0
        %3594 = vmatprep.subr.mxu0 0.0
        %3595 = vmatpush1.msra.mxu0 0.0
        %3596 = vmatprep.subr.mxu0 0.0
        %3597 = vmatpush1.msra.mxu0 0.0
        %3598 = vmatprep.subr.mxu0 0.0
        %3599 = vmatpush1.msra.mxu0 0.0
        %3600 = vmatprep.subr.mxu0 0.0
        %3601 = vmatpush1.msra.mxu0 0.0
        %3602 = vmatprep.subr.mxu0 0.0
        %3603 = vmatpush1.msra.mxu0 0.0
        %3604 = vmatprep.subr.mxu0 0.0
        %3605 = vmatpush1.msra.mxu0 0.0
        %3606 = vmatprep.subr.mxu0 0.0
        %3607 = vmatpush1.msra.mxu0 0.0
        %3608 = vmatprep.subr.mxu0 0.0
        %3609 = vmatpush1.msra.mxu0 0.0
        %3610 = vmatprep.subr.mxu0 0.0
        %3611 = vmatpush1.msra.mxu0 0.0
        %3612 = vmatprep.subr.mxu0 0.0
        %3613 = vmatpush1.msra.mxu0 0.0
        %3614 = vmatprep.subr.mxu0 0.0
        %3615 = vmatpush1.msra.mxu0 0.0
        %3616 = vmatprep.subr.mxu0 0.0
        %3617 = vmatpush1.msra.mxu0 0.0
        %3618 = vmatprep.subr.mxu0 0.0
        %3619 = vmatpush1.msra.mxu0 %v1860
        %3620 = vmatprep.subr.mxu0 0.0
        %3621 = vmatpush1.msra.mxu0 %v1855
        %3622 = vmatprep.subr.mxu0 0.0
        %3623 = vmatpush2.msra.mxu0 0.0
        %3624 = vmatprep.subr.mxu0 0.0
        %3625 = vmatpush2.msra.mxu0 0.0
        %3626 = vmatprep.subr.mxu0 0.0
        %3627 = vmatpush2.msra.mxu0 0.0
        %3628 = vmatprep.subr.mxu0 0.0
        %3629 = vmatpush2.msra.mxu0 0.0
        %3630 = vmatprep.subr.mxu0 0.0
        %3631 = vmatpush2.msra.mxu0 0.0
        %3632 = vmatprep.subr.mxu0 0.0
        %3633 = vmatpush2.msra.mxu0 0.0
        %3634 = vmatprep.subr.mxu0 0.0
        %3635 = vmatpush2.msra.mxu0 0.0
        %3636 = vmatprep.subr.mxu0 0.0
        %3637 = vmatpush2.msra.mxu0 0.0
        %3638 = vmatprep.subr.mxu0 0.0
        %3639 = vmatpush2.msra.mxu0 0.0
        %3640 = vmatprep.subr.mxu0 0.0
        %3641 = vmatpush2.msra.mxu0 0.0
        %3642 = vmatprep.subr.mxu0 0.0
        %3643 = vmatpush2.msra.mxu0 0.0
        %3644 = vmatprep.subr.mxu0 0.0
        %3645 = vmatpush2.msra.mxu0 0.0
        %3646 = vmatprep.subr.mxu0 0.0
        %3647 = vmatpush2.msra.mxu0 0.0
        %3648 = vmatprep.subr.mxu0 0.0
        %3649 = vmatpush2.msra.mxu0 0.0
        %3650 = vmatprep.subr.mxu0 0.0
        %3651 = vmatpush2.msra.mxu0 0.0
        %3652 = vmatprep.subr.mxu0 0.0
        %3653 = vmatpush2.msra.mxu0 0.0
        %3654 = vmatprep.mubr.f32.mxu0 0.0
        %3655 = vmatmul.mubr.f32.gmra.mxu0 %v1946
        %v3656 = vpop.f32.mrf.mxu0
        %v3657 = vadd.f32 0.0, %v3656
        %v3658 = vpop.f32.mrf.mxu0
        %3659 = vmatprep.mubr.f32.mxu0 0.0
        %3660 = vmatmul.mubr.f32.gmra.mxu0 %v1949
        %v3661 = vpop.f32.mrf.mxu0
        %v3662 = vadd.f32 0.0, %v3661
        %v3663 = vpop.f32.mrf.mxu0
        %3664 = vdwg.mxu0
        %s3665 = scalar_lea.vmem %s8, 384
        %v3666 = vld [vmem:[%s3665] sm:$0xff]
        %v3667 = vld [vmem:[%s3665 + $0x8] sm:$0xff]
        %v3668 = vld [vmem:[%s3665 + $0x10] sm:$0xff]
        %v3669 = vld [vmem:[%s3665 + $0x18] sm:$0xff]
        %s3670 = scalar_lea.vmem %s8, 416
        %v3671 = vld [vmem:[%s3670] sm:$0xff]
        %v3672 = vld [vmem:[%s3670 + $0x8] sm:$0xff]
        %v3673 = vld [vmem:[%s3670 + $0x10] sm:$0xff]
        %v3674 = vld [vmem:[%s3670 + $0x18] sm:$0xff]
        %v3676 = vsel %vm1011, %v1855, 0
        %v3679 = vsel %vm1011, %v1860, 0
        %3681 = vmatprep.subr.mxu0 0.0
        %3682 = vmatpush1.msra.mxu0 0.0
        %3683 = vmatprep.subr.mxu0 0.0
        %3684 = vmatpush1.msra.mxu0 0.0
        %3685 = vmatprep.subr.mxu0 0.0
        %3686 = vmatpush1.msra.mxu0 0.0
        %3687 = vmatprep.subr.mxu0 0.0
        %3688 = vmatpush1.msra.mxu0 0.0
        %3689 = vmatprep.subr.mxu0 0.0
        %3690 = vmatpush1.msra.mxu0 0.0
        %3691 = vmatprep.subr.mxu0 0.0
        %3692 = vmatpush1.msra.mxu0 0.0
        %3693 = vmatprep.subr.mxu0 0.0
        %3694 = vmatpush1.msra.mxu0 0.0
        %3695 = vmatprep.subr.mxu0 0.0
        %3696 = vmatpush1.msra.mxu0 0.0
        %3697 = vmatprep.subr.mxu0 0.0
        %3698 = vmatpush1.msra.mxu0 0.0
        %3699 = vmatprep.subr.mxu0 0.0
        %3700 = vmatpush1.msra.mxu0 0.0
        %3701 = vmatprep.subr.mxu0 0.0
        %3702 = vmatpush1.msra.mxu0 0.0
        %3703 = vmatprep.subr.mxu0 0.0
        %3704 = vmatpush1.msra.mxu0 0.0
        %3705 = vmatprep.subr.mxu0 0.0
        %3706 = vmatpush1.msra.mxu0 %v3674
        %3707 = vmatprep.subr.mxu0 0.0
        %3708 = vmatpush1.msra.mxu0 %v3673
        %3709 = vmatprep.subr.mxu0 0.0
        %3710 = vmatpush1.msra.mxu0 %v3672
        %3711 = vmatprep.subr.mxu0 0.0
        %3712 = vmatpush1.msra.mxu0 %v3671
        %3713 = vmatprep.subr.mxu0 0.0
        %3714 = vmatpush2.msra.mxu0 0.0
        %3715 = vmatprep.subr.mxu0 0.0
        %3716 = vmatpush2.msra.mxu0 0.0
        %3717 = vmatprep.subr.mxu0 0.0
        %3718 = vmatpush2.msra.mxu0 0.0
        %3719 = vmatprep.subr.mxu0 0.0
        %3720 = vmatpush2.msra.mxu0 0.0
        %3721 = vmatprep.subr.mxu0 0.0
        %3722 = vmatpush2.msra.mxu0 0.0
        %3723 = vmatprep.subr.mxu0 0.0
        %3724 = vmatpush2.msra.mxu0 0.0
        %3725 = vmatprep.subr.mxu0 0.0
        %3726 = vmatpush2.msra.mxu0 0.0
        %3727 = vmatprep.subr.mxu0 0.0
        %3728 = vmatpush2.msra.mxu0 0.0
        %3729 = vmatprep.subr.mxu0 0.0
        %3730 = vmatpush2.msra.mxu0 0.0
        %3731 = vmatprep.subr.mxu0 0.0
        %3732 = vmatpush2.msra.mxu0 0.0
        %3733 = vmatprep.subr.mxu0 0.0
        %3734 = vmatpush2.msra.mxu0 0.0
        %3735 = vmatprep.subr.mxu0 0.0
        %3736 = vmatpush2.msra.mxu0 0.0
        %3737 = vmatprep.subr.mxu0 0.0
        %3738 = vmatpush2.msra.mxu0 0.0
        %3739 = vmatprep.subr.mxu0 0.0
        %3740 = vmatpush2.msra.mxu0 0.0
        %3741 = vmatprep.subr.mxu0 0.0
        %3742 = vmatpush2.msra.mxu0 0.0
        %3743 = vmatprep.subr.mxu0 0.0
        %3744 = vmatpush2.msra.mxu0 0.0
        %3745 = vmatprep.mubr.f32.mxu0 0.0
        %3746 = vmatmul.mubr.f32.gmra.mxu0 %v3676
        %v3747 = vpop.f32.mrf.mxu0
        %v3748 = vadd.f32 0.0, %v3747
        %v3749 = vpop.f32.mrf.mxu0
        %3750 = vmatprep.mubr.f32.mxu0 0.0
        %3751 = vmatmul.mubr.f32.gmra.mxu0 %v3679
        %v3752 = vpop.f32.mrf.mxu0
        %v3753 = vadd.f32 0.0, %v3752
        %v3754 = vpop.f32.mrf.mxu0
        %3755 = vdwg.mxu0
        %v3757 = vsel %vm1011, %v3582, 0
        %v3760 = vsel %vm1011, %v3587, 0
        %3762 = vmatprep.subr.mxu0 0.0
        %3763 = vmatpush1.msra.mxu0 0.0
        %3764 = vmatprep.subr.mxu0 0.0
        %3765 = vmatpush1.msra.mxu0 0.0
        %3766 = vmatprep.subr.mxu0 0.0
        %3767 = vmatpush1.msra.mxu0 0.0
        %3768 = vmatprep.subr.mxu0 0.0
        %3769 = vmatpush1.msra.mxu0 0.0
        %3770 = vmatprep.subr.mxu0 0.0
        %3771 = vmatpush1.msra.mxu0 0.0
        %3772 = vmatprep.subr.mxu0 0.0
        %3773 = vmatpush1.msra.mxu0 0.0
        %3774 = vmatprep.subr.mxu0 0.0
        %3775 = vmatpush1.msra.mxu0 0.0
        %3776 = vmatprep.subr.mxu0 0.0
        %3777 = vmatpush1.msra.mxu0 0.0
        %3778 = vmatprep.subr.mxu0 0.0
        %3779 = vmatpush1.msra.mxu0 0.0
        %3780 = vmatprep.subr.mxu0 0.0
        %3781 = vmatpush1.msra.mxu0 0.0
        %3782 = vmatprep.subr.mxu0 0.0
        %3783 = vmatpush1.msra.mxu0 0.0
        %3784 = vmatprep.subr.mxu0 0.0
        %3785 = vmatpush1.msra.mxu0 0.0
        %3786 = vmatprep.subr.mxu0 0.0
        %3787 = vmatpush1.msra.mxu0 %v3669
        %3788 = vmatprep.subr.mxu0 0.0
        %3789 = vmatpush1.msra.mxu0 %v3668
        %3790 = vmatprep.subr.mxu0 0.0
        %3791 = vmatpush1.msra.mxu0 %v3667
        %3792 = vmatprep.subr.mxu0 0.0
        %3793 = vmatpush1.msra.mxu0 %v3666
        %3794 = vmatprep.subr.mxu0 0.0
        %3795 = vmatpush2.msra.mxu0 0.0
        %3796 = vmatprep.subr.mxu0 0.0
        %3797 = vmatpush2.msra.mxu0 0.0
        %3798 = vmatprep.subr.mxu0 0.0
        %3799 = vmatpush2.msra.mxu0 0.0
        %3800 = vmatprep.subr.mxu0 0.0
        %3801 = vmatpush2.msra.mxu0 0.0
        %3802 = vmatprep.subr.mxu0 0.0
        %3803 = vmatpush2.msra.mxu0 0.0
        %3804 = vmatprep.subr.mxu0 0.0
        %3805 = vmatpush2.msra.mxu0 0.0
        %3806 = vmatprep.subr.mxu0 0.0
        %3807 = vmatpush2.msra.mxu0 0.0
        %3808 = vmatprep.subr.mxu0 0.0
        %3809 = vmatpush2.msra.mxu0 0.0
        %3810 = vmatprep.subr.mxu0 0.0
        %3811 = vmatpush2.msra.mxu0 0.0
        %3812 = vmatprep.subr.mxu0 0.0
        %3813 = vmatpush2.msra.mxu0 0.0
        %3814 = vmatprep.subr.mxu0 0.0
        %3815 = vmatpush2.msra.mxu0 0.0
        %3816 = vmatprep.subr.mxu0 0.0
        %3817 = vmatpush2.msra.mxu0 0.0
        %3818 = vmatprep.subr.mxu0 0.0
        %3819 = vmatpush2.msra.mxu0 0.0
        %3820 = vmatprep.subr.mxu0 0.0
        %3821 = vmatpush2.msra.mxu0 0.0
        %3822 = vmatprep.subr.mxu0 0.0
        %3823 = vmatpush2.msra.mxu0 0.0
        %3824 = vmatprep.subr.mxu0 0.0
        %3825 = vmatpush2.msra.mxu0 0.0
        %3826 = vmatprep.mubr.f32.mxu0 0.0
        %3827 = vmatmul.mubr.f32.gmra.mxu0 %v3757
        %v3828 = vpop.f32.mrf.mxu0
        %v3829 = vadd.f32 %v3748, %v3828
        %v3830 = vpop.f32.mrf.mxu0
        %3831 = vmatprep.mubr.f32.mxu0 0.0
        %3832 = vmatmul.mubr.f32.gmra.mxu0 %v3760
        %v3833 = vpop.f32.mrf.mxu0
        %v3834 = vadd.f32 %v3753, %v3833
        %v3835 = vpop.f32.mrf.mxu0
        %3836 = vdwg.mxu0
        %s3837 = scalar_lea.vmem %s8, 448
        %v3838 = vld [vmem:[%s3837] sm:$0xff]
        %v3839 = vld [vmem:[%s3837 + $0x8] sm:$0xff]
        %v3840 = vld [vmem:[%s3837 + $0x10] sm:$0xff]
        %v3841 = vld [vmem:[%s3837 + $0x18] sm:$0xff]
        %v3843 = vsel %vm1011, %v3657, 0
        %v3846 = vsel %vm1011, %v3662, 0
        %3848 = vmatprep.subr.mxu0 0.0
        %3849 = vmatpush1.msra.mxu0 0.0
        %3850 = vmatprep.subr.mxu0 0.0
        %3851 = vmatpush1.msra.mxu0 0.0
        %3852 = vmatprep.subr.mxu0 0.0
        %3853 = vmatpush1.msra.mxu0 0.0
        %3854 = vmatprep.subr.mxu0 0.0
        %3855 = vmatpush1.msra.mxu0 0.0
        %3856 = vmatprep.subr.mxu0 0.0
        %3857 = vmatpush1.msra.mxu0 0.0
        %3858 = vmatprep.subr.mxu0 0.0
        %3859 = vmatpush1.msra.mxu0 0.0
        %3860 = vmatprep.subr.mxu0 0.0
        %3861 = vmatpush1.msra.mxu0 0.0
        %3862 = vmatprep.subr.mxu0 0.0
        %3863 = vmatpush1.msra.mxu0 0.0
        %3864 = vmatprep.subr.mxu0 0.0
        %3865 = vmatpush1.msra.mxu0 0.0
        %3866 = vmatprep.subr.mxu0 0.0
        %3867 = vmatpush1.msra.mxu0 0.0
        %3868 = vmatprep.subr.mxu0 0.0
        %3869 = vmatpush1.msra.mxu0 0.0
        %3870 = vmatprep.subr.mxu0 0.0
        %3871 = vmatpush1.msra.mxu0 0.0
        %3872 = vmatprep.subr.mxu0 0.0
        %3873 = vmatpush1.msra.mxu0 %v3841
        %3874 = vmatprep.subr.mxu0 0.0
        %3875 = vmatpush1.msra.mxu0 %v3840
        %3876 = vmatprep.subr.mxu0 0.0
        %3877 = vmatpush1.msra.mxu0 %v3839
        %3878 = vmatprep.subr.mxu0 0.0
        %3879 = vmatpush1.msra.mxu0 %v3838
        %3880 = vmatprep.subr.mxu0 0.0
        %3881 = vmatpush2.msra.mxu0 0.0
        %3882 = vmatprep.subr.mxu0 0.0
        %3883 = vmatpush2.msra.mxu0 0.0
        %3884 = vmatprep.subr.mxu0 0.0
        %3885 = vmatpush2.msra.mxu0 0.0
        %3886 = vmatprep.subr.mxu0 0.0
        %3887 = vmatpush2.msra.mxu0 0.0
        %3888 = vmatprep.subr.mxu0 0.0
        %3889 = vmatpush2.msra.mxu0 0.0
        %3890 = vmatprep.subr.mxu0 0.0
        %3891 = vmatpush2.msra.mxu0 0.0
        %3892 = vmatprep.subr.mxu0 0.0
        %3893 = vmatpush2.msra.mxu0 0.0
        %3894 = vmatprep.subr.mxu0 0.0
        %3895 = vmatpush2.msra.mxu0 0.0
        %3896 = vmatprep.subr.mxu0 0.0
        %3897 = vmatpush2.msra.mxu0 0.0
        %3898 = vmatprep.subr.mxu0 0.0
        %3899 = vmatpush2.msra.mxu0 0.0
        %3900 = vmatprep.subr.mxu0 0.0
        %3901 = vmatpush2.msra.mxu0 0.0
        %3902 = vmatprep.subr.mxu0 0.0
        %3903 = vmatpush2.msra.mxu0 0.0
        %3904 = vmatprep.subr.mxu0 0.0
        %3905 = vmatpush2.msra.mxu0 0.0
        %3906 = vmatprep.subr.mxu0 0.0
        %3907 = vmatpush2.msra.mxu0 0.0
        %3908 = vmatprep.subr.mxu0 0.0
        %3909 = vmatpush2.msra.mxu0 0.0
        %3910 = vmatprep.subr.mxu0 0.0
        %3911 = vmatpush2.msra.mxu0 0.0
        %3912 = vmatprep.mubr.f32.mxu0 0.0
        %3913 = vmatmul.mubr.f32.gmra.mxu0 %v3843
        %v3914 = vpop.f32.mrf.mxu0
        %v3915 = vadd.f32 0.0, %v3914
        %v3916 = vpop.f32.mrf.mxu0
        %3917 = vmatprep.mubr.f32.mxu0 0.0
        %3918 = vmatmul.mubr.f32.gmra.mxu0 %v3846
        %v3919 = vpop.f32.mrf.mxu0
        %v3920 = vadd.f32 0.0, %v3919
        %v3921 = vpop.f32.mrf.mxu0
        %3922 = vdwg.mxu0
        %v3923 = vadd.f32 %v3829, %v3915
        %v3924 = vadd.f32 %v3834, %v3920
        %v3925 = vadd.f32 %v3513, %v3923
        %v3926 = vadd.f32 %v3514, %v3924
        %v3928 = vlaneseq
        %v3929 = vshrl.u32 %v3928, 7
        %v3930 = vsub.s32 0, %v3929
        %v3931 = vrot.slane %v1863, %v3930
        %v3933 = vadd.f32 %v3925, %v3931
        %v3934 = vadd.f32 %v3926, %v3931
        %v3935 = vld [vmem:[%s18] sm:$0xff]
        %vm3936 = vcmask 31744
        %v3938 = vsel %vm3936, %v3935, 0
        %vm3940 = vcmask 1043456
        %v3942 = vsel %vm3940, %v1082, 0
        %3944 = vmatprep.subr.mxu0 0.0
        %3945 = vmatpush1.msra.mxu0 0.0
        %3946 = vmatprep.subr.mxu0 0.0
        %3947 = vmatpush1.msra.mxu0 0.0
        %3948 = vmatprep.subr.mxu0 0.0
        %3949 = vmatpush1.msra.mxu0 0.0
        %3950 = vmatprep.subr.mxu0 0.0
        %3951 = vmatpush1.msra.mxu0 0.0
        %3952 = vmatprep.subr.mxu0 0.0
        %3953 = vmatpush1.msra.mxu0 0.0
        %3954 = vmatprep.subr.mxu0 0.0
        %3955 = vmatpush1.msra.mxu0 0.0
        %3956 = vmatprep.subr.mxu0 0.0
        %3957 = vmatpush1.msra.mxu0 0.0
        %3958 = vmatprep.subr.mxu0 0.0
        %3959 = vmatpush1.msra.mxu0 0.0
        %3960 = vmatprep.subr.mxu0 0.0
        %3961 = vmatpush1.msra.mxu0 0.0
        %3962 = vmatprep.subr.mxu0 0.0
        %3963 = vmatpush1.msra.mxu0 0.0
        %3964 = vmatprep.subr.mxu0 0.0
        %3965 = vmatpush1.msra.mxu0 0.0
        %3966 = vmatprep.subr.mxu0 0.0
        %3967 = vmatpush1.msra.mxu0 0.0
        %3968 = vmatprep.subr.mxu0 0.0
        %3969 = vmatpush1.msra.mxu0 0.0
        %3970 = vmatprep.subr.mxu0 0.0
        %3971 = vmatpush1.msra.mxu0 0.0
        %3972 = vmatprep.subr.mxu0 0.0
        %3973 = vmatpush1.msra.mxu0 0.0
        %3974 = vmatprep.subr.mxu0 0.0
        %3975 = vmatpush1.msra.mxu0 %v3942
        %3976 = vmatprep.subr.mxu0 0.0
        %3977 = vmatpush2.msra.mxu0 0.0
        %3978 = vmatprep.subr.mxu0 0.0
        %3979 = vmatpush2.msra.mxu0 0.0
        %3980 = vmatprep.subr.mxu0 0.0
        %3981 = vmatpush2.msra.mxu0 0.0
        %3982 = vmatprep.subr.mxu0 0.0
        %3983 = vmatpush2.msra.mxu0 0.0
        %3984 = vmatprep.subr.mxu0 0.0
        %3985 = vmatpush2.msra.mxu0 0.0
        %3986 = vmatprep.subr.mxu0 0.0
        %3987 = vmatpush2.msra.mxu0 0.0
        %3988 = vmatprep.subr.mxu0 0.0
        %3989 = vmatpush2.msra.mxu0 0.0
        %3990 = vmatprep.subr.mxu0 0.0
        %3991 = vmatpush2.msra.mxu0 0.0
        %3992 = vmatprep.subr.mxu0 0.0
        %3993 = vmatpush2.msra.mxu0 0.0
        %3994 = vmatprep.subr.mxu0 0.0
        %3995 = vmatpush2.msra.mxu0 0.0
        %3996 = vmatprep.subr.mxu0 0.0
        %3997 = vmatpush2.msra.mxu0 0.0
        %3998 = vmatprep.subr.mxu0 0.0
        %3999 = vmatpush2.msra.mxu0 0.0
        %4000 = vmatprep.subr.mxu0 0.0
        %4001 = vmatpush2.msra.mxu0 0.0
        %4002 = vmatprep.subr.mxu0 0.0
        %4003 = vmatpush2.msra.mxu0 0.0
        %4004 = vmatprep.subr.mxu0 0.0
        %4005 = vmatpush2.msra.mxu0 0.0
        %4006 = vmatprep.subr.mxu0 0.0
        %4007 = vmatpush2.msra.mxu0 0.0
        %4008 = vmatprep.mubr.f32.mxu0 0.0
        %4009 = vmatmul.mubr.f32.gmra.mxu0 %v3938
        %v4010 = vpop.f32.mrf.mxu0
        %v4011 = vadd.f32 0.0, %v4010
        %v4012 = vpop.f32.mrf.mxu0
        %4013 = vdwg.mxu0
        %v4014 = vadd.f32 %v1168, %v4011
        %v4015 = vld [vmem:[%s19] sm:$0xff]
        %v4016 = vld [vmem:[%s19 + $0x8] sm:$0xff]
        %vm4017 = vcmask 64512
        %v4019 = vsel %vm4017, %v4015, 0
        %v4022 = vsel %vm4017, %v4016, 0
        %4024 = vmatprep.subr.mxu0 0.0
        %4025 = vmatpush1.msra.mxu0 0.0
        %4026 = vmatprep.subr.mxu0 0.0
        %4027 = vmatpush1.msra.mxu0 0.0
        %4028 = vmatprep.subr.mxu0 0.0
        %4029 = vmatpush1.msra.mxu0 0.0
        %4030 = vmatprep.subr.mxu0 0.0
        %4031 = vmatpush1.msra.mxu0 0.0
        %4032 = vmatprep.subr.mxu0 0.0
        %4033 = vmatpush1.msra.mxu0 0.0
        %4034 = vmatprep.subr.mxu0 0.0
        %4035 = vmatpush1.msra.mxu0 0.0
        %4036 = vmatprep.subr.mxu0 0.0
        %4037 = vmatpush1.msra.mxu0 0.0
        %4038 = vmatprep.subr.mxu0 0.0
        %4039 = vmatpush1.msra.mxu0 0.0
        %4040 = vmatprep.subr.mxu0 0.0
        %4041 = vmatpush1.msra.mxu0 0.0
        %4042 = vmatprep.subr.mxu0 0.0
        %4043 = vmatpush1.msra.mxu0 0.0
        %4044 = vmatprep.subr.mxu0 0.0
        %4045 = vmatpush1.msra.mxu0 0.0
        %4046 = vmatprep.subr.mxu0 0.0
        %4047 = vmatpush1.msra.mxu0 0.0
        %4048 = vmatprep.subr.mxu0 0.0
        %4049 = vmatpush1.msra.mxu0 0.0
        %4050 = vmatprep.subr.mxu0 0.0
        %4051 = vmatpush1.msra.mxu0 0.0
        %4052 = vmatprep.subr.mxu0 0.0
        %4053 = vmatpush1.msra.mxu0 0.0
        %4054 = vmatprep.subr.mxu0 0.0
        %4055 = vmatpush1.msra.mxu0 %v4014
        %4056 = vmatprep.subr.mxu0 0.0
        %4057 = vmatpush2.msra.mxu0 0.0
        %4058 = vmatprep.subr.mxu0 0.0
        %4059 = vmatpush2.msra.mxu0 0.0
        %4060 = vmatprep.subr.mxu0 0.0
        %4061 = vmatpush2.msra.mxu0 0.0
        %4062 = vmatprep.subr.mxu0 0.0
        %4063 = vmatpush2.msra.mxu0 0.0
        %4064 = vmatprep.subr.mxu0 0.0
        %4065 = vmatpush2.msra.mxu0 0.0
        %4066 = vmatprep.subr.mxu0 0.0
        %4067 = vmatpush2.msra.mxu0 0.0
        %4068 = vmatprep.subr.mxu0 0.0
        %4069 = vmatpush2.msra.mxu0 0.0
        %4070 = vmatprep.subr.mxu0 0.0
        %4071 = vmatpush2.msra.mxu0 0.0
        %4072 = vmatprep.subr.mxu0 0.0
        %4073 = vmatpush2.msra.mxu0 0.0
        %4074 = vmatprep.subr.mxu0 0.0
        %4075 = vmatpush2.msra.mxu0 0.0
        %4076 = vmatprep.subr.mxu0 0.0
        %4077 = vmatpush2.msra.mxu0 0.0
        %4078 = vmatprep.subr.mxu0 0.0
        %4079 = vmatpush2.msra.mxu0 0.0
        %4080 = vmatprep.subr.mxu0 0.0
        %4081 = vmatpush2.msra.mxu0 0.0
        %4082 = vmatprep.subr.mxu0 0.0
        %4083 = vmatpush2.msra.mxu0 0.0
        %4084 = vmatprep.subr.mxu0 0.0
        %4085 = vmatpush2.msra.mxu0 0.0
        %4086 = vmatprep.subr.mxu0 0.0
        %4087 = vmatpush2.msra.mxu0 0.0
        %4088 = vmatprep.mubr.f32.mxu0 0.0
        %4089 = vmatmul.mubr.f32.gmra.mxu0 %v4019
        %v4090 = vpop.f32.mrf.mxu0
        %v4091 = vadd.f32 0.0, %v4090
        %v4092 = vpop.f32.mrf.mxu0
        %4093 = vmatprep.mubr.f32.mxu0 0.0
        %4094 = vmatmul.mubr.f32.gmra.mxu0 %v4022
        %v4095 = vpop.f32.mrf.mxu0
        %v4096 = vadd.f32 0.0, %v4095
        %v4097 = vpop.f32.mrf.mxu0
        %4098 = vdwg.mxu0
        %v4099 = vadd.f32 %v3933, %v4091
        %v4100 = vadd.f32 %v3934, %v4096
        %v4101 = vld [vmem:[#allocation19] sm:$0x1]
        %v4102 = vsel %vm3936, %v992, 0
        %4104 = vmatprep.subr.mxu0 0.0
        %4105 = vmatpush1.msra.mxu0 0.0
        %4106 = vmatprep.subr.mxu0 0.0
        %4107 = vmatpush1.msra.mxu0 0.0
        %4108 = vmatprep.subr.mxu0 0.0
        %4109 = vmatpush1.msra.mxu0 0.0
        %4110 = vmatprep.subr.mxu0 0.0
        %4111 = vmatpush1.msra.mxu0 0.0
        %4112 = vmatprep.subr.mxu0 0.0
        %4113 = vmatpush1.msra.mxu0 0.0
        %4114 = vmatprep.subr.mxu0 0.0
        %4115 = vmatpush1.msra.mxu0 0.0
        %4116 = vmatprep.subr.mxu0 0.0
        %4117 = vmatpush1.msra.mxu0 0.0
        %4118 = vmatprep.subr.mxu0 0.0
        %4119 = vmatpush1.msra.mxu0 0.0
        %4120 = vmatprep.subr.mxu0 0.0
        %4121 = vmatpush1.msra.mxu0 0.0
        %4122 = vmatprep.subr.mxu0 0.0
        %4123 = vmatpush1.msra.mxu0 0.0
        %4124 = vmatprep.subr.mxu0 0.0
        %4125 = vmatpush1.msra.mxu0 0.0
        %4126 = vmatprep.subr.mxu0 0.0
        %4127 = vmatpush1.msra.mxu0 0.0
        %4128 = vmatprep.subr.mxu0 0.0
        %4129 = vmatpush1.msra.mxu0 0.0
        %4130 = vmatprep.subr.mxu0 0.0
        %4131 = vmatpush1.msra.mxu0 0.0
        %4132 = vmatprep.subr.mxu0 0.0
        %4133 = vmatpush1.msra.mxu0 0.0
        %4134 = vmatprep.subr.mxu0 0.0
        %4135 = vmatpush1.msra.mxu0 %v3942
        %4136 = vmatprep.subr.mxu0 0.0
        %4137 = vmatpush2.msra.mxu0 0.0
        %4138 = vmatprep.subr.mxu0 0.0
        %4139 = vmatpush2.msra.mxu0 0.0
        %4140 = vmatprep.subr.mxu0 0.0
        %4141 = vmatpush2.msra.mxu0 0.0
        %4142 = vmatprep.subr.mxu0 0.0
        %4143 = vmatpush2.msra.mxu0 0.0
        %4144 = vmatprep.subr.mxu0 0.0
        %4145 = vmatpush2.msra.mxu0 0.0
        %4146 = vmatprep.subr.mxu0 0.0
        %4147 = vmatpush2.msra.mxu0 0.0
        %4148 = vmatprep.subr.mxu0 0.0
        %4149 = vmatpush2.msra.mxu0 0.0
        %4150 = vmatprep.subr.mxu0 0.0
        %4151 = vmatpush2.msra.mxu0 0.0
        %4152 = vmatprep.subr.mxu0 0.0
        %4153 = vmatpush2.msra.mxu0 0.0
        %4154 = vmatprep.subr.mxu0 0.0
        %4155 = vmatpush2.msra.mxu0 0.0
        %4156 = vmatprep.subr.mxu0 0.0
        %4157 = vmatpush2.msra.mxu0 0.0
        %4158 = vmatprep.subr.mxu0 0.0
        %4159 = vmatpush2.msra.mxu0 0.0
        %4160 = vmatprep.subr.mxu0 0.0
        %4161 = vmatpush2.msra.mxu0 0.0
        %4162 = vmatprep.subr.mxu0 0.0
        %4163 = vmatpush2.msra.mxu0 0.0
        %4164 = vmatprep.subr.mxu0 0.0
        %4165 = vmatpush2.msra.mxu0 0.0
        %4166 = vmatprep.subr.mxu0 0.0
        %4167 = vmatpush2.msra.mxu0 0.0
        %4168 = vmatprep.mubr.f32.mxu0 0.0
        %4169 = vmatmul.mubr.f32.gmra.mxu0 %v4102
        %v4170 = vpop.f32.mrf.mxu0
        %v4171 = vadd.f32 0.0, %v4170
        %v4172 = vpop.f32.mrf.mxu0
        %4173 = vdwg.mxu0
        %v4174 = vsel %vm3936, %v994, 0
        %4176 = vmatprep.subr.mxu0 0.0
        %4177 = vmatpush1.msra.mxu0 0.0
        %4178 = vmatprep.subr.mxu0 0.0
        %4179 = vmatpush1.msra.mxu0 0.0
        %4180 = vmatprep.subr.mxu0 0.0
        %4181 = vmatpush1.msra.mxu0 0.0
        %4182 = vmatprep.subr.mxu0 0.0
        %4183 = vmatpush1.msra.mxu0 0.0
        %4184 = vmatprep.subr.mxu0 0.0
        %4185 = vmatpush1.msra.mxu0 0.0
        %4186 = vmatprep.subr.mxu0 0.0
        %4187 = vmatpush1.msra.mxu0 0.0
        %4188 = vmatprep.subr.mxu0 0.0
        %4189 = vmatpush1.msra.mxu0 0.0
        %4190 = vmatprep.subr.mxu0 0.0
        %4191 = vmatpush1.msra.mxu0 0.0
        %4192 = vmatprep.subr.mxu0 0.0
        %4193 = vmatpush1.msra.mxu0 0.0
        %4194 = vmatprep.subr.mxu0 0.0
        %4195 = vmatpush1.msra.mxu0 0.0
        %4196 = vmatprep.subr.mxu0 0.0
        %4197 = vmatpush1.msra.mxu0 0.0
        %4198 = vmatprep.subr.mxu0 0.0
        %4199 = vmatpush1.msra.mxu0 0.0
        %4200 = vmatprep.subr.mxu0 0.0
        %4201 = vmatpush1.msra.mxu0 0.0
        %4202 = vmatprep.subr.mxu0 0.0
        %4203 = vmatpush1.msra.mxu0 0.0
        %4204 = vmatprep.subr.mxu0 0.0
        %4205 = vmatpush1.msra.mxu0 0.0
        %4206 = vmatprep.subr.mxu0 0.0
        %4207 = vmatpush1.msra.mxu0 %v3942
        %4208 = vmatprep.subr.mxu0 0.0
        %4209 = vmatpush2.msra.mxu0 0.0
        %4210 = vmatprep.subr.mxu0 0.0
        %4211 = vmatpush2.msra.mxu0 0.0
        %4212 = vmatprep.subr.mxu0 0.0
        %4213 = vmatpush2.msra.mxu0 0.0
        %4214 = vmatprep.subr.mxu0 0.0
        %4215 = vmatpush2.msra.mxu0 0.0
        %4216 = vmatprep.subr.mxu0 0.0
        %4217 = vmatpush2.msra.mxu0 0.0
        %4218 = vmatprep.subr.mxu0 0.0
        %4219 = vmatpush2.msra.mxu0 0.0
        %4220 = vmatprep.subr.mxu0 0.0
        %4221 = vmatpush2.msra.mxu0 0.0
        %4222 = vmatprep.subr.mxu0 0.0
        %4223 = vmatpush2.msra.mxu0 0.0
        %4224 = vmatprep.subr.mxu0 0.0
        %4225 = vmatpush2.msra.mxu0 0.0
        %4226 = vmatprep.subr.mxu0 0.0
        %4227 = vmatpush2.msra.mxu0 0.0
        %4228 = vmatprep.subr.mxu0 0.0
        %4229 = vmatpush2.msra.mxu0 0.0
        %4230 = vmatprep.subr.mxu0 0.0
        %4231 = vmatpush2.msra.mxu0 0.0
        %4232 = vmatprep.subr.mxu0 0.0
        %4233 = vmatpush2.msra.mxu0 0.0
        %4234 = vmatprep.subr.mxu0 0.0
        %4235 = vmatpush2.msra.mxu0 0.0
        %4236 = vmatprep.subr.mxu0 0.0
        %4237 = vmatpush2.msra.mxu0 0.0
        %4238 = vmatprep.subr.mxu0 0.0
        %4239 = vmatpush2.msra.mxu0 0.0
        %4240 = vmatprep.mubr.f32.mxu0 0.0
        %4241 = vmatmul.mubr.f32.gmra.mxu0 %v4174
        %v4242 = vpop.f32.mrf.mxu0
        %v4243 = vadd.f32 0.0, %v4242
        %v4244 = vpop.f32.mrf.mxu0
        %4245 = vdwg.mxu0
        %v4246 = vld [vmem:[#allocation17] sm:$0xff]
        %v4247 = vld [vmem:[#allocation17 + $0x8] sm:$0xff]
        %v4248 = vld [vmem:[#allocation17 + $0x10] sm:$0xff]
        %v4249 = vld [vmem:[#allocation17 + $0x18] sm:$0xff]
        %s4250 = scalar_lea.vmem [#allocation17], 32
        %v4251 = vld [vmem:[%s4250] sm:$0xff]
        %v4252 = vld [vmem:[%s4250 + $0x8] sm:$0xff]
        %v4253 = vld [vmem:[%s4250 + $0x10] sm:$0xff]
        %v4254 = vld [vmem:[%s4250 + $0x18] sm:$0xff]
        %v4255 = vsel %vm1011, %v1082, 0
        %4257 = vmatprep.subr.mxu0 0.0
        %4258 = vmatpush1.msra.mxu0 0.0
        %4259 = vmatprep.subr.mxu0 0.0
        %4260 = vmatpush1.msra.mxu0 0.0
        %4261 = vmatprep.subr.mxu0 0.0
        %4262 = vmatpush1.msra.mxu0 0.0
        %4263 = vmatprep.subr.mxu0 0.0
        %4264 = vmatpush1.msra.mxu0 0.0
        %4265 = vmatprep.subr.mxu0 0.0
        %4266 = vmatpush1.msra.mxu0 0.0
        %4267 = vmatprep.subr.mxu0 0.0
        %4268 = vmatpush1.msra.mxu0 0.0
        %4269 = vmatprep.subr.mxu0 0.0
        %4270 = vmatpush1.msra.mxu0 0.0
        %4271 = vmatprep.subr.mxu0 0.0
        %4272 = vmatpush1.msra.mxu0 0.0
        %4273 = vmatprep.subr.mxu0 0.0
        %4274 = vmatpush1.msra.mxu0 0.0
        %4275 = vmatprep.subr.mxu0 0.0
        %4276 = vmatpush1.msra.mxu0 0.0
        %4277 = vmatprep.subr.mxu0 0.0
        %4278 = vmatpush1.msra.mxu0 0.0
        %4279 = vmatprep.subr.mxu0 0.0
        %4280 = vmatpush1.msra.mxu0 0.0
        %4281 = vmatprep.subr.mxu0 0.0
        %4282 = vmatpush1.msra.mxu0 %v4254
        %4283 = vmatprep.subr.mxu0 0.0
        %4284 = vmatpush1.msra.mxu0 %v4253
        %4285 = vmatprep.subr.mxu0 0.0
        %4286 = vmatpush1.msra.mxu0 %v4252
        %4287 = vmatprep.subr.mxu0 0.0
        %4288 = vmatpush1.msra.mxu0 %v4251
        %4289 = vmatprep.subr.mxu0 0.0
        %4290 = vmatpush2.msra.mxu0 0.0
        %4291 = vmatprep.subr.mxu0 0.0
        %4292 = vmatpush2.msra.mxu0 0.0
        %4293 = vmatprep.subr.mxu0 0.0
        %4294 = vmatpush2.msra.mxu0 0.0
        %4295 = vmatprep.subr.mxu0 0.0
        %4296 = vmatpush2.msra.mxu0 0.0
        %4297 = vmatprep.subr.mxu0 0.0
        %4298 = vmatpush2.msra.mxu0 0.0
        %4299 = vmatprep.subr.mxu0 0.0
        %4300 = vmatpush2.msra.mxu0 0.0
        %4301 = vmatprep.subr.mxu0 0.0
        %4302 = vmatpush2.msra.mxu0 0.0
        %4303 = vmatprep.subr.mxu0 0.0
        %4304 = vmatpush2.msra.mxu0 0.0
        %4305 = vmatprep.subr.mxu0 0.0
        %4306 = vmatpush2.msra.mxu0 0.0
        %4307 = vmatprep.subr.mxu0 0.0
        %4308 = vmatpush2.msra.mxu0 0.0
        %4309 = vmatprep.subr.mxu0 0.0
        %4310 = vmatpush2.msra.mxu0 0.0
        %4311 = vmatprep.subr.mxu0 0.0
        %4312 = vmatpush2.msra.mxu0 0.0
        %4313 = vmatprep.subr.mxu0 0.0
        %4314 = vmatpush2.msra.mxu0 0.0
        %4315 = vmatprep.subr.mxu0 0.0
        %4316 = vmatpush2.msra.mxu0 0.0
        %4317 = vmatprep.subr.mxu0 0.0
        %4318 = vmatpush2.msra.mxu0 0.0
        %4319 = vmatprep.subr.mxu0 0.0
        %4320 = vmatpush2.msra.mxu0 0.0
        %4321 = vmatprep.mubr.f32.mxu0 0.0
        %4322 = vmatmul.mubr.f32.gmra.mxu0 %v4255
        %v4323 = vpop.f32.mrf.mxu0
        %v4324 = vadd.f32 0.0, %v4323
        %v4325 = vpop.f32.mrf.mxu0
        %4326 = vdwg.mxu0
        %v4328 = vsel %vm1011, %v4171, 0
        %4330 = vmatprep.subr.mxu0 0.0
        %4331 = vmatpush1.msra.mxu0 0.0
        %4332 = vmatprep.subr.mxu0 0.0
        %4333 = vmatpush1.msra.mxu0 0.0
        %4334 = vmatprep.subr.mxu0 0.0
        %4335 = vmatpush1.msra.mxu0 0.0
        %4336 = vmatprep.subr.mxu0 0.0
        %4337 = vmatpush1.msra.mxu0 0.0
        %4338 = vmatprep.subr.mxu0 0.0
        %4339 = vmatpush1.msra.mxu0 0.0
        %4340 = vmatprep.subr.mxu0 0.0
        %4341 = vmatpush1.msra.mxu0 0.0
        %4342 = vmatprep.subr.mxu0 0.0
        %4343 = vmatpush1.msra.mxu0 0.0
        %4344 = vmatprep.subr.mxu0 0.0
        %4345 = vmatpush1.msra.mxu0 0.0
        %4346 = vmatprep.subr.mxu0 0.0
        %4347 = vmatpush1.msra.mxu0 0.0
        %4348 = vmatprep.subr.mxu0 0.0
        %4349 = vmatpush1.msra.mxu0 0.0
        %4350 = vmatprep.subr.mxu0 0.0
        %4351 = vmatpush1.msra.mxu0 0.0
        %4352 = vmatprep.subr.mxu0 0.0
        %4353 = vmatpush1.msra.mxu0 0.0
        %4354 = vmatprep.subr.mxu0 0.0
        %4355 = vmatpush1.msra.mxu0 %v4249
        %4356 = vmatprep.subr.mxu0 0.0
        %4357 = vmatpush1.msra.mxu0 %v4248
        %4358 = vmatprep.subr.mxu0 0.0
        %4359 = vmatpush1.msra.mxu0 %v4247
        %4360 = vmatprep.subr.mxu0 0.0
        %4361 = vmatpush1.msra.mxu0 %v4246
        %4362 = vmatprep.subr.mxu0 0.0
        %4363 = vmatpush2.msra.mxu0 0.0
        %4364 = vmatprep.subr.mxu0 0.0
        %4365 = vmatpush2.msra.mxu0 0.0
        %4366 = vmatprep.subr.mxu0 0.0
        %4367 = vmatpush2.msra.mxu0 0.0
        %4368 = vmatprep.subr.mxu0 0.0
        %4369 = vmatpush2.msra.mxu0 0.0
        %4370 = vmatprep.subr.mxu0 0.0
        %4371 = vmatpush2.msra.mxu0 0.0
        %4372 = vmatprep.subr.mxu0 0.0
        %4373 = vmatpush2.msra.mxu0 0.0
        %4374 = vmatprep.subr.mxu0 0.0
        %4375 = vmatpush2.msra.mxu0 0.0
        %4376 = vmatprep.subr.mxu0 0.0
        %4377 = vmatpush2.msra.mxu0 0.0
        %4378 = vmatprep.subr.mxu0 0.0
        %4379 = vmatpush2.msra.mxu0 0.0
        %4380 = vmatprep.subr.mxu0 0.0
        %4381 = vmatpush2.msra.mxu0 0.0
        %4382 = vmatprep.subr.mxu0 0.0
        %4383 = vmatpush2.msra.mxu0 0.0
        %4384 = vmatprep.subr.mxu0 0.0
        %4385 = vmatpush2.msra.mxu0 0.0
        %4386 = vmatprep.subr.mxu0 0.0
        %4387 = vmatpush2.msra.mxu0 0.0
        %4388 = vmatprep.subr.mxu0 0.0
        %4389 = vmatpush2.msra.mxu0 0.0
        %4390 = vmatprep.subr.mxu0 0.0
        %4391 = vmatpush2.msra.mxu0 0.0
        %4392 = vmatprep.subr.mxu0 0.0
        %4393 = vmatpush2.msra.mxu0 0.0
        %4394 = vmatprep.mubr.f32.mxu0 0.0
        %4395 = vmatmul.mubr.f32.gmra.mxu0 %v4328
        %v4396 = vpop.f32.mrf.mxu0
        %v4397 = vadd.f32 %v4324, %v4396
        %v4398 = vpop.f32.mrf.mxu0
        %4399 = vdwg.mxu0
        %s4400 = scalar_lea.vmem [#allocation17], 64
        %v4401 = vld [vmem:[%s4400] sm:$0xff]
        %v4402 = vld [vmem:[%s4400 + $0x8] sm:$0xff]
        %v4403 = vld [vmem:[%s4400 + $0x10] sm:$0xff]
        %v4404 = vld [vmem:[%s4400 + $0x18] sm:$0xff]
        %v4406 = vsel %vm1011, %v4243, 0
        %4408 = vmatprep.subr.mxu0 0.0
        %4409 = vmatpush1.msra.mxu0 0.0
        %4410 = vmatprep.subr.mxu0 0.0
        %4411 = vmatpush1.msra.mxu0 0.0
        %4412 = vmatprep.subr.mxu0 0.0
        %4413 = vmatpush1.msra.mxu0 0.0
        %4414 = vmatprep.subr.mxu0 0.0
        %4415 = vmatpush1.msra.mxu0 0.0
        %4416 = vmatprep.subr.mxu0 0.0
        %4417 = vmatpush1.msra.mxu0 0.0
        %4418 = vmatprep.subr.mxu0 0.0
        %4419 = vmatpush1.msra.mxu0 0.0
        %4420 = vmatprep.subr.mxu0 0.0
        %4421 = vmatpush1.msra.mxu0 0.0
        %4422 = vmatprep.subr.mxu0 0.0
        %4423 = vmatpush1.msra.mxu0 0.0
        %4424 = vmatprep.subr.mxu0 0.0
        %4425 = vmatpush1.msra.mxu0 0.0
        %4426 = vmatprep.subr.mxu0 0.0
        %4427 = vmatpush1.msra.mxu0 0.0
        %4428 = vmatprep.subr.mxu0 0.0
        %4429 = vmatpush1.msra.mxu0 0.0
        %4430 = vmatprep.subr.mxu0 0.0
        %4431 = vmatpush1.msra.mxu0 0.0
        %4432 = vmatprep.subr.mxu0 0.0
        %4433 = vmatpush1.msra.mxu0 %v4404
        %4434 = vmatprep.subr.mxu0 0.0
        %4435 = vmatpush1.msra.mxu0 %v4403
        %4436 = vmatprep.subr.mxu0 0.0
        %4437 = vmatpush1.msra.mxu0 %v4402
        %4438 = vmatprep.subr.mxu0 0.0
        %4439 = vmatpush1.msra.mxu0 %v4401
        %4440 = vmatprep.subr.mxu0 0.0
        %4441 = vmatpush2.msra.mxu0 0.0
        %4442 = vmatprep.subr.mxu0 0.0
        %4443 = vmatpush2.msra.mxu0 0.0
        %4444 = vmatprep.subr.mxu0 0.0
        %4445 = vmatpush2.msra.mxu0 0.0
        %4446 = vmatprep.subr.mxu0 0.0
        %4447 = vmatpush2.msra.mxu0 0.0
        %4448 = vmatprep.subr.mxu0 0.0
        %4449 = vmatpush2.msra.mxu0 0.0
        %4450 = vmatprep.subr.mxu0 0.0
        %4451 = vmatpush2.msra.mxu0 0.0
        %4452 = vmatprep.subr.mxu0 0.0
        %4453 = vmatpush2.msra.mxu0 0.0
        %4454 = vmatprep.subr.mxu0 0.0
        %4455 = vmatpush2.msra.mxu0 0.0
        %4456 = vmatprep.subr.mxu0 0.0
        %4457 = vmatpush2.msra.mxu0 0.0
        %4458 = vmatprep.subr.mxu0 0.0
        %4459 = vmatpush2.msra.mxu0 0.0
        %4460 = vmatprep.subr.mxu0 0.0
        %4461 = vmatpush2.msra.mxu0 0.0
        %4462 = vmatprep.subr.mxu0 0.0
        %4463 = vmatpush2.msra.mxu0 0.0
        %4464 = vmatprep.subr.mxu0 0.0
        %4465 = vmatpush2.msra.mxu0 0.0
        %4466 = vmatprep.subr.mxu0 0.0
        %4467 = vmatpush2.msra.mxu0 0.0
        %4468 = vmatprep.subr.mxu0 0.0
        %4469 = vmatpush2.msra.mxu0 0.0
        %4470 = vmatprep.subr.mxu0 0.0
        %4471 = vmatpush2.msra.mxu0 0.0
        %4472 = vmatprep.mubr.f32.mxu0 0.0
        %4473 = vmatmul.mubr.f32.gmra.mxu0 %v4406
        %v4474 = vpop.f32.mrf.mxu0
        %v4475 = vadd.f32 0.0, %v4474
        %v4476 = vpop.f32.mrf.mxu0
        %4477 = vdwg.mxu0
        %v4478 = vadd.f32 %v4397, %v4475
        %v4480 = vlaneseq
        %v4481 = vshrl.u32 %v4480, 7
        %v4482 = vsub.s32 0, %v4481
        %v4483 = vrot.slane %v4101, %v4482
        %v4485 = vadd.f32 %v4478, %v4483
        %v4486 = vld [vmem:[%s20] sm:$0xff]
        %v4487 = vld [vmem:[%s20 + $0x8] sm:$0xff]
        %v4489 = vsel %vm3936, %v4486, 0
        %v4492 = vsel %vm3936, %v4487, 0
        %v4495 = vsel %vm3940, %v4485, 0
        %4497 = vmatprep.subr.mxu0 0.0
        %4498 = vmatpush1.msra.mxu0 0.0
        %4499 = vmatprep.subr.mxu0 0.0
        %4500 = vmatpush1.msra.mxu0 0.0
        %4501 = vmatprep.subr.mxu0 0.0
        %4502 = vmatpush1.msra.mxu0 0.0
        %4503 = vmatprep.subr.mxu0 0.0
        %4504 = vmatpush1.msra.mxu0 0.0
        %4505 = vmatprep.subr.mxu0 0.0
        %4506 = vmatpush1.msra.mxu0 0.0
        %4507 = vmatprep.subr.mxu0 0.0
        %4508 = vmatpush1.msra.mxu0 0.0
        %4509 = vmatprep.subr.mxu0 0.0
        %4510 = vmatpush1.msra.mxu0 0.0
        %4511 = vmatprep.subr.mxu0 0.0
        %4512 = vmatpush1.msra.mxu0 0.0
        %4513 = vmatprep.subr.mxu0 0.0
        %4514 = vmatpush1.msra.mxu0 0.0
        %4515 = vmatprep.subr.mxu0 0.0
        %4516 = vmatpush1.msra.mxu0 0.0
        %4517 = vmatprep.subr.mxu0 0.0
        %4518 = vmatpush1.msra.mxu0 0.0
        %4519 = vmatprep.subr.mxu0 0.0
        %4520 = vmatpush1.msra.mxu0 0.0
        %4521 = vmatprep.subr.mxu0 0.0
        %4522 = vmatpush1.msra.mxu0 0.0
        %4523 = vmatprep.subr.mxu0 0.0
        %4524 = vmatpush1.msra.mxu0 0.0
        %4525 = vmatprep.subr.mxu0 0.0
        %4526 = vmatpush1.msra.mxu0 0.0
        %4527 = vmatprep.subr.mxu0 0.0
        %4528 = vmatpush1.msra.mxu0 %v4495
        %4529 = vmatprep.subr.mxu0 0.0
        %4530 = vmatpush2.msra.mxu0 0.0
        %4531 = vmatprep.subr.mxu0 0.0
        %4532 = vmatpush2.msra.mxu0 0.0
        %4533 = vmatprep.subr.mxu0 0.0
        %4534 = vmatpush2.msra.mxu0 0.0
        %4535 = vmatprep.subr.mxu0 0.0
        %4536 = vmatpush2.msra.mxu0 0.0
        %4537 = vmatprep.subr.mxu0 0.0
        %4538 = vmatpush2.msra.mxu0 0.0
        %4539 = vmatprep.subr.mxu0 0.0
        %4540 = vmatpush2.msra.mxu0 0.0
        %4541 = vmatprep.subr.mxu0 0.0
        %4542 = vmatpush2.msra.mxu0 0.0
        %4543 = vmatprep.subr.mxu0 0.0
        %4544 = vmatpush2.msra.mxu0 0.0
        %4545 = vmatprep.subr.mxu0 0.0
        %4546 = vmatpush2.msra.mxu0 0.0
        %4547 = vmatprep.subr.mxu0 0.0
        %4548 = vmatpush2.msra.mxu0 0.0
        %4549 = vmatprep.subr.mxu0 0.0
        %4550 = vmatpush2.msra.mxu0 0.0
        %4551 = vmatprep.subr.mxu0 0.0
        %4552 = vmatpush2.msra.mxu0 0.0
        %4553 = vmatprep.subr.mxu0 0.0
        %4554 = vmatpush2.msra.mxu0 0.0
        %4555 = vmatprep.subr.mxu0 0.0
        %4556 = vmatpush2.msra.mxu0 0.0
        %4557 = vmatprep.subr.mxu0 0.0
        %4558 = vmatpush2.msra.mxu0 0.0
        %4559 = vmatprep.subr.mxu0 0.0
        %4560 = vmatpush2.msra.mxu0 0.0
        %4561 = vmatprep.mubr.f32.mxu0 0.0
        %4562 = vmatmul.mubr.f32.gmra.mxu0 %v4489
        %v4563 = vpop.f32.mrf.mxu0
        %v4564 = vadd.f32 0.0, %v4563
        %v4565 = vpop.f32.mrf.mxu0
        %4566 = vmatprep.mubr.f32.mxu0 0.0
        %4567 = vmatmul.mubr.f32.gmra.mxu0 %v4492
        %v4568 = vpop.f32.mrf.mxu0
        %v4569 = vadd.f32 0.0, %v4568
        %v4570 = vpop.f32.mrf.mxu0
        %4571 = vdwg.mxu0
        %s4572 = scalar_lea.vmem [#allocation19], 1
        %v4573 = vld [vmem:[%s4572] sm:$0x1]
        %v4574 = vsel %vm4017, %v992, 0
        %4576 = vmatprep.subr.mxu0 0.0
        %4577 = vmatpush1.msra.mxu0 0.0
        %4578 = vmatprep.subr.mxu0 0.0
        %4579 = vmatpush1.msra.mxu0 0.0
        %4580 = vmatprep.subr.mxu0 0.0
        %4581 = vmatpush1.msra.mxu0 0.0
        %4582 = vmatprep.subr.mxu0 0.0
        %4583 = vmatpush1.msra.mxu0 0.0
        %4584 = vmatprep.subr.mxu0 0.0
        %4585 = vmatpush1.msra.mxu0 0.0
        %4586 = vmatprep.subr.mxu0 0.0
        %4587 = vmatpush1.msra.mxu0 0.0
        %4588 = vmatprep.subr.mxu0 0.0
        %4589 = vmatpush1.msra.mxu0 0.0
        %4590 = vmatprep.subr.mxu0 0.0
        %4591 = vmatpush1.msra.mxu0 0.0
        %4592 = vmatprep.subr.mxu0 0.0
        %4593 = vmatpush1.msra.mxu0 0.0
        %4594 = vmatprep.subr.mxu0 0.0
        %4595 = vmatpush1.msra.mxu0 0.0
        %4596 = vmatprep.subr.mxu0 0.0
        %4597 = vmatpush1.msra.mxu0 0.0
        %4598 = vmatprep.subr.mxu0 0.0
        %4599 = vmatpush1.msra.mxu0 0.0
        %4600 = vmatprep.subr.mxu0 0.0
        %4601 = vmatpush1.msra.mxu0 0.0
        %4602 = vmatprep.subr.mxu0 0.0
        %4603 = vmatpush1.msra.mxu0 0.0
        %4604 = vmatprep.subr.mxu0 0.0
        %4605 = vmatpush1.msra.mxu0 0.0
        %4606 = vmatprep.subr.mxu0 0.0
        %4607 = vmatpush1.msra.mxu0 %v4014
        %4608 = vmatprep.subr.mxu0 0.0
        %4609 = vmatpush2.msra.mxu0 0.0
        %4610 = vmatprep.subr.mxu0 0.0
        %4611 = vmatpush2.msra.mxu0 0.0
        %4612 = vmatprep.subr.mxu0 0.0
        %4613 = vmatpush2.msra.mxu0 0.0
        %4614 = vmatprep.subr.mxu0 0.0
        %4615 = vmatpush2.msra.mxu0 0.0
        %4616 = vmatprep.subr.mxu0 0.0
        %4617 = vmatpush2.msra.mxu0 0.0
        %4618 = vmatprep.subr.mxu0 0.0
        %4619 = vmatpush2.msra.mxu0 0.0
        %4620 = vmatprep.subr.mxu0 0.0
        %4621 = vmatpush2.msra.mxu0 0.0
        %4622 = vmatprep.subr.mxu0 0.0
        %4623 = vmatpush2.msra.mxu0 0.0
        %4624 = vmatprep.subr.mxu0 0.0
        %4625 = vmatpush2.msra.mxu0 0.0
        %4626 = vmatprep.subr.mxu0 0.0
        %4627 = vmatpush2.msra.mxu0 0.0
        %4628 = vmatprep.subr.mxu0 0.0
        %4629 = vmatpush2.msra.mxu0 0.0
        %4630 = vmatprep.subr.mxu0 0.0
        %4631 = vmatpush2.msra.mxu0 0.0
        %4632 = vmatprep.subr.mxu0 0.0
        %4633 = vmatpush2.msra.mxu0 0.0
        %4634 = vmatprep.subr.mxu0 0.0
        %4635 = vmatpush2.msra.mxu0 0.0
        %4636 = vmatprep.subr.mxu0 0.0
        %4637 = vmatpush2.msra.mxu0 0.0
        %4638 = vmatprep.subr.mxu0 0.0
        %4639 = vmatpush2.msra.mxu0 0.0
        %4640 = vmatprep.mubr.f32.mxu0 0.0
        %4641 = vmatmul.mubr.f32.gmra.mxu0 %v4574
        %v4642 = vpop.f32.mrf.mxu0
        %v4643 = vadd.f32 0.0, %v4642
        %v4644 = vpop.f32.mrf.mxu0
        %4645 = vdwg.mxu0
        %v4646 = vsel %vm4017, %v994, 0
        %4648 = vmatprep.subr.mxu0 0.0
        %4649 = vmatpush1.msra.mxu0 0.0
        %4650 = vmatprep.subr.mxu0 0.0
        %4651 = vmatpush1.msra.mxu0 0.0
        %4652 = vmatprep.subr.mxu0 0.0
        %4653 = vmatpush1.msra.mxu0 0.0
        %4654 = vmatprep.subr.mxu0 0.0
        %4655 = vmatpush1.msra.mxu0 0.0
        %4656 = vmatprep.subr.mxu0 0.0
        %4657 = vmatpush1.msra.mxu0 0.0
        %4658 = vmatprep.subr.mxu0 0.0
        %4659 = vmatpush1.msra.mxu0 0.0
        %4660 = vmatprep.subr.mxu0 0.0
        %4661 = vmatpush1.msra.mxu0 0.0
        %4662 = vmatprep.subr.mxu0 0.0
        %4663 = vmatpush1.msra.mxu0 0.0
        %4664 = vmatprep.subr.mxu0 0.0
        %4665 = vmatpush1.msra.mxu0 0.0
        %4666 = vmatprep.subr.mxu0 0.0
        %4667 = vmatpush1.msra.mxu0 0.0
        %4668 = vmatprep.subr.mxu0 0.0
        %4669 = vmatpush1.msra.mxu0 0.0
        %4670 = vmatprep.subr.mxu0 0.0
        %4671 = vmatpush1.msra.mxu0 0.0
        %4672 = vmatprep.subr.mxu0 0.0
        %4673 = vmatpush1.msra.mxu0 0.0
        %4674 = vmatprep.subr.mxu0 0.0
        %4675 = vmatpush1.msra.mxu0 0.0
        %4676 = vmatprep.subr.mxu0 0.0
        %4677 = vmatpush1.msra.mxu0 0.0
        %4678 = vmatprep.subr.mxu0 0.0
        %4679 = vmatpush1.msra.mxu0 %v4014
        %4680 = vmatprep.subr.mxu0 0.0
        %4681 = vmatpush2.msra.mxu0 0.0
        %4682 = vmatprep.subr.mxu0 0.0
        %4683 = vmatpush2.msra.mxu0 0.0
        %4684 = vmatprep.subr.mxu0 0.0
        %4685 = vmatpush2.msra.mxu0 0.0
        %4686 = vmatprep.subr.mxu0 0.0
        %4687 = vmatpush2.msra.mxu0 0.0
        %4688 = vmatprep.subr.mxu0 0.0
        %4689 = vmatpush2.msra.mxu0 0.0
        %4690 = vmatprep.subr.mxu0 0.0
        %4691 = vmatpush2.msra.mxu0 0.0
        %4692 = vmatprep.subr.mxu0 0.0
        %4693 = vmatpush2.msra.mxu0 0.0
        %4694 = vmatprep.subr.mxu0 0.0
        %4695 = vmatpush2.msra.mxu0 0.0
        %4696 = vmatprep.subr.mxu0 0.0
        %4697 = vmatpush2.msra.mxu0 0.0
        %4698 = vmatprep.subr.mxu0 0.0
        %4699 = vmatpush2.msra.mxu0 0.0
        %4700 = vmatprep.subr.mxu0 0.0
        %4701 = vmatpush2.msra.mxu0 0.0
        %4702 = vmatprep.subr.mxu0 0.0
        %4703 = vmatpush2.msra.mxu0 0.0
        %4704 = vmatprep.subr.mxu0 0.0
        %4705 = vmatpush2.msra.mxu0 0.0
        %4706 = vmatprep.subr.mxu0 0.0
        %4707 = vmatpush2.msra.mxu0 0.0
        %4708 = vmatprep.subr.mxu0 0.0
        %4709 = vmatpush2.msra.mxu0 0.0
        %4710 = vmatprep.subr.mxu0 0.0
        %4711 = vmatpush2.msra.mxu0 0.0
        %4712 = vmatprep.mubr.f32.mxu0 0.0
        %4713 = vmatmul.mubr.f32.gmra.mxu0 %v4646
        %v4714 = vpop.f32.mrf.mxu0
        %v4715 = vadd.f32 0.0, %v4714
        %v4716 = vpop.f32.mrf.mxu0
        %4717 = vdwg.mxu0
        %s4718 = scalar_lea.vmem [#allocation17], 96
        %v4719 = vld [vmem:[%s4718] sm:$0xff]
        %v4720 = vld [vmem:[%s4718 + $0x8] sm:$0xff]
        %v4721 = vld [vmem:[%s4718 + $0x10] sm:$0xff]
        %v4722 = vld [vmem:[%s4718 + $0x18] sm:$0xff]
        %s4723 = scalar_lea.vmem [#allocation17], 128
        %v4724 = vld [vmem:[%s4723] sm:$0xff]
        %v4725 = vld [vmem:[%s4723 + $0x8] sm:$0xff]
        %v4726 = vld [vmem:[%s4723 + $0x10] sm:$0xff]
        %v4727 = vld [vmem:[%s4723 + $0x18] sm:$0xff]
        %v4729 = vsel %vm1011, %v4014, 0
        %4731 = vmatprep.subr.mxu0 0.0
        %4732 = vmatpush1.msra.mxu0 0.0
        %4733 = vmatprep.subr.mxu0 0.0
        %4734 = vmatpush1.msra.mxu0 0.0
        %4735 = vmatprep.subr.mxu0 0.0
        %4736 = vmatpush1.msra.mxu0 0.0
        %4737 = vmatprep.subr.mxu0 0.0
        %4738 = vmatpush1.msra.mxu0 0.0
        %4739 = vmatprep.subr.mxu0 0.0
        %4740 = vmatpush1.msra.mxu0 0.0
        %4741 = vmatprep.subr.mxu0 0.0
        %4742 = vmatpush1.msra.mxu0 0.0
        %4743 = vmatprep.subr.mxu0 0.0
        %4744 = vmatpush1.msra.mxu0 0.0
        %4745 = vmatprep.subr.mxu0 0.0
        %4746 = vmatpush1.msra.mxu0 0.0
        %4747 = vmatprep.subr.mxu0 0.0
        %4748 = vmatpush1.msra.mxu0 0.0
        %4749 = vmatprep.subr.mxu0 0.0
        %4750 = vmatpush1.msra.mxu0 0.0
        %4751 = vmatprep.subr.mxu0 0.0
        %4752 = vmatpush1.msra.mxu0 0.0
        %4753 = vmatprep.subr.mxu0 0.0
        %4754 = vmatpush1.msra.mxu0 0.0
        %4755 = vmatprep.subr.mxu0 0.0
        %4756 = vmatpush1.msra.mxu0 %v4727
        %4757 = vmatprep.subr.mxu0 0.0
        %4758 = vmatpush1.msra.mxu0 %v4726
        %4759 = vmatprep.subr.mxu0 0.0
        %4760 = vmatpush1.msra.mxu0 %v4725
        %4761 = vmatprep.subr.mxu0 0.0
        %4762 = vmatpush1.msra.mxu0 %v4724
        %4763 = vmatprep.subr.mxu0 0.0
        %4764 = vmatpush2.msra.mxu0 0.0
        %4765 = vmatprep.subr.mxu0 0.0
        %4766 = vmatpush2.msra.mxu0 0.0
        %4767 = vmatprep.subr.mxu0 0.0
        %4768 = vmatpush2.msra.mxu0 0.0
        %4769 = vmatprep.subr.mxu0 0.0
        %4770 = vmatpush2.msra.mxu0 0.0
        %4771 = vmatprep.subr.mxu0 0.0
        %4772 = vmatpush2.msra.mxu0 0.0
        %4773 = vmatprep.subr.mxu0 0.0
        %4774 = vmatpush2.msra.mxu0 0.0
        %4775 = vmatprep.subr.mxu0 0.0
        %4776 = vmatpush2.msra.mxu0 0.0
        %4777 = vmatprep.subr.mxu0 0.0
        %4778 = vmatpush2.msra.mxu0 0.0
        %4779 = vmatprep.subr.mxu0 0.0
        %4780 = vmatpush2.msra.mxu0 0.0
        %4781 = vmatprep.subr.mxu0 0.0
        %4782 = vmatpush2.msra.mxu0 0.0
        %4783 = vmatprep.subr.mxu0 0.0
        %4784 = vmatpush2.msra.mxu0 0.0
        %4785 = vmatprep.subr.mxu0 0.0
        %4786 = vmatpush2.msra.mxu0 0.0
        %4787 = vmatprep.subr.mxu0 0.0
        %4788 = vmatpush2.msra.mxu0 0.0
        %4789 = vmatprep.subr.mxu0 0.0
        %4790 = vmatpush2.msra.mxu0 0.0
        %4791 = vmatprep.subr.mxu0 0.0
        %4792 = vmatpush2.msra.mxu0 0.0
        %4793 = vmatprep.subr.mxu0 0.0
        %4794 = vmatpush2.msra.mxu0 0.0
        %4795 = vmatprep.mubr.f32.mxu0 0.0
        %4796 = vmatmul.mubr.f32.gmra.mxu0 %v4729
        %v4797 = vpop.f32.mrf.mxu0
        %v4798 = vadd.f32 0.0, %v4797
        %v4799 = vpop.f32.mrf.mxu0
        %4800 = vdwg.mxu0
        %v4802 = vsel %vm1011, %v4643, 0
        %4804 = vmatprep.subr.mxu0 0.0
        %4805 = vmatpush1.msra.mxu0 0.0
        %4806 = vmatprep.subr.mxu0 0.0
        %4807 = vmatpush1.msra.mxu0 0.0
        %4808 = vmatprep.subr.mxu0 0.0
        %4809 = vmatpush1.msra.mxu0 0.0
        %4810 = vmatprep.subr.mxu0 0.0
        %4811 = vmatpush1.msra.mxu0 0.0
        %4812 = vmatprep.subr.mxu0 0.0
        %4813 = vmatpush1.msra.mxu0 0.0
        %4814 = vmatprep.subr.mxu0 0.0
        %4815 = vmatpush1.msra.mxu0 0.0
        %4816 = vmatprep.subr.mxu0 0.0
        %4817 = vmatpush1.msra.mxu0 0.0
        %4818 = vmatprep.subr.mxu0 0.0
        %4819 = vmatpush1.msra.mxu0 0.0
        %4820 = vmatprep.subr.mxu0 0.0
        %4821 = vmatpush1.msra.mxu0 0.0
        %4822 = vmatprep.subr.mxu0 0.0
        %4823 = vmatpush1.msra.mxu0 0.0
        %4824 = vmatprep.subr.mxu0 0.0
        %4825 = vmatpush1.msra.mxu0 0.0
        %4826 = vmatprep.subr.mxu0 0.0
        %4827 = vmatpush1.msra.mxu0 0.0
        %4828 = vmatprep.subr.mxu0 0.0
        %4829 = vmatpush1.msra.mxu0 %v4722
        %4830 = vmatprep.subr.mxu0 0.0
        %4831 = vmatpush1.msra.mxu0 %v4721
        %4832 = vmatprep.subr.mxu0 0.0
        %4833 = vmatpush1.msra.mxu0 %v4720
        %4834 = vmatprep.subr.mxu0 0.0
        %4835 = vmatpush1.msra.mxu0 %v4719
        %4836 = vmatprep.subr.mxu0 0.0
        %4837 = vmatpush2.msra.mxu0 0.0
        %4838 = vmatprep.subr.mxu0 0.0
        %4839 = vmatpush2.msra.mxu0 0.0
        %4840 = vmatprep.subr.mxu0 0.0
        %4841 = vmatpush2.msra.mxu0 0.0
        %4842 = vmatprep.subr.mxu0 0.0
        %4843 = vmatpush2.msra.mxu0 0.0
        %4844 = vmatprep.subr.mxu0 0.0
        %4845 = vmatpush2.msra.mxu0 0.0
        %4846 = vmatprep.subr.mxu0 0.0
        %4847 = vmatpush2.msra.mxu0 0.0
        %4848 = vmatprep.subr.mxu0 0.0
        %4849 = vmatpush2.msra.mxu0 0.0
        %4850 = vmatprep.subr.mxu0 0.0
        %4851 = vmatpush2.msra.mxu0 0.0
        %4852 = vmatprep.subr.mxu0 0.0
        %4853 = vmatpush2.msra.mxu0 0.0
        %4854 = vmatprep.subr.mxu0 0.0
        %4855 = vmatpush2.msra.mxu0 0.0
        %4856 = vmatprep.subr.mxu0 0.0
        %4857 = vmatpush2.msra.mxu0 0.0
        %4858 = vmatprep.subr.mxu0 0.0
        %4859 = vmatpush2.msra.mxu0 0.0
        %4860 = vmatprep.subr.mxu0 0.0
        %4861 = vmatpush2.msra.mxu0 0.0
        %4862 = vmatprep.subr.mxu0 0.0
        %4863 = vmatpush2.msra.mxu0 0.0
        %4864 = vmatprep.subr.mxu0 0.0
        %4865 = vmatpush2.msra.mxu0 0.0
        %4866 = vmatprep.subr.mxu0 0.0
        %4867 = vmatpush2.msra.mxu0 0.0
        %4868 = vmatprep.mubr.f32.mxu0 0.0
        %4869 = vmatmul.mubr.f32.gmra.mxu0 %v4802
        %v4870 = vpop.f32.mrf.mxu0
        %v4871 = vadd.f32 %v4798, %v4870
        %v4872 = vpop.f32.mrf.mxu0
        %4873 = vdwg.mxu0
        %s4874 = scalar_lea.vmem [#allocation17], 160
        %v4875 = vld [vmem:[%s4874] sm:$0xff]
        %v4876 = vld [vmem:[%s4874 + $0x8] sm:$0xff]
        %v4877 = vld [vmem:[%s4874 + $0x10] sm:$0xff]
        %v4878 = vld [vmem:[%s4874 + $0x18] sm:$0xff]
        %v4880 = vsel %vm1011, %v4715, 0
        %4882 = vmatprep.subr.mxu0 0.0
        %4883 = vmatpush1.msra.mxu0 0.0
        %4884 = vmatprep.subr.mxu0 0.0
        %4885 = vmatpush1.msra.mxu0 0.0
        %4886 = vmatprep.subr.mxu0 0.0
        %4887 = vmatpush1.msra.mxu0 0.0
        %4888 = vmatprep.subr.mxu0 0.0
        %4889 = vmatpush1.msra.mxu0 0.0
        %4890 = vmatprep.subr.mxu0 0.0
        %4891 = vmatpush1.msra.mxu0 0.0
        %4892 = vmatprep.subr.mxu0 0.0
        %4893 = vmatpush1.msra.mxu0 0.0
        %4894 = vmatprep.subr.mxu0 0.0
        %4895 = vmatpush1.msra.mxu0 0.0
        %4896 = vmatprep.subr.mxu0 0.0
        %4897 = vmatpush1.msra.mxu0 0.0
        %4898 = vmatprep.subr.mxu0 0.0
        %4899 = vmatpush1.msra.mxu0 0.0
        %4900 = vmatprep.subr.mxu0 0.0
        %4901 = vmatpush1.msra.mxu0 0.0
        %4902 = vmatprep.subr.mxu0 0.0
        %4903 = vmatpush1.msra.mxu0 0.0
        %4904 = vmatprep.subr.mxu0 0.0
        %4905 = vmatpush1.msra.mxu0 0.0
        %4906 = vmatprep.subr.mxu0 0.0
        %4907 = vmatpush1.msra.mxu0 %v4878
        %4908 = vmatprep.subr.mxu0 0.0
        %4909 = vmatpush1.msra.mxu0 %v4877
        %4910 = vmatprep.subr.mxu0 0.0
        %4911 = vmatpush1.msra.mxu0 %v4876
        %4912 = vmatprep.subr.mxu0 0.0
        %4913 = vmatpush1.msra.mxu0 %v4875
        %4914 = vmatprep.subr.mxu0 0.0
        %4915 = vmatpush2.msra.mxu0 0.0
        %4916 = vmatprep.subr.mxu0 0.0
        %4917 = vmatpush2.msra.mxu0 0.0
        %4918 = vmatprep.subr.mxu0 0.0
        %4919 = vmatpush2.msra.mxu0 0.0
        %4920 = vmatprep.subr.mxu0 0.0
        %4921 = vmatpush2.msra.mxu0 0.0
        %4922 = vmatprep.subr.mxu0 0.0
        %4923 = vmatpush2.msra.mxu0 0.0
        %4924 = vmatprep.subr.mxu0 0.0
        %4925 = vmatpush2.msra.mxu0 0.0
        %4926 = vmatprep.subr.mxu0 0.0
        %4927 = vmatpush2.msra.mxu0 0.0
        %4928 = vmatprep.subr.mxu0 0.0
        %4929 = vmatpush2.msra.mxu0 0.0
        %4930 = vmatprep.subr.mxu0 0.0
        %4931 = vmatpush2.msra.mxu0 0.0
        %4932 = vmatprep.subr.mxu0 0.0
        %4933 = vmatpush2.msra.mxu0 0.0
        %4934 = vmatprep.subr.mxu0 0.0
        %4935 = vmatpush2.msra.mxu0 0.0
        %4936 = vmatprep.subr.mxu0 0.0
        %4937 = vmatpush2.msra.mxu0 0.0
        %4938 = vmatprep.subr.mxu0 0.0
        %4939 = vmatpush2.msra.mxu0 0.0
        %4940 = vmatprep.subr.mxu0 0.0
        %4941 = vmatpush2.msra.mxu0 0.0
        %4942 = vmatprep.subr.mxu0 0.0
        %4943 = vmatpush2.msra.mxu0 0.0
        %4944 = vmatprep.subr.mxu0 0.0
        %4945 = vmatpush2.msra.mxu0 0.0
        %4946 = vmatprep.mubr.f32.mxu0 0.0
        %4947 = vmatmul.mubr.f32.gmra.mxu0 %v4880
        %v4948 = vpop.f32.mrf.mxu0
        %v4949 = vadd.f32 0.0, %v4948
        %v4950 = vpop.f32.mrf.mxu0
        %4951 = vdwg.mxu0
        %v4952 = vadd.f32 %v4871, %v4949
        %v4954 = vlaneseq
        %v4955 = vshrl.u32 %v4954, 7
        %v4956 = vsub.s32 0, %v4955
        %v4957 = vrot.slane %v4573, %v4956
        %v4959 = vadd.f32 %v4952, %v4957
        %v4960 = vld [vmem:[%s21] sm:$0xff]
        %v4961 = vld [vmem:[%s21 + $0x8] sm:$0xff]
        %v4963 = vsel %vm4017, %v4960, 0
        %v4966 = vsel %vm4017, %v4961, 0
        %4968 = vmatprep.subr.mxu0 0.0
        %4969 = vmatpush1.msra.mxu0 0.0
        %4970 = vmatprep.subr.mxu0 0.0
        %4971 = vmatpush1.msra.mxu0 0.0
        %4972 = vmatprep.subr.mxu0 0.0
        %4973 = vmatpush1.msra.mxu0 0.0
        %4974 = vmatprep.subr.mxu0 0.0
        %4975 = vmatpush1.msra.mxu0 0.0
        %4976 = vmatprep.subr.mxu0 0.0
        %4977 = vmatpush1.msra.mxu0 0.0
        %4978 = vmatprep.subr.mxu0 0.0
        %4979 = vmatpush1.msra.mxu0 0.0
        %4980 = vmatprep.subr.mxu0 0.0
        %4981 = vmatpush1.msra.mxu0 0.0
        %4982 = vmatprep.subr.mxu0 0.0
        %4983 = vmatpush1.msra.mxu0 0.0
        %4984 = vmatprep.subr.mxu0 0.0
        %4985 = vmatpush1.msra.mxu0 0.0
        %4986 = vmatprep.subr.mxu0 0.0
        %4987 = vmatpush1.msra.mxu0 0.0
        %4988 = vmatprep.subr.mxu0 0.0
        %4989 = vmatpush1.msra.mxu0 0.0
        %4990 = vmatprep.subr.mxu0 0.0
        %4991 = vmatpush1.msra.mxu0 0.0
        %4992 = vmatprep.subr.mxu0 0.0
        %4993 = vmatpush1.msra.mxu0 0.0
        %4994 = vmatprep.subr.mxu0 0.0
        %4995 = vmatpush1.msra.mxu0 0.0
        %4996 = vmatprep.subr.mxu0 0.0
        %4997 = vmatpush1.msra.mxu0 0.0
        %4998 = vmatprep.subr.mxu0 0.0
        %4999 = vmatpush1.msra.mxu0 %v4959
        %5000 = vmatprep.subr.mxu0 0.0
        %5001 = vmatpush2.msra.mxu0 0.0
        %5002 = vmatprep.subr.mxu0 0.0
        %5003 = vmatpush2.msra.mxu0 0.0
        %5004 = vmatprep.subr.mxu0 0.0
        %5005 = vmatpush2.msra.mxu0 0.0
        %5006 = vmatprep.subr.mxu0 0.0
        %5007 = vmatpush2.msra.mxu0 0.0
        %5008 = vmatprep.subr.mxu0 0.0
        %5009 = vmatpush2.msra.mxu0 0.0
        %5010 = vmatprep.subr.mxu0 0.0
        %5011 = vmatpush2.msra.mxu0 0.0
        %5012 = vmatprep.subr.mxu0 0.0
        %5013 = vmatpush2.msra.mxu0 0.0
        %5014 = vmatprep.subr.mxu0 0.0
        %5015 = vmatpush2.msra.mxu0 0.0
        %5016 = vmatprep.subr.mxu0 0.0
        %5017 = vmatpush2.msra.mxu0 0.0
        %5018 = vmatprep.subr.mxu0 0.0
        %5019 = vmatpush2.msra.mxu0 0.0
        %5020 = vmatprep.subr.mxu0 0.0
        %5021 = vmatpush2.msra.mxu0 0.0
        %5022 = vmatprep.subr.mxu0 0.0
        %5023 = vmatpush2.msra.mxu0 0.0
        %5024 = vmatprep.subr.mxu0 0.0
        %5025 = vmatpush2.msra.mxu0 0.0
        %5026 = vmatprep.subr.mxu0 0.0
        %5027 = vmatpush2.msra.mxu0 0.0
        %5028 = vmatprep.subr.mxu0 0.0
        %5029 = vmatpush2.msra.mxu0 0.0
        %5030 = vmatprep.subr.mxu0 0.0
        %5031 = vmatpush2.msra.mxu0 0.0
        %5032 = vmatprep.mubr.f32.mxu0 0.0
        %5033 = vmatmul.mubr.f32.gmra.mxu0 %v4963
        %v5034 = vpop.f32.mrf.mxu0
        %v5035 = vadd.f32 0.0, %v5034
        %v5036 = vpop.f32.mrf.mxu0
        %5037 = vmatprep.mubr.f32.mxu0 0.0
        %5038 = vmatmul.mubr.f32.gmra.mxu0 %v4966
        %v5039 = vpop.f32.mrf.mxu0
        %v5040 = vadd.f32 0.0, %v5039
        %v5041 = vpop.f32.mrf.mxu0
        %5042 = vdwg.mxu0
        %v5043 = vld [vmem:[#allocation20] sm:$0x1]
        %5044 = vmatprep.subr.mxu0 0.0
        %5045 = vmatpush1.msra.mxu0 0.0
        %5046 = vmatprep.subr.mxu0 0.0
        %5047 = vmatpush1.msra.mxu0 0.0
        %5048 = vmatprep.subr.mxu0 0.0
        %5049 = vmatpush1.msra.mxu0 0.0
        %5050 = vmatprep.subr.mxu0 0.0
        %5051 = vmatpush1.msra.mxu0 0.0
        %5052 = vmatprep.subr.mxu0 0.0
        %5053 = vmatpush1.msra.mxu0 0.0
        %5054 = vmatprep.subr.mxu0 0.0
        %5055 = vmatpush1.msra.mxu0 0.0
        %5056 = vmatprep.subr.mxu0 0.0
        %5057 = vmatpush1.msra.mxu0 0.0
        %5058 = vmatprep.subr.mxu0 0.0
        %5059 = vmatpush1.msra.mxu0 0.0
        %5060 = vmatprep.subr.mxu0 0.0
        %5061 = vmatpush1.msra.mxu0 0.0
        %5062 = vmatprep.subr.mxu0 0.0
        %5063 = vmatpush1.msra.mxu0 0.0
        %5064 = vmatprep.subr.mxu0 0.0
        %5065 = vmatpush1.msra.mxu0 0.0
        %5066 = vmatprep.subr.mxu0 0.0
        %5067 = vmatpush1.msra.mxu0 0.0
        %5068 = vmatprep.subr.mxu0 0.0
        %5069 = vmatpush1.msra.mxu0 0.0
        %5070 = vmatprep.subr.mxu0 0.0
        %5071 = vmatpush1.msra.mxu0 0.0
        %5072 = vmatprep.subr.mxu0 0.0
        %5073 = vmatpush1.msra.mxu0 %v4569
        %5074 = vmatprep.subr.mxu0 0.0
        %5075 = vmatpush1.msra.mxu0 %v4564
        %5076 = vmatprep.subr.mxu0 0.0
        %5077 = vmatpush2.msra.mxu0 0.0
        %5078 = vmatprep.subr.mxu0 0.0
        %5079 = vmatpush2.msra.mxu0 0.0
        %5080 = vmatprep.subr.mxu0 0.0
        %5081 = vmatpush2.msra.mxu0 0.0
        %5082 = vmatprep.subr.mxu0 0.0
        %5083 = vmatpush2.msra.mxu0 0.0
        %5084 = vmatprep.subr.mxu0 0.0
        %5085 = vmatpush2.msra.mxu0 0.0
        %5086 = vmatprep.subr.mxu0 0.0
        %5087 = vmatpush2.msra.mxu0 0.0
        %5088 = vmatprep.subr.mxu0 0.0
        %5089 = vmatpush2.msra.mxu0 0.0
        %5090 = vmatprep.subr.mxu0 0.0
        %5091 = vmatpush2.msra.mxu0 0.0
        %5092 = vmatprep.subr.mxu0 0.0
        %5093 = vmatpush2.msra.mxu0 0.0
        %5094 = vmatprep.subr.mxu0 0.0
        %5095 = vmatpush2.msra.mxu0 0.0
        %5096 = vmatprep.subr.mxu0 0.0
        %5097 = vmatpush2.msra.mxu0 0.0
        %5098 = vmatprep.subr.mxu0 0.0
        %5099 = vmatpush2.msra.mxu0 0.0
        %5100 = vmatprep.subr.mxu0 0.0
        %5101 = vmatpush2.msra.mxu0 0.0
        %5102 = vmatprep.subr.mxu0 0.0
        %5103 = vmatpush2.msra.mxu0 0.0
        %5104 = vmatprep.subr.mxu0 0.0
        %5105 = vmatpush2.msra.mxu0 0.0
        %5106 = vmatprep.subr.mxu0 0.0
        %5107 = vmatpush2.msra.mxu0 0.0
        %5108 = vmatprep.mubr.f32.mxu0 0.0
        %5109 = vmatmul.mubr.f32.gmra.mxu0 %v1865
        %v5110 = vpop.f32.mrf.mxu0
        %v5111 = vadd.f32 0.0, %v5110
        %v5112 = vpop.f32.mrf.mxu0
        %5113 = vmatprep.mubr.f32.mxu0 0.0
        %5114 = vmatmul.mubr.f32.gmra.mxu0 %v1868
        %v5115 = vpop.f32.mrf.mxu0
        %v5116 = vadd.f32 0.0, %v5115
        %v5117 = vpop.f32.mrf.mxu0
        %5118 = vdwg.mxu0
        %5119 = vmatprep.subr.mxu0 0.0
        %5120 = vmatpush1.msra.mxu0 0.0
        %5121 = vmatprep.subr.mxu0 0.0
        %5122 = vmatpush1.msra.mxu0 0.0
        %5123 = vmatprep.subr.mxu0 0.0
        %5124 = vmatpush1.msra.mxu0 0.0
        %5125 = vmatprep.subr.mxu0 0.0
        %5126 = vmatpush1.msra.mxu0 0.0
        %5127 = vmatprep.subr.mxu0 0.0
        %5128 = vmatpush1.msra.mxu0 0.0
        %5129 = vmatprep.subr.mxu0 0.0
        %5130 = vmatpush1.msra.mxu0 0.0
        %5131 = vmatprep.subr.mxu0 0.0
        %5132 = vmatpush1.msra.mxu0 0.0
        %5133 = vmatprep.subr.mxu0 0.0
        %5134 = vmatpush1.msra.mxu0 0.0
        %5135 = vmatprep.subr.mxu0 0.0
        %5136 = vmatpush1.msra.mxu0 0.0
        %5137 = vmatprep.subr.mxu0 0.0
        %5138 = vmatpush1.msra.mxu0 0.0
        %5139 = vmatprep.subr.mxu0 0.0
        %5140 = vmatpush1.msra.mxu0 0.0
        %5141 = vmatprep.subr.mxu0 0.0
        %5142 = vmatpush1.msra.mxu0 0.0
        %5143 = vmatprep.subr.mxu0 0.0
        %5144 = vmatpush1.msra.mxu0 0.0
        %5145 = vmatprep.subr.mxu0 0.0
        %5146 = vmatpush1.msra.mxu0 0.0
        %5147 = vmatprep.subr.mxu0 0.0
        %5148 = vmatpush1.msra.mxu0 %v4569
        %5149 = vmatprep.subr.mxu0 0.0
        %5150 = vmatpush1.msra.mxu0 %v4564
        %5151 = vmatprep.subr.mxu0 0.0
        %5152 = vmatpush2.msra.mxu0 0.0
        %5153 = vmatprep.subr.mxu0 0.0
        %5154 = vmatpush2.msra.mxu0 0.0
        %5155 = vmatprep.subr.mxu0 0.0
        %5156 = vmatpush2.msra.mxu0 0.0
        %5157 = vmatprep.subr.mxu0 0.0
        %5158 = vmatpush2.msra.mxu0 0.0
        %5159 = vmatprep.subr.mxu0 0.0
        %5160 = vmatpush2.msra.mxu0 0.0
        %5161 = vmatprep.subr.mxu0 0.0
        %5162 = vmatpush2.msra.mxu0 0.0
        %5163 = vmatprep.subr.mxu0 0.0
        %5164 = vmatpush2.msra.mxu0 0.0
        %5165 = vmatprep.subr.mxu0 0.0
        %5166 = vmatpush2.msra.mxu0 0.0
        %5167 = vmatprep.subr.mxu0 0.0
        %5168 = vmatpush2.msra.mxu0 0.0
        %5169 = vmatprep.subr.mxu0 0.0
        %5170 = vmatpush2.msra.mxu0 0.0
        %5171 = vmatprep.subr.mxu0 0.0
        %5172 = vmatpush2.msra.mxu0 0.0
        %5173 = vmatprep.subr.mxu0 0.0
        %5174 = vmatpush2.msra.mxu0 0.0
        %5175 = vmatprep.subr.mxu0 0.0
        %5176 = vmatpush2.msra.mxu0 0.0
        %5177 = vmatprep.subr.mxu0 0.0
        %5178 = vmatpush2.msra.mxu0 0.0
        %5179 = vmatprep.subr.mxu0 0.0
        %5180 = vmatpush2.msra.mxu0 0.0
        %5181 = vmatprep.subr.mxu0 0.0
        %5182 = vmatpush2.msra.mxu0 0.0
        %5183 = vmatprep.mubr.f32.mxu0 0.0
        %5184 = vmatmul.mubr.f32.gmra.mxu0 %v1946
        %v5185 = vpop.f32.mrf.mxu0
        %v5186 = vadd.f32 0.0, %v5185
        %v5187 = vpop.f32.mrf.mxu0
        %5188 = vmatprep.mubr.f32.mxu0 0.0
        %5189 = vmatmul.mubr.f32.gmra.mxu0 %v1949
        %v5190 = vpop.f32.mrf.mxu0
        %v5191 = vadd.f32 0.0, %v5190
        %v5192 = vpop.f32.mrf.mxu0
        %5193 = vdwg.mxu0
        %v5194 = vld [vmem:[%s12] sm:$0xff]
        %v5195 = vld [vmem:[%s12 + $0x8] sm:$0xff]
        %v5196 = vld [vmem:[%s12 + $0x10] sm:$0xff]
        %v5197 = vld [vmem:[%s12 + $0x18] sm:$0xff]
        %s5198 = scalar_lea.vmem %s12, 32
        %v5199 = vld [vmem:[%s5198] sm:$0xff]
        %v5200 = vld [vmem:[%s5198 + $0x8] sm:$0xff]
        %v5201 = vld [vmem:[%s5198 + $0x10] sm:$0xff]
        %v5202 = vld [vmem:[%s5198 + $0x18] sm:$0xff]
        %v5204 = vsel %vm1011, %v4564, 0
        %v5207 = vsel %vm1011, %v4569, 0
        %5209 = vmatprep.subr.mxu0 0.0
        %5210 = vmatpush1.msra.mxu0 0.0
        %5211 = vmatprep.subr.mxu0 0.0
        %5212 = vmatpush1.msra.mxu0 0.0
        %5213 = vmatprep.subr.mxu0 0.0
        %5214 = vmatpush1.msra.mxu0 0.0
        %5215 = vmatprep.subr.mxu0 0.0
        %5216 = vmatpush1.msra.mxu0 0.0
        %5217 = vmatprep.subr.mxu0 0.0
        %5218 = vmatpush1.msra.mxu0 0.0
        %5219 = vmatprep.subr.mxu0 0.0
        %5220 = vmatpush1.msra.mxu0 0.0
        %5221 = vmatprep.subr.mxu0 0.0
        %5222 = vmatpush1.msra.mxu0 0.0
        %5223 = vmatprep.subr.mxu0 0.0
        %5224 = vmatpush1.msra.mxu0 0.0
        %5225 = vmatprep.subr.mxu0 0.0
        %5226 = vmatpush1.msra.mxu0 0.0
        %5227 = vmatprep.subr.mxu0 0.0
        %5228 = vmatpush1.msra.mxu0 0.0
        %5229 = vmatprep.subr.mxu0 0.0
        %5230 = vmatpush1.msra.mxu0 0.0
        %5231 = vmatprep.subr.mxu0 0.0
        %5232 = vmatpush1.msra.mxu0 0.0
        %5233 = vmatprep.subr.mxu0 0.0
        %5234 = vmatpush1.msra.mxu0 %v5202
        %5235 = vmatprep.subr.mxu0 0.0
        %5236 = vmatpush1.msra.mxu0 %v5201
        %5237 = vmatprep.subr.mxu0 0.0
        %5238 = vmatpush1.msra.mxu0 %v5200
        %5239 = vmatprep.subr.mxu0 0.0
        %5240 = vmatpush1.msra.mxu0 %v5199
        %5241 = vmatprep.subr.mxu0 0.0
        %5242 = vmatpush2.msra.mxu0 0.0
        %5243 = vmatprep.subr.mxu0 0.0
        %5244 = vmatpush2.msra.mxu0 0.0
        %5245 = vmatprep.subr.mxu0 0.0
        %5246 = vmatpush2.msra.mxu0 0.0
        %5247 = vmatprep.subr.mxu0 0.0
        %5248 = vmatpush2.msra.mxu0 0.0
        %5249 = vmatprep.subr.mxu0 0.0
        %5250 = vmatpush2.msra.mxu0 0.0
        %5251 = vmatprep.subr.mxu0 0.0
        %5252 = vmatpush2.msra.mxu0 0.0
        %5253 = vmatprep.subr.mxu0 0.0
        %5254 = vmatpush2.msra.mxu0 0.0
        %5255 = vmatprep.subr.mxu0 0.0
        %5256 = vmatpush2.msra.mxu0 0.0
        %5257 = vmatprep.subr.mxu0 0.0
        %5258 = vmatpush2.msra.mxu0 0.0
        %5259 = vmatprep.subr.mxu0 0.0
        %5260 = vmatpush2.msra.mxu0 0.0
        %5261 = vmatprep.subr.mxu0 0.0
        %5262 = vmatpush2.msra.mxu0 0.0
        %5263 = vmatprep.subr.mxu0 0.0
        %5264 = vmatpush2.msra.mxu0 0.0
        %5265 = vmatprep.subr.mxu0 0.0
        %5266 = vmatpush2.msra.mxu0 0.0
        %5267 = vmatprep.subr.mxu0 0.0
        %5268 = vmatpush2.msra.mxu0 0.0
        %5269 = vmatprep.subr.mxu0 0.0
        %5270 = vmatpush2.msra.mxu0 0.0
        %5271 = vmatprep.subr.mxu0 0.0
        %5272 = vmatpush2.msra.mxu0 0.0
        %5273 = vmatprep.mubr.f32.mxu0 0.0
        %5274 = vmatmul.mubr.f32.gmra.mxu0 %v5204
        %v5275 = vpop.f32.mrf.mxu0
        %v5276 = vadd.f32 0.0, %v5275
        %v5277 = vpop.f32.mrf.mxu0
        %5278 = vmatprep.mubr.f32.mxu0 0.0
        %5279 = vmatmul.mubr.f32.gmra.mxu0 %v5207
        %v5280 = vpop.f32.mrf.mxu0
        %v5281 = vadd.f32 0.0, %v5280
        %v5282 = vpop.f32.mrf.mxu0
        %5283 = vdwg.mxu0
        %v5285 = vsel %vm1011, %v5111, 0
        %v5288 = vsel %vm1011, %v5116, 0
        %5290 = vmatprep.subr.mxu0 0.0
        %5291 = vmatpush1.msra.mxu0 0.0
        %5292 = vmatprep.subr.mxu0 0.0
        %5293 = vmatpush1.msra.mxu0 0.0
        %5294 = vmatprep.subr.mxu0 0.0
        %5295 = vmatpush1.msra.mxu0 0.0
        %5296 = vmatprep.subr.mxu0 0.0
        %5297 = vmatpush1.msra.mxu0 0.0
        %5298 = vmatprep.subr.mxu0 0.0
        %5299 = vmatpush1.msra.mxu0 0.0
        %5300 = vmatprep.subr.mxu0 0.0
        %5301 = vmatpush1.msra.mxu0 0.0
        %5302 = vmatprep.subr.mxu0 0.0
        %5303 = vmatpush1.msra.mxu0 0.0
        %5304 = vmatprep.subr.mxu0 0.0
        %5305 = vmatpush1.msra.mxu0 0.0
        %5306 = vmatprep.subr.mxu0 0.0
        %5307 = vmatpush1.msra.mxu0 0.0
        %5308 = vmatprep.subr.mxu0 0.0
        %5309 = vmatpush1.msra.mxu0 0.0
        %5310 = vmatprep.subr.mxu0 0.0
        %5311 = vmatpush1.msra.mxu0 0.0
        %5312 = vmatprep.subr.mxu0 0.0
        %5313 = vmatpush1.msra.mxu0 0.0
        %5314 = vmatprep.subr.mxu0 0.0
        %5315 = vmatpush1.msra.mxu0 %v5197
        %5316 = vmatprep.subr.mxu0 0.0
        %5317 = vmatpush1.msra.mxu0 %v5196
        %5318 = vmatprep.subr.mxu0 0.0
        %5319 = vmatpush1.msra.mxu0 %v5195
        %5320 = vmatprep.subr.mxu0 0.0
        %5321 = vmatpush1.msra.mxu0 %v5194
        %5322 = vmatprep.subr.mxu0 0.0
        %5323 = vmatpush2.msra.mxu0 0.0
        %5324 = vmatprep.subr.mxu0 0.0
        %5325 = vmatpush2.msra.mxu0 0.0
        %5326 = vmatprep.subr.mxu0 0.0
        %5327 = vmatpush2.msra.mxu0 0.0
        %5328 = vmatprep.subr.mxu0 0.0
        %5329 = vmatpush2.msra.mxu0 0.0
        %5330 = vmatprep.subr.mxu0 0.0
        %5331 = vmatpush2.msra.mxu0 0.0
        %5332 = vmatprep.subr.mxu0 0.0
        %5333 = vmatpush2.msra.mxu0 0.0
        %5334 = vmatprep.subr.mxu0 0.0
        %5335 = vmatpush2.msra.mxu0 0.0
        %5336 = vmatprep.subr.mxu0 0.0
        %5337 = vmatpush2.msra.mxu0 0.0
        %5338 = vmatprep.subr.mxu0 0.0
        %5339 = vmatpush2.msra.mxu0 0.0
        %5340 = vmatprep.subr.mxu0 0.0
        %5341 = vmatpush2.msra.mxu0 0.0
        %5342 = vmatprep.subr.mxu0 0.0
        %5343 = vmatpush2.msra.mxu0 0.0
        %5344 = vmatprep.subr.mxu0 0.0
        %5345 = vmatpush2.msra.mxu0 0.0
        %5346 = vmatprep.subr.mxu0 0.0
        %5347 = vmatpush2.msra.mxu0 0.0
        %5348 = vmatprep.subr.mxu0 0.0
        %5349 = vmatpush2.msra.mxu0 0.0
        %5350 = vmatprep.subr.mxu0 0.0
        %5351 = vmatpush2.msra.mxu0 0.0
        %5352 = vmatprep.subr.mxu0 0.0
        %5353 = vmatpush2.msra.mxu0 0.0
        %5354 = vmatprep.mubr.f32.mxu0 0.0
        %5355 = vmatmul.mubr.f32.gmra.mxu0 %v5285
        %v5356 = vpop.f32.mrf.mxu0
        %v5357 = vadd.f32 %v5276, %v5356
        %v5358 = vpop.f32.mrf.mxu0
        %5359 = vmatprep.mubr.f32.mxu0 0.0
        %5360 = vmatmul.mubr.f32.gmra.mxu0 %v5288
        %v5361 = vpop.f32.mrf.mxu0
        %v5362 = vadd.f32 %v5281, %v5361
        %v5363 = vpop.f32.mrf.mxu0
        %5364 = vdwg.mxu0
        %s5365 = scalar_lea.vmem %s12, 64
        %v5366 = vld [vmem:[%s5365] sm:$0xff]
        %v5367 = vld [vmem:[%s5365 + $0x8] sm:$0xff]
        %v5368 = vld [vmem:[%s5365 + $0x10] sm:$0xff]
        %v5369 = vld [vmem:[%s5365 + $0x18] sm:$0xff]
        %v5371 = vsel %vm1011, %v5186, 0
        %v5374 = vsel %vm1011, %v5191, 0
        %5376 = vmatprep.subr.mxu0 0.0
        %5377 = vmatpush1.msra.mxu0 0.0
        %5378 = vmatprep.subr.mxu0 0.0
        %5379 = vmatpush1.msra.mxu0 0.0
        %5380 = vmatprep.subr.mxu0 0.0
        %5381 = vmatpush1.msra.mxu0 0.0
        %5382 = vmatprep.subr.mxu0 0.0
        %5383 = vmatpush1.msra.mxu0 0.0
        %5384 = vmatprep.subr.mxu0 0.0
        %5385 = vmatpush1.msra.mxu0 0.0
        %5386 = vmatprep.subr.mxu0 0.0
        %5387 = vmatpush1.msra.mxu0 0.0
        %5388 = vmatprep.subr.mxu0 0.0
        %5389 = vmatpush1.msra.mxu0 0.0
        %5390 = vmatprep.subr.mxu0 0.0
        %5391 = vmatpush1.msra.mxu0 0.0
        %5392 = vmatprep.subr.mxu0 0.0
        %5393 = vmatpush1.msra.mxu0 0.0
        %5394 = vmatprep.subr.mxu0 0.0
        %5395 = vmatpush1.msra.mxu0 0.0
        %5396 = vmatprep.subr.mxu0 0.0
        %5397 = vmatpush1.msra.mxu0 0.0
        %5398 = vmatprep.subr.mxu0 0.0
        %5399 = vmatpush1.msra.mxu0 0.0
        %5400 = vmatprep.subr.mxu0 0.0
        %5401 = vmatpush1.msra.mxu0 %v5369
        %5402 = vmatprep.subr.mxu0 0.0
        %5403 = vmatpush1.msra.mxu0 %v5368
        %5404 = vmatprep.subr.mxu0 0.0
        %5405 = vmatpush1.msra.mxu0 %v5367
        %5406 = vmatprep.subr.mxu0 0.0
        %5407 = vmatpush1.msra.mxu0 %v5366
        %5408 = vmatprep.subr.mxu0 0.0
        %5409 = vmatpush2.msra.mxu0 0.0
        %5410 = vmatprep.subr.mxu0 0.0
        %5411 = vmatpush2.msra.mxu0 0.0
        %5412 = vmatprep.subr.mxu0 0.0
        %5413 = vmatpush2.msra.mxu0 0.0
        %5414 = vmatprep.subr.mxu0 0.0
        %5415 = vmatpush2.msra.mxu0 0.0
        %5416 = vmatprep.subr.mxu0 0.0
        %5417 = vmatpush2.msra.mxu0 0.0
        %5418 = vmatprep.subr.mxu0 0.0
        %5419 = vmatpush2.msra.mxu0 0.0
        %5420 = vmatprep.subr.mxu0 0.0
        %5421 = vmatpush2.msra.mxu0 0.0
        %5422 = vmatprep.subr.mxu0 0.0
        %5423 = vmatpush2.msra.mxu0 0.0
        %5424 = vmatprep.subr.mxu0 0.0
        %5425 = vmatpush2.msra.mxu0 0.0
        %5426 = vmatprep.subr.mxu0 0.0
        %5427 = vmatpush2.msra.mxu0 0.0
        %5428 = vmatprep.subr.mxu0 0.0
        %5429 = vmatpush2.msra.mxu0 0.0
        %5430 = vmatprep.subr.mxu0 0.0
        %5431 = vmatpush2.msra.mxu0 0.0
        %5432 = vmatprep.subr.mxu0 0.0
        %5433 = vmatpush2.msra.mxu0 0.0
        %5434 = vmatprep.subr.mxu0 0.0
        %5435 = vmatpush2.msra.mxu0 0.0
        %5436 = vmatprep.subr.mxu0 0.0
        %5437 = vmatpush2.msra.mxu0 0.0
        %5438 = vmatprep.subr.mxu0 0.0
        %5439 = vmatpush2.msra.mxu0 0.0
        %5440 = vmatprep.mubr.f32.mxu0 0.0
        %5441 = vmatmul.mubr.f32.gmra.mxu0 %v5371
        %v5442 = vpop.f32.mrf.mxu0
        %v5443 = vadd.f32 0.0, %v5442
        %v5444 = vpop.f32.mrf.mxu0
        %5445 = vmatprep.mubr.f32.mxu0 0.0
        %5446 = vmatmul.mubr.f32.gmra.mxu0 %v5374
        %v5447 = vpop.f32.mrf.mxu0
        %v5448 = vadd.f32 0.0, %v5447
        %v5449 = vpop.f32.mrf.mxu0
        %5450 = vdwg.mxu0
        %v5451 = vadd.f32 %v5357, %v5443
        %v5452 = vadd.f32 %v5362, %v5448
        %5453 = vmatprep.subr.mxu0 0.0
        %5454 = vmatpush1.msra.mxu0 0.0
        %5455 = vmatprep.subr.mxu0 0.0
        %5456 = vmatpush1.msra.mxu0 0.0
        %5457 = vmatprep.subr.mxu0 0.0
        %5458 = vmatpush1.msra.mxu0 0.0
        %5459 = vmatprep.subr.mxu0 0.0
        %5460 = vmatpush1.msra.mxu0 0.0
        %5461 = vmatprep.subr.mxu0 0.0
        %5462 = vmatpush1.msra.mxu0 0.0
        %5463 = vmatprep.subr.mxu0 0.0
        %5464 = vmatpush1.msra.mxu0 0.0
        %5465 = vmatprep.subr.mxu0 0.0
        %5466 = vmatpush1.msra.mxu0 0.0
        %5467 = vmatprep.subr.mxu0 0.0
        %5468 = vmatpush1.msra.mxu0 0.0
        %5469 = vmatprep.subr.mxu0 0.0
        %5470 = vmatpush1.msra.mxu0 0.0
        %5471 = vmatprep.subr.mxu0 0.0
        %5472 = vmatpush1.msra.mxu0 0.0
        %5473 = vmatprep.subr.mxu0 0.0
        %5474 = vmatpush1.msra.mxu0 0.0
        %5475 = vmatprep.subr.mxu0 0.0
        %5476 = vmatpush1.msra.mxu0 0.0
        %5477 = vmatprep.subr.mxu0 0.0
        %5478 = vmatpush1.msra.mxu0 0.0
        %5479 = vmatprep.subr.mxu0 0.0
        %5480 = vmatpush1.msra.mxu0 0.0
        %5481 = vmatprep.subr.mxu0 0.0
        %5482 = vmatpush1.msra.mxu0 %v5040
        %5483 = vmatprep.subr.mxu0 0.0
        %5484 = vmatpush1.msra.mxu0 %v5035
        %5485 = vmatprep.subr.mxu0 0.0
        %5486 = vmatpush2.msra.mxu0 0.0
        %5487 = vmatprep.subr.mxu0 0.0
        %5488 = vmatpush2.msra.mxu0 0.0
        %5489 = vmatprep.subr.mxu0 0.0
        %5490 = vmatpush2.msra.mxu0 0.0
        %5491 = vmatprep.subr.mxu0 0.0
        %5492 = vmatpush2.msra.mxu0 0.0
        %5493 = vmatprep.subr.mxu0 0.0
        %5494 = vmatpush2.msra.mxu0 0.0
        %5495 = vmatprep.subr.mxu0 0.0
        %5496 = vmatpush2.msra.mxu0 0.0
        %5497 = vmatprep.subr.mxu0 0.0
        %5498 = vmatpush2.msra.mxu0 0.0
        %5499 = vmatprep.subr.mxu0 0.0
        %5500 = vmatpush2.msra.mxu0 0.0
        %5501 = vmatprep.subr.mxu0 0.0
        %5502 = vmatpush2.msra.mxu0 0.0
        %5503 = vmatprep.subr.mxu0 0.0
        %5504 = vmatpush2.msra.mxu0 0.0
        %5505 = vmatprep.subr.mxu0 0.0
        %5506 = vmatpush2.msra.mxu0 0.0
        %5507 = vmatprep.subr.mxu0 0.0
        %5508 = vmatpush2.msra.mxu0 0.0
        %5509 = vmatprep.subr.mxu0 0.0
        %5510 = vmatpush2.msra.mxu0 0.0
        %5511 = vmatprep.subr.mxu0 0.0
        %5512 = vmatpush2.msra.mxu0 0.0
        %5513 = vmatprep.subr.mxu0 0.0
        %5514 = vmatpush2.msra.mxu0 0.0
        %5515 = vmatprep.subr.mxu0 0.0
        %5516 = vmatpush2.msra.mxu0 0.0
        %5517 = vmatprep.mubr.f32.mxu0 0.0
        %5518 = vmatmul.mubr.f32.gmra.mxu0 %v1865
        %v5519 = vpop.f32.mrf.mxu0
        %v5520 = vadd.f32 0.0, %v5519
        %v5521 = vpop.f32.mrf.mxu0
        %5522 = vmatprep.mubr.f32.mxu0 0.0
        %5523 = vmatmul.mubr.f32.gmra.mxu0 %v1868
        %v5524 = vpop.f32.mrf.mxu0
        %v5525 = vadd.f32 0.0, %v5524
        %v5526 = vpop.f32.mrf.mxu0
        %5527 = vdwg.mxu0
        %5528 = vmatprep.subr.mxu0 0.0
        %5529 = vmatpush1.msra.mxu0 0.0
        %5530 = vmatprep.subr.mxu0 0.0
        %5531 = vmatpush1.msra.mxu0 0.0
        %5532 = vmatprep.subr.mxu0 0.0
        %5533 = vmatpush1.msra.mxu0 0.0
        %5534 = vmatprep.subr.mxu0 0.0
        %5535 = vmatpush1.msra.mxu0 0.0
        %5536 = vmatprep.subr.mxu0 0.0
        %5537 = vmatpush1.msra.mxu0 0.0
        %5538 = vmatprep.subr.mxu0 0.0
        %5539 = vmatpush1.msra.mxu0 0.0
        %5540 = vmatprep.subr.mxu0 0.0
        %5541 = vmatpush1.msra.mxu0 0.0
        %5542 = vmatprep.subr.mxu0 0.0
        %5543 = vmatpush1.msra.mxu0 0.0
        %5544 = vmatprep.subr.mxu0 0.0
        %5545 = vmatpush1.msra.mxu0 0.0
        %5546 = vmatprep.subr.mxu0 0.0
        %5547 = vmatpush1.msra.mxu0 0.0
        %5548 = vmatprep.subr.mxu0 0.0
        %5549 = vmatpush1.msra.mxu0 0.0
        %5550 = vmatprep.subr.mxu0 0.0
        %5551 = vmatpush1.msra.mxu0 0.0
        %5552 = vmatprep.subr.mxu0 0.0
        %5553 = vmatpush1.msra.mxu0 0.0
        %5554 = vmatprep.subr.mxu0 0.0
        %5555 = vmatpush1.msra.mxu0 0.0
        %5556 = vmatprep.subr.mxu0 0.0
        %5557 = vmatpush1.msra.mxu0 %v5040
        %5558 = vmatprep.subr.mxu0 0.0
        %5559 = vmatpush1.msra.mxu0 %v5035
        %5560 = vmatprep.subr.mxu0 0.0
        %5561 = vmatpush2.msra.mxu0 0.0
        %5562 = vmatprep.subr.mxu0 0.0
        %5563 = vmatpush2.msra.mxu0 0.0
        %5564 = vmatprep.subr.mxu0 0.0
        %5565 = vmatpush2.msra.mxu0 0.0
        %5566 = vmatprep.subr.mxu0 0.0
        %5567 = vmatpush2.msra.mxu0 0.0
        %5568 = vmatprep.subr.mxu0 0.0
        %5569 = vmatpush2.msra.mxu0 0.0
        %5570 = vmatprep.subr.mxu0 0.0
        %5571 = vmatpush2.msra.mxu0 0.0
        %5572 = vmatprep.subr.mxu0 0.0
        %5573 = vmatpush2.msra.mxu0 0.0
        %5574 = vmatprep.subr.mxu0 0.0
        %5575 = vmatpush2.msra.mxu0 0.0
        %5576 = vmatprep.subr.mxu0 0.0
        %5577 = vmatpush2.msra.mxu0 0.0
        %5578 = vmatprep.subr.mxu0 0.0
        %5579 = vmatpush2.msra.mxu0 0.0
        %5580 = vmatprep.subr.mxu0 0.0
        %5581 = vmatpush2.msra.mxu0 0.0
        %5582 = vmatprep.subr.mxu0 0.0
        %5583 = vmatpush2.msra.mxu0 0.0
        %5584 = vmatprep.subr.mxu0 0.0
        %5585 = vmatpush2.msra.mxu0 0.0
        %5586 = vmatprep.subr.mxu0 0.0
        %5587 = vmatpush2.msra.mxu0 0.0
        %5588 = vmatprep.subr.mxu0 0.0
        %5589 = vmatpush2.msra.mxu0 0.0
        %5590 = vmatprep.subr.mxu0 0.0
        %5591 = vmatpush2.msra.mxu0 0.0
        %5592 = vmatprep.mubr.f32.mxu0 0.0
        %5593 = vmatmul.mubr.f32.gmra.mxu0 %v1946
        %v5594 = vpop.f32.mrf.mxu0
        %v5595 = vadd.f32 0.0, %v5594
        %v5596 = vpop.f32.mrf.mxu0
        %5597 = vmatprep.mubr.f32.mxu0 0.0
        %5598 = vmatmul.mubr.f32.gmra.mxu0 %v1949
        %v5599 = vpop.f32.mrf.mxu0
        %v5600 = vadd.f32 0.0, %v5599
        %v5601 = vpop.f32.mrf.mxu0
        %5602 = vdwg.mxu0
        %s5603 = scalar_lea.vmem %s12, 96
        %v5604 = vld [vmem:[%s5603] sm:$0xff]
        %v5605 = vld [vmem:[%s5603 + $0x8] sm:$0xff]
        %v5606 = vld [vmem:[%s5603 + $0x10] sm:$0xff]
        %v5607 = vld [vmem:[%s5603 + $0x18] sm:$0xff]
        %s5608 = scalar_lea.vmem %s12, 128
        %v5609 = vld [vmem:[%s5608] sm:$0xff]
        %v5610 = vld [vmem:[%s5608 + $0x8] sm:$0xff]
        %v5611 = vld [vmem:[%s5608 + $0x10] sm:$0xff]
        %v5612 = vld [vmem:[%s5608 + $0x18] sm:$0xff]
        %v5614 = vsel %vm1011, %v5035, 0
        %v5617 = vsel %vm1011, %v5040, 0
        %5619 = vmatprep.subr.mxu0 0.0
        %5620 = vmatpush1.msra.mxu0 0.0
        %5621 = vmatprep.subr.mxu0 0.0
        %5622 = vmatpush1.msra.mxu0 0.0
        %5623 = vmatprep.subr.mxu0 0.0
        %5624 = vmatpush1.msra.mxu0 0.0
        %5625 = vmatprep.subr.mxu0 0.0
        %5626 = vmatpush1.msra.mxu0 0.0
        %5627 = vmatprep.subr.mxu0 0.0
        %5628 = vmatpush1.msra.mxu0 0.0
        %5629 = vmatprep.subr.mxu0 0.0
        %5630 = vmatpush1.msra.mxu0 0.0
        %5631 = vmatprep.subr.mxu0 0.0
        %5632 = vmatpush1.msra.mxu0 0.0
        %5633 = vmatprep.subr.mxu0 0.0
        %5634 = vmatpush1.msra.mxu0 0.0
        %5635 = vmatprep.subr.mxu0 0.0
        %5636 = vmatpush1.msra.mxu0 0.0
        %5637 = vmatprep.subr.mxu0 0.0
        %5638 = vmatpush1.msra.mxu0 0.0
        %5639 = vmatprep.subr.mxu0 0.0
        %5640 = vmatpush1.msra.mxu0 0.0
        %5641 = vmatprep.subr.mxu0 0.0
        %5642 = vmatpush1.msra.mxu0 0.0
        %5643 = vmatprep.subr.mxu0 0.0
        %5644 = vmatpush1.msra.mxu0 %v5612
        %5645 = vmatprep.subr.mxu0 0.0
        %5646 = vmatpush1.msra.mxu0 %v5611
        %5647 = vmatprep.subr.mxu0 0.0
        %5648 = vmatpush1.msra.mxu0 %v5610
        %5649 = vmatprep.subr.mxu0 0.0
        %5650 = vmatpush1.msra.mxu0 %v5609
        %5651 = vmatprep.subr.mxu0 0.0
        %5652 = vmatpush2.msra.mxu0 0.0
        %5653 = vmatprep.subr.mxu0 0.0
        %5654 = vmatpush2.msra.mxu0 0.0
        %5655 = vmatprep.subr.mxu0 0.0
        %5656 = vmatpush2.msra.mxu0 0.0
        %5657 = vmatprep.subr.mxu0 0.0
        %5658 = vmatpush2.msra.mxu0 0.0
        %5659 = vmatprep.subr.mxu0 0.0
        %5660 = vmatpush2.msra.mxu0 0.0
        %5661 = vmatprep.subr.mxu0 0.0
        %5662 = vmatpush2.msra.mxu0 0.0
        %5663 = vmatprep.subr.mxu0 0.0
        %5664 = vmatpush2.msra.mxu0 0.0
        %5665 = vmatprep.subr.mxu0 0.0
        %5666 = vmatpush2.msra.mxu0 0.0
        %5667 = vmatprep.subr.mxu0 0.0
        %5668 = vmatpush2.msra.mxu0 0.0
        %5669 = vmatprep.subr.mxu0 0.0
        %5670 = vmatpush2.msra.mxu0 0.0
        %5671 = vmatprep.subr.mxu0 0.0
        %5672 = vmatpush2.msra.mxu0 0.0
        %5673 = vmatprep.subr.mxu0 0.0
        %5674 = vmatpush2.msra.mxu0 0.0
        %5675 = vmatprep.subr.mxu0 0.0
        %5676 = vmatpush2.msra.mxu0 0.0
        %5677 = vmatprep.subr.mxu0 0.0
        %5678 = vmatpush2.msra.mxu0 0.0
        %5679 = vmatprep.subr.mxu0 0.0
        %5680 = vmatpush2.msra.mxu0 0.0
        %5681 = vmatprep.subr.mxu0 0.0
        %5682 = vmatpush2.msra.mxu0 0.0
        %5683 = vmatprep.mubr.f32.mxu0 0.0
        %5684 = vmatmul.mubr.f32.gmra.mxu0 %v5614
        %v5685 = vpop.f32.mrf.mxu0
        %v5686 = vadd.f32 0.0, %v5685
        %v5687 = vpop.f32.mrf.mxu0
        %5688 = vmatprep.mubr.f32.mxu0 0.0
        %5689 = vmatmul.mubr.f32.gmra.mxu0 %v5617
        %v5690 = vpop.f32.mrf.mxu0
        %v5691 = vadd.f32 0.0, %v5690
        %v5692 = vpop.f32.mrf.mxu0
        %5693 = vdwg.mxu0
        %v5695 = vsel %vm1011, %v5520, 0
        %v5698 = vsel %vm1011, %v5525, 0
        %5700 = vmatprep.subr.mxu0 0.0
        %5701 = vmatpush1.msra.mxu0 0.0
        %5702 = vmatprep.subr.mxu0 0.0
        %5703 = vmatpush1.msra.mxu0 0.0
        %5704 = vmatprep.subr.mxu0 0.0
        %5705 = vmatpush1.msra.mxu0 0.0
        %5706 = vmatprep.subr.mxu0 0.0
        %5707 = vmatpush1.msra.mxu0 0.0
        %5708 = vmatprep.subr.mxu0 0.0
        %5709 = vmatpush1.msra.mxu0 0.0
        %5710 = vmatprep.subr.mxu0 0.0
        %5711 = vmatpush1.msra.mxu0 0.0
        %5712 = vmatprep.subr.mxu0 0.0
        %5713 = vmatpush1.msra.mxu0 0.0
        %5714 = vmatprep.subr.mxu0 0.0
        %5715 = vmatpush1.msra.mxu0 0.0
        %5716 = vmatprep.subr.mxu0 0.0
        %5717 = vmatpush1.msra.mxu0 0.0
        %5718 = vmatprep.subr.mxu0 0.0
        %5719 = vmatpush1.msra.mxu0 0.0
        %5720 = vmatprep.subr.mxu0 0.0
        %5721 = vmatpush1.msra.mxu0 0.0
        %5722 = vmatprep.subr.mxu0 0.0
        %5723 = vmatpush1.msra.mxu0 0.0
        %5724 = vmatprep.subr.mxu0 0.0
        %5725 = vmatpush1.msra.mxu0 %v5607
        %5726 = vmatprep.subr.mxu0 0.0
        %5727 = vmatpush1.msra.mxu0 %v5606
        %5728 = vmatprep.subr.mxu0 0.0
        %5729 = vmatpush1.msra.mxu0 %v5605
        %5730 = vmatprep.subr.mxu0 0.0
        %5731 = vmatpush1.msra.mxu0 %v5604
        %5732 = vmatprep.subr.mxu0 0.0
        %5733 = vmatpush2.msra.mxu0 0.0
        %5734 = vmatprep.subr.mxu0 0.0
        %5735 = vmatpush2.msra.mxu0 0.0
        %5736 = vmatprep.subr.mxu0 0.0
        %5737 = vmatpush2.msra.mxu0 0.0
        %5738 = vmatprep.subr.mxu0 0.0
        %5739 = vmatpush2.msra.mxu0 0.0
        %5740 = vmatprep.subr.mxu0 0.0
        %5741 = vmatpush2.msra.mxu0 0.0
        %5742 = vmatprep.subr.mxu0 0.0
        %5743 = vmatpush2.msra.mxu0 0.0
        %5744 = vmatprep.subr.mxu0 0.0
        %5745 = vmatpush2.msra.mxu0 0.0
        %5746 = vmatprep.subr.mxu0 0.0
        %5747 = vmatpush2.msra.mxu0 0.0
        %5748 = vmatprep.subr.mxu0 0.0
        %5749 = vmatpush2.msra.mxu0 0.0
        %5750 = vmatprep.subr.mxu0 0.0
        %5751 = vmatpush2.msra.mxu0 0.0
        %5752 = vmatprep.subr.mxu0 0.0
        %5753 = vmatpush2.msra.mxu0 0.0
        %5754 = vmatprep.subr.mxu0 0.0
        %5755 = vmatpush2.msra.mxu0 0.0
        %5756 = vmatprep.subr.mxu0 0.0
        %5757 = vmatpush2.msra.mxu0 0.0
        %5758 = vmatprep.subr.mxu0 0.0
        %5759 = vmatpush2.msra.mxu0 0.0
        %5760 = vmatprep.subr.mxu0 0.0
        %5761 = vmatpush2.msra.mxu0 0.0
        %5762 = vmatprep.subr.mxu0 0.0
        %5763 = vmatpush2.msra.mxu0 0.0
        %5764 = vmatprep.mubr.f32.mxu0 0.0
        %5765 = vmatmul.mubr.f32.gmra.mxu0 %v5695
        %v5766 = vpop.f32.mrf.mxu0
        %v5767 = vadd.f32 %v5686, %v5766
        %v5768 = vpop.f32.mrf.mxu0
        %5769 = vmatprep.mubr.f32.mxu0 0.0
        %5770 = vmatmul.mubr.f32.gmra.mxu0 %v5698
        %v5771 = vpop.f32.mrf.mxu0
        %v5772 = vadd.f32 %v5691, %v5771
        %v5773 = vpop.f32.mrf.mxu0
        %5774 = vdwg.mxu0
        %s5775 = scalar_lea.vmem %s12, 160
        %v5776 = vld [vmem:[%s5775] sm:$0xff]
        %v5777 = vld [vmem:[%s5775 + $0x8] sm:$0xff]
        %v5778 = vld [vmem:[%s5775 + $0x10] sm:$0xff]
        %v5779 = vld [vmem:[%s5775 + $0x18] sm:$0xff]
        %v5781 = vsel %vm1011, %v5595, 0
        %v5784 = vsel %vm1011, %v5600, 0
        %5786 = vmatprep.subr.mxu0 0.0
        %5787 = vmatpush1.msra.mxu0 0.0
        %5788 = vmatprep.subr.mxu0 0.0
        %5789 = vmatpush1.msra.mxu0 0.0
        %5790 = vmatprep.subr.mxu0 0.0
        %5791 = vmatpush1.msra.mxu0 0.0
        %5792 = vmatprep.subr.mxu0 0.0
        %5793 = vmatpush1.msra.mxu0 0.0
        %5794 = vmatprep.subr.mxu0 0.0
        %5795 = vmatpush1.msra.mxu0 0.0
        %5796 = vmatprep.subr.mxu0 0.0
        %5797 = vmatpush1.msra.mxu0 0.0
        %5798 = vmatprep.subr.mxu0 0.0
        %5799 = vmatpush1.msra.mxu0 0.0
        %5800 = vmatprep.subr.mxu0 0.0
        %5801 = vmatpush1.msra.mxu0 0.0
        %5802 = vmatprep.subr.mxu0 0.0
        %5803 = vmatpush1.msra.mxu0 0.0
        %5804 = vmatprep.subr.mxu0 0.0
        %5805 = vmatpush1.msra.mxu0 0.0
        %5806 = vmatprep.subr.mxu0 0.0
        %5807 = vmatpush1.msra.mxu0 0.0
        %5808 = vmatprep.subr.mxu0 0.0
        %5809 = vmatpush1.msra.mxu0 0.0
        %5810 = vmatprep.subr.mxu0 0.0
        %5811 = vmatpush1.msra.mxu0 %v5779
        %5812 = vmatprep.subr.mxu0 0.0
        %5813 = vmatpush1.msra.mxu0 %v5778
        %5814 = vmatprep.subr.mxu0 0.0
        %5815 = vmatpush1.msra.mxu0 %v5777
        %5816 = vmatprep.subr.mxu0 0.0
        %5817 = vmatpush1.msra.mxu0 %v5776
        %5818 = vmatprep.subr.mxu0 0.0
        %5819 = vmatpush2.msra.mxu0 0.0
        %5820 = vmatprep.subr.mxu0 0.0
        %5821 = vmatpush2.msra.mxu0 0.0
        %5822 = vmatprep.subr.mxu0 0.0
        %5823 = vmatpush2.msra.mxu0 0.0
        %5824 = vmatprep.subr.mxu0 0.0
        %5825 = vmatpush2.msra.mxu0 0.0
        %5826 = vmatprep.subr.mxu0 0.0
        %5827 = vmatpush2.msra.mxu0 0.0
        %5828 = vmatprep.subr.mxu0 0.0
        %5829 = vmatpush2.msra.mxu0 0.0
        %5830 = vmatprep.subr.mxu0 0.0
        %5831 = vmatpush2.msra.mxu0 0.0
        %5832 = vmatprep.subr.mxu0 0.0
        %5833 = vmatpush2.msra.mxu0 0.0
        %5834 = vmatprep.subr.mxu0 0.0
        %5835 = vmatpush2.msra.mxu0 0.0
        %5836 = vmatprep.subr.mxu0 0.0
        %5837 = vmatpush2.msra.mxu0 0.0
        %5838 = vmatprep.subr.mxu0 0.0
        %5839 = vmatpush2.msra.mxu0 0.0
        %5840 = vmatprep.subr.mxu0 0.0
        %5841 = vmatpush2.msra.mxu0 0.0
        %5842 = vmatprep.subr.mxu0 0.0
        %5843 = vmatpush2.msra.mxu0 0.0
        %5844 = vmatprep.subr.mxu0 0.0
        %5845 = vmatpush2.msra.mxu0 0.0
        %5846 = vmatprep.subr.mxu0 0.0
        %5847 = vmatpush2.msra.mxu0 0.0
        %5848 = vmatprep.subr.mxu0 0.0
        %5849 = vmatpush2.msra.mxu0 0.0
        %5850 = vmatprep.mubr.f32.mxu0 0.0
        %5851 = vmatmul.mubr.f32.gmra.mxu0 %v5781
        %v5852 = vpop.f32.mrf.mxu0
        %v5853 = vadd.f32 0.0, %v5852
        %v5854 = vpop.f32.mrf.mxu0
        %5855 = vmatprep.mubr.f32.mxu0 0.0
        %5856 = vmatmul.mubr.f32.gmra.mxu0 %v5784
        %v5857 = vpop.f32.mrf.mxu0
        %v5858 = vadd.f32 0.0, %v5857
        %v5859 = vpop.f32.mrf.mxu0
        %5860 = vdwg.mxu0
        %v5861 = vadd.f32 %v5767, %v5853
        %v5862 = vadd.f32 %v5772, %v5858
        %v5863 = vadd.f32 %v5451, %v5861
        %v5864 = vadd.f32 %v5452, %v5862
        %5865 = vmatprep.subr.mxu0 0.0
        %5866 = vmatpush1.msra.mxu0 0.0
        %5867 = vmatprep.subr.mxu0 0.0
        %5868 = vmatpush1.msra.mxu0 0.0
        %5869 = vmatprep.subr.mxu0 0.0
        %5870 = vmatpush1.msra.mxu0 0.0
        %5871 = vmatprep.subr.mxu0 0.0
        %5872 = vmatpush1.msra.mxu0 0.0
        %5873 = vmatprep.subr.mxu0 0.0
        %5874 = vmatpush1.msra.mxu0 0.0
        %5875 = vmatprep.subr.mxu0 0.0
        %5876 = vmatpush1.msra.mxu0 0.0
        %5877 = vmatprep.subr.mxu0 0.0
        %5878 = vmatpush1.msra.mxu0 0.0
        %5879 = vmatprep.subr.mxu0 0.0
        %5880 = vmatpush1.msra.mxu0 0.0
        %5881 = vmatprep.subr.mxu0 0.0
        %5882 = vmatpush1.msra.mxu0 0.0
        %5883 = vmatprep.subr.mxu0 0.0
        %5884 = vmatpush1.msra.mxu0 0.0
        %5885 = vmatprep.subr.mxu0 0.0
        %5886 = vmatpush1.msra.mxu0 0.0
        %5887 = vmatprep.subr.mxu0 0.0
        %5888 = vmatpush1.msra.mxu0 0.0
        %5889 = vmatprep.subr.mxu0 0.0
        %5890 = vmatpush1.msra.mxu0 0.0
        %5891 = vmatprep.subr.mxu0 0.0
        %5892 = vmatpush1.msra.mxu0 0.0
        %5893 = vmatprep.subr.mxu0 0.0
        %5894 = vmatpush1.msra.mxu0 %v4100
        %5895 = vmatprep.subr.mxu0 0.0
        %5896 = vmatpush1.msra.mxu0 %v4099
        %5897 = vmatprep.subr.mxu0 0.0
        %5898 = vmatpush2.msra.mxu0 0.0
        %5899 = vmatprep.subr.mxu0 0.0
        %5900 = vmatpush2.msra.mxu0 0.0
        %5901 = vmatprep.subr.mxu0 0.0
        %5902 = vmatpush2.msra.mxu0 0.0
        %5903 = vmatprep.subr.mxu0 0.0
        %5904 = vmatpush2.msra.mxu0 0.0
        %5905 = vmatprep.subr.mxu0 0.0
        %5906 = vmatpush2.msra.mxu0 0.0
        %5907 = vmatprep.subr.mxu0 0.0
        %5908 = vmatpush2.msra.mxu0 0.0
        %5909 = vmatprep.subr.mxu0 0.0
        %5910 = vmatpush2.msra.mxu0 0.0
        %5911 = vmatprep.subr.mxu0 0.0
        %5912 = vmatpush2.msra.mxu0 0.0
        %5913 = vmatprep.subr.mxu0 0.0
        %5914 = vmatpush2.msra.mxu0 0.0
        %5915 = vmatprep.subr.mxu0 0.0
        %5916 = vmatpush2.msra.mxu0 0.0
        %5917 = vmatprep.subr.mxu0 0.0
        %5918 = vmatpush2.msra.mxu0 0.0
        %5919 = vmatprep.subr.mxu0 0.0
        %5920 = vmatpush2.msra.mxu0 0.0
        %5921 = vmatprep.subr.mxu0 0.0
        %5922 = vmatpush2.msra.mxu0 0.0
        %5923 = vmatprep.subr.mxu0 0.0
        %5924 = vmatpush2.msra.mxu0 0.0
        %5925 = vmatprep.subr.mxu0 0.0
        %5926 = vmatpush2.msra.mxu0 0.0
        %5927 = vmatprep.subr.mxu0 0.0
        %5928 = vmatpush2.msra.mxu0 0.0
        %5929 = vmatprep.mubr.f32.mxu0 0.0
        %5930 = vmatmul.mubr.f32.gmra.mxu0 %v1865
        %v5931 = vpop.f32.mrf.mxu0
        %v5932 = vadd.f32 0.0, %v5931
        %v5933 = vpop.f32.mrf.mxu0
        %5934 = vmatprep.mubr.f32.mxu0 0.0
        %5935 = vmatmul.mubr.f32.gmra.mxu0 %v1868
        %v5936 = vpop.f32.mrf.mxu0
        %v5937 = vadd.f32 0.0, %v5936
        %v5938 = vpop.f32.mrf.mxu0
        %5939 = vdwg.mxu0
        %5940 = vmatprep.subr.mxu0 0.0
        %5941 = vmatpush1.msra.mxu0 0.0
        %5942 = vmatprep.subr.mxu0 0.0
        %5943 = vmatpush1.msra.mxu0 0.0
        %5944 = vmatprep.subr.mxu0 0.0
        %5945 = vmatpush1.msra.mxu0 0.0
        %5946 = vmatprep.subr.mxu0 0.0
        %5947 = vmatpush1.msra.mxu0 0.0
        %5948 = vmatprep.subr.mxu0 0.0
        %5949 = vmatpush1.msra.mxu0 0.0
        %5950 = vmatprep.subr.mxu0 0.0
        %5951 = vmatpush1.msra.mxu0 0.0
        %5952 = vmatprep.subr.mxu0 0.0
        %5953 = vmatpush1.msra.mxu0 0.0
        %5954 = vmatprep.subr.mxu0 0.0
        %5955 = vmatpush1.msra.mxu0 0.0
        %5956 = vmatprep.subr.mxu0 0.0
        %5957 = vmatpush1.msra.mxu0 0.0
        %5958 = vmatprep.subr.mxu0 0.0
        %5959 = vmatpush1.msra.mxu0 0.0
        %5960 = vmatprep.subr.mxu0 0.0
        %5961 = vmatpush1.msra.mxu0 0.0
        %5962 = vmatprep.subr.mxu0 0.0
        %5963 = vmatpush1.msra.mxu0 0.0
        %5964 = vmatprep.subr.mxu0 0.0
        %5965 = vmatpush1.msra.mxu0 0.0
        %5966 = vmatprep.subr.mxu0 0.0
        %5967 = vmatpush1.msra.mxu0 0.0
        %5968 = vmatprep.subr.mxu0 0.0
        %5969 = vmatpush1.msra.mxu0 %v4100
        %5970 = vmatprep.subr.mxu0 0.0
        %5971 = vmatpush1.msra.mxu0 %v4099
        %5972 = vmatprep.subr.mxu0 0.0
        %5973 = vmatpush2.msra.mxu0 0.0
        %5974 = vmatprep.subr.mxu0 0.0
        %5975 = vmatpush2.msra.mxu0 0.0
        %5976 = vmatprep.subr.mxu0 0.0
        %5977 = vmatpush2.msra.mxu0 0.0
        %5978 = vmatprep.subr.mxu0 0.0
        %5979 = vmatpush2.msra.mxu0 0.0
        %5980 = vmatprep.subr.mxu0 0.0
        %5981 = vmatpush2.msra.mxu0 0.0
        %5982 = vmatprep.subr.mxu0 0.0
        %5983 = vmatpush2.msra.mxu0 0.0
        %5984 = vmatprep.subr.mxu0 0.0
        %5985 = vmatpush2.msra.mxu0 0.0
        %5986 = vmatprep.subr.mxu0 0.0
        %5987 = vmatpush2.msra.mxu0 0.0
        %5988 = vmatprep.subr.mxu0 0.0
        %5989 = vmatpush2.msra.mxu0 0.0
        %5990 = vmatprep.subr.mxu0 0.0
        %5991 = vmatpush2.msra.mxu0 0.0
        %5992 = vmatprep.subr.mxu0 0.0
        %5993 = vmatpush2.msra.mxu0 0.0
        %5994 = vmatprep.subr.mxu0 0.0
        %5995 = vmatpush2.msra.mxu0 0.0
        %5996 = vmatprep.subr.mxu0 0.0
        %5997 = vmatpush2.msra.mxu0 0.0
        %5998 = vmatprep.subr.mxu0 0.0
        %5999 = vmatpush2.msra.mxu0 0.0
        %6000 = vmatprep.subr.mxu0 0.0
        %6001 = vmatpush2.msra.mxu0 0.0
        %6002 = vmatprep.subr.mxu0 0.0
        %6003 = vmatpush2.msra.mxu0 0.0
        %6004 = vmatprep.mubr.f32.mxu0 0.0
        %6005 = vmatmul.mubr.f32.gmra.mxu0 %v1946
        %v6006 = vpop.f32.mrf.mxu0
        %v6007 = vadd.f32 0.0, %v6006
        %v6008 = vpop.f32.mrf.mxu0
        %6009 = vmatprep.mubr.f32.mxu0 0.0
        %6010 = vmatmul.mubr.f32.gmra.mxu0 %v1949
        %v6011 = vpop.f32.mrf.mxu0
        %v6012 = vadd.f32 0.0, %v6011
        %v6013 = vpop.f32.mrf.mxu0
        %6014 = vdwg.mxu0
        %s6015 = scalar_lea.vmem %s12, 192
        %v6016 = vld [vmem:[%s6015] sm:$0xff]
        %v6017 = vld [vmem:[%s6015 + $0x8] sm:$0xff]
        %v6018 = vld [vmem:[%s6015 + $0x10] sm:$0xff]
        %v6019 = vld [vmem:[%s6015 + $0x18] sm:$0xff]
        %s6020 = scalar_lea.vmem %s12, 224
        %v6021 = vld [vmem:[%s6020] sm:$0xff]
        %v6022 = vld [vmem:[%s6020 + $0x8] sm:$0xff]
        %v6023 = vld [vmem:[%s6020 + $0x10] sm:$0xff]
        %v6024 = vld [vmem:[%s6020 + $0x18] sm:$0xff]
        %v6026 = vsel %vm1011, %v4099, 0
        %v6029 = vsel %vm1011, %v4100, 0
        %6031 = vmatprep.subr.mxu0 0.0
        %6032 = vmatpush1.msra.mxu0 0.0
        %6033 = vmatprep.subr.mxu0 0.0
        %6034 = vmatpush1.msra.mxu0 0.0
        %6035 = vmatprep.subr.mxu0 0.0
        %6036 = vmatpush1.msra.mxu0 0.0
        %6037 = vmatprep.subr.mxu0 0.0
        %6038 = vmatpush1.msra.mxu0 0.0
        %6039 = vmatprep.subr.mxu0 0.0
        %6040 = vmatpush1.msra.mxu0 0.0
        %6041 = vmatprep.subr.mxu0 0.0
        %6042 = vmatpush1.msra.mxu0 0.0
        %6043 = vmatprep.subr.mxu0 0.0
        %6044 = vmatpush1.msra.mxu0 0.0
        %6045 = vmatprep.subr.mxu0 0.0
        %6046 = vmatpush1.msra.mxu0 0.0
        %6047 = vmatprep.subr.mxu0 0.0
        %6048 = vmatpush1.msra.mxu0 0.0
        %6049 = vmatprep.subr.mxu0 0.0
        %6050 = vmatpush1.msra.mxu0 0.0
        %6051 = vmatprep.subr.mxu0 0.0
        %6052 = vmatpush1.msra.mxu0 0.0
        %6053 = vmatprep.subr.mxu0 0.0
        %6054 = vmatpush1.msra.mxu0 0.0
        %6055 = vmatprep.subr.mxu0 0.0
        %6056 = vmatpush1.msra.mxu0 %v6024
        %6057 = vmatprep.subr.mxu0 0.0
        %6058 = vmatpush1.msra.mxu0 %v6023
        %6059 = vmatprep.subr.mxu0 0.0
        %6060 = vmatpush1.msra.mxu0 %v6022
        %6061 = vmatprep.subr.mxu0 0.0
        %6062 = vmatpush1.msra.mxu0 %v6021
        %6063 = vmatprep.subr.mxu0 0.0
        %6064 = vmatpush2.msra.mxu0 0.0
        %6065 = vmatprep.subr.mxu0 0.0
        %6066 = vmatpush2.msra.mxu0 0.0
        %6067 = vmatprep.subr.mxu0 0.0
        %6068 = vmatpush2.msra.mxu0 0.0
        %6069 = vmatprep.subr.mxu0 0.0
        %6070 = vmatpush2.msra.mxu0 0.0
        %6071 = vmatprep.subr.mxu0 0.0
        %6072 = vmatpush2.msra.mxu0 0.0
        %6073 = vmatprep.subr.mxu0 0.0
        %6074 = vmatpush2.msra.mxu0 0.0
        %6075 = vmatprep.subr.mxu0 0.0
        %6076 = vmatpush2.msra.mxu0 0.0
        %6077 = vmatprep.subr.mxu0 0.0
        %6078 = vmatpush2.msra.mxu0 0.0
        %6079 = vmatprep.subr.mxu0 0.0
        %6080 = vmatpush2.msra.mxu0 0.0
        %6081 = vmatprep.subr.mxu0 0.0
        %6082 = vmatpush2.msra.mxu0 0.0
        %6083 = vmatprep.subr.mxu0 0.0
        %6084 = vmatpush2.msra.mxu0 0.0
        %6085 = vmatprep.subr.mxu0 0.0
        %6086 = vmatpush2.msra.mxu0 0.0
        %6087 = vmatprep.subr.mxu0 0.0
        %6088 = vmatpush2.msra.mxu0 0.0
        %6089 = vmatprep.subr.mxu0 0.0
        %6090 = vmatpush2.msra.mxu0 0.0
        %6091 = vmatprep.subr.mxu0 0.0
        %6092 = vmatpush2.msra.mxu0 0.0
        %6093 = vmatprep.subr.mxu0 0.0
        %6094 = vmatpush2.msra.mxu0 0.0
        %6095 = vmatprep.mubr.f32.mxu0 0.0
        %6096 = vmatmul.mubr.f32.gmra.mxu0 %v6026
        %v6097 = vpop.f32.mrf.mxu0
        %v6098 = vadd.f32 0.0, %v6097
        %v6099 = vpop.f32.mrf.mxu0
        %6100 = vmatprep.mubr.f32.mxu0 0.0
        %6101 = vmatmul.mubr.f32.gmra.mxu0 %v6029
        %v6102 = vpop.f32.mrf.mxu0
        %v6103 = vadd.f32 0.0, %v6102
        %v6104 = vpop.f32.mrf.mxu0
        %6105 = vdwg.mxu0
        %v6107 = vsel %vm1011, %v5932, 0
        %v6110 = vsel %vm1011, %v5937, 0
        %6112 = vmatprep.subr.mxu0 0.0
        %6113 = vmatpush1.msra.mxu0 0.0
        %6114 = vmatprep.subr.mxu0 0.0
        %6115 = vmatpush1.msra.mxu0 0.0
        %6116 = vmatprep.subr.mxu0 0.0
        %6117 = vmatpush1.msra.mxu0 0.0
        %6118 = vmatprep.subr.mxu0 0.0
        %6119 = vmatpush1.msra.mxu0 0.0
        %6120 = vmatprep.subr.mxu0 0.0
        %6121 = vmatpush1.msra.mxu0 0.0
        %6122 = vmatprep.subr.mxu0 0.0
        %6123 = vmatpush1.msra.mxu0 0.0
        %6124 = vmatprep.subr.mxu0 0.0
        %6125 = vmatpush1.msra.mxu0 0.0
        %6126 = vmatprep.subr.mxu0 0.0
        %6127 = vmatpush1.msra.mxu0 0.0
        %6128 = vmatprep.subr.mxu0 0.0
        %6129 = vmatpush1.msra.mxu0 0.0
        %6130 = vmatprep.subr.mxu0 0.0
        %6131 = vmatpush1.msra.mxu0 0.0
        %6132 = vmatprep.subr.mxu0 0.0
        %6133 = vmatpush1.msra.mxu0 0.0
        %6134 = vmatprep.subr.mxu0 0.0
        %6135 = vmatpush1.msra.mxu0 0.0
        %6136 = vmatprep.subr.mxu0 0.0
        %6137 = vmatpush1.msra.mxu0 %v6019
        %6138 = vmatprep.subr.mxu0 0.0
        %6139 = vmatpush1.msra.mxu0 %v6018
        %6140 = vmatprep.subr.mxu0 0.0
        %6141 = vmatpush1.msra.mxu0 %v6017
        %6142 = vmatprep.subr.mxu0 0.0
        %6143 = vmatpush1.msra.mxu0 %v6016
        %6144 = vmatprep.subr.mxu0 0.0
        %6145 = vmatpush2.msra.mxu0 0.0
        %6146 = vmatprep.subr.mxu0 0.0
        %6147 = vmatpush2.msra.mxu0 0.0
        %6148 = vmatprep.subr.mxu0 0.0
        %6149 = vmatpush2.msra.mxu0 0.0
        %6150 = vmatprep.subr.mxu0 0.0
        %6151 = vmatpush2.msra.mxu0 0.0
        %6152 = vmatprep.subr.mxu0 0.0
        %6153 = vmatpush2.msra.mxu0 0.0
        %6154 = vmatprep.subr.mxu0 0.0
        %6155 = vmatpush2.msra.mxu0 0.0
        %6156 = vmatprep.subr.mxu0 0.0
        %6157 = vmatpush2.msra.mxu0 0.0
        %6158 = vmatprep.subr.mxu0 0.0
        %6159 = vmatpush2.msra.mxu0 0.0
        %6160 = vmatprep.subr.mxu0 0.0
        %6161 = vmatpush2.msra.mxu0 0.0
        %6162 = vmatprep.subr.mxu0 0.0
        %6163 = vmatpush2.msra.mxu0 0.0
        %6164 = vmatprep.subr.mxu0 0.0
        %6165 = vmatpush2.msra.mxu0 0.0
        %6166 = vmatprep.subr.mxu0 0.0
        %6167 = vmatpush2.msra.mxu0 0.0
        %6168 = vmatprep.subr.mxu0 0.0
        %6169 = vmatpush2.msra.mxu0 0.0
        %6170 = vmatprep.subr.mxu0 0.0
        %6171 = vmatpush2.msra.mxu0 0.0
        %6172 = vmatprep.subr.mxu0 0.0
        %6173 = vmatpush2.msra.mxu0 0.0
        %6174 = vmatprep.subr.mxu0 0.0
        %6175 = vmatpush2.msra.mxu0 0.0
        %6176 = vmatprep.mubr.f32.mxu0 0.0
        %6177 = vmatmul.mubr.f32.gmra.mxu0 %v6107
        %v6178 = vpop.f32.mrf.mxu0
        %v6179 = vadd.f32 %v6098, %v6178
        %v6180 = vpop.f32.mrf.mxu0
        %6181 = vmatprep.mubr.f32.mxu0 0.0
        %6182 = vmatmul.mubr.f32.gmra.mxu0 %v6110
        %v6183 = vpop.f32.mrf.mxu0
        %v6184 = vadd.f32 %v6103, %v6183
        %v6185 = vpop.f32.mrf.mxu0
        %6186 = vdwg.mxu0
        %s6187 = scalar_lea.vmem %s12, 256
        %v6188 = vld [vmem:[%s6187] sm:$0xff]
        %v6189 = vld [vmem:[%s6187 + $0x8] sm:$0xff]
        %v6190 = vld [vmem:[%s6187 + $0x10] sm:$0xff]
        %v6191 = vld [vmem:[%s6187 + $0x18] sm:$0xff]
        %v6193 = vsel %vm1011, %v6007, 0
        %v6196 = vsel %vm1011, %v6012, 0
        %6198 = vmatprep.subr.mxu0 0.0
        %6199 = vmatpush1.msra.mxu0 0.0
        %6200 = vmatprep.subr.mxu0 0.0
        %6201 = vmatpush1.msra.mxu0 0.0
        %6202 = vmatprep.subr.mxu0 0.0
        %6203 = vmatpush1.msra.mxu0 0.0
        %6204 = vmatprep.subr.mxu0 0.0
        %6205 = vmatpush1.msra.mxu0 0.0
        %6206 = vmatprep.subr.mxu0 0.0
        %6207 = vmatpush1.msra.mxu0 0.0
        %6208 = vmatprep.subr.mxu0 0.0
        %6209 = vmatpush1.msra.mxu0 0.0
        %6210 = vmatprep.subr.mxu0 0.0
        %6211 = vmatpush1.msra.mxu0 0.0
        %6212 = vmatprep.subr.mxu0 0.0
        %6213 = vmatpush1.msra.mxu0 0.0
        %6214 = vmatprep.subr.mxu0 0.0
        %6215 = vmatpush1.msra.mxu0 0.0
        %6216 = vmatprep.subr.mxu0 0.0
        %6217 = vmatpush1.msra.mxu0 0.0
        %6218 = vmatprep.subr.mxu0 0.0
        %6219 = vmatpush1.msra.mxu0 0.0
        %6220 = vmatprep.subr.mxu0 0.0
        %6221 = vmatpush1.msra.mxu0 0.0
        %6222 = vmatprep.subr.mxu0 0.0
        %6223 = vmatpush1.msra.mxu0 %v6191
        %6224 = vmatprep.subr.mxu0 0.0
        %6225 = vmatpush1.msra.mxu0 %v6190
        %6226 = vmatprep.subr.mxu0 0.0
        %6227 = vmatpush1.msra.mxu0 %v6189
        %6228 = vmatprep.subr.mxu0 0.0
        %6229 = vmatpush1.msra.mxu0 %v6188
        %6230 = vmatprep.subr.mxu0 0.0
        %6231 = vmatpush2.msra.mxu0 0.0
        %6232 = vmatprep.subr.mxu0 0.0
        %6233 = vmatpush2.msra.mxu0 0.0
        %6234 = vmatprep.subr.mxu0 0.0
        %6235 = vmatpush2.msra.mxu0 0.0
        %6236 = vmatprep.subr.mxu0 0.0
        %6237 = vmatpush2.msra.mxu0 0.0
        %6238 = vmatprep.subr.mxu0 0.0
        %6239 = vmatpush2.msra.mxu0 0.0
        %6240 = vmatprep.subr.mxu0 0.0
        %6241 = vmatpush2.msra.mxu0 0.0
        %6242 = vmatprep.subr.mxu0 0.0
        %6243 = vmatpush2.msra.mxu0 0.0
        %6244 = vmatprep.subr.mxu0 0.0
        %6245 = vmatpush2.msra.mxu0 0.0
        %6246 = vmatprep.subr.mxu0 0.0
        %6247 = vmatpush2.msra.mxu0 0.0
        %6248 = vmatprep.subr.mxu0 0.0
        %6249 = vmatpush2.msra.mxu0 0.0
        %6250 = vmatprep.subr.mxu0 0.0
        %6251 = vmatpush2.msra.mxu0 0.0
        %6252 = vmatprep.subr.mxu0 0.0
        %6253 = vmatpush2.msra.mxu0 0.0
        %6254 = vmatprep.subr.mxu0 0.0
        %6255 = vmatpush2.msra.mxu0 0.0
        %6256 = vmatprep.subr.mxu0 0.0
        %6257 = vmatpush2.msra.mxu0 0.0
        %6258 = vmatprep.subr.mxu0 0.0
        %6259 = vmatpush2.msra.mxu0 0.0
        %6260 = vmatprep.subr.mxu0 0.0
        %6261 = vmatpush2.msra.mxu0 0.0
        %6262 = vmatprep.mubr.f32.mxu0 0.0
        %6263 = vmatmul.mubr.f32.gmra.mxu0 %v6193
        %v6264 = vpop.f32.mrf.mxu0
        %v6265 = vadd.f32 0.0, %v6264
        %v6266 = vpop.f32.mrf.mxu0
        %6267 = vmatprep.mubr.f32.mxu0 0.0
        %6268 = vmatmul.mubr.f32.gmra.mxu0 %v6196
        %v6269 = vpop.f32.mrf.mxu0
        %v6270 = vadd.f32 0.0, %v6269
        %v6271 = vpop.f32.mrf.mxu0
        %6272 = vdwg.mxu0
        %v6273 = vadd.f32 %v6179, %v6265
        %v6274 = vadd.f32 %v6184, %v6270
        %v6275 = vadd.f32 %v5863, %v6273
        %v6276 = vadd.f32 %v5864, %v6274
        %v6278 = vlaneseq
        %v6279 = vshrl.u32 %v6278, 7
        %v6280 = vsub.s32 0, %v6279
        %v6281 = vrot.slane %v5043, %v6280
        %v6283 = vadd.f32 %v6275, %v6281
        %v6284 = vadd.f32 %v6276, %v6281
        %v6285 = vld [vmem:[%s14] sm:$0xff]
        %v6286 = vld [vmem:[%s14 + $0x8] sm:$0xff]
        %v6287 = vld [vmem:[%s14 + $0x10] sm:$0xff]
        %v6288 = vld [vmem:[%s14 + $0x18] sm:$0xff]
        %v6289 = vld [vmem:[#allocation22] sm:$0x1]
        %v6291 = vlaneseq
        %v6292 = vshrl.u32 %v6291, 7
        %v6293 = vsub.s32 0, %v6292
        %v6294 = vrot.slane %v6289, %v6293
        %v6297 = vsel %vm1011, %v6283, 0
        %v6300 = vsel %vm1011, %v6284, 0
        %6302 = vmatprep.subr.mxu0 0.0
        %6303 = vmatpush1.msra.mxu0 0.0
        %6304 = vmatprep.subr.mxu0 0.0
        %6305 = vmatpush1.msra.mxu0 0.0
        %6306 = vmatprep.subr.mxu0 0.0
        %6307 = vmatpush1.msra.mxu0 0.0
        %6308 = vmatprep.subr.mxu0 0.0
        %6309 = vmatpush1.msra.mxu0 0.0
        %6310 = vmatprep.subr.mxu0 0.0
        %6311 = vmatpush1.msra.mxu0 0.0
        %6312 = vmatprep.subr.mxu0 0.0
        %6313 = vmatpush1.msra.mxu0 0.0
        %6314 = vmatprep.subr.mxu0 0.0
        %6315 = vmatpush1.msra.mxu0 0.0
        %6316 = vmatprep.subr.mxu0 0.0
        %6317 = vmatpush1.msra.mxu0 0.0
        %6318 = vmatprep.subr.mxu0 0.0
        %6319 = vmatpush1.msra.mxu0 0.0
        %6320 = vmatprep.subr.mxu0 0.0
        %6321 = vmatpush1.msra.mxu0 0.0
        %6322 = vmatprep.subr.mxu0 0.0
        %6323 = vmatpush1.msra.mxu0 0.0
        %6324 = vmatprep.subr.mxu0 0.0
        %6325 = vmatpush1.msra.mxu0 0.0
        %6326 = vmatprep.subr.mxu0 0.0
        %6327 = vmatpush1.msra.mxu0 %v6288
        %6328 = vmatprep.subr.mxu0 0.0
        %6329 = vmatpush1.msra.mxu0 %v6287
        %6330 = vmatprep.subr.mxu0 0.0
        %6331 = vmatpush1.msra.mxu0 %v6286
        %6332 = vmatprep.subr.mxu0 0.0
        %6333 = vmatpush1.msra.mxu0 %v6285
        %6334 = vmatprep.subr.mxu0 0.0
        %6335 = vmatpush2.msra.mxu0 0.0
        %6336 = vmatprep.subr.mxu0 0.0
        %6337 = vmatpush2.msra.mxu0 0.0
        %6338 = vmatprep.subr.mxu0 0.0
        %6339 = vmatpush2.msra.mxu0 0.0
        %6340 = vmatprep.subr.mxu0 0.0
        %6341 = vmatpush2.msra.mxu0 0.0
        %6342 = vmatprep.subr.mxu0 0.0
        %6343 = vmatpush2.msra.mxu0 0.0
        %6344 = vmatprep.subr.mxu0 0.0
        %6345 = vmatpush2.msra.mxu0 0.0
        %6346 = vmatprep.subr.mxu0 0.0
        %6347 = vmatpush2.msra.mxu0 0.0
        %6348 = vmatprep.subr.mxu0 0.0
        %6349 = vmatpush2.msra.mxu0 0.0
        %6350 = vmatprep.subr.mxu0 0.0
        %6351 = vmatpush2.msra.mxu0 0.0
        %6352 = vmatprep.subr.mxu0 0.0
        %6353 = vmatpush2.msra.mxu0 0.0
        %6354 = vmatprep.subr.mxu0 0.0
        %6355 = vmatpush2.msra.mxu0 0.0
        %6356 = vmatprep.subr.mxu0 0.0
        %6357 = vmatpush2.msra.mxu0 0.0
        %6358 = vmatprep.subr.mxu0 0.0
        %6359 = vmatpush2.msra.mxu0 0.0
        %6360 = vmatprep.subr.mxu0 0.0
        %6361 = vmatpush2.msra.mxu0 0.0
        %6362 = vmatprep.subr.mxu0 0.0
        %6363 = vmatpush2.msra.mxu0 0.0
        %6364 = vmatprep.subr.mxu0 0.0
        %6365 = vmatpush2.msra.mxu0 0.0
        %6366 = vmatprep.mubr.f32.mxu0 0.0
        %6367 = vmatmul.mubr.f32.gmra.mxu0 %v6297
        %v6368 = vpop.f32.mrf.mxu0
        %v6369 = vadd.f32 %v6294, %v6368
        %v6370 = vpop.f32.mrf.mxu0
        %6371 = vmatprep.mubr.f32.mxu0 0.0
        %6372 = vmatmul.mubr.f32.gmra.mxu0 %v6300
        %v6373 = vpop.f32.mrf.mxu0
        %v6374 = vadd.f32 %v6294, %v6373
        %v6375 = vpop.f32.mrf.mxu0
        %6376 = vdwg.mxu0
        %v6377 = vld [vmem:[#allocation23] sm:$0x1]
        %v6378 = vld [vmem:[%s16] sm:$0xff]
        %v6379 = vld [vmem:[%s16 + $0x8] sm:$0xff]
        %v6380 = vld [vmem:[%s16 + $0x10] sm:$0xff]
        %v6381 = vld [vmem:[%s16 + $0x18] sm:$0xff]
        %v6383 = vsel %vm1011, %v6369, 0
        %6385 = vmatprep.subr.mxu0 0.0
        %6386 = vmatpush1.msra.mxu0 0.0
        %6387 = vmatprep.subr.mxu0 0.0
        %6388 = vmatpush1.msra.mxu0 0.0
        %6389 = vmatprep.subr.mxu0 0.0
        %6390 = vmatpush1.msra.mxu0 0.0
        %6391 = vmatprep.subr.mxu0 0.0
        %6392 = vmatpush1.msra.mxu0 0.0
        %6393 = vmatprep.subr.mxu0 0.0
        %6394 = vmatpush1.msra.mxu0 0.0
        %6395 = vmatprep.subr.mxu0 0.0
        %6396 = vmatpush1.msra.mxu0 0.0
        %6397 = vmatprep.subr.mxu0 0.0
        %6398 = vmatpush1.msra.mxu0 0.0
        %6399 = vmatprep.subr.mxu0 0.0
        %6400 = vmatpush1.msra.mxu0 0.0
        %6401 = vmatprep.subr.mxu0 0.0
        %6402 = vmatpush1.msra.mxu0 0.0
        %6403 = vmatprep.subr.mxu0 0.0
        %6404 = vmatpush1.msra.mxu0 0.0
        %6405 = vmatprep.subr.mxu0 0.0
        %6406 = vmatpush1.msra.mxu0 0.0
        %6407 = vmatprep.subr.mxu0 0.0
        %6408 = vmatpush1.msra.mxu0 0.0
        %6409 = vmatprep.subr.mxu0 0.0
        %6410 = vmatpush1.msra.mxu0 %v6381
        %6411 = vmatprep.subr.mxu0 0.0
        %6412 = vmatpush1.msra.mxu0 %v6380
        %6413 = vmatprep.subr.mxu0 0.0
        %6414 = vmatpush1.msra.mxu0 %v6379
        %6415 = vmatprep.subr.mxu0 0.0
        %6416 = vmatpush1.msra.mxu0 %v6378
        %6417 = vmatprep.subr.mxu0 0.0
        %6418 = vmatpush2.msra.mxu0 0.0
        %6419 = vmatprep.subr.mxu0 0.0
        %6420 = vmatpush2.msra.mxu0 0.0
        %6421 = vmatprep.subr.mxu0 0.0
        %6422 = vmatpush2.msra.mxu0 0.0
        %6423 = vmatprep.subr.mxu0 0.0
        %6424 = vmatpush2.msra.mxu0 0.0
        %6425 = vmatprep.subr.mxu0 0.0
        %6426 = vmatpush2.msra.mxu0 0.0
        %6427 = vmatprep.subr.mxu0 0.0
        %6428 = vmatpush2.msra.mxu0 0.0
        %6429 = vmatprep.subr.mxu0 0.0
        %6430 = vmatpush2.msra.mxu0 0.0
        %6431 = vmatprep.subr.mxu0 0.0
        %6432 = vmatpush2.msra.mxu0 0.0
        %6433 = vmatprep.subr.mxu0 0.0
        %6434 = vmatpush2.msra.mxu0 0.0
        %6435 = vmatprep.subr.mxu0 0.0
        %6436 = vmatpush2.msra.mxu0 0.0
        %6437 = vmatprep.subr.mxu0 0.0
        %6438 = vmatpush2.msra.mxu0 0.0
        %6439 = vmatprep.subr.mxu0 0.0
        %6440 = vmatpush2.msra.mxu0 0.0
        %6441 = vmatprep.subr.mxu0 0.0
        %6442 = vmatpush2.msra.mxu0 0.0
        %6443 = vmatprep.subr.mxu0 0.0
        %6444 = vmatpush2.msra.mxu0 0.0
        %6445 = vmatprep.subr.mxu0 0.0
        %6446 = vmatpush2.msra.mxu0 0.0
        %6447 = vmatprep.subr.mxu0 0.0
        %6448 = vmatpush2.msra.mxu0 0.0
        %6449 = vmatprep.mubr.f32.mxu0 0.0
        %6450 = vmatmul.mubr.f32.gmra.mxu0 %v6383
        %v6451 = vpop.f32.mrf.mxu0
        %v6452 = vadd.f32 0.0, %v6451
        %v6453 = vpop.f32.mrf.mxu0
        %6454 = vdwg.mxu0
        %v6455 = vadd.f32 %v6377, %v6452
        %s6456 = scalar_lea.vmem %s16, 32
        %v6457 = vld [vmem:[%s6456] sm:$0xff]
        %v6458 = vld [vmem:[%s6456 + $0x8] sm:$0xff]
        %v6459 = vld [vmem:[%s6456 + $0x10] sm:$0xff]
        %v6460 = vld [vmem:[%s6456 + $0x18] sm:$0xff]
        %v6461 = vrot.slane %v6369, 1
        %v6462 = vsel %vm1011, %v6461, 0
        %6464 = vmatprep.subr.mxu0 0.0
        %6465 = vmatpush1.msra.mxu0 0.0
        %6466 = vmatprep.subr.mxu0 0.0
        %6467 = vmatpush1.msra.mxu0 0.0
        %6468 = vmatprep.subr.mxu0 0.0
        %6469 = vmatpush1.msra.mxu0 0.0
        %6470 = vmatprep.subr.mxu0 0.0
        %6471 = vmatpush1.msra.mxu0 0.0
        %6472 = vmatprep.subr.mxu0 0.0
        %6473 = vmatpush1.msra.mxu0 0.0
        %6474 = vmatprep.subr.mxu0 0.0
        %6475 = vmatpush1.msra.mxu0 0.0
        %6476 = vmatprep.subr.mxu0 0.0
        %6477 = vmatpush1.msra.mxu0 0.0
        %6478 = vmatprep.subr.mxu0 0.0
        %6479 = vmatpush1.msra.mxu0 0.0
        %6480 = vmatprep.subr.mxu0 0.0
        %6481 = vmatpush1.msra.mxu0 0.0
        %6482 = vmatprep.subr.mxu0 0.0
        %6483 = vmatpush1.msra.mxu0 0.0
        %6484 = vmatprep.subr.mxu0 0.0
        %6485 = vmatpush1.msra.mxu0 0.0
        %6486 = vmatprep.subr.mxu0 0.0
        %6487 = vmatpush1.msra.mxu0 0.0
        %6488 = vmatprep.subr.mxu0 0.0
        %6489 = vmatpush1.msra.mxu0 %v6460
        %6490 = vmatprep.subr.mxu0 0.0
        %6491 = vmatpush1.msra.mxu0 %v6459
        %6492 = vmatprep.subr.mxu0 0.0
        %6493 = vmatpush1.msra.mxu0 %v6458
        %6494 = vmatprep.subr.mxu0 0.0
        %6495 = vmatpush1.msra.mxu0 %v6457
        %6496 = vmatprep.subr.mxu0 0.0
        %6497 = vmatpush2.msra.mxu0 0.0
        %6498 = vmatprep.subr.mxu0 0.0
        %6499 = vmatpush2.msra.mxu0 0.0
        %6500 = vmatprep.subr.mxu0 0.0
        %6501 = vmatpush2.msra.mxu0 0.0
        %6502 = vmatprep.subr.mxu0 0.0
        %6503 = vmatpush2.msra.mxu0 0.0
        %6504 = vmatprep.subr.mxu0 0.0
        %6505 = vmatpush2.msra.mxu0 0.0
        %6506 = vmatprep.subr.mxu0 0.0
        %6507 = vmatpush2.msra.mxu0 0.0
        %6508 = vmatprep.subr.mxu0 0.0
        %6509 = vmatpush2.msra.mxu0 0.0
        %6510 = vmatprep.subr.mxu0 0.0
        %6511 = vmatpush2.msra.mxu0 0.0
        %6512 = vmatprep.subr.mxu0 0.0
        %6513 = vmatpush2.msra.mxu0 0.0
        %6514 = vmatprep.subr.mxu0 0.0
        %6515 = vmatpush2.msra.mxu0 0.0
        %6516 = vmatprep.subr.mxu0 0.0
        %6517 = vmatpush2.msra.mxu0 0.0
        %6518 = vmatprep.subr.mxu0 0.0
        %6519 = vmatpush2.msra.mxu0 0.0
        %6520 = vmatprep.subr.mxu0 0.0
        %6521 = vmatpush2.msra.mxu0 0.0
        %6522 = vmatprep.subr.mxu0 0.0
        %6523 = vmatpush2.msra.mxu0 0.0
        %6524 = vmatprep.subr.mxu0 0.0
        %6525 = vmatpush2.msra.mxu0 0.0
        %6526 = vmatprep.subr.mxu0 0.0
        %6527 = vmatpush2.msra.mxu0 0.0
        %6528 = vmatprep.mubr.f32.mxu0 0.0
        %6529 = vmatmul.mubr.f32.gmra.mxu0 %v6462
        %v6530 = vpop.f32.mrf.mxu0
        %v6531 = vadd.f32 0.0, %v6530
        %v6532 = vpop.f32.mrf.mxu0
        %6533 = vdwg.mxu0
        %v6534 = vadd.f32 %v6455, %v6531
        %s6535 = scalar_lea.vmem %s16, 64
        %v6536 = vld [vmem:[%s6535] sm:$0xff]
        %v6537 = vld [vmem:[%s6535 + $0x8] sm:$0xff]
        %v6538 = vld [vmem:[%s6535 + $0x10] sm:$0xff]
        %v6539 = vld [vmem:[%s6535 + $0x18] sm:$0xff]
        %v6540 = vrot.slane %v6369, 2
        %v6541 = vsel %vm1011, %v6540, 0
        %6543 = vmatprep.subr.mxu0 0.0
        %6544 = vmatpush1.msra.mxu0 0.0
        %6545 = vmatprep.subr.mxu0 0.0
        %6546 = vmatpush1.msra.mxu0 0.0
        %6547 = vmatprep.subr.mxu0 0.0
        %6548 = vmatpush1.msra.mxu0 0.0
        %6549 = vmatprep.subr.mxu0 0.0
        %6550 = vmatpush1.msra.mxu0 0.0
        %6551 = vmatprep.subr.mxu0 0.0
        %6552 = vmatpush1.msra.mxu0 0.0
        %6553 = vmatprep.subr.mxu0 0.0
        %6554 = vmatpush1.msra.mxu0 0.0
        %6555 = vmatprep.subr.mxu0 0.0
        %6556 = vmatpush1.msra.mxu0 0.0
        %6557 = vmatprep.subr.mxu0 0.0
        %6558 = vmatpush1.msra.mxu0 0.0
        %6559 = vmatprep.subr.mxu0 0.0
        %6560 = vmatpush1.msra.mxu0 0.0
        %6561 = vmatprep.subr.mxu0 0.0
        %6562 = vmatpush1.msra.mxu0 0.0
        %6563 = vmatprep.subr.mxu0 0.0
        %6564 = vmatpush1.msra.mxu0 0.0
        %6565 = vmatprep.subr.mxu0 0.0
        %6566 = vmatpush1.msra.mxu0 0.0
        %6567 = vmatprep.subr.mxu0 0.0
        %6568 = vmatpush1.msra.mxu0 %v6539
        %6569 = vmatprep.subr.mxu0 0.0
        %6570 = vmatpush1.msra.mxu0 %v6538
        %6571 = vmatprep.subr.mxu0 0.0
        %6572 = vmatpush1.msra.mxu0 %v6537
        %6573 = vmatprep.subr.mxu0 0.0
        %6574 = vmatpush1.msra.mxu0 %v6536
        %6575 = vmatprep.subr.mxu0 0.0
        %6576 = vmatpush2.msra.mxu0 0.0
        %6577 = vmatprep.subr.mxu0 0.0
        %6578 = vmatpush2.msra.mxu0 0.0
        %6579 = vmatprep.subr.mxu0 0.0
        %6580 = vmatpush2.msra.mxu0 0.0
        %6581 = vmatprep.subr.mxu0 0.0
        %6582 = vmatpush2.msra.mxu0 0.0
        %6583 = vmatprep.subr.mxu0 0.0
        %6584 = vmatpush2.msra.mxu0 0.0
        %6585 = vmatprep.subr.mxu0 0.0
        %6586 = vmatpush2.msra.mxu0 0.0
        %6587 = vmatprep.subr.mxu0 0.0
        %6588 = vmatpush2.msra.mxu0 0.0
        %6589 = vmatprep.subr.mxu0 0.0
        %6590 = vmatpush2.msra.mxu0 0.0
        %6591 = vmatprep.subr.mxu0 0.0
        %6592 = vmatpush2.msra.mxu0 0.0
        %6593 = vmatprep.subr.mxu0 0.0
        %6594 = vmatpush2.msra.mxu0 0.0
        %6595 = vmatprep.subr.mxu0 0.0
        %6596 = vmatpush2.msra.mxu0 0.0
        %6597 = vmatprep.subr.mxu0 0.0
        %6598 = vmatpush2.msra.mxu0 0.0
        %6599 = vmatprep.subr.mxu0 0.0
        %6600 = vmatpush2.msra.mxu0 0.0
        %6601 = vmatprep.subr.mxu0 0.0
        %6602 = vmatpush2.msra.mxu0 0.0
        %6603 = vmatprep.subr.mxu0 0.0
        %6604 = vmatpush2.msra.mxu0 0.0
        %6605 = vmatprep.subr.mxu0 0.0
        %6606 = vmatpush2.msra.mxu0 0.0
        %6607 = vmatprep.mubr.f32.mxu0 0.0
        %6608 = vmatmul.mubr.f32.gmra.mxu0 %v6541
        %v6609 = vpop.f32.mrf.mxu0
        %v6610 = vadd.f32 0.0, %v6609
        %v6611 = vpop.f32.mrf.mxu0
        %6612 = vdwg.mxu0
        %v6613 = vadd.f32 %v6534, %v6610
        %s6614 = scalar_lea.vmem %s16, 96
        %v6615 = vld [vmem:[%s6614] sm:$0xff]
        %v6616 = vld [vmem:[%s6614 + $0x8] sm:$0xff]
        %v6617 = vld [vmem:[%s6614 + $0x10] sm:$0xff]
        %v6618 = vld [vmem:[%s6614 + $0x18] sm:$0xff]
        %v6619 = vrot.slane %v6369, 3
        %v6620 = vsel %vm1011, %v6619, 0
        %6622 = vmatprep.subr.mxu0 0.0
        %6623 = vmatpush1.msra.mxu0 0.0
        %6624 = vmatprep.subr.mxu0 0.0
        %6625 = vmatpush1.msra.mxu0 0.0
        %6626 = vmatprep.subr.mxu0 0.0
        %6627 = vmatpush1.msra.mxu0 0.0
        %6628 = vmatprep.subr.mxu0 0.0
        %6629 = vmatpush1.msra.mxu0 0.0
        %6630 = vmatprep.subr.mxu0 0.0
        %6631 = vmatpush1.msra.mxu0 0.0
        %6632 = vmatprep.subr.mxu0 0.0
        %6633 = vmatpush1.msra.mxu0 0.0
        %6634 = vmatprep.subr.mxu0 0.0
        %6635 = vmatpush1.msra.mxu0 0.0
        %6636 = vmatprep.subr.mxu0 0.0
        %6637 = vmatpush1.msra.mxu0 0.0
        %6638 = vmatprep.subr.mxu0 0.0
        %6639 = vmatpush1.msra.mxu0 0.0
        %6640 = vmatprep.subr.mxu0 0.0
        %6641 = vmatpush1.msra.mxu0 0.0
        %6642 = vmatprep.subr.mxu0 0.0
        %6643 = vmatpush1.msra.mxu0 0.0
        %6644 = vmatprep.subr.mxu0 0.0
        %6645 = vmatpush1.msra.mxu0 0.0
        %6646 = vmatprep.subr.mxu0 0.0
        %6647 = vmatpush1.msra.mxu0 %v6618
        %6648 = vmatprep.subr.mxu0 0.0
        %6649 = vmatpush1.msra.mxu0 %v6617
        %6650 = vmatprep.subr.mxu0 0.0
        %6651 = vmatpush1.msra.mxu0 %v6616
        %6652 = vmatprep.subr.mxu0 0.0
        %6653 = vmatpush1.msra.mxu0 %v6615
        %6654 = vmatprep.subr.mxu0 0.0
        %6655 = vmatpush2.msra.mxu0 0.0
        %6656 = vmatprep.subr.mxu0 0.0
        %6657 = vmatpush2.msra.mxu0 0.0
        %6658 = vmatprep.subr.mxu0 0.0
        %6659 = vmatpush2.msra.mxu0 0.0
        %6660 = vmatprep.subr.mxu0 0.0
        %6661 = vmatpush2.msra.mxu0 0.0
        %6662 = vmatprep.subr.mxu0 0.0
        %6663 = vmatpush2.msra.mxu0 0.0
        %6664 = vmatprep.subr.mxu0 0.0
        %6665 = vmatpush2.msra.mxu0 0.0
        %6666 = vmatprep.subr.mxu0 0.0
        %6667 = vmatpush2.msra.mxu0 0.0
        %6668 = vmatprep.subr.mxu0 0.0
        %6669 = vmatpush2.msra.mxu0 0.0
        %6670 = vmatprep.subr.mxu0 0.0
        %6671 = vmatpush2.msra.mxu0 0.0
        %6672 = vmatprep.subr.mxu0 0.0
        %6673 = vmatpush2.msra.mxu0 0.0
        %6674 = vmatprep.subr.mxu0 0.0
        %6675 = vmatpush2.msra.mxu0 0.0
        %6676 = vmatprep.subr.mxu0 0.0
        %6677 = vmatpush2.msra.mxu0 0.0
        %6678 = vmatprep.subr.mxu0 0.0
        %6679 = vmatpush2.msra.mxu0 0.0
        %6680 = vmatprep.subr.mxu0 0.0
        %6681 = vmatpush2.msra.mxu0 0.0
        %6682 = vmatprep.subr.mxu0 0.0
        %6683 = vmatpush2.msra.mxu0 0.0
        %6684 = vmatprep.subr.mxu0 0.0
        %6685 = vmatpush2.msra.mxu0 0.0
        %6686 = vmatprep.mubr.f32.mxu0 0.0
        %6687 = vmatmul.mubr.f32.gmra.mxu0 %v6620
        %v6688 = vpop.f32.mrf.mxu0
        %v6689 = vadd.f32 0.0, %v6688
        %v6690 = vpop.f32.mrf.mxu0
        %6691 = vdwg.mxu0
        %v6692 = vadd.f32 %v6613, %v6689
        %s6693 = scalar_lea.vmem %s16, 128
        %v6694 = vld [vmem:[%s6693] sm:$0xff]
        %v6695 = vld [vmem:[%s6693 + $0x8] sm:$0xff]
        %v6696 = vld [vmem:[%s6693 + $0x10] sm:$0xff]
        %v6697 = vld [vmem:[%s6693 + $0x18] sm:$0xff]
        %v6698 = vrot.slane %v6369, 4
        %v6699 = vsel %vm1011, %v6698, 0
        %6701 = vmatprep.subr.mxu0 0.0
        %6702 = vmatpush1.msra.mxu0 0.0
        %6703 = vmatprep.subr.mxu0 0.0
        %6704 = vmatpush1.msra.mxu0 0.0
        %6705 = vmatprep.subr.mxu0 0.0
        %6706 = vmatpush1.msra.mxu0 0.0
        %6707 = vmatprep.subr.mxu0 0.0
        %6708 = vmatpush1.msra.mxu0 0.0
        %6709 = vmatprep.subr.mxu0 0.0
        %6710 = vmatpush1.msra.mxu0 0.0
        %6711 = vmatprep.subr.mxu0 0.0
        %6712 = vmatpush1.msra.mxu0 0.0
        %6713 = vmatprep.subr.mxu0 0.0
        %6714 = vmatpush1.msra.mxu0 0.0
        %6715 = vmatprep.subr.mxu0 0.0
        %6716 = vmatpush1.msra.mxu0 0.0
        %6717 = vmatprep.subr.mxu0 0.0
        %6718 = vmatpush1.msra.mxu0 0.0
        %6719 = vmatprep.subr.mxu0 0.0
        %6720 = vmatpush1.msra.mxu0 0.0
        %6721 = vmatprep.subr.mxu0 0.0
        %6722 = vmatpush1.msra.mxu0 0.0
        %6723 = vmatprep.subr.mxu0 0.0
        %6724 = vmatpush1.msra.mxu0 0.0
        %6725 = vmatprep.subr.mxu0 0.0
        %6726 = vmatpush1.msra.mxu0 %v6697
        %6727 = vmatprep.subr.mxu0 0.0
        %6728 = vmatpush1.msra.mxu0 %v6696
        %6729 = vmatprep.subr.mxu0 0.0
        %6730 = vmatpush1.msra.mxu0 %v6695
        %6731 = vmatprep.subr.mxu0 0.0
        %6732 = vmatpush1.msra.mxu0 %v6694
        %6733 = vmatprep.subr.mxu0 0.0
        %6734 = vmatpush2.msra.mxu0 0.0
        %6735 = vmatprep.subr.mxu0 0.0
        %6736 = vmatpush2.msra.mxu0 0.0
        %6737 = vmatprep.subr.mxu0 0.0
        %6738 = vmatpush2.msra.mxu0 0.0
        %6739 = vmatprep.subr.mxu0 0.0
        %6740 = vmatpush2.msra.mxu0 0.0
        %6741 = vmatprep.subr.mxu0 0.0
        %6742 = vmatpush2.msra.mxu0 0.0
        %6743 = vmatprep.subr.mxu0 0.0
        %6744 = vmatpush2.msra.mxu0 0.0
        %6745 = vmatprep.subr.mxu0 0.0
        %6746 = vmatpush2.msra.mxu0 0.0
        %6747 = vmatprep.subr.mxu0 0.0
        %6748 = vmatpush2.msra.mxu0 0.0
        %6749 = vmatprep.subr.mxu0 0.0
        %6750 = vmatpush2.msra.mxu0 0.0
        %6751 = vmatprep.subr.mxu0 0.0
        %6752 = vmatpush2.msra.mxu0 0.0
        %6753 = vmatprep.subr.mxu0 0.0
        %6754 = vmatpush2.msra.mxu0 0.0
        %6755 = vmatprep.subr.mxu0 0.0
        %6756 = vmatpush2.msra.mxu0 0.0
        %6757 = vmatprep.subr.mxu0 0.0
        %6758 = vmatpush2.msra.mxu0 0.0
        %6759 = vmatprep.subr.mxu0 0.0
        %6760 = vmatpush2.msra.mxu0 0.0
        %6761 = vmatprep.subr.mxu0 0.0
        %6762 = vmatpush2.msra.mxu0 0.0
        %6763 = vmatprep.subr.mxu0 0.0
        %6764 = vmatpush2.msra.mxu0 0.0
        %6765 = vmatprep.mubr.f32.mxu0 0.0
        %6766 = vmatmul.mubr.f32.gmra.mxu0 %v6699
        %v6767 = vpop.f32.mrf.mxu0
        %v6768 = vadd.f32 0.0, %v6767
        %v6769 = vpop.f32.mrf.mxu0
        %6770 = vdwg.mxu0
        %v6771 = vadd.f32 %v6692, %v6768
        %s6772 = scalar_lea.vmem %s16, 160
        %v6773 = vld [vmem:[%s6772] sm:$0xff]
        %v6774 = vld [vmem:[%s6772 + $0x8] sm:$0xff]
        %v6775 = vld [vmem:[%s6772 + $0x10] sm:$0xff]
        %v6776 = vld [vmem:[%s6772 + $0x18] sm:$0xff]
        %v6777 = vrot.slane %v6369, 5
        %v6778 = vsel %vm1011, %v6777, 0
        %6780 = vmatprep.subr.mxu0 0.0
        %6781 = vmatpush1.msra.mxu0 0.0
        %6782 = vmatprep.subr.mxu0 0.0
        %6783 = vmatpush1.msra.mxu0 0.0
        %6784 = vmatprep.subr.mxu0 0.0
        %6785 = vmatpush1.msra.mxu0 0.0
        %6786 = vmatprep.subr.mxu0 0.0
        %6787 = vmatpush1.msra.mxu0 0.0
        %6788 = vmatprep.subr.mxu0 0.0
        %6789 = vmatpush1.msra.mxu0 0.0
        %6790 = vmatprep.subr.mxu0 0.0
        %6791 = vmatpush1.msra.mxu0 0.0
        %6792 = vmatprep.subr.mxu0 0.0
        %6793 = vmatpush1.msra.mxu0 0.0
        %6794 = vmatprep.subr.mxu0 0.0
        %6795 = vmatpush1.msra.mxu0 0.0
        %6796 = vmatprep.subr.mxu0 0.0
        %6797 = vmatpush1.msra.mxu0 0.0
        %6798 = vmatprep.subr.mxu0 0.0
        %6799 = vmatpush1.msra.mxu0 0.0
        %6800 = vmatprep.subr.mxu0 0.0
        %6801 = vmatpush1.msra.mxu0 0.0
        %6802 = vmatprep.subr.mxu0 0.0
        %6803 = vmatpush1.msra.mxu0 0.0
        %6804 = vmatprep.subr.mxu0 0.0
        %6805 = vmatpush1.msra.mxu0 %v6776
        %6806 = vmatprep.subr.mxu0 0.0
        %6807 = vmatpush1.msra.mxu0 %v6775
        %6808 = vmatprep.subr.mxu0 0.0
        %6809 = vmatpush1.msra.mxu0 %v6774
        %6810 = vmatprep.subr.mxu0 0.0
        %6811 = vmatpush1.msra.mxu0 %v6773
        %6812 = vmatprep.subr.mxu0 0.0
        %6813 = vmatpush2.msra.mxu0 0.0
        %6814 = vmatprep.subr.mxu0 0.0
        %6815 = vmatpush2.msra.mxu0 0.0
        %6816 = vmatprep.subr.mxu0 0.0
        %6817 = vmatpush2.msra.mxu0 0.0
        %6818 = vmatprep.subr.mxu0 0.0
        %6819 = vmatpush2.msra.mxu0 0.0
        %6820 = vmatprep.subr.mxu0 0.0
        %6821 = vmatpush2.msra.mxu0 0.0
        %6822 = vmatprep.subr.mxu0 0.0
        %6823 = vmatpush2.msra.mxu0 0.0
        %6824 = vmatprep.subr.mxu0 0.0
        %6825 = vmatpush2.msra.mxu0 0.0
        %6826 = vmatprep.subr.mxu0 0.0
        %6827 = vmatpush2.msra.mxu0 0.0
        %6828 = vmatprep.subr.mxu0 0.0
        %6829 = vmatpush2.msra.mxu0 0.0
        %6830 = vmatprep.subr.mxu0 0.0
        %6831 = vmatpush2.msra.mxu0 0.0
        %6832 = vmatprep.subr.mxu0 0.0
        %6833 = vmatpush2.msra.mxu0 0.0
        %6834 = vmatprep.subr.mxu0 0.0
        %6835 = vmatpush2.msra.mxu0 0.0
        %6836 = vmatprep.subr.mxu0 0.0
        %6837 = vmatpush2.msra.mxu0 0.0
        %6838 = vmatprep.subr.mxu0 0.0
        %6839 = vmatpush2.msra.mxu0 0.0
        %6840 = vmatprep.subr.mxu0 0.0
        %6841 = vmatpush2.msra.mxu0 0.0
        %6842 = vmatprep.subr.mxu0 0.0
        %6843 = vmatpush2.msra.mxu0 0.0
        %6844 = vmatprep.mubr.f32.mxu0 0.0
        %6845 = vmatmul.mubr.f32.gmra.mxu0 %v6778
        %v6846 = vpop.f32.mrf.mxu0
        %v6847 = vadd.f32 0.0, %v6846
        %v6848 = vpop.f32.mrf.mxu0
        %6849 = vdwg.mxu0
        %v6850 = vadd.f32 %v6771, %v6847
        %s6851 = scalar_lea.vmem %s16, 192
        %v6852 = vld [vmem:[%s6851] sm:$0xff]
        %v6853 = vld [vmem:[%s6851 + $0x8] sm:$0xff]
        %v6854 = vld [vmem:[%s6851 + $0x10] sm:$0xff]
        %v6855 = vld [vmem:[%s6851 + $0x18] sm:$0xff]
        %v6856 = vrot.slane %v6369, 6
        %v6857 = vsel %vm1011, %v6856, 0
        %6859 = vmatprep.subr.mxu0 0.0
        %6860 = vmatpush1.msra.mxu0 0.0
        %6861 = vmatprep.subr.mxu0 0.0
        %6862 = vmatpush1.msra.mxu0 0.0
        %6863 = vmatprep.subr.mxu0 0.0
        %6864 = vmatpush1.msra.mxu0 0.0
        %6865 = vmatprep.subr.mxu0 0.0
        %6866 = vmatpush1.msra.mxu0 0.0
        %6867 = vmatprep.subr.mxu0 0.0
        %6868 = vmatpush1.msra.mxu0 0.0
        %6869 = vmatprep.subr.mxu0 0.0
        %6870 = vmatpush1.msra.mxu0 0.0
        %6871 = vmatprep.subr.mxu0 0.0
        %6872 = vmatpush1.msra.mxu0 0.0
        %6873 = vmatprep.subr.mxu0 0.0
        %6874 = vmatpush1.msra.mxu0 0.0
        %6875 = vmatprep.subr.mxu0 0.0
        %6876 = vmatpush1.msra.mxu0 0.0
        %6877 = vmatprep.subr.mxu0 0.0
        %6878 = vmatpush1.msra.mxu0 0.0
        %6879 = vmatprep.subr.mxu0 0.0
        %6880 = vmatpush1.msra.mxu0 0.0
        %6881 = vmatprep.subr.mxu0 0.0
        %6882 = vmatpush1.msra.mxu0 0.0
        %6883 = vmatprep.subr.mxu0 0.0
        %6884 = vmatpush1.msra.mxu0 %v6855
        %6885 = vmatprep.subr.mxu0 0.0
        %6886 = vmatpush1.msra.mxu0 %v6854
        %6887 = vmatprep.subr.mxu0 0.0
        %6888 = vmatpush1.msra.mxu0 %v6853
        %6889 = vmatprep.subr.mxu0 0.0
        %6890 = vmatpush1.msra.mxu0 %v6852
        %6891 = vmatprep.subr.mxu0 0.0
        %6892 = vmatpush2.msra.mxu0 0.0
        %6893 = vmatprep.subr.mxu0 0.0
        %6894 = vmatpush2.msra.mxu0 0.0
        %6895 = vmatprep.subr.mxu0 0.0
        %6896 = vmatpush2.msra.mxu0 0.0
        %6897 = vmatprep.subr.mxu0 0.0
        %6898 = vmatpush2.msra.mxu0 0.0
        %6899 = vmatprep.subr.mxu0 0.0
        %6900 = vmatpush2.msra.mxu0 0.0
        %6901 = vmatprep.subr.mxu0 0.0
        %6902 = vmatpush2.msra.mxu0 0.0
        %6903 = vmatprep.subr.mxu0 0.0
        %6904 = vmatpush2.msra.mxu0 0.0
        %6905 = vmatprep.subr.mxu0 0.0
        %6906 = vmatpush2.msra.mxu0 0.0
        %6907 = vmatprep.subr.mxu0 0.0
        %6908 = vmatpush2.msra.mxu0 0.0
        %6909 = vmatprep.subr.mxu0 0.0
        %6910 = vmatpush2.msra.mxu0 0.0
        %6911 = vmatprep.subr.mxu0 0.0
        %6912 = vmatpush2.msra.mxu0 0.0
        %6913 = vmatprep.subr.mxu0 0.0
        %6914 = vmatpush2.msra.mxu0 0.0
        %6915 = vmatprep.subr.mxu0 0.0
        %6916 = vmatpush2.msra.mxu0 0.0
        %6917 = vmatprep.subr.mxu0 0.0
        %6918 = vmatpush2.msra.mxu0 0.0
        %6919 = vmatprep.subr.mxu0 0.0
        %6920 = vmatpush2.msra.mxu0 0.0
        %6921 = vmatprep.subr.mxu0 0.0
        %6922 = vmatpush2.msra.mxu0 0.0
        %6923 = vmatprep.mubr.f32.mxu0 0.0
        %6924 = vmatmul.mubr.f32.gmra.mxu0 %v6857
        %v6925 = vpop.f32.mrf.mxu0
        %v6926 = vadd.f32 0.0, %v6925
        %v6927 = vpop.f32.mrf.mxu0
        %6928 = vdwg.mxu0
        %v6929 = vadd.f32 %v6850, %v6926
        %s6930 = scalar_lea.vmem %s16, 224
        %v6931 = vld [vmem:[%s6930] sm:$0xff]
        %v6932 = vld [vmem:[%s6930 + $0x8] sm:$0xff]
        %v6933 = vld [vmem:[%s6930 + $0x10] sm:$0xff]
        %v6934 = vld [vmem:[%s6930 + $0x18] sm:$0xff]
        %v6935 = vrot.slane %v6369, 7
        %v6936 = vsel %vm1011, %v6935, 0
        %6938 = vmatprep.subr.mxu0 0.0
        %6939 = vmatpush1.msra.mxu0 0.0
        %6940 = vmatprep.subr.mxu0 0.0
        %6941 = vmatpush1.msra.mxu0 0.0
        %6942 = vmatprep.subr.mxu0 0.0
        %6943 = vmatpush1.msra.mxu0 0.0
        %6944 = vmatprep.subr.mxu0 0.0
        %6945 = vmatpush1.msra.mxu0 0.0
        %6946 = vmatprep.subr.mxu0 0.0
        %6947 = vmatpush1.msra.mxu0 0.0
        %6948 = vmatprep.subr.mxu0 0.0
        %6949 = vmatpush1.msra.mxu0 0.0
        %6950 = vmatprep.subr.mxu0 0.0
        %6951 = vmatpush1.msra.mxu0 0.0
        %6952 = vmatprep.subr.mxu0 0.0
        %6953 = vmatpush1.msra.mxu0 0.0
        %6954 = vmatprep.subr.mxu0 0.0
        %6955 = vmatpush1.msra.mxu0 0.0
        %6956 = vmatprep.subr.mxu0 0.0
        %6957 = vmatpush1.msra.mxu0 0.0
        %6958 = vmatprep.subr.mxu0 0.0
        %6959 = vmatpush1.msra.mxu0 0.0
        %6960 = vmatprep.subr.mxu0 0.0
        %6961 = vmatpush1.msra.mxu0 0.0
        %6962 = vmatprep.subr.mxu0 0.0
        %6963 = vmatpush1.msra.mxu0 %v6934
        %6964 = vmatprep.subr.mxu0 0.0
        %6965 = vmatpush1.msra.mxu0 %v6933
        %6966 = vmatprep.subr.mxu0 0.0
        %6967 = vmatpush1.msra.mxu0 %v6932
        %6968 = vmatprep.subr.mxu0 0.0
        %6969 = vmatpush1.msra.mxu0 %v6931
        %6970 = vmatprep.subr.mxu0 0.0
        %6971 = vmatpush2.msra.mxu0 0.0
        %6972 = vmatprep.subr.mxu0 0.0
        %6973 = vmatpush2.msra.mxu0 0.0
        %6974 = vmatprep.subr.mxu0 0.0
        %6975 = vmatpush2.msra.mxu0 0.0
        %6976 = vmatprep.subr.mxu0 0.0
        %6977 = vmatpush2.msra.mxu0 0.0
        %6978 = vmatprep.subr.mxu0 0.0
        %6979 = vmatpush2.msra.mxu0 0.0
        %6980 = vmatprep.subr.mxu0 0.0
        %6981 = vmatpush2.msra.mxu0 0.0
        %6982 = vmatprep.subr.mxu0 0.0
        %6983 = vmatpush2.msra.mxu0 0.0
        %6984 = vmatprep.subr.mxu0 0.0
        %6985 = vmatpush2.msra.mxu0 0.0
        %6986 = vmatprep.subr.mxu0 0.0
        %6987 = vmatpush2.msra.mxu0 0.0
        %6988 = vmatprep.subr.mxu0 0.0
        %6989 = vmatpush2.msra.mxu0 0.0
        %6990 = vmatprep.subr.mxu0 0.0
        %6991 = vmatpush2.msra.mxu0 0.0
        %6992 = vmatprep.subr.mxu0 0.0
        %6993 = vmatpush2.msra.mxu0 0.0
        %6994 = vmatprep.subr.mxu0 0.0
        %6995 = vmatpush2.msra.mxu0 0.0
        %6996 = vmatprep.subr.mxu0 0.0
        %6997 = vmatpush2.msra.mxu0 0.0
        %6998 = vmatprep.subr.mxu0 0.0
        %6999 = vmatpush2.msra.mxu0 0.0
        %7000 = vmatprep.subr.mxu0 0.0
        %7001 = vmatpush2.msra.mxu0 0.0
        %7002 = vmatprep.mubr.f32.mxu0 0.0
        %7003 = vmatmul.mubr.f32.gmra.mxu0 %v6936
        %v7004 = vpop.f32.mrf.mxu0
        %v7005 = vadd.f32 0.0, %v7004
        %v7006 = vpop.f32.mrf.mxu0
        %7007 = vdwg.mxu0
        %v7008 = vadd.f32 %v6929, %v7005
        %s7009 = scalar_lea.vmem %s16, 256
        %v7010 = vld [vmem:[%s7009] sm:$0xff]
        %v7011 = vld [vmem:[%s7009 + $0x8] sm:$0xff]
        %v7012 = vld [vmem:[%s7009 + $0x10] sm:$0xff]
        %v7013 = vld [vmem:[%s7009 + $0x18] sm:$0xff]
        %v7015 = vsel %vm1011, %v6374, 0
        %7017 = vmatprep.subr.mxu0 0.0
        %7018 = vmatpush1.msra.mxu0 0.0
        %7019 = vmatprep.subr.mxu0 0.0
        %7020 = vmatpush1.msra.mxu0 0.0
        %7021 = vmatprep.subr.mxu0 0.0
        %7022 = vmatpush1.msra.mxu0 0.0
        %7023 = vmatprep.subr.mxu0 0.0
        %7024 = vmatpush1.msra.mxu0 0.0
        %7025 = vmatprep.subr.mxu0 0.0
        %7026 = vmatpush1.msra.mxu0 0.0
        %7027 = vmatprep.subr.mxu0 0.0
        %7028 = vmatpush1.msra.mxu0 0.0
        %7029 = vmatprep.subr.mxu0 0.0
        %7030 = vmatpush1.msra.mxu0 0.0
        %7031 = vmatprep.subr.mxu0 0.0
        %7032 = vmatpush1.msra.mxu0 0.0
        %7033 = vmatprep.subr.mxu0 0.0
        %7034 = vmatpush1.msra.mxu0 0.0
        %7035 = vmatprep.subr.mxu0 0.0
        %7036 = vmatpush1.msra.mxu0 0.0
        %7037 = vmatprep.subr.mxu0 0.0
        %7038 = vmatpush1.msra.mxu0 0.0
        %7039 = vmatprep.subr.mxu0 0.0
        %7040 = vmatpush1.msra.mxu0 0.0
        %7041 = vmatprep.subr.mxu0 0.0
        %7042 = vmatpush1.msra.mxu0 %v7013
        %7043 = vmatprep.subr.mxu0 0.0
        %7044 = vmatpush1.msra.mxu0 %v7012
        %7045 = vmatprep.subr.mxu0 0.0
        %7046 = vmatpush1.msra.mxu0 %v7011
        %7047 = vmatprep.subr.mxu0 0.0
        %7048 = vmatpush1.msra.mxu0 %v7010
        %7049 = vmatprep.subr.mxu0 0.0
        %7050 = vmatpush2.msra.mxu0 0.0
        %7051 = vmatprep.subr.mxu0 0.0
        %7052 = vmatpush2.msra.mxu0 0.0
        %7053 = vmatprep.subr.mxu0 0.0
        %7054 = vmatpush2.msra.mxu0 0.0
        %7055 = vmatprep.subr.mxu0 0.0
        %7056 = vmatpush2.msra.mxu0 0.0
        %7057 = vmatprep.subr.mxu0 0.0
        %7058 = vmatpush2.msra.mxu0 0.0
        %7059 = vmatprep.subr.mxu0 0.0
        %7060 = vmatpush2.msra.mxu0 0.0
        %7061 = vmatprep.subr.mxu0 0.0
        %7062 = vmatpush2.msra.mxu0 0.0
        %7063 = vmatprep.subr.mxu0 0.0
        %7064 = vmatpush2.msra.mxu0 0.0
        %7065 = vmatprep.subr.mxu0 0.0
        %7066 = vmatpush2.msra.mxu0 0.0
        %7067 = vmatprep.subr.mxu0 0.0
        %7068 = vmatpush2.msra.mxu0 0.0
        %7069 = vmatprep.subr.mxu0 0.0
        %7070 = vmatpush2.msra.mxu0 0.0
        %7071 = vmatprep.subr.mxu0 0.0
        %7072 = vmatpush2.msra.mxu0 0.0
        %7073 = vmatprep.subr.mxu0 0.0
        %7074 = vmatpush2.msra.mxu0 0.0
        %7075 = vmatprep.subr.mxu0 0.0
        %7076 = vmatpush2.msra.mxu0 0.0
        %7077 = vmatprep.subr.mxu0 0.0
        %7078 = vmatpush2.msra.mxu0 0.0
        %7079 = vmatprep.subr.mxu0 0.0
        %7080 = vmatpush2.msra.mxu0 0.0
        %7081 = vmatprep.mubr.f32.mxu0 0.0
        %7082 = vmatmul.mubr.f32.gmra.mxu0 %v7015
        %v7083 = vpop.f32.mrf.mxu0
        %v7084 = vadd.f32 0.0, %v7083
        %v7085 = vpop.f32.mrf.mxu0
        %7086 = vdwg.mxu0
        %v7087 = vadd.f32 %v7008, %v7084
        %s7088 = scalar_lea.vmem %s16, 288
        %v7089 = vld [vmem:[%s7088] sm:$0xff]
        %v7090 = vld [vmem:[%s7088 + $0x8] sm:$0xff]
        %v7091 = vld [vmem:[%s7088 + $0x10] sm:$0xff]
        %v7092 = vld [vmem:[%s7088 + $0x18] sm:$0xff]
        %v7093 = vrot.slane %v6374, 1
        %v7094 = vsel %vm1011, %v7093, 0
        %7096 = vmatprep.subr.mxu0 0.0
        %7097 = vmatpush1.msra.mxu0 0.0
        %7098 = vmatprep.subr.mxu0 0.0
        %7099 = vmatpush1.msra.mxu0 0.0
        %7100 = vmatprep.subr.mxu0 0.0
        %7101 = vmatpush1.msra.mxu0 0.0
        %7102 = vmatprep.subr.mxu0 0.0
        %7103 = vmatpush1.msra.mxu0 0.0
        %7104 = vmatprep.subr.mxu0 0.0
        %7105 = vmatpush1.msra.mxu0 0.0
        %7106 = vmatprep.subr.mxu0 0.0
        %7107 = vmatpush1.msra.mxu0 0.0
        %7108 = vmatprep.subr.mxu0 0.0
        %7109 = vmatpush1.msra.mxu0 0.0
        %7110 = vmatprep.subr.mxu0 0.0
        %7111 = vmatpush1.msra.mxu0 0.0
        %7112 = vmatprep.subr.mxu0 0.0
        %7113 = vmatpush1.msra.mxu0 0.0
        %7114 = vmatprep.subr.mxu0 0.0
        %7115 = vmatpush1.msra.mxu0 0.0
        %7116 = vmatprep.subr.mxu0 0.0
        %7117 = vmatpush1.msra.mxu0 0.0
        %7118 = vmatprep.subr.mxu0 0.0
        %7119 = vmatpush1.msra.mxu0 0.0
        %7120 = vmatprep.subr.mxu0 0.0
        %7121 = vmatpush1.msra.mxu0 %v7092
        %7122 = vmatprep.subr.mxu0 0.0
        %7123 = vmatpush1.msra.mxu0 %v7091
        %7124 = vmatprep.subr.mxu0 0.0
        %7125 = vmatpush1.msra.mxu0 %v7090
        %7126 = vmatprep.subr.mxu0 0.0
        %7127 = vmatpush1.msra.mxu0 %v7089
        %7128 = vmatprep.subr.mxu0 0.0
        %7129 = vmatpush2.msra.mxu0 0.0
        %7130 = vmatprep.subr.mxu0 0.0
        %7131 = vmatpush2.msra.mxu0 0.0
        %7132 = vmatprep.subr.mxu0 0.0
        %7133 = vmatpush2.msra.mxu0 0.0
        %7134 = vmatprep.subr.mxu0 0.0
        %7135 = vmatpush2.msra.mxu0 0.0
        %7136 = vmatprep.subr.mxu0 0.0
        %7137 = vmatpush2.msra.mxu0 0.0
        %7138 = vmatprep.subr.mxu0 0.0
        %7139 = vmatpush2.msra.mxu0 0.0
        %7140 = vmatprep.subr.mxu0 0.0
        %7141 = vmatpush2.msra.mxu0 0.0
        %7142 = vmatprep.subr.mxu0 0.0
        %7143 = vmatpush2.msra.mxu0 0.0
        %7144 = vmatprep.subr.mxu0 0.0
        %7145 = vmatpush2.msra.mxu0 0.0
        %7146 = vmatprep.subr.mxu0 0.0
        %7147 = vmatpush2.msra.mxu0 0.0
        %7148 = vmatprep.subr.mxu0 0.0
        %7149 = vmatpush2.msra.mxu0 0.0
        %7150 = vmatprep.subr.mxu0 0.0
        %7151 = vmatpush2.msra.mxu0 0.0
        %7152 = vmatprep.subr.mxu0 0.0
        %7153 = vmatpush2.msra.mxu0 0.0
        %7154 = vmatprep.subr.mxu0 0.0
        %7155 = vmatpush2.msra.mxu0 0.0
        %7156 = vmatprep.subr.mxu0 0.0
        %7157 = vmatpush2.msra.mxu0 0.0
        %7158 = vmatprep.subr.mxu0 0.0
        %7159 = vmatpush2.msra.mxu0 0.0
        %7160 = vmatprep.mubr.f32.mxu0 0.0
        %7161 = vmatmul.mubr.f32.gmra.mxu0 %v7094
        %v7162 = vpop.f32.mrf.mxu0
        %v7163 = vadd.f32 0.0, %v7162
        %v7164 = vpop.f32.mrf.mxu0
        %7165 = vdwg.mxu0
        %v7166 = vadd.f32 %v7087, %v7163
        %s7167 = scalar_lea.vmem %s16, 320
        %v7168 = vld [vmem:[%s7167] sm:$0xff]
        %v7169 = vld [vmem:[%s7167 + $0x8] sm:$0xff]
        %v7170 = vld [vmem:[%s7167 + $0x10] sm:$0xff]
        %v7171 = vld [vmem:[%s7167 + $0x18] sm:$0xff]
        %v7172 = vrot.slane %v6374, 2
        %v7173 = vsel %vm1011, %v7172, 0
        %7175 = vmatprep.subr.mxu0 0.0
        %7176 = vmatpush1.msra.mxu0 0.0
        %7177 = vmatprep.subr.mxu0 0.0
        %7178 = vmatpush1.msra.mxu0 0.0
        %7179 = vmatprep.subr.mxu0 0.0
        %7180 = vmatpush1.msra.mxu0 0.0
        %7181 = vmatprep.subr.mxu0 0.0
        %7182 = vmatpush1.msra.mxu0 0.0
        %7183 = vmatprep.subr.mxu0 0.0
        %7184 = vmatpush1.msra.mxu0 0.0
        %7185 = vmatprep.subr.mxu0 0.0
        %7186 = vmatpush1.msra.mxu0 0.0
        %7187 = vmatprep.subr.mxu0 0.0
        %7188 = vmatpush1.msra.mxu0 0.0
        %7189 = vmatprep.subr.mxu0 0.0
        %7190 = vmatpush1.msra.mxu0 0.0
        %7191 = vmatprep.subr.mxu0 0.0
        %7192 = vmatpush1.msra.mxu0 0.0
        %7193 = vmatprep.subr.mxu0 0.0
        %7194 = vmatpush1.msra.mxu0 0.0
        %7195 = vmatprep.subr.mxu0 0.0
        %7196 = vmatpush1.msra.mxu0 0.0
        %7197 = vmatprep.subr.mxu0 0.0
        %7198 = vmatpush1.msra.mxu0 0.0
        %7199 = vmatprep.subr.mxu0 0.0
        %7200 = vmatpush1.msra.mxu0 %v7171
        %7201 = vmatprep.subr.mxu0 0.0
        %7202 = vmatpush1.msra.mxu0 %v7170
        %7203 = vmatprep.subr.mxu0 0.0
        %7204 = vmatpush1.msra.mxu0 %v7169
        %7205 = vmatprep.subr.mxu0 0.0
        %7206 = vmatpush1.msra.mxu0 %v7168
        %7207 = vmatprep.subr.mxu0 0.0
        %7208 = vmatpush2.msra.mxu0 0.0
        %7209 = vmatprep.subr.mxu0 0.0
        %7210 = vmatpush2.msra.mxu0 0.0
        %7211 = vmatprep.subr.mxu0 0.0
        %7212 = vmatpush2.msra.mxu0 0.0
        %7213 = vmatprep.subr.mxu0 0.0
        %7214 = vmatpush2.msra.mxu0 0.0
        %7215 = vmatprep.subr.mxu0 0.0
        %7216 = vmatpush2.msra.mxu0 0.0
        %7217 = vmatprep.subr.mxu0 0.0
        %7218 = vmatpush2.msra.mxu0 0.0
        %7219 = vmatprep.subr.mxu0 0.0
        %7220 = vmatpush2.msra.mxu0 0.0
        %7221 = vmatprep.subr.mxu0 0.0
        %7222 = vmatpush2.msra.mxu0 0.0
        %7223 = vmatprep.subr.mxu0 0.0
        %7224 = vmatpush2.msra.mxu0 0.0
        %7225 = vmatprep.subr.mxu0 0.0
        %7226 = vmatpush2.msra.mxu0 0.0
        %7227 = vmatprep.subr.mxu0 0.0
        %7228 = vmatpush2.msra.mxu0 0.0
        %7229 = vmatprep.subr.mxu0 0.0
        %7230 = vmatpush2.msra.mxu0 0.0
        %7231 = vmatprep.subr.mxu0 0.0
        %7232 = vmatpush2.msra.mxu0 0.0
        %7233 = vmatprep.subr.mxu0 0.0
        %7234 = vmatpush2.msra.mxu0 0.0
        %7235 = vmatprep.subr.mxu0 0.0
        %7236 = vmatpush2.msra.mxu0 0.0
        %7237 = vmatprep.subr.mxu0 0.0
        %7238 = vmatpush2.msra.mxu0 0.0
        %7239 = vmatprep.mubr.f32.mxu0 0.0
        %7240 = vmatmul.mubr.f32.gmra.mxu0 %v7173
        %v7241 = vpop.f32.mrf.mxu0
        %v7242 = vadd.f32 0.0, %v7241
        %v7243 = vpop.f32.mrf.mxu0
        %7244 = vdwg.mxu0
        %v7245 = vadd.f32 %v7166, %v7242
        %s7246 = scalar_lea.vmem %s16, 352
        %v7247 = vld [vmem:[%s7246] sm:$0xff]
        %v7248 = vld [vmem:[%s7246 + $0x8] sm:$0xff]
        %v7249 = vld [vmem:[%s7246 + $0x10] sm:$0xff]
        %v7250 = vld [vmem:[%s7246 + $0x18] sm:$0xff]
        %v7251 = vrot.slane %v6374, 3
        %v7252 = vsel %vm1011, %v7251, 0
        %7254 = vmatprep.subr.mxu0 0.0
        %7255 = vmatpush1.msra.mxu0 0.0
        %7256 = vmatprep.subr.mxu0 0.0
        %7257 = vmatpush1.msra.mxu0 0.0
        %7258 = vmatprep.subr.mxu0 0.0
        %7259 = vmatpush1.msra.mxu0 0.0
        %7260 = vmatprep.subr.mxu0 0.0
        %7261 = vmatpush1.msra.mxu0 0.0
        %7262 = vmatprep.subr.mxu0 0.0
        %7263 = vmatpush1.msra.mxu0 0.0
        %7264 = vmatprep.subr.mxu0 0.0
        %7265 = vmatpush1.msra.mxu0 0.0
        %7266 = vmatprep.subr.mxu0 0.0
        %7267 = vmatpush1.msra.mxu0 0.0
        %7268 = vmatprep.subr.mxu0 0.0
        %7269 = vmatpush1.msra.mxu0 0.0
        %7270 = vmatprep.subr.mxu0 0.0
        %7271 = vmatpush1.msra.mxu0 0.0
        %7272 = vmatprep.subr.mxu0 0.0
        %7273 = vmatpush1.msra.mxu0 0.0
        %7274 = vmatprep.subr.mxu0 0.0
        %7275 = vmatpush1.msra.mxu0 0.0
        %7276 = vmatprep.subr.mxu0 0.0
        %7277 = vmatpush1.msra.mxu0 0.0
        %7278 = vmatprep.subr.mxu0 0.0
        %7279 = vmatpush1.msra.mxu0 %v7250
        %7280 = vmatprep.subr.mxu0 0.0
        %7281 = vmatpush1.msra.mxu0 %v7249
        %7282 = vmatprep.subr.mxu0 0.0
        %7283 = vmatpush1.msra.mxu0 %v7248
        %7284 = vmatprep.subr.mxu0 0.0
        %7285 = vmatpush1.msra.mxu0 %v7247
        %7286 = vmatprep.subr.mxu0 0.0
        %7287 = vmatpush2.msra.mxu0 0.0
        %7288 = vmatprep.subr.mxu0 0.0
        %7289 = vmatpush2.msra.mxu0 0.0
        %7290 = vmatprep.subr.mxu0 0.0
        %7291 = vmatpush2.msra.mxu0 0.0
        %7292 = vmatprep.subr.mxu0 0.0
        %7293 = vmatpush2.msra.mxu0 0.0
        %7294 = vmatprep.subr.mxu0 0.0
        %7295 = vmatpush2.msra.mxu0 0.0
        %7296 = vmatprep.subr.mxu0 0.0
        %7297 = vmatpush2.msra.mxu0 0.0
        %7298 = vmatprep.subr.mxu0 0.0
        %7299 = vmatpush2.msra.mxu0 0.0
        %7300 = vmatprep.subr.mxu0 0.0
        %7301 = vmatpush2.msra.mxu0 0.0
        %7302 = vmatprep.subr.mxu0 0.0
        %7303 = vmatpush2.msra.mxu0 0.0
        %7304 = vmatprep.subr.mxu0 0.0
        %7305 = vmatpush2.msra.mxu0 0.0
        %7306 = vmatprep.subr.mxu0 0.0
        %7307 = vmatpush2.msra.mxu0 0.0
        %7308 = vmatprep.subr.mxu0 0.0
        %7309 = vmatpush2.msra.mxu0 0.0
        %7310 = vmatprep.subr.mxu0 0.0
        %7311 = vmatpush2.msra.mxu0 0.0
        %7312 = vmatprep.subr.mxu0 0.0
        %7313 = vmatpush2.msra.mxu0 0.0
        %7314 = vmatprep.subr.mxu0 0.0
        %7315 = vmatpush2.msra.mxu0 0.0
        %7316 = vmatprep.subr.mxu0 0.0
        %7317 = vmatpush2.msra.mxu0 0.0
        %7318 = vmatprep.mubr.f32.mxu0 0.0
        %7319 = vmatmul.mubr.f32.gmra.mxu0 %v7252
        %v7320 = vpop.f32.mrf.mxu0
        %v7321 = vadd.f32 0.0, %v7320
        %v7322 = vpop.f32.mrf.mxu0
        %7323 = vdwg.mxu0
        %v7324 = vadd.f32 %v7245, %v7321
        %s7325 = scalar_lea.vmem %s16, 384
        %v7326 = vld [vmem:[%s7325] sm:$0xff]
        %v7327 = vld [vmem:[%s7325 + $0x8] sm:$0xff]
        %v7328 = vld [vmem:[%s7325 + $0x10] sm:$0xff]
        %v7329 = vld [vmem:[%s7325 + $0x18] sm:$0xff]
        %v7330 = vrot.slane %v6374, 4
        %v7331 = vsel %vm1011, %v7330, 0
        %7333 = vmatprep.subr.mxu0 0.0
        %7334 = vmatpush1.msra.mxu0 0.0
        %7335 = vmatprep.subr.mxu0 0.0
        %7336 = vmatpush1.msra.mxu0 0.0
        %7337 = vmatprep.subr.mxu0 0.0
        %7338 = vmatpush1.msra.mxu0 0.0
        %7339 = vmatprep.subr.mxu0 0.0
        %7340 = vmatpush1.msra.mxu0 0.0
        %7341 = vmatprep.subr.mxu0 0.0
        %7342 = vmatpush1.msra.mxu0 0.0
        %7343 = vmatprep.subr.mxu0 0.0
        %7344 = vmatpush1.msra.mxu0 0.0
        %7345 = vmatprep.subr.mxu0 0.0
        %7346 = vmatpush1.msra.mxu0 0.0
        %7347 = vmatprep.subr.mxu0 0.0
        %7348 = vmatpush1.msra.mxu0 0.0
        %7349 = vmatprep.subr.mxu0 0.0
        %7350 = vmatpush1.msra.mxu0 0.0
        %7351 = vmatprep.subr.mxu0 0.0
        %7352 = vmatpush1.msra.mxu0 0.0
        %7353 = vmatprep.subr.mxu0 0.0
        %7354 = vmatpush1.msra.mxu0 0.0
        %7355 = vmatprep.subr.mxu0 0.0
        %7356 = vmatpush1.msra.mxu0 0.0
        %7357 = vmatprep.subr.mxu0 0.0
        %7358 = vmatpush1.msra.mxu0 %v7329
        %7359 = vmatprep.subr.mxu0 0.0
        %7360 = vmatpush1.msra.mxu0 %v7328
        %7361 = vmatprep.subr.mxu0 0.0
        %7362 = vmatpush1.msra.mxu0 %v7327
        %7363 = vmatprep.subr.mxu0 0.0
        %7364 = vmatpush1.msra.mxu0 %v7326
        %7365 = vmatprep.subr.mxu0 0.0
        %7366 = vmatpush2.msra.mxu0 0.0
        %7367 = vmatprep.subr.mxu0 0.0
        %7368 = vmatpush2.msra.mxu0 0.0
        %7369 = vmatprep.subr.mxu0 0.0
        %7370 = vmatpush2.msra.mxu0 0.0
        %7371 = vmatprep.subr.mxu0 0.0
        %7372 = vmatpush2.msra.mxu0 0.0
        %7373 = vmatprep.subr.mxu0 0.0
        %7374 = vmatpush2.msra.mxu0 0.0
        %7375 = vmatprep.subr.mxu0 0.0
        %7376 = vmatpush2.msra.mxu0 0.0
        %7377 = vmatprep.subr.mxu0 0.0
        %7378 = vmatpush2.msra.mxu0 0.0
        %7379 = vmatprep.subr.mxu0 0.0
        %7380 = vmatpush2.msra.mxu0 0.0
        %7381 = vmatprep.subr.mxu0 0.0
        %7382 = vmatpush2.msra.mxu0 0.0
        %7383 = vmatprep.subr.mxu0 0.0
        %7384 = vmatpush2.msra.mxu0 0.0
        %7385 = vmatprep.subr.mxu0 0.0
        %7386 = vmatpush2.msra.mxu0 0.0
        %7387 = vmatprep.subr.mxu0 0.0
        %7388 = vmatpush2.msra.mxu0 0.0
        %7389 = vmatprep.subr.mxu0 0.0
        %7390 = vmatpush2.msra.mxu0 0.0
        %7391 = vmatprep.subr.mxu0 0.0
        %7392 = vmatpush2.msra.mxu0 0.0
        %7393 = vmatprep.subr.mxu0 0.0
        %7394 = vmatpush2.msra.mxu0 0.0
        %7395 = vmatprep.subr.mxu0 0.0
        %7396 = vmatpush2.msra.mxu0 0.0
        %7397 = vmatprep.mubr.f32.mxu0 0.0
        %7398 = vmatmul.mubr.f32.gmra.mxu0 %v7331
        %v7399 = vpop.f32.mrf.mxu0
        %v7400 = vadd.f32 0.0, %v7399
        %v7401 = vpop.f32.mrf.mxu0
        %7402 = vdwg.mxu0
        %v7403 = vadd.f32 %v7324, %v7400
        %s7404 = scalar_lea.vmem %s16, 416
        %v7405 = vld [vmem:[%s7404] sm:$0xff]
        %v7406 = vld [vmem:[%s7404 + $0x8] sm:$0xff]
        %v7407 = vld [vmem:[%s7404 + $0x10] sm:$0xff]
        %v7408 = vld [vmem:[%s7404 + $0x18] sm:$0xff]
        %v7409 = vrot.slane %v6374, 5
        %v7410 = vsel %vm1011, %v7409, 0
        %7412 = vmatprep.subr.mxu0 0.0
        %7413 = vmatpush1.msra.mxu0 0.0
        %7414 = vmatprep.subr.mxu0 0.0
        %7415 = vmatpush1.msra.mxu0 0.0
        %7416 = vmatprep.subr.mxu0 0.0
        %7417 = vmatpush1.msra.mxu0 0.0
        %7418 = vmatprep.subr.mxu0 0.0
        %7419 = vmatpush1.msra.mxu0 0.0
        %7420 = vmatprep.subr.mxu0 0.0
        %7421 = vmatpush1.msra.mxu0 0.0
        %7422 = vmatprep.subr.mxu0 0.0
        %7423 = vmatpush1.msra.mxu0 0.0
        %7424 = vmatprep.subr.mxu0 0.0
        %7425 = vmatpush1.msra.mxu0 0.0
        %7426 = vmatprep.subr.mxu0 0.0
        %7427 = vmatpush1.msra.mxu0 0.0
        %7428 = vmatprep.subr.mxu0 0.0
        %7429 = vmatpush1.msra.mxu0 0.0
        %7430 = vmatprep.subr.mxu0 0.0
        %7431 = vmatpush1.msra.mxu0 0.0
        %7432 = vmatprep.subr.mxu0 0.0
        %7433 = vmatpush1.msra.mxu0 0.0
        %7434 = vmatprep.subr.mxu0 0.0
        %7435 = vmatpush1.msra.mxu0 0.0
        %7436 = vmatprep.subr.mxu0 0.0
        %7437 = vmatpush1.msra.mxu0 %v7408
        %7438 = vmatprep.subr.mxu0 0.0
        %7439 = vmatpush1.msra.mxu0 %v7407
        %7440 = vmatprep.subr.mxu0 0.0
        %7441 = vmatpush1.msra.mxu0 %v7406
        %7442 = vmatprep.subr.mxu0 0.0
        %7443 = vmatpush1.msra.mxu0 %v7405
        %7444 = vmatprep.subr.mxu0 0.0
        %7445 = vmatpush2.msra.mxu0 0.0
        %7446 = vmatprep.subr.mxu0 0.0
        %7447 = vmatpush2.msra.mxu0 0.0
        %7448 = vmatprep.subr.mxu0 0.0
        %7449 = vmatpush2.msra.mxu0 0.0
        %7450 = vmatprep.subr.mxu0 0.0
        %7451 = vmatpush2.msra.mxu0 0.0
        %7452 = vmatprep.subr.mxu0 0.0
        %7453 = vmatpush2.msra.mxu0 0.0
        %7454 = vmatprep.subr.mxu0 0.0
        %7455 = vmatpush2.msra.mxu0 0.0
        %7456 = vmatprep.subr.mxu0 0.0
        %7457 = vmatpush2.msra.mxu0 0.0
        %7458 = vmatprep.subr.mxu0 0.0
        %7459 = vmatpush2.msra.mxu0 0.0
        %7460 = vmatprep.subr.mxu0 0.0
        %7461 = vmatpush2.msra.mxu0 0.0
        %7462 = vmatprep.subr.mxu0 0.0
        %7463 = vmatpush2.msra.mxu0 0.0
        %7464 = vmatprep.subr.mxu0 0.0
        %7465 = vmatpush2.msra.mxu0 0.0
        %7466 = vmatprep.subr.mxu0 0.0
        %7467 = vmatpush2.msra.mxu0 0.0
        %7468 = vmatprep.subr.mxu0 0.0
        %7469 = vmatpush2.msra.mxu0 0.0
        %7470 = vmatprep.subr.mxu0 0.0
        %7471 = vmatpush2.msra.mxu0 0.0
        %7472 = vmatprep.subr.mxu0 0.0
        %7473 = vmatpush2.msra.mxu0 0.0
        %7474 = vmatprep.subr.mxu0 0.0
        %7475 = vmatpush2.msra.mxu0 0.0
        %7476 = vmatprep.mubr.f32.mxu0 0.0
        %7477 = vmatmul.mubr.f32.gmra.mxu0 %v7410
        %v7478 = vpop.f32.mrf.mxu0
        %v7479 = vadd.f32 0.0, %v7478
        %v7480 = vpop.f32.mrf.mxu0
        %7481 = vdwg.mxu0
        %v7482 = vadd.f32 %v7403, %v7479
        %s7483 = scalar_lea.vmem %s16, 448
        %v7484 = vld [vmem:[%s7483] sm:$0xff]
        %v7485 = vld [vmem:[%s7483 + $0x8] sm:$0xff]
        %v7486 = vld [vmem:[%s7483 + $0x10] sm:$0xff]
        %v7487 = vld [vmem:[%s7483 + $0x18] sm:$0xff]
        %v7488 = vrot.slane %v6374, 6
        %v7489 = vsel %vm1011, %v7488, 0
        %7491 = vmatprep.subr.mxu0 0.0
        %7492 = vmatpush1.msra.mxu0 0.0
        %7493 = vmatprep.subr.mxu0 0.0
        %7494 = vmatpush1.msra.mxu0 0.0
        %7495 = vmatprep.subr.mxu0 0.0
        %7496 = vmatpush1.msra.mxu0 0.0
        %7497 = vmatprep.subr.mxu0 0.0
        %7498 = vmatpush1.msra.mxu0 0.0
        %7499 = vmatprep.subr.mxu0 0.0
        %7500 = vmatpush1.msra.mxu0 0.0
        %7501 = vmatprep.subr.mxu0 0.0
        %7502 = vmatpush1.msra.mxu0 0.0
        %7503 = vmatprep.subr.mxu0 0.0
        %7504 = vmatpush1.msra.mxu0 0.0
        %7505 = vmatprep.subr.mxu0 0.0
        %7506 = vmatpush1.msra.mxu0 0.0
        %7507 = vmatprep.subr.mxu0 0.0
        %7508 = vmatpush1.msra.mxu0 0.0
        %7509 = vmatprep.subr.mxu0 0.0
        %7510 = vmatpush1.msra.mxu0 0.0
        %7511 = vmatprep.subr.mxu0 0.0
        %7512 = vmatpush1.msra.mxu0 0.0
        %7513 = vmatprep.subr.mxu0 0.0
        %7514 = vmatpush1.msra.mxu0 0.0
        %7515 = vmatprep.subr.mxu0 0.0
        %7516 = vmatpush1.msra.mxu0 %v7487
        %7517 = vmatprep.subr.mxu0 0.0
        %7518 = vmatpush1.msra.mxu0 %v7486
        %7519 = vmatprep.subr.mxu0 0.0
        %7520 = vmatpush1.msra.mxu0 %v7485
        %7521 = vmatprep.subr.mxu0 0.0
        %7522 = vmatpush1.msra.mxu0 %v7484
        %7523 = vmatprep.subr.mxu0 0.0
        %7524 = vmatpush2.msra.mxu0 0.0
        %7525 = vmatprep.subr.mxu0 0.0
        %7526 = vmatpush2.msra.mxu0 0.0
        %7527 = vmatprep.subr.mxu0 0.0
        %7528 = vmatpush2.msra.mxu0 0.0
        %7529 = vmatprep.subr.mxu0 0.0
        %7530 = vmatpush2.msra.mxu0 0.0
        %7531 = vmatprep.subr.mxu0 0.0
        %7532 = vmatpush2.msra.mxu0 0.0
        %7533 = vmatprep.subr.mxu0 0.0
        %7534 = vmatpush2.msra.mxu0 0.0
        %7535 = vmatprep.subr.mxu0 0.0
        %7536 = vmatpush2.msra.mxu0 0.0
        %7537 = vmatprep.subr.mxu0 0.0
        %7538 = vmatpush2.msra.mxu0 0.0
        %7539 = vmatprep.subr.mxu0 0.0
        %7540 = vmatpush2.msra.mxu0 0.0
        %7541 = vmatprep.subr.mxu0 0.0
        %7542 = vmatpush2.msra.mxu0 0.0
        %7543 = vmatprep.subr.mxu0 0.0
        %7544 = vmatpush2.msra.mxu0 0.0
        %7545 = vmatprep.subr.mxu0 0.0
        %7546 = vmatpush2.msra.mxu0 0.0
        %7547 = vmatprep.subr.mxu0 0.0
        %7548 = vmatpush2.msra.mxu0 0.0
        %7549 = vmatprep.subr.mxu0 0.0
        %7550 = vmatpush2.msra.mxu0 0.0
        %7551 = vmatprep.subr.mxu0 0.0
        %7552 = vmatpush2.msra.mxu0 0.0
        %7553 = vmatprep.subr.mxu0 0.0
        %7554 = vmatpush2.msra.mxu0 0.0
        %7555 = vmatprep.mubr.f32.mxu0 0.0
        %7556 = vmatmul.mubr.f32.gmra.mxu0 %v7489
        %v7557 = vpop.f32.mrf.mxu0
        %v7558 = vadd.f32 0.0, %v7557
        %v7559 = vpop.f32.mrf.mxu0
        %7560 = vdwg.mxu0
        %v7561 = vadd.f32 %v7482, %v7558
        %s7562 = scalar_lea.vmem %s16, 480
        %v7563 = vld [vmem:[%s7562] sm:$0xff]
        %v7564 = vld [vmem:[%s7562 + $0x8] sm:$0xff]
        %v7565 = vld [vmem:[%s7562 + $0x10] sm:$0xff]
        %v7566 = vld [vmem:[%s7562 + $0x18] sm:$0xff]
        %v7567 = vrot.slane %v6374, 7
        %v7568 = vsel %vm1011, %v7567, 0
        %7570 = vmatprep.subr.mxu0 0.0
        %7571 = vmatpush1.msra.mxu0 0.0
        %7572 = vmatprep.subr.mxu0 0.0
        %7573 = vmatpush1.msra.mxu0 0.0
        %7574 = vmatprep.subr.mxu0 0.0
        %7575 = vmatpush1.msra.mxu0 0.0
        %7576 = vmatprep.subr.mxu0 0.0
        %7577 = vmatpush1.msra.mxu0 0.0
        %7578 = vmatprep.subr.mxu0 0.0
        %7579 = vmatpush1.msra.mxu0 0.0
        %7580 = vmatprep.subr.mxu0 0.0
        %7581 = vmatpush1.msra.mxu0 0.0
        %7582 = vmatprep.subr.mxu0 0.0
        %7583 = vmatpush1.msra.mxu0 0.0
        %7584 = vmatprep.subr.mxu0 0.0
        %7585 = vmatpush1.msra.mxu0 0.0
        %7586 = vmatprep.subr.mxu0 0.0
        %7587 = vmatpush1.msra.mxu0 0.0
        %7588 = vmatprep.subr.mxu0 0.0
        %7589 = vmatpush1.msra.mxu0 0.0
        %7590 = vmatprep.subr.mxu0 0.0
        %7591 = vmatpush1.msra.mxu0 0.0
        %7592 = vmatprep.subr.mxu0 0.0
        %7593 = vmatpush1.msra.mxu0 0.0
        %7594 = vmatprep.subr.mxu0 0.0
        %7595 = vmatpush1.msra.mxu0 %v7566
        %7596 = vmatprep.subr.mxu0 0.0
        %7597 = vmatpush1.msra.mxu0 %v7565
        %7598 = vmatprep.subr.mxu0 0.0
        %7599 = vmatpush1.msra.mxu0 %v7564
        %7600 = vmatprep.subr.mxu0 0.0
        %7601 = vmatpush1.msra.mxu0 %v7563
        %7602 = vmatprep.subr.mxu0 0.0
        %7603 = vmatpush2.msra.mxu0 0.0
        %7604 = vmatprep.subr.mxu0 0.0
        %7605 = vmatpush2.msra.mxu0 0.0
        %7606 = vmatprep.subr.mxu0 0.0
        %7607 = vmatpush2.msra.mxu0 0.0
        %7608 = vmatprep.subr.mxu0 0.0
        %7609 = vmatpush2.msra.mxu0 0.0
        %7610 = vmatprep.subr.mxu0 0.0
        %7611 = vmatpush2.msra.mxu0 0.0
        %7612 = vmatprep.subr.mxu0 0.0
        %7613 = vmatpush2.msra.mxu0 0.0
        %7614 = vmatprep.subr.mxu0 0.0
        %7615 = vmatpush2.msra.mxu0 0.0
        %7616 = vmatprep.subr.mxu0 0.0
        %7617 = vmatpush2.msra.mxu0 0.0
        %7618 = vmatprep.subr.mxu0 0.0
        %7619 = vmatpush2.msra.mxu0 0.0
        %7620 = vmatprep.subr.mxu0 0.0
        %7621 = vmatpush2.msra.mxu0 0.0
        %7622 = vmatprep.subr.mxu0 0.0
        %7623 = vmatpush2.msra.mxu0 0.0
        %7624 = vmatprep.subr.mxu0 0.0
        %7625 = vmatpush2.msra.mxu0 0.0
        %7626 = vmatprep.subr.mxu0 0.0
        %7627 = vmatpush2.msra.mxu0 0.0
        %7628 = vmatprep.subr.mxu0 0.0
        %7629 = vmatpush2.msra.mxu0 0.0
        %7630 = vmatprep.subr.mxu0 0.0
        %7631 = vmatpush2.msra.mxu0 0.0
        %7632 = vmatprep.subr.mxu0 0.0
        %7633 = vmatpush2.msra.mxu0 0.0
        %7634 = vmatprep.mubr.f32.mxu0 0.0
        %7635 = vmatmul.mubr.f32.gmra.mxu0 %v7568
        %v7636 = vpop.f32.mrf.mxu0
        %v7637 = vadd.f32 0.0, %v7636
        %v7638 = vpop.f32.mrf.mxu0
        %7639 = vdwg.mxu0
        %v7640 = vadd.f32 %v7561, %v7637
        %vm7641 = vcmask 90112
        %7642 = vst.msk [vmem:[%s991] sm:$0x1] %vm7641, %v7640
        %s7643 = sand.u32 %s577, 1
        %s7644 = scalar_lea.sflag [#allocation4], %s7643
        %s7645 = sand.u32 %s577, 1
        %s7646 = scalar_lea.vmem [#allocation26], %s7645
        // Predicated region
        $region177: #{tpu_custom_call.1} parent=115 // pred_check
          %p7647 = pneg %p587
        $region178: #{tpu_custom_call.1} parent=115 // pred_check_branch
          %7649 = sbr.rel (%p7647) target = $region180
        $region179: #{tpu_custom_call.1} parent=115 // pred_region
          %s7651 = ssub.s32 16, 16
          %7652 = vsyncadd %s7644, %s7651
          %s7653 = smul.addr %s50, 16
          %s7654 = scalar_lea.hbm %s24, %s7653
          %s7656 = sshll.u32 %s7646, 4
          %s7657 = int_to_ptr.vmem [resolvable:$true] %s7656
          %7659 = dma.vmem_to_hbm [thread:$0]  %s7657, 16, %s7654, %s7644
        $region180: #{tpu_custom_call.1} parent=115 // pred_fallthru
          _
      $region116: #{tpu_custom_call.1} parent=5 // pred_fallthru
        _
      %p7660 = scmp.le.s32.totalorder 2, %s45
      // Predicated region
      $region181: #{tpu_custom_call.1} parent=5 // pred_check
        %p7661 = pneg %p7660
      $region182: #{tpu_custom_call.1} parent=5 // pred_check_branch
        %7663 = sbr.rel (%p7661) target = $region184
      $region183: #{tpu_custom_call.1} parent=5 // pred_region
        %s7664 = ssub.s32 %s45, 2
        // Predicated region
        $region185: #{tpu_custom_call.1} parent=183 // pred_check
          %p7665 = pneg %p593
        $region186: #{tpu_custom_call.1} parent=183 // pred_check_branch
          %7667 = sbr.rel (%p7665) target = $region188
        $region187: #{tpu_custom_call.1} parent=183 // pred_region
          %s7668 = sand.u32 %s578, 1
          %s7669 = scalar_lea.sflag [#allocation4], %s7668
          %s7670 = sand.u32 %s578, 1
          %s7671 = scalar_lea.vmem [#allocation26], %s7670
          %7672 = dma.done %s7669, 16
        $region188: #{tpu_custom_call.1} parent=183 // pred_fallthru
          _
      $region184: #{tpu_custom_call.1} parent=5 // pred_fallthru
        _
    $region6: #{tpu_custom_call.1} parent=1 // loop_footer
      %s49 = sadd.s32 1, %s45
    $region7: #{tpu_custom_call.1} parent=1 // loop_footer_branch
      %44 = sbr.rel target = $region3
    $region8: #{tpu_custom_call.1} parent=1 // loop_exit
      _
    %7673 = vsyncpa [#allocation3], 1
    %s7674 = scalar_lea.sflag [#allocation3], 1
    %7675 = vsyncpa %s7674, 1
    %7676 = vsyncpa [#allocation6], 1
    %s7677 = scalar_lea.sflag [#allocation6], 1
    %7678 = vsyncpa %s7677, 1
    %7679 = vsyncpa [#allocation9], 1
    %7680 = vsyncpa [#allocation12], 1
    %7681 = vsyncpa [#allocation15], 1
    %7682 = vsyncpa [#allocation18], 1
    %7683 = vsyncpa [#allocation21], 1
    %7684 = vsyncpa [#allocation24], 1
    %7685 = vsyncpa [#allocation4], 1
    %s7686 = scalar_lea.sflag [#allocation4], 1
    %7687 = vsyncpa %s7686, 1

</llo_original>
